<compile_context>
chip_gen: v5e
topology: v5e:2x2
jax: 0.10.0
libtpu: 0.0.40
codegen_flags: <defaults>
</compile_context>

<pallas_src>
import functools

import jax
import jax.numpy as jnp
from jax.experimental import pallas as pl
from jax.experimental.pallas import tpu as pltpu


class Config:
    seq_len = 16
    pred_len = 8
    patch_len = 4
    stride = 4
    d_model = 32
    n_heads = 4
    d_ff = 64
    e_layers = 2
    enc_in = 4
    use_norm = True
    activation = "relu"


CFG = Config()
CFG.patch_num = (CFG.seq_len - CFG.patch_len) // CFG.stride + 1  # Identity branch


# ---------------------------------------------------------------------------
# Fused forward kernel (one grid step == BB batch elements)
# ---------------------------------------------------------------------------
def _layernorm(z, g, b, eps=1e-5):
    mu = jnp.mean(z, axis=-1, keepdims=True)
    zc = z - mu
    var = jnp.mean(zc * zc, axis=-1, keepdims=True)
    return zc * jax.lax.rsqrt(var + eps) * g + b


def _fused_forward_kernel(
    # inputs -----------------------------------------------------------------
    x_ref,                       # [1, BB*T, P]  patch tokens; row = b*T + n*C + c
    mask_ref,                    # [T, T]   additive same-channel mask (0 / -1e30)
    chsel_ref,                   # [T, C]   1 where token t belongs to channel c
    pmask_ref,                   # [T, N]   1 where token t belongs to patch n
    w_emb_ref,                   # [P, D]   value_embedding (bias=False)
    wqkv_ref, bqkv_ref,          # [E, D, 3D], [E, 1, 3D]   (Q part pre-scaled)
    wo_ref, bo_ref,              # [E, D, D], [E, 1, D]
    w1_ref, b1_ref,              # [E, D, F], [E, 1, F]
    w2_ref, b2_ref,              # [E, F, D], [E, 1, D]
    lnp_ref,                     # [E, 4, D]  rows: ln1_g, ln1_b, ln2_g, ln2_b
    wh_ref, bh_ref,              # [N, D, pred], [pred, 1]
    # output -----------------------------------------------------------------
    o_ref,                       # [1, BB, pred*C]
    *,
    n_layers, n_heads, d_model, n_patch, n_chan, bb,
    pred_len, inv_seq_len, use_norm, activation,
):
    f32 = jnp.float32
    T = n_patch * n_chan
    M = bb * T
    D = d_model
    Dh = D // n_heads

    x_flat = x_ref[0].astype(f32)                        # [M, P]
    chsel = chsel_ref[...]                               # [T, C]

    mu_c = std_c = None
    if use_norm:
        # Non-stationary normalization: per (batch, channel) mean/std over time.
        x3 = x_flat.reshape(bb, T, -1)                   # [BB, T, P]
        row_sum = jnp.sum(x3, axis=-1)                   # [BB, T]
        mu_c = jnp.dot(row_sum, chsel,
                       preferred_element_type=f32) * inv_seq_len        # [BB, C]
        mu_t = jnp.einsum('bc,tc->bt', mu_c, chsel,
                          preferred_element_type=f32)                   # [BB, T]
        xc = x3 - mu_t[:, :, None]
        sq_sum = jnp.sum(xc * xc, axis=-1)               # [BB, T]
        var_c = jnp.dot(sq_sum, chsel,
                        preferred_element_type=f32) * inv_seq_len       # [BB, C]
        std_c = jnp.sqrt(var_c + 1e-5)                   # biased var (two-pass)
        std_t = jnp.einsum('bc,tc->bt', std_c, chsel,
                           preferred_element_type=f32)                  # [BB, T]
        x_flat = (xc / std_t[:, :, None]).reshape(M, -1)

    # PatchEmbedding: Linear(patch_len -> d_model), no bias, no pos-embed.
    x = jnp.dot(x_flat, w_emb_ref[...], preferred_element_type=f32)     # [M, D]

    mask = mask_ref[...]                                 # [T, T]

    # Encoder: e_layers x [MHSA (per (batch, channel) sequences) + FFN + LN]
    for l in range(n_layers):
        lnp = lnp_ref[l]                                 # [4, D]

        qkv = jnp.dot(x, wqkv_ref[l],
                      preferred_element_type=f32) + bqkv_ref[l]         # [M, 3D]
        heads = []
        for h in range(n_heads):
            q = qkv[:, h * Dh:(h + 1) * Dh].reshape(bb, T, Dh)
            k = qkv[:, D + h * Dh:D + (h + 1) * Dh].reshape(bb, T, Dh)
            v = qkv[:, 2 * D + h * Dh:2 * D + (h + 1) * Dh].reshape(bb, T, Dh)
            s = jnp.einsum('bqd,bkd->bqk', q, k,
                           preferred_element_type=f32) + mask           # [BB, T, T]
            m = jnp.max(s, axis=-1, keepdims=True)
            p = jnp.exp(s - m)
            p = p * pl.reciprocal(jnp.sum(p, axis=-1, keepdims=True), approx=True)
            o_h = jnp.einsum('bqk,bkd->bqd', p, v,
                             preferred_element_type=f32)                # [BB, T, Dh]
            heads.append(o_h.reshape(M, Dh))
        attn = jnp.dot(jnp.concatenate(heads, axis=-1), wo_ref[l],
                       preferred_element_type=f32) + bo_ref[l]          # [M, D]

        x = _layernorm(x + attn, lnp[0:1, :], lnp[1:2, :])              # norm1

        y = jnp.dot(x, w1_ref[l], preferred_element_type=f32) + b1_ref[l]
        if activation == "relu":
            y = jnp.maximum(y, 0.0)
        else:
            y = jax.nn.gelu(y)
        y = jnp.dot(y, w2_ref[l], preferred_element_type=f32) + b2_ref[l]

        x = _layernorm(x + y, lnp[2:3, :], lnp[3:4, :])                 # norm2

    # Flatten_Head: out[b, :, c] = sum_n X[b, n, c, :] @ W_head[n] + b_head
    pmask = pmask_ref[...]                               # [T, N]
    contrib = jnp.zeros((bb, T, pred_len), f32)
    for n in range(n_patch):
        pn = jnp.dot(x, wh_ref[n], preferred_element_type=f32)          # [M, pred]
        contrib = contrib + pn.reshape(bb, T, pred_len) * pmask[None, :, n:n + 1]
    out = jnp.einsum('btp,tc->bpc', contrib, chsel,
                     preferred_element_type=f32)                        # [BB, pred, C]
    out = out + bh_ref[...][None, :, :]

    if use_norm:
        out = out * std_c[:, None, :] + mu_c[:, None, :]

    o_ref[0] = out.reshape(bb, pred_len * n_chan).astype(o_ref.dtype)


# ---------------------------------------------------------------------------
# Parameters (deterministic synthetic init) + packing into kernel layouts
# ---------------------------------------------------------------------------
def init_params(key, cfg):
    D, F, P, N = cfg.d_model, cfg.d_ff, cfg.patch_len, cfg.patch_num
    H, E, pred = cfg.n_heads, cfg.e_layers, cfg.pred_len
    Dh = D // H
    scale = 1.0 / (Dh ** 0.5)

    def nrm(k, shape, s=0.05):
        return s * jax.random.normal(k, shape, dtype=jnp.float32)

    keys = iter(jax.random.split(key, 3 + 12 * E))

    w_emb = nrm(next(keys), (P, D))                     # value_embedding (bias=False)
    w_head = nrm(next(keys), (D * N, pred))
    b_head = nrm(next(keys), (pred,))

    wqkv, bqkv, wo, bo, w1, b1, w2, b2, lnp = ([] for _ in range(9))
    for _ in range(E):
        wq = nrm(next(keys), (D, D)); bq = nrm(next(keys), (D,))
        wk = nrm(next(keys), (D, D)); bk = nrm(next(keys), (D,))
        wv = nrm(next(keys), (D, D)); bv = nrm(next(keys), (D,))
        wol = nrm(next(keys), (D, D)); bol = nrm(next(keys), (D,))
        w1l = nrm(next(keys), (D, F)); b1l = nrm(next(keys), (F,))
        w2l = nrm(next(keys), (F, D)); b2l = nrm(next(keys), (D,))
        # fused QKV, with the 1/sqrt(Dh) attention scale folded into Q
        wqkv.append(jnp.concatenate([wq * scale, wk, wv], axis=1))       # [D, 3D]
        bqkv.append(jnp.concatenate([bq * scale, bk, bv]).reshape(1, 3 * D))
        wo.append(wol); bo.append(bol.reshape(1, D))
        w1.append(w1l); b1.append(b1l.reshape(1, F))
        w2.append(w2l); b2.append(b2l.reshape(1, D))
        lnp.append(jnp.stack([jnp.ones((D,), jnp.float32),
                              jnp.zeros((D,), jnp.float32),
                              jnp.ones((D,), jnp.float32),
                              jnp.zeros((D,), jnp.float32)], axis=0))     # [4, D]

    return {
        "w_emb": w_emb,                                   # [P, D]
        "wqkv": jnp.stack(wqkv), "bqkv": jnp.stack(bqkv), # [E, D, 3D], [E, 1, 3D]
        "wo": jnp.stack(wo), "bo": jnp.stack(bo),         # [E, D, D],  [E, 1, D]
        "w1": jnp.stack(w1), "b1": jnp.stack(b1),         # [E, D, F],  [E, 1, F]
        "w2": jnp.stack(w2), "b2": jnp.stack(b2),         # [E, F, D],  [E, 1, D]
        "lnp": jnp.stack(lnp),                            # [E, 4, D]
        "w_head": w_head.reshape(N, D, pred),             # [N, D, pred]
        "b_head": b_head.reshape(pred, 1),                # [pred, 1]
    }


# ---------------------------------------------------------------------------
# Batch-block choice: target M ~= 256 rows, but keep >= 2 grid steps
# (two v7x TensorCores) whenever the batch allows.
# ---------------------------------------------------------------------------
def _choose_block_batch(B, T, target_rows=256):
    bb = max(1, target_rows // T)
    if B >= 2:
        bb = min(bb, max(1, B // 2))
    return min(bb, B)


# ---------------------------------------------------------------------------
# Model forward: one fused pallas_call + trivial host-side layout ops
# ---------------------------------------------------------------------------
def model_forward(params, x_enc, x_mark_enc=None, x_dec=None, x_mark_dec=None, cfg=CFG):
    B, L, C = x_enc.shape
    D, H, F = cfg.d_model, cfg.n_heads, cfg.d_ff
    N, P = cfg.patch_num, cfg.patch_len
    E, pred = cfg.e_layers, cfg.pred_len
    T = N * C

    bb = _choose_block_batch(B, T)
    grid = (B + bb - 1) // bb
    B_pad = grid * bb

    # stride == patch_len and seq_len % stride == 0 -> patching is a pure reshape
    # (no gather). Token row of a batch element: r = n*C + c.
    x_tok = (x_enc.astype(jnp.float32)
             .reshape(B, N, P, C)
             .transpose(0, 1, 3, 2)
             .reshape(B, T, P))
    if B_pad != B:
        x_tok = jnp.concatenate(
            [x_tok, jnp.zeros((B_pad - B, T, P), jnp.float32)], axis=0)
    x_in = x_tok.reshape(grid, bb * T, P)

    # Precomputed structure matrices (compile-time constants).
    tok = jnp.arange(T)
    chan = tok % C
    patch = tok // C
    mask = jnp.where(chan[:, None] == chan[None, :], 0.0, -1e30).astype(jnp.float32)
    chsel = (chan[:, None] == jnp.arange(C)[None, :]).astype(jnp.float32)   # [T, C]
    pmask = (patch[:, None] == jnp.arange(N)[None, :]).astype(jnp.float32)  # [T, N]

    kernel = functools.partial(
        _fused_forward_kernel,
        n_layers=E, n_heads=H, d_model=D, n_patch=N, n_chan=C, bb=bb,
        pred_len=pred, inv_seq_len=1.0 / L,
        use_norm=cfg.use_norm, activation=cfg.activation)

    weight_arrays = [
        mask, chsel, pmask,
        params["w_emb"],
        params["wqkv"], params["bqkv"],
        params["wo"], params["bo"],
        params["w1"], params["b1"], params["w2"], params["b2"],
        params["lnp"],
        params["w_head"], params["b_head"],
    ]

    def full_spec(a):
        return pl.BlockSpec(a.shape, lambda b: (0,) * a.ndim)

    out = pl.pallas_call(
        kernel,
        out_shape=jax.ShapeDtypeStruct((grid, bb, pred * C), jnp.float32),
        grid=(grid,),
        in_specs=[pl.BlockSpec((1, bb * T, P), lambda b: (b, 0, 0))]
                 + [full_spec(a) for a in weight_arrays],
        out_specs=pl.BlockSpec((1, bb, pred * C), lambda b: (b, 0, 0)),
        compiler_params=pltpu.CompilerParams(
            dimension_semantics=("parallel",)),   # megacore over grid steps on v7x
    )(x_in, *weight_arrays)

    dec_out = out.reshape(B_pad, pred, C)[:B]     # [B, pred_len, C]
    attns = [None] * E                            # output_attention=False
    return dec_out, attns


if __name__ == "__main__":
    key = jax.random.PRNGKey(0)
    pkey, xkey = jax.random.split(key)
    params = init_params(pkey, CFG)

    B = 8   # exercises batch-blocking: bb=4, grid=2 (both TCs busy on v7x)
    x_enc = jax.random.normal(xkey, (B, CFG.seq_len, CFG.enc_in), dtype=jnp.float32)
    x_mark_enc = jnp.zeros((B, CFG.seq_len, 4), jnp.float32)        # unused by forward
    x_dec = jnp.zeros((B, CFG.pred_len, CFG.enc_in), jnp.float32)   # unused
    x_mark_dec = jnp.zeros((B, CFG.pred_len, 4), jnp.float32)       # unused

    @jax.jit
    def fwd(p, xe, xme, xd, xmd):
        return model_forward(p, xe, xme, xd, xmd, cfg=CFG)

    dec_out, attns = fwd(params, x_enc, x_mark_enc, x_dec, x_mark_dec)
    dec_out = jax.block_until_ready(dec_out)
    assert dec_out.shape == (B, CFG.pred_len, CFG.enc_in)
    assert bool(jnp.all(jnp.isfinite(dec_out)))
    print("KERNEL_OK")
</pallas_src>

<mosaic_0001>
module attributes {stable_mosaic.version = 11 : i64} {
  func.func @_fused_forward_kernel(%arg0: i32, %arg1: memref<1x64x4xf32, #tpu.memory_space<vmem>>, %arg2: memref<16x16xf32, #tpu.memory_space<vmem>>, %arg3: memref<16x4xf32, #tpu.memory_space<vmem>>, %arg4: memref<16x4xf32, #tpu.memory_space<vmem>>, %arg5: memref<4x32xf32, #tpu.memory_space<vmem>>, %arg6: memref<2x32x96xf32, #tpu.memory_space<vmem>>, %arg7: memref<2x1x96xf32, #tpu.memory_space<vmem>>, %arg8: memref<2x32x32xf32, #tpu.memory_space<vmem>>, %arg9: memref<2x1x32xf32, #tpu.memory_space<vmem>>, %arg10: memref<2x32x64xf32, #tpu.memory_space<vmem>>, %arg11: memref<2x1x64xf32, #tpu.memory_space<vmem>>, %arg12: memref<2x64x32xf32, #tpu.memory_space<vmem>>, %arg13: memref<2x1x32xf32, #tpu.memory_space<vmem>>, %arg14: memref<2x4x32xf32, #tpu.memory_space<vmem>>, %arg15: memref<4x32x8xf32, #tpu.memory_space<vmem>>, %arg16: memref<8x1xf32, #tpu.memory_space<vmem>>, %arg17: memref<1x4x32xf32, #tpu.memory_space<vmem>>) attributes {dimension_semantics = [#tpu.dimension_semantics<parallel>], iteration_bounds = array<i64: 2>, scalar_prefetch = 0 : i64, scratch_operands = 0 : i64, tpu.core_type = #tpu.core_type<tc>, window_params = [{transform_indices = @transform_0, window_bounds = array<i64: 1, 64, 4>}, {pipeline_mode = #tpu.pipeline_mode<synchronous>, transform_indices = @transform_1, window_bounds = array<i64: 16, 16>}, {pipeline_mode = #tpu.pipeline_mode<synchronous>, transform_indices = @transform_2, window_bounds = array<i64: 16, 4>}, {pipeline_mode = #tpu.pipeline_mode<synchronous>, transform_indices = @transform_3, window_bounds = array<i64: 16, 4>}, {pipeline_mode = #tpu.pipeline_mode<synchronous>, transform_indices = @transform_4, window_bounds = array<i64: 4, 32>}, {pipeline_mode = #tpu.pipeline_mode<synchronous>, transform_indices = @transform_5, window_bounds = array<i64: 2, 32, 96>}, {pipeline_mode = #tpu.pipeline_mode<synchronous>, transform_indices = @transform_6, window_bounds = array<i64: 2, 1, 96>}, {pipeline_mode = #tpu.pipeline_mode<synchronous>, transform_indices = @transform_7, window_bounds = array<i64: 2, 32, 32>}, {pipeline_mode = #tpu.pipeline_mode<synchronous>, transform_indices = @transform_8, window_bounds = array<i64: 2, 1, 32>}, {pipeline_mode = #tpu.pipeline_mode<synchronous>, transform_indices = @transform_9, window_bounds = array<i64: 2, 32, 64>}, {pipeline_mode = #tpu.pipeline_mode<synchronous>, transform_indices = @transform_10, window_bounds = array<i64: 2, 1, 64>}, {pipeline_mode = #tpu.pipeline_mode<synchronous>, transform_indices = @transform_11, window_bounds = array<i64: 2, 64, 32>}, {pipeline_mode = #tpu.pipeline_mode<synchronous>, transform_indices = @transform_12, window_bounds = array<i64: 2, 1, 32>}, {pipeline_mode = #tpu.pipeline_mode<synchronous>, transform_indices = @transform_13, window_bounds = array<i64: 2, 4, 32>}, {pipeline_mode = #tpu.pipeline_mode<synchronous>, transform_indices = @transform_14, window_bounds = array<i64: 4, 32, 8>}, {pipeline_mode = #tpu.pipeline_mode<synchronous>, transform_indices = @transform_15, window_bounds = array<i64: 8, 1>}, {transform_indices = @transform_16, window_bounds = array<i64: 1, 4, 32>}]} {
    %c0 = arith.constant 0 : index
    %c0_0 = arith.constant 0 : index
    %c0_1 = arith.constant 0 : index
    %0 = vector.load %arg1[%c0, %c0_0, %c0_1] : memref<1x64x4xf32, #tpu.memory_space<vmem>>, vector<1x64x4xf32>
    %1 = vector.shape_cast %0 : vector<1x64x4xf32> to vector<64x4xf32>
    %c0_2 = arith.constant 0 : index
    %c0_3 = arith.constant 0 : index
    %2 = vector.load %arg3[%c0_2, %c0_3] : memref<16x4xf32, #tpu.memory_space<vmem>>, vector<16x4xf32>
    %3 = vector.shape_cast %1 : vector<64x4xf32> to vector<4x16x4xf32>
    %cst = arith.constant dense<0.000000e+00> : vector<4x16xf32>
    %4 = vector.multi_reduction <add>, %3, %cst [2] : vector<4x16x4xf32> to vector<4x16xf32>
    %cst_4 = arith.constant dense<0.000000e+00> : vector<4x4xf32>
    %5 = tpu.matmul %4, %2, %cst_4 {dimension_numbers = #tpu.dot_dimension_numbers<[1], [0], [0], [1], [0, 0, 1, 1], [], []>} : vector<4x16xf32>, vector<16x4xf32>, vector<4x4xf32> -> vector<4x4xf32>
    %cst_5 = arith.constant 6.250000e-02 : f32
    %6 = vector.broadcast %cst_5 : f32 to vector<4x4xf32>
    %7 = arith.mulf %5, %6 : vector<4x4xf32>
    "tpu.trace_start"() <{level = 10 : i32, message = "bc,tc->bt"}> : () -> ()
    %cst_6 = arith.constant dense<0.000000e+00> : vector<4x16xf32>
    %8 = tpu.matmul %7, %2, %cst_6 {dimension_numbers = #tpu.dot_dimension_numbers<[1], [1], [0], [0], [0, 0, 1, 0], [], []>} : vector<4x4xf32>, vector<16x4xf32>, vector<4x16xf32> -> vector<4x16xf32>
    "tpu.trace_stop"() : () -> ()
    %9 = vector.shape_cast %8 : vector<4x16xf32> to vector<4x16x1xf32>
    %10 = vector.broadcast %9 : vector<4x16x1xf32> to vector<4x16x4xf32>
    %11 = arith.subf %3, %10 : vector<4x16x4xf32>
    %12 = arith.mulf %11, %11 : vector<4x16x4xf32>
    %cst_7 = arith.constant dense<0.000000e+00> : vector<4x16xf32>
    %13 = vector.multi_reduction <add>, %12, %cst_7 [2] : vector<4x16x4xf32> to vector<4x16xf32>
    %cst_8 = arith.constant dense<0.000000e+00> : vector<4x4xf32>
    %14 = tpu.matmul %13, %2, %cst_8 {dimension_numbers = #tpu.dot_dimension_numbers<[1], [0], [0], [1], [0, 0, 1, 1], [], []>} : vector<4x16xf32>, vector<16x4xf32>, vector<4x4xf32> -> vector<4x4xf32>
    %cst_9 = arith.constant 6.250000e-02 : f32
    %15 = vector.broadcast %cst_9 : f32 to vector<4x4xf32>
    %16 = arith.mulf %14, %15 : vector<4x4xf32>
    %cst_10 = arith.constant 9.99999974E-6 : f32
    %17 = vector.broadcast %cst_10 : f32 to vector<4x4xf32>
    %18 = arith.addf %16, %17 : vector<4x4xf32>
    %19 = math.sqrt %18 : vector<4x4xf32>
    "tpu.trace_start"() <{level = 10 : i32, message = "bc,tc->bt"}> : () -> ()
    %cst_11 = arith.constant dense<0.000000e+00> : vector<4x16xf32>
    %20 = tpu.matmul %19, %2, %cst_11 {dimension_numbers = #tpu.dot_dimension_numbers<[1], [1], [0], [0], [0, 0, 1, 0], [], []>} : vector<4x4xf32>, vector<16x4xf32>, vector<4x16xf32> -> vector<4x16xf32>
    "tpu.trace_stop"() : () -> ()
    %21 = vector.shape_cast %20 : vector<4x16xf32> to vector<4x16x1xf32>
    %22 = vector.broadcast %21 : vector<4x16x1xf32> to vector<4x16x4xf32>
    %23 = arith.divf %11, %22 : vector<4x16x4xf32>
    %24 = vector.shape_cast %23 : vector<4x16x4xf32> to vector<64x4xf32>
    %c0_12 = arith.constant 0 : index
    %c0_13 = arith.constant 0 : index
    %25 = vector.load %arg5[%c0_12, %c0_13] : memref<4x32xf32, #tpu.memory_space<vmem>>, vector<4x32xf32>
    %cst_14 = arith.constant dense<0.000000e+00> : vector<64x32xf32>
    %26 = tpu.matmul %24, %25, %cst_14 {dimension_numbers = #tpu.dot_dimension_numbers<[1], [0], [0], [1], [0, 0, 1, 1], [], []>} : vector<64x4xf32>, vector<4x32xf32>, vector<64x32xf32> -> vector<64x32xf32>
    %c0_15 = arith.constant 0 : index
    %c0_16 = arith.constant 0 : index
    %27 = vector.load %arg2[%c0_15, %c0_16] : memref<16x16xf32, #tpu.memory_space<vmem>>, vector<16x16xf32>
    %c0_17 = arith.constant 0 : index
    %c0_18 = arith.constant 0 : index
    %c0_19 = arith.constant 0 : index
    %28 = vector.load %arg14[%c0_17, %c0_18, %c0_19] : memref<2x4x32xf32, #tpu.memory_space<vmem>>, vector<1x4x32xf32>
    %29 = vector.shape_cast %28 : vector<1x4x32xf32> to vector<4x32xf32>
    %c0_20 = arith.constant 0 : index
    %c0_21 = arith.constant 0 : index
    %c0_22 = arith.constant 0 : index
    %30 = vector.load %arg6[%c0_20, %c0_21, %c0_22] : memref<2x32x96xf32, #tpu.memory_space<vmem>>, vector<1x32x96xf32>
    %31 = vector.shape_cast %30 : vector<1x32x96xf32> to vector<32x96xf32>
    %cst_23 = arith.constant dense<0.000000e+00> : vector<64x96xf32>
    %32 = tpu.matmul %26, %31, %cst_23 {dimension_numbers = #tpu.dot_dimension_numbers<[1], [0], [0], [1], [0, 0, 1, 1], [], []>} : vector<64x32xf32>, vector<32x96xf32>, vector<64x96xf32> -> vector<64x96xf32>
    %c0_24 = arith.constant 0 : index
    %c0_25 = arith.constant 0 : index
    %c0_26 = arith.constant 0 : index
    %33 = vector.load %arg7[%c0_24, %c0_25, %c0_26] : memref<2x1x96xf32, #tpu.memory_space<vmem>>, vector<1x1x96xf32>
    %34 = vector.shape_cast %33 : vector<1x1x96xf32> to vector<1x96xf32>
    %35 = vector.broadcast %34 : vector<1x96xf32> to vector<64x96xf32>
    %36 = arith.addf %32, %35 : vector<64x96xf32>
    %37 = vector.extract_strided_slice %36 {offsets = [0, 0], sizes = [64, 8], strides = [1, 1]} : vector<64x96xf32> to vector<64x8xf32>
    %38 = vector.shape_cast %37 : vector<64x8xf32> to vector<4x16x8xf32>
    %39 = vector.extract_strided_slice %36 {offsets = [0, 32], sizes = [64, 8], strides = [1, 1]} : vector<64x96xf32> to vector<64x8xf32>
    %40 = vector.shape_cast %39 : vector<64x8xf32> to vector<4x16x8xf32>
    %41 = vector.extract_strided_slice %36 {offsets = [0, 64], sizes = [64, 8], strides = [1, 1]} : vector<64x96xf32> to vector<64x8xf32>
    %42 = vector.shape_cast %41 : vector<64x8xf32> to vector<4x16x8xf32>
    "tpu.trace_start"() <{level = 10 : i32, message = "bqd,bkd->bqk"}> : () -> ()
    %cst_27 = arith.constant dense<0.000000e+00> : vector<4x16x16xf32>
    %43 = tpu.matmul %38, %40, %cst_27 {dimension_numbers = #tpu.dot_dimension_numbers<[2], [2], [1], [1], [0, 0, 0, 1, 1, 1], [0], [0]>} : vector<4x16x8xf32>, vector<4x16x8xf32>, vector<4x16x16xf32> -> vector<4x16x16xf32>
    "tpu.trace_stop"() : () -> ()
    %44 = vector.shape_cast %27 : vector<16x16xf32> to vector<1x16x16xf32>
    %45 = vector.broadcast %44 : vector<1x16x16xf32> to vector<4x16x16xf32>
    %46 = arith.addf %43, %45 : vector<4x16x16xf32>
    %cst_28 = arith.constant dense<0xFF800000> : vector<4x16xf32>
    %47 = vector.multi_reduction <maximumf>, %46, %cst_28 [2] : vector<4x16x16xf32> to vector<4x16xf32>
    %48 = vector.shape_cast %47 : vector<4x16xf32> to vector<4x16x1xf32>
    %49 = vector.broadcast %48 : vector<4x16x1xf32> to vector<4x16x16xf32>
    %50 = arith.subf %46, %49 : vector<4x16x16xf32>
    %51 = math.exp %50 : vector<4x16x16xf32>
    %cst_29 = arith.constant dense<0.000000e+00> : vector<4x16xf32>
    %52 = vector.multi_reduction <add>, %51, %cst_29 [2] : vector<4x16x16xf32> to vector<4x16xf32>
    %53 = vector.shape_cast %52 : vector<4x16xf32> to vector<4x16x1xf32>
    %54 = tpu.reciprocal %53 {approx = true} : vector<4x16x1xf32> -> vector<4x16x1xf32>
    %55 = vector.broadcast %54 : vector<4x16x1xf32> to vector<4x16x16xf32>
    %56 = arith.mulf %51, %55 : vector<4x16x16xf32>
    "tpu.trace_start"() <{level = 10 : i32, message = "bqk,bkd->bqd"}> : () -> ()
    %cst_30 = arith.constant dense<0.000000e+00> : vector<4x16x8xf32>
    %57 = tpu.matmul %56, %42, %cst_30 {dimension_numbers = #tpu.dot_dimension_numbers<[2], [1], [1], [2], [0, 0, 0, 1, 1, 2], [0], [0]>} : vector<4x16x16xf32>, vector<4x16x8xf32>, vector<4x16x8xf32> -> vector<4x16x8xf32>
    "tpu.trace_stop"() : () -> ()
    %58 = vector.shape_cast %57 : vector<4x16x8xf32> to vector<64x8xf32>
    %59 = vector.extract_strided_slice %36 {offsets = [0, 8], sizes = [64, 8], strides = [1, 1]} : vector<64x96xf32> to vector<64x8xf32>
    %60 = vector.shape_cast %59 : vector<64x8xf32> to vector<4x16x8xf32>
    %61 = vector.extract_strided_slice %36 {offsets = [0, 40], sizes = [64, 8], strides = [1, 1]} : vector<64x96xf32> to vector<64x8xf32>
    %62 = vector.shape_cast %61 : vector<64x8xf32> to vector<4x16x8xf32>
    %63 = vector.extract_strided_slice %36 {offsets = [0, 72], sizes = [64, 8], strides = [1, 1]} : vector<64x96xf32> to vector<64x8xf32>
    %64 = vector.shape_cast %63 : vector<64x8xf32> to vector<4x16x8xf32>
    "tpu.trace_start"() <{level = 10 : i32, message = "bqd,bkd->bqk"}> : () -> ()
    %cst_31 = arith.constant dense<0.000000e+00> : vector<4x16x16xf32>
    %65 = tpu.matmul %60, %62, %cst_31 {dimension_numbers = #tpu.dot_dimension_numbers<[2], [2], [1], [1], [0, 0, 0, 1, 1, 1], [0], [0]>} : vector<4x16x8xf32>, vector<4x16x8xf32>, vector<4x16x16xf32> -> vector<4x16x16xf32>
    "tpu.trace_stop"() : () -> ()
    %66 = vector.shape_cast %27 : vector<16x16xf32> to vector<1x16x16xf32>
    %67 = vector.broadcast %66 : vector<1x16x16xf32> to vector<4x16x16xf32>
    %68 = arith.addf %65, %67 : vector<4x16x16xf32>
    %cst_32 = arith.constant dense<0xFF800000> : vector<4x16xf32>
    %69 = vector.multi_reduction <maximumf>, %68, %cst_32 [2] : vector<4x16x16xf32> to vector<4x16xf32>
    %70 = vector.shape_cast %69 : vector<4x16xf32> to vector<4x16x1xf32>
    %71 = vector.broadcast %70 : vector<4x16x1xf32> to vector<4x16x16xf32>
    %72 = arith.subf %68, %71 : vector<4x16x16xf32>
    %73 = math.exp %72 : vector<4x16x16xf32>
    %cst_33 = arith.constant dense<0.000000e+00> : vector<4x16xf32>
    %74 = vector.multi_reduction <add>, %73, %cst_33 [2] : vector<4x16x16xf32> to vector<4x16xf32>
    %75 = vector.shape_cast %74 : vector<4x16xf32> to vector<4x16x1xf32>
    %76 = tpu.reciprocal %75 {approx = true} : vector<4x16x1xf32> -> vector<4x16x1xf32>
    %77 = vector.broadcast %76 : vector<4x16x1xf32> to vector<4x16x16xf32>
    %78 = arith.mulf %73, %77 : vector<4x16x16xf32>
    "tpu.trace_start"() <{level = 10 : i32, message = "bqk,bkd->bqd"}> : () -> ()
    %cst_34 = arith.constant dense<0.000000e+00> : vector<4x16x8xf32>
    %79 = tpu.matmul %78, %64, %cst_34 {dimension_numbers = #tpu.dot_dimension_numbers<[2], [1], [1], [2], [0, 0, 0, 1, 1, 2], [0], [0]>} : vector<4x16x16xf32>, vector<4x16x8xf32>, vector<4x16x8xf32> -> vector<4x16x8xf32>
    "tpu.trace_stop"() : () -> ()
    %80 = vector.shape_cast %79 : vector<4x16x8xf32> to vector<64x8xf32>
    %81 = vector.extract_strided_slice %36 {offsets = [0, 16], sizes = [64, 8], strides = [1, 1]} : vector<64x96xf32> to vector<64x8xf32>
    %82 = vector.shape_cast %81 : vector<64x8xf32> to vector<4x16x8xf32>
    %83 = vector.extract_strided_slice %36 {offsets = [0, 48], sizes = [64, 8], strides = [1, 1]} : vector<64x96xf32> to vector<64x8xf32>
    %84 = vector.shape_cast %83 : vector<64x8xf32> to vector<4x16x8xf32>
    %85 = vector.extract_strided_slice %36 {offsets = [0, 80], sizes = [64, 8], strides = [1, 1]} : vector<64x96xf32> to vector<64x8xf32>
    %86 = vector.shape_cast %85 : vector<64x8xf32> to vector<4x16x8xf32>
    "tpu.trace_start"() <{level = 10 : i32, message = "bqd,bkd->bqk"}> : () -> ()
    %cst_35 = arith.constant dense<0.000000e+00> : vector<4x16x16xf32>
    %87 = tpu.matmul %82, %84, %cst_35 {dimension_numbers = #tpu.dot_dimension_numbers<[2], [2], [1], [1], [0, 0, 0, 1, 1, 1], [0], [0]>} : vector<4x16x8xf32>, vector<4x16x8xf32>, vector<4x16x16xf32> -> vector<4x16x16xf32>
    "tpu.trace_stop"() : () -> ()
    %88 = vector.shape_cast %27 : vector<16x16xf32> to vector<1x16x16xf32>
    %89 = vector.broadcast %88 : vector<1x16x16xf32> to vector<4x16x16xf32>
    %90 = arith.addf %87, %89 : vector<4x16x16xf32>
    %cst_36 = arith.constant dense<0xFF800000> : vector<4x16xf32>
    %91 = vector.multi_reduction <maximumf>, %90, %cst_36 [2] : vector<4x16x16xf32> to vector<4x16xf32>
    %92 = vector.shape_cast %91 : vector<4x16xf32> to vector<4x16x1xf32>
    %93 = vector.broadcast %92 : vector<4x16x1xf32> to vector<4x16x16xf32>
    %94 = arith.subf %90, %93 : vector<4x16x16xf32>
    %95 = math.exp %94 : vector<4x16x16xf32>
    %cst_37 = arith.constant dense<0.000000e+00> : vector<4x16xf32>
    %96 = vector.multi_reduction <add>, %95, %cst_37 [2] : vector<4x16x16xf32> to vector<4x16xf32>
    %97 = vector.shape_cast %96 : vector<4x16xf32> to vector<4x16x1xf32>
    %98 = tpu.reciprocal %97 {approx = true} : vector<4x16x1xf32> -> vector<4x16x1xf32>
    %99 = vector.broadcast %98 : vector<4x16x1xf32> to vector<4x16x16xf32>
    %100 = arith.mulf %95, %99 : vector<4x16x16xf32>
    "tpu.trace_start"() <{level = 10 : i32, message = "bqk,bkd->bqd"}> : () -> ()
    %cst_38 = arith.constant dense<0.000000e+00> : vector<4x16x8xf32>
    %101 = tpu.matmul %100, %86, %cst_38 {dimension_numbers = #tpu.dot_dimension_numbers<[2], [1], [1], [2], [0, 0, 0, 1, 1, 2], [0], [0]>} : vector<4x16x16xf32>, vector<4x16x8xf32>, vector<4x16x8xf32> -> vector<4x16x8xf32>
    "tpu.trace_stop"() : () -> ()
    %102 = vector.shape_cast %101 : vector<4x16x8xf32> to vector<64x8xf32>
    %103 = vector.extract_strided_slice %36 {offsets = [0, 24], sizes = [64, 8], strides = [1, 1]} : vector<64x96xf32> to vector<64x8xf32>
    %104 = vector.shape_cast %103 : vector<64x8xf32> to vector<4x16x8xf32>
    %105 = vector.extract_strided_slice %36 {offsets = [0, 56], sizes = [64, 8], strides = [1, 1]} : vector<64x96xf32> to vector<64x8xf32>
    %106 = vector.shape_cast %105 : vector<64x8xf32> to vector<4x16x8xf32>
    %107 = vector.extract_strided_slice %36 {offsets = [0, 88], sizes = [64, 8], strides = [1, 1]} : vector<64x96xf32> to vector<64x8xf32>
    %108 = vector.shape_cast %107 : vector<64x8xf32> to vector<4x16x8xf32>
    "tpu.trace_start"() <{level = 10 : i32, message = "bqd,bkd->bqk"}> : () -> ()
    %cst_39 = arith.constant dense<0.000000e+00> : vector<4x16x16xf32>
    %109 = tpu.matmul %104, %106, %cst_39 {dimension_numbers = #tpu.dot_dimension_numbers<[2], [2], [1], [1], [0, 0, 0, 1, 1, 1], [0], [0]>} : vector<4x16x8xf32>, vector<4x16x8xf32>, vector<4x16x16xf32> -> vector<4x16x16xf32>
    "tpu.trace_stop"() : () -> ()
    %110 = vector.shape_cast %27 : vector<16x16xf32> to vector<1x16x16xf32>
    %111 = vector.broadcast %110 : vector<1x16x16xf32> to vector<4x16x16xf32>
    %112 = arith.addf %109, %111 : vector<4x16x16xf32>
    %cst_40 = arith.constant dense<0xFF800000> : vector<4x16xf32>
    %113 = vector.multi_reduction <maximumf>, %112, %cst_40 [2] : vector<4x16x16xf32> to vector<4x16xf32>
    %114 = vector.shape_cast %113 : vector<4x16xf32> to vector<4x16x1xf32>
    %115 = vector.broadcast %114 : vector<4x16x1xf32> to vector<4x16x16xf32>
    %116 = arith.subf %112, %115 : vector<4x16x16xf32>
    %117 = math.exp %116 : vector<4x16x16xf32>
    %cst_41 = arith.constant dense<0.000000e+00> : vector<4x16xf32>
    %118 = vector.multi_reduction <add>, %117, %cst_41 [2] : vector<4x16x16xf32> to vector<4x16xf32>
    %119 = vector.shape_cast %118 : vector<4x16xf32> to vector<4x16x1xf32>
    %120 = tpu.reciprocal %119 {approx = true} : vector<4x16x1xf32> -> vector<4x16x1xf32>
    %121 = vector.broadcast %120 : vector<4x16x1xf32> to vector<4x16x16xf32>
    %122 = arith.mulf %117, %121 : vector<4x16x16xf32>
    "tpu.trace_start"() <{level = 10 : i32, message = "bqk,bkd->bqd"}> : () -> ()
    %cst_42 = arith.constant dense<0.000000e+00> : vector<4x16x8xf32>
    %123 = tpu.matmul %122, %108, %cst_42 {dimension_numbers = #tpu.dot_dimension_numbers<[2], [1], [1], [2], [0, 0, 0, 1, 1, 2], [0], [0]>} : vector<4x16x16xf32>, vector<4x16x8xf32>, vector<4x16x8xf32> -> vector<4x16x8xf32>
    "tpu.trace_stop"() : () -> ()
    %124 = vector.shape_cast %123 : vector<4x16x8xf32> to vector<64x8xf32>
    %125 = tpu.concatenate %58, %80, %102, %124 in 1 : vector<64x8xf32>, vector<64x8xf32>, vector<64x8xf32>, vector<64x8xf32> -> vector<64x32xf32>
    %c0_43 = arith.constant 0 : index
    %c0_44 = arith.constant 0 : index
    %c0_45 = arith.constant 0 : index
    %126 = vector.load %arg8[%c0_43, %c0_44, %c0_45] : memref<2x32x32xf32, #tpu.memory_space<vmem>>, vector<1x32x32xf32>
    %127 = vector.shape_cast %126 : vector<1x32x32xf32> to vector<32x32xf32>
    %cst_46 = arith.constant dense<0.000000e+00> : vector<64x32xf32>
    %128 = tpu.matmul %125, %127, %cst_46 {dimension_numbers = #tpu.dot_dimension_numbers<[1], [0], [0], [1], [0, 0, 1, 1], [], []>} : vector<64x32xf32>, vector<32x32xf32>, vector<64x32xf32> -> vector<64x32xf32>
    %c0_47 = arith.constant 0 : index
    %c0_48 = arith.constant 0 : index
    %c0_49 = arith.constant 0 : index
    %129 = vector.load %arg9[%c0_47, %c0_48, %c0_49] : memref<2x1x32xf32, #tpu.memory_space<vmem>>, vector<1x1x32xf32>
    %130 = vector.shape_cast %129 : vector<1x1x32xf32> to vector<1x32xf32>
    %131 = vector.broadcast %130 : vector<1x32xf32> to vector<64x32xf32>
    %132 = arith.addf %128, %131 : vector<64x32xf32>
    %133 = arith.addf %26, %132 : vector<64x32xf32>
    %134 = vector.extract_strided_slice %29 {offsets = [0, 0], sizes = [1, 32], strides = [1, 1]} : vector<4x32xf32> to vector<1x32xf32>
    %135 = vector.extract_strided_slice %29 {offsets = [1, 0], sizes = [1, 32], strides = [1, 1]} : vector<4x32xf32> to vector<1x32xf32>
    %cst_50 = arith.constant dense<0.000000e+00> : vector<64xf32>
    %136 = vector.multi_reduction <add>, %133, %cst_50 [1] : vector<64x32xf32> to vector<64xf32>
    %137 = vector.shape_cast %136 : vector<64xf32> to vector<64x1xf32>
    %cst_51 = arith.constant 3.200000e+01 : f32
    %138 = vector.broadcast %cst_51 : f32 to vector<64x1xf32>
    %139 = arith.divf %137, %138 : vector<64x1xf32>
    %140 = vector.broadcast %139 : vector<64x1xf32> to vector<64x32xf32>
    %141 = arith.subf %133, %140 : vector<64x32xf32>
    %142 = arith.mulf %141, %141 : vector<64x32xf32>
    %cst_52 = arith.constant dense<0.000000e+00> : vector<64xf32>
    %143 = vector.multi_reduction <add>, %142, %cst_52 [1] : vector<64x32xf32> to vector<64xf32>
    %144 = vector.shape_cast %143 : vector<64xf32> to vector<64x1xf32>
    %cst_53 = arith.constant 3.200000e+01 : f32
    %145 = vector.broadcast %cst_53 : f32 to vector<64x1xf32>
    %146 = arith.divf %144, %145 : vector<64x1xf32>
    %cst_54 = arith.constant 9.99999974E-6 : f32
    %147 = vector.broadcast %cst_54 : f32 to vector<64x1xf32>
    %148 = arith.addf %146, %147 : vector<64x1xf32>
    %149 = math.rsqrt %148 : vector<64x1xf32>
    %150 = vector.broadcast %149 : vector<64x1xf32> to vector<64x32xf32>
    %151 = arith.mulf %141, %150 : vector<64x32xf32>
    %152 = vector.broadcast %134 : vector<1x32xf32> to vector<64x32xf32>
    %153 = arith.mulf %151, %152 : vector<64x32xf32>
    %154 = vector.broadcast %135 : vector<1x32xf32> to vector<64x32xf32>
    %155 = arith.addf %153, %154 : vector<64x32xf32>
    %c0_55 = arith.constant 0 : index
    %c0_56 = arith.constant 0 : index
    %c0_57 = arith.constant 0 : index
    %156 = vector.load %arg10[%c0_55, %c0_56, %c0_57] : memref<2x32x64xf32, #tpu.memory_space<vmem>>, vector<1x32x64xf32>
    %157 = vector.shape_cast %156 : vector<1x32x64xf32> to vector<32x64xf32>
    %cst_58 = arith.constant dense<0.000000e+00> : vector<64x64xf32>
    %158 = tpu.matmul %155, %157, %cst_58 {dimension_numbers = #tpu.dot_dimension_numbers<[1], [0], [0], [1], [0, 0, 1, 1], [], []>} : vector<64x32xf32>, vector<32x64xf32>, vector<64x64xf32> -> vector<64x64xf32>
    %c0_59 = arith.constant 0 : index
    %c0_60 = arith.constant 0 : index
    %c0_61 = arith.constant 0 : index
    %159 = vector.load %arg11[%c0_59, %c0_60, %c0_61] : memref<2x1x64xf32, #tpu.memory_space<vmem>>, vector<1x1x64xf32>
    %160 = vector.shape_cast %159 : vector<1x1x64xf32> to vector<1x64xf32>
    %161 = vector.broadcast %160 : vector<1x64xf32> to vector<64x64xf32>
    %162 = arith.addf %158, %161 : vector<64x64xf32>
    %cst_62 = arith.constant 0.000000e+00 : f32
    %163 = vector.broadcast %cst_62 : f32 to vector<64x64xf32>
    %164 = arith.maximumf %162, %163 : vector<64x64xf32>
    %c0_63 = arith.constant 0 : index
    %c0_64 = arith.constant 0 : index
    %c0_65 = arith.constant 0 : index
    %165 = vector.load %arg12[%c0_63, %c0_64, %c0_65] : memref<2x64x32xf32, #tpu.memory_space<vmem>>, vector<1x64x32xf32>
    %166 = vector.shape_cast %165 : vector<1x64x32xf32> to vector<64x32xf32>
    %cst_66 = arith.constant dense<0.000000e+00> : vector<64x32xf32>
    %167 = tpu.matmul %164, %166, %cst_66 {dimension_numbers = #tpu.dot_dimension_numbers<[1], [0], [0], [1], [0, 0, 1, 1], [], []>} : vector<64x64xf32>, vector<64x32xf32>, vector<64x32xf32> -> vector<64x32xf32>
    %c0_67 = arith.constant 0 : index
    %c0_68 = arith.constant 0 : index
    %c0_69 = arith.constant 0 : index
    %168 = vector.load %arg13[%c0_67, %c0_68, %c0_69] : memref<2x1x32xf32, #tpu.memory_space<vmem>>, vector<1x1x32xf32>
    %169 = vector.shape_cast %168 : vector<1x1x32xf32> to vector<1x32xf32>
    %170 = vector.broadcast %169 : vector<1x32xf32> to vector<64x32xf32>
    %171 = arith.addf %167, %170 : vector<64x32xf32>
    %172 = arith.addf %155, %171 : vector<64x32xf32>
    %173 = vector.extract_strided_slice %29 {offsets = [2, 0], sizes = [1, 32], strides = [1, 1]} : vector<4x32xf32> to vector<1x32xf32>
    %174 = vector.extract_strided_slice %29 {offsets = [3, 0], sizes = [1, 32], strides = [1, 1]} : vector<4x32xf32> to vector<1x32xf32>
    %cst_70 = arith.constant dense<0.000000e+00> : vector<64xf32>
    %175 = vector.multi_reduction <add>, %172, %cst_70 [1] : vector<64x32xf32> to vector<64xf32>
    %176 = vector.shape_cast %175 : vector<64xf32> to vector<64x1xf32>
    %cst_71 = arith.constant 3.200000e+01 : f32
    %177 = vector.broadcast %cst_71 : f32 to vector<64x1xf32>
    %178 = arith.divf %176, %177 : vector<64x1xf32>
    %179 = vector.broadcast %178 : vector<64x1xf32> to vector<64x32xf32>
    %180 = arith.subf %172, %179 : vector<64x32xf32>
    %181 = arith.mulf %180, %180 : vector<64x32xf32>
    %cst_72 = arith.constant dense<0.000000e+00> : vector<64xf32>
    %182 = vector.multi_reduction <add>, %181, %cst_72 [1] : vector<64x32xf32> to vector<64xf32>
    %183 = vector.shape_cast %182 : vector<64xf32> to vector<64x1xf32>
    %cst_73 = arith.constant 3.200000e+01 : f32
    %184 = vector.broadcast %cst_73 : f32 to vector<64x1xf32>
    %185 = arith.divf %183, %184 : vector<64x1xf32>
    %cst_74 = arith.constant 9.99999974E-6 : f32
    %186 = vector.broadcast %cst_74 : f32 to vector<64x1xf32>
    %187 = arith.addf %185, %186 : vector<64x1xf32>
    %188 = math.rsqrt %187 : vector<64x1xf32>
    %189 = vector.broadcast %188 : vector<64x1xf32> to vector<64x32xf32>
    %190 = arith.mulf %180, %189 : vector<64x32xf32>
    %191 = vector.broadcast %173 : vector<1x32xf32> to vector<64x32xf32>
    %192 = arith.mulf %190, %191 : vector<64x32xf32>
    %193 = vector.broadcast %174 : vector<1x32xf32> to vector<64x32xf32>
    %194 = arith.addf %192, %193 : vector<64x32xf32>
    %c1 = arith.constant 1 : index
    %c0_75 = arith.constant 0 : index
    %c0_76 = arith.constant 0 : index
    %195 = vector.load %arg14[%c1, %c0_75, %c0_76] : memref<2x4x32xf32, #tpu.memory_space<vmem>>, vector<1x4x32xf32>
    %196 = vector.shape_cast %195 : vector<1x4x32xf32> to vector<4x32xf32>
    %c1_77 = arith.constant 1 : index
    %c0_78 = arith.constant 0 : index
    %c0_79 = arith.constant 0 : index
    %197 = vector.load %arg6[%c1_77, %c0_78, %c0_79] : memref<2x32x96xf32, #tpu.memory_space<vmem>>, vector<1x32x96xf32>
    %198 = vector.shape_cast %197 : vector<1x32x96xf32> to vector<32x96xf32>
    %cst_80 = arith.constant dense<0.000000e+00> : vector<64x96xf32>
    %199 = tpu.matmul %194, %198, %cst_80 {dimension_numbers = #tpu.dot_dimension_numbers<[1], [0], [0], [1], [0, 0, 1, 1], [], []>} : vector<64x32xf32>, vector<32x96xf32>, vector<64x96xf32> -> vector<64x96xf32>
    %c1_81 = arith.constant 1 : index
    %c0_82 = arith.constant 0 : index
    %c0_83 = arith.constant 0 : index
    %200 = vector.load %arg7[%c1_81, %c0_82, %c0_83] : memref<2x1x96xf32, #tpu.memory_space<vmem>>, vector<1x1x96xf32>
    %201 = vector.shape_cast %200 : vector<1x1x96xf32> to vector<1x96xf32>
    %202 = vector.broadcast %201 : vector<1x96xf32> to vector<64x96xf32>
    %203 = arith.addf %199, %202 : vector<64x96xf32>
    %204 = vector.extract_strided_slice %203 {offsets = [0, 0], sizes = [64, 8], strides = [1, 1]} : vector<64x96xf32> to vector<64x8xf32>
    %205 = vector.shape_cast %204 : vector<64x8xf32> to vector<4x16x8xf32>
    %206 = vector.extract_strided_slice %203 {offsets = [0, 32], sizes = [64, 8], strides = [1, 1]} : vector<64x96xf32> to vector<64x8xf32>
    %207 = vector.shape_cast %206 : vector<64x8xf32> to vector<4x16x8xf32>
    %208 = vector.extract_strided_slice %203 {offsets = [0, 64], sizes = [64, 8], strides = [1, 1]} : vector<64x96xf32> to vector<64x8xf32>
    %209 = vector.shape_cast %208 : vector<64x8xf32> to vector<4x16x8xf32>
    "tpu.trace_start"() <{level = 10 : i32, message = "bqd,bkd->bqk"}> : () -> ()
    %cst_84 = arith.constant dense<0.000000e+00> : vector<4x16x16xf32>
    %210 = tpu.matmul %205, %207, %cst_84 {dimension_numbers = #tpu.dot_dimension_numbers<[2], [2], [1], [1], [0, 0, 0, 1, 1, 1], [0], [0]>} : vector<4x16x8xf32>, vector<4x16x8xf32>, vector<4x16x16xf32> -> vector<4x16x16xf32>
    "tpu.trace_stop"() : () -> ()
    %211 = vector.shape_cast %27 : vector<16x16xf32> to vector<1x16x16xf32>
    %212 = vector.broadcast %211 : vector<1x16x16xf32> to vector<4x16x16xf32>
    %213 = arith.addf %210, %212 : vector<4x16x16xf32>
    %cst_85 = arith.constant dense<0xFF800000> : vector<4x16xf32>
    %214 = vector.multi_reduction <maximumf>, %213, %cst_85 [2] : vector<4x16x16xf32> to vector<4x16xf32>
    %215 = vector.shape_cast %214 : vector<4x16xf32> to vector<4x16x1xf32>
    %216 = vector.broadcast %215 : vector<4x16x1xf32> to vector<4x16x16xf32>
    %217 = arith.subf %213, %216 : vector<4x16x16xf32>
    %218 = math.exp %217 : vector<4x16x16xf32>
    %cst_86 = arith.constant dense<0.000000e+00> : vector<4x16xf32>
    %219 = vector.multi_reduction <add>, %218, %cst_86 [2] : vector<4x16x16xf32> to vector<4x16xf32>
    %220 = vector.shape_cast %219 : vector<4x16xf32> to vector<4x16x1xf32>
    %221 = tpu.reciprocal %220 {approx = true} : vector<4x16x1xf32> -> vector<4x16x1xf32>
    %222 = vector.broadcast %221 : vector<4x16x1xf32> to vector<4x16x16xf32>
    %223 = arith.mulf %218, %222 : vector<4x16x16xf32>
    "tpu.trace_start"() <{level = 10 : i32, message = "bqk,bkd->bqd"}> : () -> ()
    %cst_87 = arith.constant dense<0.000000e+00> : vector<4x16x8xf32>
    %224 = tpu.matmul %223, %209, %cst_87 {dimension_numbers = #tpu.dot_dimension_numbers<[2], [1], [1], [2], [0, 0, 0, 1, 1, 2], [0], [0]>} : vector<4x16x16xf32>, vector<4x16x8xf32>, vector<4x16x8xf32> -> vector<4x16x8xf32>
    "tpu.trace_stop"() : () -> ()
    %225 = vector.shape_cast %224 : vector<4x16x8xf32> to vector<64x8xf32>
    %226 = vector.extract_strided_slice %203 {offsets = [0, 8], sizes = [64, 8], strides = [1, 1]} : vector<64x96xf32> to vector<64x8xf32>
    %227 = vector.shape_cast %226 : vector<64x8xf32> to vector<4x16x8xf32>
    %228 = vector.extract_strided_slice %203 {offsets = [0, 40], sizes = [64, 8], strides = [1, 1]} : vector<64x96xf32> to vector<64x8xf32>
    %229 = vector.shape_cast %228 : vector<64x8xf32> to vector<4x16x8xf32>
    %230 = vector.extract_strided_slice %203 {offsets = [0, 72], sizes = [64, 8], strides = [1, 1]} : vector<64x96xf32> to vector<64x8xf32>
    %231 = vector.shape_cast %230 : vector<64x8xf32> to vector<4x16x8xf32>
    "tpu.trace_start"() <{level = 10 : i32, message = "bqd,bkd->bqk"}> : () -> ()
    %cst_88 = arith.constant dense<0.000000e+00> : vector<4x16x16xf32>
    %232 = tpu.matmul %227, %229, %cst_88 {dimension_numbers = #tpu.dot_dimension_numbers<[2], [2], [1], [1], [0, 0, 0, 1, 1, 1], [0], [0]>} : vector<4x16x8xf32>, vector<4x16x8xf32>, vector<4x16x16xf32> -> vector<4x16x16xf32>
    "tpu.trace_stop"() : () -> ()
    %233 = vector.shape_cast %27 : vector<16x16xf32> to vector<1x16x16xf32>
    %234 = vector.broadcast %233 : vector<1x16x16xf32> to vector<4x16x16xf32>
    %235 = arith.addf %232, %234 : vector<4x16x16xf32>
    %cst_89 = arith.constant dense<0xFF800000> : vector<4x16xf32>
    %236 = vector.multi_reduction <maximumf>, %235, %cst_89 [2] : vector<4x16x16xf32> to vector<4x16xf32>
    %237 = vector.shape_cast %236 : vector<4x16xf32> to vector<4x16x1xf32>
    %238 = vector.broadcast %237 : vector<4x16x1xf32> to vector<4x16x16xf32>
    %239 = arith.subf %235, %238 : vector<4x16x16xf32>
    %240 = math.exp %239 : vector<4x16x16xf32>
    %cst_90 = arith.constant dense<0.000000e+00> : vector<4x16xf32>
    %241 = vector.multi_reduction <add>, %240, %cst_90 [2] : vector<4x16x16xf32> to vector<4x16xf32>
    %242 = vector.shape_cast %241 : vector<4x16xf32> to vector<4x16x1xf32>
    %243 = tpu.reciprocal %242 {approx = true} : vector<4x16x1xf32> -> vector<4x16x1xf32>
    %244 = vector.broadcast %243 : vector<4x16x1xf32> to vector<4x16x16xf32>
    %245 = arith.mulf %240, %244 : vector<4x16x16xf32>
    "tpu.trace_start"() <{level = 10 : i32, message = "bqk,bkd->bqd"}> : () -> ()
    %cst_91 = arith.constant dense<0.000000e+00> : vector<4x16x8xf32>
    %246 = tpu.matmul %245, %231, %cst_91 {dimension_numbers = #tpu.dot_dimension_numbers<[2], [1], [1], [2], [0, 0, 0, 1, 1, 2], [0], [0]>} : vector<4x16x16xf32>, vector<4x16x8xf32>, vector<4x16x8xf32> -> vector<4x16x8xf32>
    "tpu.trace_stop"() : () -> ()
    %247 = vector.shape_cast %246 : vector<4x16x8xf32> to vector<64x8xf32>
    %248 = vector.extract_strided_slice %203 {offsets = [0, 16], sizes = [64, 8], strides = [1, 1]} : vector<64x96xf32> to vector<64x8xf32>
    %249 = vector.shape_cast %248 : vector<64x8xf32> to vector<4x16x8xf32>
    %250 = vector.extract_strided_slice %203 {offsets = [0, 48], sizes = [64, 8], strides = [1, 1]} : vector<64x96xf32> to vector<64x8xf32>
    %251 = vector.shape_cast %250 : vector<64x8xf32> to vector<4x16x8xf32>
    %252 = vector.extract_strided_slice %203 {offsets = [0, 80], sizes = [64, 8], strides = [1, 1]} : vector<64x96xf32> to vector<64x8xf32>
    %253 = vector.shape_cast %252 : vector<64x8xf32> to vector<4x16x8xf32>
    "tpu.trace_start"() <{level = 10 : i32, message = "bqd,bkd->bqk"}> : () -> ()
    %cst_92 = arith.constant dense<0.000000e+00> : vector<4x16x16xf32>
    %254 = tpu.matmul %249, %251, %cst_92 {dimension_numbers = #tpu.dot_dimension_numbers<[2], [2], [1], [1], [0, 0, 0, 1, 1, 1], [0], [0]>} : vector<4x16x8xf32>, vector<4x16x8xf32>, vector<4x16x16xf32> -> vector<4x16x16xf32>
    "tpu.trace_stop"() : () -> ()
    %255 = vector.shape_cast %27 : vector<16x16xf32> to vector<1x16x16xf32>
    %256 = vector.broadcast %255 : vector<1x16x16xf32> to vector<4x16x16xf32>
    %257 = arith.addf %254, %256 : vector<4x16x16xf32>
    %cst_93 = arith.constant dense<0xFF800000> : vector<4x16xf32>
    %258 = vector.multi_reduction <maximumf>, %257, %cst_93 [2] : vector<4x16x16xf32> to vector<4x16xf32>
    %259 = vector.shape_cast %258 : vector<4x16xf32> to vector<4x16x1xf32>
    %260 = vector.broadcast %259 : vector<4x16x1xf32> to vector<4x16x16xf32>
    %261 = arith.subf %257, %260 : vector<4x16x16xf32>
    %262 = math.exp %261 : vector<4x16x16xf32>
    %cst_94 = arith.constant dense<0.000000e+00> : vector<4x16xf32>
    %263 = vector.multi_reduction <add>, %262, %cst_94 [2] : vector<4x16x16xf32> to vector<4x16xf32>
    %264 = vector.shape_cast %263 : vector<4x16xf32> to vector<4x16x1xf32>
    %265 = tpu.reciprocal %264 {approx = true} : vector<4x16x1xf32> -> vector<4x16x1xf32>
    %266 = vector.broadcast %265 : vector<4x16x1xf32> to vector<4x16x16xf32>
    %267 = arith.mulf %262, %266 : vector<4x16x16xf32>
    "tpu.trace_start"() <{level = 10 : i32, message = "bqk,bkd->bqd"}> : () -> ()
    %cst_95 = arith.constant dense<0.000000e+00> : vector<4x16x8xf32>
    %268 = tpu.matmul %267, %253, %cst_95 {dimension_numbers = #tpu.dot_dimension_numbers<[2], [1], [1], [2], [0, 0, 0, 1, 1, 2], [0], [0]>} : vector<4x16x16xf32>, vector<4x16x8xf32>, vector<4x16x8xf32> -> vector<4x16x8xf32>
    "tpu.trace_stop"() : () -> ()
    %269 = vector.shape_cast %268 : vector<4x16x8xf32> to vector<64x8xf32>
    %270 = vector.extract_strided_slice %203 {offsets = [0, 24], sizes = [64, 8], strides = [1, 1]} : vector<64x96xf32> to vector<64x8xf32>
    %271 = vector.shape_cast %270 : vector<64x8xf32> to vector<4x16x8xf32>
    %272 = vector.extract_strided_slice %203 {offsets = [0, 56], sizes = [64, 8], strides = [1, 1]} : vector<64x96xf32> to vector<64x8xf32>
    %273 = vector.shape_cast %272 : vector<64x8xf32> to vector<4x16x8xf32>
    %274 = vector.extract_strided_slice %203 {offsets = [0, 88], sizes = [64, 8], strides = [1, 1]} : vector<64x96xf32> to vector<64x8xf32>
    %275 = vector.shape_cast %274 : vector<64x8xf32> to vector<4x16x8xf32>
    "tpu.trace_start"() <{level = 10 : i32, message = "bqd,bkd->bqk"}> : () -> ()
    %cst_96 = arith.constant dense<0.000000e+00> : vector<4x16x16xf32>
    %276 = tpu.matmul %271, %273, %cst_96 {dimension_numbers = #tpu.dot_dimension_numbers<[2], [2], [1], [1], [0, 0, 0, 1, 1, 1], [0], [0]>} : vector<4x16x8xf32>, vector<4x16x8xf32>, vector<4x16x16xf32> -> vector<4x16x16xf32>
    "tpu.trace_stop"() : () -> ()
    %277 = vector.shape_cast %27 : vector<16x16xf32> to vector<1x16x16xf32>
    %278 = vector.broadcast %277 : vector<1x16x16xf32> to vector<4x16x16xf32>
    %279 = arith.addf %276, %278 : vector<4x16x16xf32>
    %cst_97 = arith.constant dense<0xFF800000> : vector<4x16xf32>
    %280 = vector.multi_reduction <maximumf>, %279, %cst_97 [2] : vector<4x16x16xf32> to vector<4x16xf32>
    %281 = vector.shape_cast %280 : vector<4x16xf32> to vector<4x16x1xf32>
    %282 = vector.broadcast %281 : vector<4x16x1xf32> to vector<4x16x16xf32>
    %283 = arith.subf %279, %282 : vector<4x16x16xf32>
    %284 = math.exp %283 : vector<4x16x16xf32>
    %cst_98 = arith.constant dense<0.000000e+00> : vector<4x16xf32>
    %285 = vector.multi_reduction <add>, %284, %cst_98 [2] : vector<4x16x16xf32> to vector<4x16xf32>
    %286 = vector.shape_cast %285 : vector<4x16xf32> to vector<4x16x1xf32>
    %287 = tpu.reciprocal %286 {approx = true} : vector<4x16x1xf32> -> vector<4x16x1xf32>
    %288 = vector.broadcast %287 : vector<4x16x1xf32> to vector<4x16x16xf32>
    %289 = arith.mulf %284, %288 : vector<4x16x16xf32>
    "tpu.trace_start"() <{level = 10 : i32, message = "bqk,bkd->bqd"}> : () -> ()
    %cst_99 = arith.constant dense<0.000000e+00> : vector<4x16x8xf32>
    %290 = tpu.matmul %289, %275, %cst_99 {dimension_numbers = #tpu.dot_dimension_numbers<[2], [1], [1], [2], [0, 0, 0, 1, 1, 2], [0], [0]>} : vector<4x16x16xf32>, vector<4x16x8xf32>, vector<4x16x8xf32> -> vector<4x16x8xf32>
    "tpu.trace_stop"() : () -> ()
    %291 = vector.shape_cast %290 : vector<4x16x8xf32> to vector<64x8xf32>
    %292 = tpu.concatenate %225, %247, %269, %291 in 1 : vector<64x8xf32>, vector<64x8xf32>, vector<64x8xf32>, vector<64x8xf32> -> vector<64x32xf32>
    %c1_100 = arith.constant 1 : index
    %c0_101 = arith.constant 0 : index
    %c0_102 = arith.constant 0 : index
    %293 = vector.load %arg8[%c1_100, %c0_101, %c0_102] : memref<2x32x32xf32, #tpu.memory_space<vmem>>, vector<1x32x32xf32>
    %294 = vector.shape_cast %293 : vector<1x32x32xf32> to vector<32x32xf32>
    %cst_103 = arith.constant dense<0.000000e+00> : vector<64x32xf32>
    %295 = tpu.matmul %292, %294, %cst_103 {dimension_numbers = #tpu.dot_dimension_numbers<[1], [0], [0], [1], [0, 0, 1, 1], [], []>} : vector<64x32xf32>, vector<32x32xf32>, vector<64x32xf32> -> vector<64x32xf32>
    %c1_104 = arith.constant 1 : index
    %c0_105 = arith.constant 0 : index
    %c0_106 = arith.constant 0 : index
    %296 = vector.load %arg9[%c1_104, %c0_105, %c0_106] : memref<2x1x32xf32, #tpu.memory_space<vmem>>, vector<1x1x32xf32>
    %297 = vector.shape_cast %296 : vector<1x1x32xf32> to vector<1x32xf32>
    %298 = vector.broadcast %297 : vector<1x32xf32> to vector<64x32xf32>
    %299 = arith.addf %295, %298 : vector<64x32xf32>
    %300 = arith.addf %194, %299 : vector<64x32xf32>
    %301 = vector.extract_strided_slice %196 {offsets = [0, 0], sizes = [1, 32], strides = [1, 1]} : vector<4x32xf32> to vector<1x32xf32>
    %302 = vector.extract_strided_slice %196 {offsets = [1, 0], sizes = [1, 32], strides = [1, 1]} : vector<4x32xf32> to vector<1x32xf32>
    %cst_107 = arith.constant dense<0.000000e+00> : vector<64xf32>
    %303 = vector.multi_reduction <add>, %300, %cst_107 [1] : vector<64x32xf32> to vector<64xf32>
    %304 = vector.shape_cast %303 : vector<64xf32> to vector<64x1xf32>
    %cst_108 = arith.constant 3.200000e+01 : f32
    %305 = vector.broadcast %cst_108 : f32 to vector<64x1xf32>
    %306 = arith.divf %304, %305 : vector<64x1xf32>
    %307 = vector.broadcast %306 : vector<64x1xf32> to vector<64x32xf32>
    %308 = arith.subf %300, %307 : vector<64x32xf32>
    %309 = arith.mulf %308, %308 : vector<64x32xf32>
    %cst_109 = arith.constant dense<0.000000e+00> : vector<64xf32>
    %310 = vector.multi_reduction <add>, %309, %cst_109 [1] : vector<64x32xf32> to vector<64xf32>
    %311 = vector.shape_cast %310 : vector<64xf32> to vector<64x1xf32>
    %cst_110 = arith.constant 3.200000e+01 : f32
    %312 = vector.broadcast %cst_110 : f32 to vector<64x1xf32>
    %313 = arith.divf %311, %312 : vector<64x1xf32>
    %cst_111 = arith.constant 9.99999974E-6 : f32
    %314 = vector.broadcast %cst_111 : f32 to vector<64x1xf32>
    %315 = arith.addf %313, %314 : vector<64x1xf32>
    %316 = math.rsqrt %315 : vector<64x1xf32>
    %317 = vector.broadcast %316 : vector<64x1xf32> to vector<64x32xf32>
    %318 = arith.mulf %308, %317 : vector<64x32xf32>
    %319 = vector.broadcast %301 : vector<1x32xf32> to vector<64x32xf32>
    %320 = arith.mulf %318, %319 : vector<64x32xf32>
    %321 = vector.broadcast %302 : vector<1x32xf32> to vector<64x32xf32>
    %322 = arith.addf %320, %321 : vector<64x32xf32>
    %c1_112 = arith.constant 1 : index
    %c0_113 = arith.constant 0 : index
    %c0_114 = arith.constant 0 : index
    %323 = vector.load %arg10[%c1_112, %c0_113, %c0_114] : memref<2x32x64xf32, #tpu.memory_space<vmem>>, vector<1x32x64xf32>
    %324 = vector.shape_cast %323 : vector<1x32x64xf32> to vector<32x64xf32>
    %cst_115 = arith.constant dense<0.000000e+00> : vector<64x64xf32>
    %325 = tpu.matmul %322, %324, %cst_115 {dimension_numbers = #tpu.dot_dimension_numbers<[1], [0], [0], [1], [0, 0, 1, 1], [], []>} : vector<64x32xf32>, vector<32x64xf32>, vector<64x64xf32> -> vector<64x64xf32>
    %c1_116 = arith.constant 1 : index
    %c0_117 = arith.constant 0 : index
    %c0_118 = arith.constant 0 : index
    %326 = vector.load %arg11[%c1_116, %c0_117, %c0_118] : memref<2x1x64xf32, #tpu.memory_space<vmem>>, vector<1x1x64xf32>
    %327 = vector.shape_cast %326 : vector<1x1x64xf32> to vector<1x64xf32>
    %328 = vector.broadcast %327 : vector<1x64xf32> to vector<64x64xf32>
    %329 = arith.addf %325, %328 : vector<64x64xf32>
    %cst_119 = arith.constant 0.000000e+00 : f32
    %330 = vector.broadcast %cst_119 : f32 to vector<64x64xf32>
    %331 = arith.maximumf %329, %330 : vector<64x64xf32>
    %c1_120 = arith.constant 1 : index
    %c0_121 = arith.constant 0 : index
    %c0_122 = arith.constant 0 : index
    %332 = vector.load %arg12[%c1_120, %c0_121, %c0_122] : memref<2x64x32xf32, #tpu.memory_space<vmem>>, vector<1x64x32xf32>
    %333 = vector.shape_cast %332 : vector<1x64x32xf32> to vector<64x32xf32>
    %cst_123 = arith.constant dense<0.000000e+00> : vector<64x32xf32>
    %334 = tpu.matmul %331, %333, %cst_123 {dimension_numbers = #tpu.dot_dimension_numbers<[1], [0], [0], [1], [0, 0, 1, 1], [], []>} : vector<64x64xf32>, vector<64x32xf32>, vector<64x32xf32> -> vector<64x32xf32>
    %c1_124 = arith.constant 1 : index
    %c0_125 = arith.constant 0 : index
    %c0_126 = arith.constant 0 : index
    %335 = vector.load %arg13[%c1_124, %c0_125, %c0_126] : memref<2x1x32xf32, #tpu.memory_space<vmem>>, vector<1x1x32xf32>
    %336 = vector.shape_cast %335 : vector<1x1x32xf32> to vector<1x32xf32>
    %337 = vector.broadcast %336 : vector<1x32xf32> to vector<64x32xf32>
    %338 = arith.addf %334, %337 : vector<64x32xf32>
    %339 = arith.addf %322, %338 : vector<64x32xf32>
    %340 = vector.extract_strided_slice %196 {offsets = [2, 0], sizes = [1, 32], strides = [1, 1]} : vector<4x32xf32> to vector<1x32xf32>
    %341 = vector.extract_strided_slice %196 {offsets = [3, 0], sizes = [1, 32], strides = [1, 1]} : vector<4x32xf32> to vector<1x32xf32>
    %cst_127 = arith.constant dense<0.000000e+00> : vector<64xf32>
    %342 = vector.multi_reduction <add>, %339, %cst_127 [1] : vector<64x32xf32> to vector<64xf32>
    %343 = vector.shape_cast %342 : vector<64xf32> to vector<64x1xf32>
    %cst_128 = arith.constant 3.200000e+01 : f32
    %344 = vector.broadcast %cst_128 : f32 to vector<64x1xf32>
    %345 = arith.divf %343, %344 : vector<64x1xf32>
    %346 = vector.broadcast %345 : vector<64x1xf32> to vector<64x32xf32>
    %347 = arith.subf %339, %346 : vector<64x32xf32>
    %348 = arith.mulf %347, %347 : vector<64x32xf32>
    %cst_129 = arith.constant dense<0.000000e+00> : vector<64xf32>
    %349 = vector.multi_reduction <add>, %348, %cst_129 [1] : vector<64x32xf32> to vector<64xf32>
    %350 = vector.shape_cast %349 : vector<64xf32> to vector<64x1xf32>
    %cst_130 = arith.constant 3.200000e+01 : f32
    %351 = vector.broadcast %cst_130 : f32 to vector<64x1xf32>
    %352 = arith.divf %350, %351 : vector<64x1xf32>
    %cst_131 = arith.constant 9.99999974E-6 : f32
    %353 = vector.broadcast %cst_131 : f32 to vector<64x1xf32>
    %354 = arith.addf %352, %353 : vector<64x1xf32>
    %355 = math.rsqrt %354 : vector<64x1xf32>
    %356 = vector.broadcast %355 : vector<64x1xf32> to vector<64x32xf32>
    %357 = arith.mulf %347, %356 : vector<64x32xf32>
    %358 = vector.broadcast %340 : vector<1x32xf32> to vector<64x32xf32>
    %359 = arith.mulf %357, %358 : vector<64x32xf32>
    %360 = vector.broadcast %341 : vector<1x32xf32> to vector<64x32xf32>
    %361 = arith.addf %359, %360 : vector<64x32xf32>
    %c0_132 = arith.constant 0 : index
    %c0_133 = arith.constant 0 : index
    %362 = vector.load %arg4[%c0_132, %c0_133] : memref<16x4xf32, #tpu.memory_space<vmem>>, vector<16x4xf32>
    %cst_134 = arith.constant 0.000000e+00 : f32
    %363 = vector.broadcast %cst_134 : f32 to vector<4x16x8xf32>
    %c0_135 = arith.constant 0 : index
    %c0_136 = arith.constant 0 : index
    %c0_137 = arith.constant 0 : index
    %364 = vector.load %arg15[%c0_135, %c0_136, %c0_137] : memref<4x32x8xf32, #tpu.memory_space<vmem>>, vector<1x32x8xf32>
    %365 = vector.shape_cast %364 : vector<1x32x8xf32> to vector<32x8xf32>
    %cst_138 = arith.constant dense<0.000000e+00> : vector<64x8xf32>
    %366 = tpu.matmul %361, %365, %cst_138 {dimension_numbers = #tpu.dot_dimension_numbers<[1], [0], [0], [1], [0, 0, 1, 1], [], []>} : vector<64x32xf32>, vector<32x8xf32>, vector<64x8xf32> -> vector<64x8xf32>
    %367 = vector.shape_cast %366 : vector<64x8xf32> to vector<4x16x8xf32>
    %368 = vector.extract_strided_slice %362 {offsets = [0, 0], sizes = [16, 1], strides = [1, 1]} : vector<16x4xf32> to vector<16x1xf32>
    %369 = vector.shape_cast %368 : vector<16x1xf32> to vector<1x16x1xf32>
    %370 = vector.broadcast %369 : vector<1x16x1xf32> to vector<4x16x8xf32>
    %371 = arith.mulf %367, %370 : vector<4x16x8xf32>
    %372 = arith.addf %363, %371 : vector<4x16x8xf32>
    %c1_139 = arith.constant 1 : index
    %c0_140 = arith.constant 0 : index
    %c0_141 = arith.constant 0 : index
    %373 = vector.load %arg15[%c1_139, %c0_140, %c0_141] : memref<4x32x8xf32, #tpu.memory_space<vmem>>, vector<1x32x8xf32>
    %374 = vector.shape_cast %373 : vector<1x32x8xf32> to vector<32x8xf32>
    %cst_142 = arith.constant dense<0.000000e+00> : vector<64x8xf32>
    %375 = tpu.matmul %361, %374, %cst_142 {dimension_numbers = #tpu.dot_dimension_numbers<[1], [0], [0], [1], [0, 0, 1, 1], [], []>} : vector<64x32xf32>, vector<32x8xf32>, vector<64x8xf32> -> vector<64x8xf32>
    %376 = vector.shape_cast %375 : vector<64x8xf32> to vector<4x16x8xf32>
    %377 = vector.extract_strided_slice %362 {offsets = [0, 1], sizes = [16, 1], strides = [1, 1]} : vector<16x4xf32> to vector<16x1xf32>
    %378 = vector.shape_cast %377 : vector<16x1xf32> to vector<1x16x1xf32>
    %379 = vector.broadcast %378 : vector<1x16x1xf32> to vector<4x16x8xf32>
    %380 = arith.mulf %376, %379 : vector<4x16x8xf32>
    %381 = arith.addf %372, %380 : vector<4x16x8xf32>
    %c2 = arith.constant 2 : index
    %c0_143 = arith.constant 0 : index
    %c0_144 = arith.constant 0 : index
    %382 = vector.load %arg15[%c2, %c0_143, %c0_144] : memref<4x32x8xf32, #tpu.memory_space<vmem>>, vector<1x32x8xf32>
    %383 = vector.shape_cast %382 : vector<1x32x8xf32> to vector<32x8xf32>
    %cst_145 = arith.constant dense<0.000000e+00> : vector<64x8xf32>
    %384 = tpu.matmul %361, %383, %cst_145 {dimension_numbers = #tpu.dot_dimension_numbers<[1], [0], [0], [1], [0, 0, 1, 1], [], []>} : vector<64x32xf32>, vector<32x8xf32>, vector<64x8xf32> -> vector<64x8xf32>
    %385 = vector.shape_cast %384 : vector<64x8xf32> to vector<4x16x8xf32>
    %386 = vector.extract_strided_slice %362 {offsets = [0, 2], sizes = [16, 1], strides = [1, 1]} : vector<16x4xf32> to vector<16x1xf32>
    %387 = vector.shape_cast %386 : vector<16x1xf32> to vector<1x16x1xf32>
    %388 = vector.broadcast %387 : vector<1x16x1xf32> to vector<4x16x8xf32>
    %389 = arith.mulf %385, %388 : vector<4x16x8xf32>
    %390 = arith.addf %381, %389 : vector<4x16x8xf32>
    %c3 = arith.constant 3 : index
    %c0_146 = arith.constant 0 : index
    %c0_147 = arith.constant 0 : index
    %391 = vector.load %arg15[%c3, %c0_146, %c0_147] : memref<4x32x8xf32, #tpu.memory_space<vmem>>, vector<1x32x8xf32>
    %392 = vector.shape_cast %391 : vector<1x32x8xf32> to vector<32x8xf32>
    %cst_148 = arith.constant dense<0.000000e+00> : vector<64x8xf32>
    %393 = tpu.matmul %361, %392, %cst_148 {dimension_numbers = #tpu.dot_dimension_numbers<[1], [0], [0], [1], [0, 0, 1, 1], [], []>} : vector<64x32xf32>, vector<32x8xf32>, vector<64x8xf32> -> vector<64x8xf32>
    %394 = vector.shape_cast %393 : vector<64x8xf32> to vector<4x16x8xf32>
    %395 = vector.extract_strided_slice %362 {offsets = [0, 3], sizes = [16, 1], strides = [1, 1]} : vector<16x4xf32> to vector<16x1xf32>
    %396 = vector.shape_cast %395 : vector<16x1xf32> to vector<1x16x1xf32>
    %397 = vector.broadcast %396 : vector<1x16x1xf32> to vector<4x16x8xf32>
    %398 = arith.mulf %394, %397 : vector<4x16x8xf32>
    %399 = arith.addf %390, %398 : vector<4x16x8xf32>
    "tpu.trace_start"() <{level = 10 : i32, message = "btp,tc->bpc"}> : () -> ()
    %cst_149 = arith.constant dense<0.000000e+00> : vector<4x8x4xf32>
    %400 = tpu.matmul %399, %2, %cst_149 {dimension_numbers = #tpu.dot_dimension_numbers<[1], [0], [0, 2], [1], [0, 0, 0, 2, 1, 1], [], []>} : vector<4x16x8xf32>, vector<16x4xf32>, vector<4x8x4xf32> -> vector<4x8x4xf32>
    "tpu.trace_stop"() : () -> ()
    %c0_150 = arith.constant 0 : index
    %c0_151 = arith.constant 0 : index
    %401 = vector.load %arg16[%c0_150, %c0_151] : memref<8x1xf32, #tpu.memory_space<vmem>>, vector<8x1xf32>
    %402 = vector.shape_cast %401 : vector<8x1xf32> to vector<1x8x1xf32>
    %403 = vector.broadcast %402 : vector<1x8x1xf32> to vector<4x8x4xf32>
    %404 = arith.addf %400, %403 : vector<4x8x4xf32>
    %405 = vector.shape_cast %19 : vector<4x4xf32> to vector<4x1x4xf32>
    %406 = vector.broadcast %405 : vector<4x1x4xf32> to vector<4x8x4xf32>
    %407 = arith.mulf %404, %406 : vector<4x8x4xf32>
    %408 = vector.shape_cast %7 : vector<4x4xf32> to vector<4x1x4xf32>
    %409 = vector.broadcast %408 : vector<4x1x4xf32> to vector<4x8x4xf32>
    %410 = arith.addf %407, %409 : vector<4x8x4xf32>
    %411 = vector.shape_cast %410 : vector<4x8x4xf32> to vector<4x32xf32>
    %c0_152 = arith.constant 0 : index
    %c0_153 = arith.constant 0 : index
    %c0_154 = arith.constant 0 : index
    %412 = vector.load %arg17[%c0_152, %c0_153, %c0_154] : memref<1x4x32xf32, #tpu.memory_space<vmem>>, vector<1x4x32xf32>
    %413 = vector.shape_cast %412 : vector<1x4x32xf32> to vector<4x32xf32>
    %414 = vector.shape_cast %411 : vector<4x32xf32> to vector<1x4x32xf32>
    tpu.vector_store %arg17[%c0_152, %c0_153, %c0_154], %414 {strides = array<i32>} : memref<1x4x32xf32, #tpu.memory_space<vmem>>, vector<1x4x32xf32>,
    return
  }
  func.func @transform_0(%arg0: i32) -> (i32, i32, i32) {
    %c0_i32 = arith.constant 0 : i32
    %c0_i32_0 = arith.constant 0 : i32
    %c0_i32_1 = arith.constant 0 : i32
    return %arg0, %c0_i32, %c0_i32_0 : i32, i32, i32
  }
  func.func @transform_1(%arg0: i32) -> (i32, i32) {
    %c0_i32 = arith.constant 0 : i32
    %c0_i32_0 = arith.constant 0 : i32
    %c0_i32_1 = arith.constant 0 : i32
    return %c0_i32, %c0_i32_0 : i32, i32
  }
  func.func @transform_2(%arg0: i32) -> (i32, i32) {
    %c0_i32 = arith.constant 0 : i32
    %c0_i32_0 = arith.constant 0 : i32
    %c0_i32_1 = arith.constant 0 : i32
    return %c0_i32, %c0_i32_0 : i32, i32
  }
  func.func @transform_3(%arg0: i32) -> (i32, i32) {
    %c0_i32 = arith.constant 0 : i32
    %c0_i32_0 = arith.constant 0 : i32
    %c0_i32_1 = arith.constant 0 : i32
    return %c0_i32, %c0_i32_0 : i32, i32
  }
  func.func @transform_4(%arg0: i32) -> (i32, i32) {
    %c0_i32 = arith.constant 0 : i32
    %c0_i32_0 = arith.constant 0 : i32
    %c0_i32_1 = arith.constant 0 : i32
    return %c0_i32, %c0_i32_0 : i32, i32
  }
  func.func @transform_5(%arg0: i32) -> (i32, i32, i32) {
    %c0_i32 = arith.constant 0 : i32
    %c0_i32_0 = arith.constant 0 : i32
    %c0_i32_1 = arith.constant 0 : i32
    %c0_i32_2 = arith.constant 0 : i32
    return %c0_i32, %c0_i32_0, %c0_i32_1 : i32, i32, i32
  }
  func.func @transform_6(%arg0: i32) -> (i32, i32, i32) {
    %c0_i32 = arith.constant 0 : i32
    %c0_i32_0 = arith.constant 0 : i32
    %c0_i32_1 = arith.constant 0 : i32
    %c0_i32_2 = arith.constant 0 : i32
    return %c0_i32, %c0_i32_0, %c0_i32_1 : i32, i32, i32
  }
  func.func @transform_7(%arg0: i32) -> (i32, i32, i32) {
    %c0_i32 = arith.constant 0 : i32
    %c0_i32_0 = arith.constant 0 : i32
    %c0_i32_1 = arith.constant 0 : i32
    %c0_i32_2 = arith.constant 0 : i32
    return %c0_i32, %c0_i32_0, %c0_i32_1 : i32, i32, i32
  }
  func.func @transform_8(%arg0: i32) -> (i32, i32, i32) {
    %c0_i32 = arith.constant 0 : i32
    %c0_i32_0 = arith.constant 0 : i32
    %c0_i32_1 = arith.constant 0 : i32
    %c0_i32_2 = arith.constant 0 : i32
    return %c0_i32, %c0_i32_0, %c0_i32_1 : i32, i32, i32
  }
  func.func @transform_9(%arg0: i32) -> (i32, i32, i32) {
    %c0_i32 = arith.constant 0 : i32
    %c0_i32_0 = arith.constant 0 : i32
    %c0_i32_1 = arith.constant 0 : i32
    %c0_i32_2 = arith.constant 0 : i32
    return %c0_i32, %c0_i32_0, %c0_i32_1 : i32, i32, i32
  }
  func.func @transform_10(%arg0: i32) -> (i32, i32, i32) {
    %c0_i32 = arith.constant 0 : i32
    %c0_i32_0 = arith.constant 0 : i32
    %c0_i32_1 = arith.constant 0 : i32
    %c0_i32_2 = arith.constant 0 : i32
    return %c0_i32, %c0_i32_0, %c0_i32_1 : i32, i32, i32
  }
  func.func @transform_11(%arg0: i32) -> (i32, i32, i32) {
    %c0_i32 = arith.constant 0 : i32
    %c0_i32_0 = arith.constant 0 : i32
    %c0_i32_1 = arith.constant 0 : i32
    %c0_i32_2 = arith.constant 0 : i32
    return %c0_i32, %c0_i32_0, %c0_i32_1 : i32, i32, i32
  }
  func.func @transform_12(%arg0: i32) -> (i32, i32, i32) {
    %c0_i32 = arith.constant 0 : i32
    %c0_i32_0 = arith.constant 0 : i32
    %c0_i32_1 = arith.constant 0 : i32
    %c0_i32_2 = arith.constant 0 : i32
    return %c0_i32, %c0_i32_0, %c0_i32_1 : i32, i32, i32
  }
  func.func @transform_13(%arg0: i32) -> (i32, i32, i32) {
    %c0_i32 = arith.constant 0 : i32
    %c0_i32_0 = arith.constant 0 : i32
    %c0_i32_1 = arith.constant 0 : i32
    %c0_i32_2 = arith.constant 0 : i32
    return %c0_i32, %c0_i32_0, %c0_i32_1 : i32, i32, i32
  }
  func.func @transform_14(%arg0: i32) -> (i32, i32, i32) {
    %c0_i32 = arith.constant 0 : i32
    %c0_i32_0 = arith.constant 0 : i32
    %c0_i32_1 = arith.constant 0 : i32
    %c0_i32_2 = arith.constant 0 : i32
    return %c0_i32, %c0_i32_0, %c0_i32_1 : i32, i32, i32
  }
  func.func @transform_15(%arg0: i32) -> (i32, i32) {
    %c0_i32 = arith.constant 0 : i32
    %c0_i32_0 = arith.constant 0 : i32
    %c0_i32_1 = arith.constant 0 : i32
    return %c0_i32, %c0_i32_0 : i32, i32
  }
  func.func @transform_16(%arg0: i32) -> (i32, i32, i32) {
    %c0_i32 = arith.constant 0 : i32
    %c0_i32_0 = arith.constant 0 : i32
    %c0_i32_1 = arith.constant 0 : i32
    return %arg0, %c0_i32, %c0_i32_0 : i32, i32, i32
  }
}

</mosaic_0001>

<llo_original>
// kernel: fwd.1
$region0: #{fwd.1}
  #allocation0 [shape = 'u32[]', space=smem, size = 0x4, offset = 0x4, fixed_abs, tag = 'smem constant byte address 0x4 - core index']
  #allocation1 [shape = 'u32[72,128]{1,0:T(1,128)}', space=vmem, size = 0x9000, scoped, tag = 'internal scratch']
  %s0 = inlined_call_operand.vmem [shape: f32[2,64,4], index: 0, kind: input, shape index: {}]
  %s1 = inlined_call_operand.vmem [shape: f32[16,16], index: 1, kind: input, shape index: {}]
  %s2 = inlined_call_operand.vmem [shape: f32[16,4], index: 2, kind: input, shape index: {}]
  %s3 = inlined_call_operand.vmem [shape: f32[16,4], index: 3, kind: input, shape index: {}]
  %s4 = inlined_call_operand.vmem [shape: f32[4,32], index: 4, kind: input, shape index: {}]
  %s5 = inlined_call_operand.vmem [shape: f32[2,32,96], index: 5, kind: input, shape index: {}]
  %s6 = inlined_call_operand.vmem [shape: f32[2,1,96], index: 6, kind: input, shape index: {}]
  %s7 = inlined_call_operand.vmem [shape: f32[2,32,32], index: 7, kind: input, shape index: {}]
  %s8 = inlined_call_operand.vmem [shape: f32[2,1,32], index: 8, kind: input, shape index: {}]
  %s9 = inlined_call_operand.vmem [shape: f32[2,32,64], index: 9, kind: input, shape index: {}]
  %s10 = inlined_call_operand.vmem [shape: f32[2,1,64], index: 10, kind: input, shape index: {}]
  %s11 = inlined_call_operand.vmem [shape: f32[2,64,32], index: 11, kind: input, shape index: {}]
  %s12 = inlined_call_operand.vmem [shape: f32[2,1,32], index: 12, kind: input, shape index: {}]
  %s13 = inlined_call_operand.vmem [shape: f32[2,4,32], index: 13, kind: input, shape index: {}]
  %s14 = inlined_call_operand.vmem [shape: f32[4,32,8], index: 14, kind: input, shape index: {}]
  %s15 = inlined_call_operand.vmem [shape: f32[8,1], index: 15, kind: input, shape index: {}]
  %s16 = inlined_call_operand.vmem [shape: f32[2,4,32], index: 16, kind: output, shape index: {}]
  %s17 = sld [smem:[#allocation0]]
  $region97: #{fwd.1} parent=0
    _
  %s19 = ssub.s32 1, %s17
  %s20 = scalar_select 0, %s19, %s17
  loop: start=0, step=1, limit=4
  $region2: #{fwd.1} parent=0 // loop_pre_header
    _
  $region3: #{fwd.1} parent=0 // loop_header
    %s22 = sphi 0, %s26
    %p23 = scmp.ge.s32.totalorder %s22, 4
    %s32 = sphi 0, %s34
    %s35 = sphi 0, %s32
    %s36 = sphi 0, %s35
    %s52 = sphi 0, %s36
    %s56 = sphi 0, %s56
    %s58 = sphi 0, %s56
    %s59 = sphi 0, %s58
    %s73 = sphi 0, %s59
    %s77 = sphi 0, %s77
    %s79 = sphi 0, %s77
    %s80 = sphi 0, %s79
    %s94 = sphi 0, %s80
    %s98 = sphi 0, %s98
    %s100 = sphi 0, %s98
    %s101 = sphi 0, %s100
    %s115 = sphi 0, %s101
    %s119 = sphi 0, %s119
    %s121 = sphi 0, %s119
    %s122 = sphi 0, %s121
    %s136 = sphi 0, %s122
    %s140 = sphi 0, %s140
    %s142 = sphi 0, %s140
    %s143 = sphi 0, %s142
    %s157 = sphi 0, %s143
    %s161 = sphi 0, %s161
    %s163 = sphi 0, %s161
    %s164 = sphi 0, %s163
    %s178 = sphi 0, %s164
    %s182 = sphi 0, %s182
    %s184 = sphi 0, %s182
    %s185 = sphi 0, %s184
    %s199 = sphi 0, %s185
    %s203 = sphi 0, %s203
    %s205 = sphi 0, %s203
    %s206 = sphi 0, %s205
    %s220 = sphi 0, %s206
    %s224 = sphi 0, %s224
    %s226 = sphi 0, %s224
    %s227 = sphi 0, %s226
    %s241 = sphi 0, %s227
    %s245 = sphi 0, %s245
    %s247 = sphi 0, %s245
    %s248 = sphi 0, %s247
    %s262 = sphi 0, %s248
    %s266 = sphi 0, %s266
    %s268 = sphi 0, %s266
    %s269 = sphi 0, %s268
    %s283 = sphi 0, %s269
    %s287 = sphi 0, %s287
    %s289 = sphi 0, %s287
    %s290 = sphi 0, %s289
    %s304 = sphi 0, %s290
    %s308 = sphi 0, %s308
    %s310 = sphi 0, %s308
    %s311 = sphi 0, %s310
    %s325 = sphi 0, %s311
    %s329 = sphi 0, %s329
    %s331 = sphi 0, %s329
    %s332 = sphi 0, %s331
    %s346 = sphi 0, %s332
    %s350 = sphi 0, %s350
    %s352 = sphi 0, %s350
    %s353 = sphi 0, %s352
    %s367 = sphi 0, %s353
    %s373 = sphi 0, %s375
    %s376 = sphi 0, %s373
    %s377 = sphi 0, %s376
    %s393 = sphi 0, %s377
  $region4: #{fwd.1} parent=0 // loop_header_branch
    %25 = sbr.rel (%p23) target = $region8
  $region5: #{fwd.1} parent=0 // loop_body
    %s27 = ssub.s32 %s22, 1
    %s28 = ssub.s32 %s22, 2
    %s29 = sadd.s32 %s22, 1
    %s30 = ssub.s32 %s22, %s29
    %p31 = scmp.eq.s32.totalorder %s30, 0
    %s33 = sadd.s32 %s32, 1
    %s34 = scalar_select %p31, %s32, %s33
    %p37 = pneg %p31
    %p38 = scmp.eq.s32.totalorder %s22, 1
    %p39 = por %p37, %p38
    %p40 = scmp.ne.s32.totalorder %s32, %s35
    %p41 = scmp.eq.s32.totalorder %s22, 0
    %p42 = por %p40, %p41
    %p43 = scmp.ne.s32.totalorder %s32, %s35
    %p44 = scmp.eq.s32.totalorder %s27, 1
    %p45 = por %p43, %p44
    %p46 = scmp.ne.s32.totalorder %s35, %s36
    %p47 = scmp.eq.s32.totalorder %s27, 0
    %p48 = por %p46, %p47
    %p49 = scmp.ne.s32.totalorder %s35, %s36
    %p50 = scmp.eq.s32.totalorder %s28, 1
    %p51 = por %p49, %p50
    %p53 = scmp.ne.s32.totalorder %s36, %s52
    %p54 = scmp.eq.s32.totalorder %s28, 0
    %p55 = por %p53, %p54
    %s57 = sadd.s32 %s56, 1
    %p60 = scmp.eq.s32.totalorder %s22, 1
    %p61 = scmp.ne.s32.totalorder %s56, %s58
    %p62 = scmp.eq.s32.totalorder %s22, 0
    %p63 = por %p61, %p62
    %p64 = scmp.ne.s32.totalorder %s56, %s58
    %p65 = scmp.eq.s32.totalorder %s27, 1
    %p66 = por %p64, %p65
    %p67 = scmp.ne.s32.totalorder %s58, %s59
    %p68 = scmp.eq.s32.totalorder %s27, 0
    %p69 = por %p67, %p68
    %p70 = scmp.ne.s32.totalorder %s58, %s59
    %p71 = scmp.eq.s32.totalorder %s28, 1
    %p72 = por %p70, %p71
    %p74 = scmp.ne.s32.totalorder %s59, %s73
    %p75 = scmp.eq.s32.totalorder %s28, 0
    %p76 = por %p74, %p75
    %s78 = sadd.s32 %s77, 1
    %p81 = scmp.eq.s32.totalorder %s22, 1
    %p82 = scmp.ne.s32.totalorder %s77, %s79
    %p83 = scmp.eq.s32.totalorder %s22, 0
    %p84 = por %p82, %p83
    %p85 = scmp.ne.s32.totalorder %s77, %s79
    %p86 = scmp.eq.s32.totalorder %s27, 1
    %p87 = por %p85, %p86
    %p88 = scmp.ne.s32.totalorder %s79, %s80
    %p89 = scmp.eq.s32.totalorder %s27, 0
    %p90 = por %p88, %p89
    %p91 = scmp.ne.s32.totalorder %s79, %s80
    %p92 = scmp.eq.s32.totalorder %s28, 1
    %p93 = por %p91, %p92
    %p95 = scmp.ne.s32.totalorder %s80, %s94
    %p96 = scmp.eq.s32.totalorder %s28, 0
    %p97 = por %p95, %p96
    %s99 = sadd.s32 %s98, 1
    %p102 = scmp.eq.s32.totalorder %s22, 1
    %p103 = scmp.ne.s32.totalorder %s98, %s100
    %p104 = scmp.eq.s32.totalorder %s22, 0
    %p105 = por %p103, %p104
    %p106 = scmp.ne.s32.totalorder %s98, %s100
    %p107 = scmp.eq.s32.totalorder %s27, 1
    %p108 = por %p106, %p107
    %p109 = scmp.ne.s32.totalorder %s100, %s101
    %p110 = scmp.eq.s32.totalorder %s27, 0
    %p111 = por %p109, %p110
    %p112 = scmp.ne.s32.totalorder %s100, %s101
    %p113 = scmp.eq.s32.totalorder %s28, 1
    %p114 = por %p112, %p113
    %p116 = scmp.ne.s32.totalorder %s101, %s115
    %p117 = scmp.eq.s32.totalorder %s28, 0
    %p118 = por %p116, %p117
    %s120 = sadd.s32 %s119, 1
    %p123 = scmp.eq.s32.totalorder %s22, 1
    %p124 = scmp.ne.s32.totalorder %s119, %s121
    %p125 = scmp.eq.s32.totalorder %s22, 0
    %p126 = por %p124, %p125
    %p127 = scmp.ne.s32.totalorder %s119, %s121
    %p128 = scmp.eq.s32.totalorder %s27, 1
    %p129 = por %p127, %p128
    %p130 = scmp.ne.s32.totalorder %s121, %s122
    %p131 = scmp.eq.s32.totalorder %s27, 0
    %p132 = por %p130, %p131
    %p133 = scmp.ne.s32.totalorder %s121, %s122
    %p134 = scmp.eq.s32.totalorder %s28, 1
    %p135 = por %p133, %p134
    %p137 = scmp.ne.s32.totalorder %s122, %s136
    %p138 = scmp.eq.s32.totalorder %s28, 0
    %p139 = por %p137, %p138
    %s141 = sadd.s32 %s140, 1
    %p144 = scmp.eq.s32.totalorder %s22, 1
    %p145 = scmp.ne.s32.totalorder %s140, %s142
    %p146 = scmp.eq.s32.totalorder %s22, 0
    %p147 = por %p145, %p146
    %p148 = scmp.ne.s32.totalorder %s140, %s142
    %p149 = scmp.eq.s32.totalorder %s27, 1
    %p150 = por %p148, %p149
    %p151 = scmp.ne.s32.totalorder %s142, %s143
    %p152 = scmp.eq.s32.totalorder %s27, 0
    %p153 = por %p151, %p152
    %p154 = scmp.ne.s32.totalorder %s142, %s143
    %p155 = scmp.eq.s32.totalorder %s28, 1
    %p156 = por %p154, %p155
    %p158 = scmp.ne.s32.totalorder %s143, %s157
    %p159 = scmp.eq.s32.totalorder %s28, 0
    %p160 = por %p158, %p159
    %s162 = sadd.s32 %s161, 1
    %p165 = scmp.eq.s32.totalorder %s22, 1
    %p166 = scmp.ne.s32.totalorder %s161, %s163
    %p167 = scmp.eq.s32.totalorder %s22, 0
    %p168 = por %p166, %p167
    %p169 = scmp.ne.s32.totalorder %s161, %s163
    %p170 = scmp.eq.s32.totalorder %s27, 1
    %p171 = por %p169, %p170
    %p172 = scmp.ne.s32.totalorder %s163, %s164
    %p173 = scmp.eq.s32.totalorder %s27, 0
    %p174 = por %p172, %p173
    %p175 = scmp.ne.s32.totalorder %s163, %s164
    %p176 = scmp.eq.s32.totalorder %s28, 1
    %p177 = por %p175, %p176
    %p179 = scmp.ne.s32.totalorder %s164, %s178
    %p180 = scmp.eq.s32.totalorder %s28, 0
    %p181 = por %p179, %p180
    %s183 = sadd.s32 %s182, 1
    %p186 = scmp.eq.s32.totalorder %s22, 1
    %p187 = scmp.ne.s32.totalorder %s182, %s184
    %p188 = scmp.eq.s32.totalorder %s22, 0
    %p189 = por %p187, %p188
    %p190 = scmp.ne.s32.totalorder %s182, %s184
    %p191 = scmp.eq.s32.totalorder %s27, 1
    %p192 = por %p190, %p191
    %p193 = scmp.ne.s32.totalorder %s184, %s185
    %p194 = scmp.eq.s32.totalorder %s27, 0
    %p195 = por %p193, %p194
    %p196 = scmp.ne.s32.totalorder %s184, %s185
    %p197 = scmp.eq.s32.totalorder %s28, 1
    %p198 = por %p196, %p197
    %p200 = scmp.ne.s32.totalorder %s185, %s199
    %p201 = scmp.eq.s32.totalorder %s28, 0
    %p202 = por %p200, %p201
    %s204 = sadd.s32 %s203, 1
    %p207 = scmp.eq.s32.totalorder %s22, 1
    %p208 = scmp.ne.s32.totalorder %s203, %s205
    %p209 = scmp.eq.s32.totalorder %s22, 0
    %p210 = por %p208, %p209
    %p211 = scmp.ne.s32.totalorder %s203, %s205
    %p212 = scmp.eq.s32.totalorder %s27, 1
    %p213 = por %p211, %p212
    %p214 = scmp.ne.s32.totalorder %s205, %s206
    %p215 = scmp.eq.s32.totalorder %s27, 0
    %p216 = por %p214, %p215
    %p217 = scmp.ne.s32.totalorder %s205, %s206
    %p218 = scmp.eq.s32.totalorder %s28, 1
    %p219 = por %p217, %p218
    %p221 = scmp.ne.s32.totalorder %s206, %s220
    %p222 = scmp.eq.s32.totalorder %s28, 0
    %p223 = por %p221, %p222
    %s225 = sadd.s32 %s224, 1
    %p228 = scmp.eq.s32.totalorder %s22, 1
    %p229 = scmp.ne.s32.totalorder %s224, %s226
    %p230 = scmp.eq.s32.totalorder %s22, 0
    %p231 = por %p229, %p230
    %p232 = scmp.ne.s32.totalorder %s224, %s226
    %p233 = scmp.eq.s32.totalorder %s27, 1
    %p234 = por %p232, %p233
    %p235 = scmp.ne.s32.totalorder %s226, %s227
    %p236 = scmp.eq.s32.totalorder %s27, 0
    %p237 = por %p235, %p236
    %p238 = scmp.ne.s32.totalorder %s226, %s227
    %p239 = scmp.eq.s32.totalorder %s28, 1
    %p240 = por %p238, %p239
    %p242 = scmp.ne.s32.totalorder %s227, %s241
    %p243 = scmp.eq.s32.totalorder %s28, 0
    %p244 = por %p242, %p243
    %s246 = sadd.s32 %s245, 1
    %p249 = scmp.eq.s32.totalorder %s22, 1
    %p250 = scmp.ne.s32.totalorder %s245, %s247
    %p251 = scmp.eq.s32.totalorder %s22, 0
    %p252 = por %p250, %p251
    %p253 = scmp.ne.s32.totalorder %s245, %s247
    %p254 = scmp.eq.s32.totalorder %s27, 1
    %p255 = por %p253, %p254
    %p256 = scmp.ne.s32.totalorder %s247, %s248
    %p257 = scmp.eq.s32.totalorder %s27, 0
    %p258 = por %p256, %p257
    %p259 = scmp.ne.s32.totalorder %s247, %s248
    %p260 = scmp.eq.s32.totalorder %s28, 1
    %p261 = por %p259, %p260
    %p263 = scmp.ne.s32.totalorder %s248, %s262
    %p264 = scmp.eq.s32.totalorder %s28, 0
    %p265 = por %p263, %p264
    %s267 = sadd.s32 %s266, 1
    %p270 = scmp.eq.s32.totalorder %s22, 1
    %p271 = scmp.ne.s32.totalorder %s266, %s268
    %p272 = scmp.eq.s32.totalorder %s22, 0
    %p273 = por %p271, %p272
    %p274 = scmp.ne.s32.totalorder %s266, %s268
    %p275 = scmp.eq.s32.totalorder %s27, 1
    %p276 = por %p274, %p275
    %p277 = scmp.ne.s32.totalorder %s268, %s269
    %p278 = scmp.eq.s32.totalorder %s27, 0
    %p279 = por %p277, %p278
    %p280 = scmp.ne.s32.totalorder %s268, %s269
    %p281 = scmp.eq.s32.totalorder %s28, 1
    %p282 = por %p280, %p281
    %p284 = scmp.ne.s32.totalorder %s269, %s283
    %p285 = scmp.eq.s32.totalorder %s28, 0
    %p286 = por %p284, %p285
    %s288 = sadd.s32 %s287, 1
    %p291 = scmp.eq.s32.totalorder %s22, 1
    %p292 = scmp.ne.s32.totalorder %s287, %s289
    %p293 = scmp.eq.s32.totalorder %s22, 0
    %p294 = por %p292, %p293
    %p295 = scmp.ne.s32.totalorder %s287, %s289
    %p296 = scmp.eq.s32.totalorder %s27, 1
    %p297 = por %p295, %p296
    %p298 = scmp.ne.s32.totalorder %s289, %s290
    %p299 = scmp.eq.s32.totalorder %s27, 0
    %p300 = por %p298, %p299
    %p301 = scmp.ne.s32.totalorder %s289, %s290
    %p302 = scmp.eq.s32.totalorder %s28, 1
    %p303 = por %p301, %p302
    %p305 = scmp.ne.s32.totalorder %s290, %s304
    %p306 = scmp.eq.s32.totalorder %s28, 0
    %p307 = por %p305, %p306
    %s309 = sadd.s32 %s308, 1
    %p312 = scmp.eq.s32.totalorder %s22, 1
    %p313 = scmp.ne.s32.totalorder %s308, %s310
    %p314 = scmp.eq.s32.totalorder %s22, 0
    %p315 = por %p313, %p314
    %p316 = scmp.ne.s32.totalorder %s308, %s310
    %p317 = scmp.eq.s32.totalorder %s27, 1
    %p318 = por %p316, %p317
    %p319 = scmp.ne.s32.totalorder %s310, %s311
    %p320 = scmp.eq.s32.totalorder %s27, 0
    %p321 = por %p319, %p320
    %p322 = scmp.ne.s32.totalorder %s310, %s311
    %p323 = scmp.eq.s32.totalorder %s28, 1
    %p324 = por %p322, %p323
    %p326 = scmp.ne.s32.totalorder %s311, %s325
    %p327 = scmp.eq.s32.totalorder %s28, 0
    %p328 = por %p326, %p327
    %s330 = sadd.s32 %s329, 1
    %p333 = scmp.eq.s32.totalorder %s22, 1
    %p334 = scmp.ne.s32.totalorder %s329, %s331
    %p335 = scmp.eq.s32.totalorder %s22, 0
    %p336 = por %p334, %p335
    %p337 = scmp.ne.s32.totalorder %s329, %s331
    %p338 = scmp.eq.s32.totalorder %s27, 1
    %p339 = por %p337, %p338
    %p340 = scmp.ne.s32.totalorder %s331, %s332
    %p341 = scmp.eq.s32.totalorder %s27, 0
    %p342 = por %p340, %p341
    %p343 = scmp.ne.s32.totalorder %s331, %s332
    %p344 = scmp.eq.s32.totalorder %s28, 1
    %p345 = por %p343, %p344
    %p347 = scmp.ne.s32.totalorder %s332, %s346
    %p348 = scmp.eq.s32.totalorder %s28, 0
    %p349 = por %p347, %p348
    %s351 = sadd.s32 %s350, 1
    %p354 = scmp.eq.s32.totalorder %s22, 1
    %p355 = scmp.ne.s32.totalorder %s350, %s352
    %p356 = scmp.eq.s32.totalorder %s22, 0
    %p357 = por %p355, %p356
    %p358 = scmp.ne.s32.totalorder %s350, %s352
    %p359 = scmp.eq.s32.totalorder %s27, 1
    %p360 = por %p358, %p359
    %p361 = scmp.ne.s32.totalorder %s352, %s353
    %p362 = scmp.eq.s32.totalorder %s27, 0
    %p363 = por %p361, %p362
    %p364 = scmp.ne.s32.totalorder %s352, %s353
    %p365 = scmp.eq.s32.totalorder %s28, 1
    %p366 = por %p364, %p365
    %p368 = scmp.ne.s32.totalorder %s353, %s367
    %p369 = scmp.eq.s32.totalorder %s28, 0
    %p370 = por %p368, %p369
    %s371 = ssub.s32 %s22, %s29
    %p372 = scmp.eq.s32.totalorder %s371, 0
    %s374 = sadd.s32 %s373, 1
    %s375 = scalar_select %p372, %s373, %s374
    %p378 = pneg %p372
    %p379 = scmp.eq.s32.totalorder %s22, 1
    %p380 = por %p378, %p379
    %p381 = scmp.ne.s32.totalorder %s373, %s376
    %p382 = scmp.eq.s32.totalorder %s22, 0
    %p383 = por %p381, %p382
    %p384 = scmp.ne.s32.totalorder %s373, %s376
    %p385 = scmp.eq.s32.totalorder %s27, 1
    %p386 = por %p384, %p385
    %p387 = scmp.ne.s32.totalorder %s376, %s377
    %p388 = scmp.eq.s32.totalorder %s27, 0
    %p389 = por %p387, %p388
    %p390 = scmp.ne.s32.totalorder %s376, %s377
    %p391 = scmp.eq.s32.totalorder %s28, 1
    %p392 = por %p390, %p391
    %p394 = scmp.ne.s32.totalorder %s377, %s393
    %p395 = scmp.eq.s32.totalorder %s28, 0
    %p396 = por %p394, %p395
    %p397 = scmp.le.s32.totalorder 1, %s22
    %p398 = scmp.lt.s32.totalorder %s22, 3
    %p399 = pnand %p397, %p398
    %p400 = pneg %p399
    // Predicated region
    $region9: #{fwd.1} parent=5 // pred_check
      _
    $region10: #{fwd.1} parent=5 // pred_check_branch
      %402 = sbr.rel (%p399) target = $region12
    $region11: #{fwd.1} parent=5 // pred_region
      %s403 = ssub.s32 %s22, 1
      // Predicated region
      $region13: #{fwd.1} parent=11 // pred_check
        %p404 = pneg %p69
      $region14: #{fwd.1} parent=11 // pred_check_branch
        %406 = sbr.rel (%p404) target = $region16
      $region15: #{fwd.1} parent=11 // pred_region
        _
      $region16: #{fwd.1} parent=11 // pred_fallthru
        _
      // Predicated region
      $region17: #{fwd.1} parent=11 // pred_check
        %p407 = pneg %p90
      $region18: #{fwd.1} parent=11 // pred_check_branch
        %409 = sbr.rel (%p407) target = $region20
      $region19: #{fwd.1} parent=11 // pred_region
        _
      $region20: #{fwd.1} parent=11 // pred_fallthru
        _
      // Predicated region
      $region21: #{fwd.1} parent=11 // pred_check
        %p410 = pneg %p111
      $region22: #{fwd.1} parent=11 // pred_check_branch
        %412 = sbr.rel (%p410) target = $region24
      $region23: #{fwd.1} parent=11 // pred_region
        _
      $region24: #{fwd.1} parent=11 // pred_fallthru
        _
      // Predicated region
      $region25: #{fwd.1} parent=11 // pred_check
        %p413 = pneg %p132
      $region26: #{fwd.1} parent=11 // pred_check_branch
        %415 = sbr.rel (%p413) target = $region28
      $region27: #{fwd.1} parent=11 // pred_region
        _
      $region28: #{fwd.1} parent=11 // pred_fallthru
        _
      // Predicated region
      $region29: #{fwd.1} parent=11 // pred_check
        %p416 = pneg %p153
      $region30: #{fwd.1} parent=11 // pred_check_branch
        %418 = sbr.rel (%p416) target = $region32
      $region31: #{fwd.1} parent=11 // pred_region
        _
      $region32: #{fwd.1} parent=11 // pred_fallthru
        _
      // Predicated region
      $region33: #{fwd.1} parent=11 // pred_check
        %p419 = pneg %p174
      $region34: #{fwd.1} parent=11 // pred_check_branch
        %421 = sbr.rel (%p419) target = $region36
      $region35: #{fwd.1} parent=11 // pred_region
        _
      $region36: #{fwd.1} parent=11 // pred_fallthru
        _
      // Predicated region
      $region37: #{fwd.1} parent=11 // pred_check
        %p422 = pneg %p195
      $region38: #{fwd.1} parent=11 // pred_check_branch
        %424 = sbr.rel (%p422) target = $region40
      $region39: #{fwd.1} parent=11 // pred_region
        _
      $region40: #{fwd.1} parent=11 // pred_fallthru
        _
      // Predicated region
      $region41: #{fwd.1} parent=11 // pred_check
        %p425 = pneg %p216
      $region42: #{fwd.1} parent=11 // pred_check_branch
        %427 = sbr.rel (%p425) target = $region44
      $region43: #{fwd.1} parent=11 // pred_region
        _
      $region44: #{fwd.1} parent=11 // pred_fallthru
        _
      // Predicated region
      $region45: #{fwd.1} parent=11 // pred_check
        %p428 = pneg %p237
      $region46: #{fwd.1} parent=11 // pred_check_branch
        %430 = sbr.rel (%p428) target = $region48
      $region47: #{fwd.1} parent=11 // pred_region
        _
      $region48: #{fwd.1} parent=11 // pred_fallthru
        _
      // Predicated region
      $region49: #{fwd.1} parent=11 // pred_check
        %p431 = pneg %p258
      $region50: #{fwd.1} parent=11 // pred_check_branch
        %433 = sbr.rel (%p431) target = $region52
      $region51: #{fwd.1} parent=11 // pred_region
        _
      $region52: #{fwd.1} parent=11 // pred_fallthru
        _
      // Predicated region
      $region53: #{fwd.1} parent=11 // pred_check
        %p434 = pneg %p279
      $region54: #{fwd.1} parent=11 // pred_check_branch
        %436 = sbr.rel (%p434) target = $region56
      $region55: #{fwd.1} parent=11 // pred_region
        _
      $region56: #{fwd.1} parent=11 // pred_fallthru
        _
      // Predicated region
      $region57: #{fwd.1} parent=11 // pred_check
        %p437 = pneg %p300
      $region58: #{fwd.1} parent=11 // pred_check_branch
        %439 = sbr.rel (%p437) target = $region60
      $region59: #{fwd.1} parent=11 // pred_region
        _
      $region60: #{fwd.1} parent=11 // pred_fallthru
        _
      // Predicated region
      $region61: #{fwd.1} parent=11 // pred_check
        %p440 = pneg %p321
      $region62: #{fwd.1} parent=11 // pred_check_branch
        %442 = sbr.rel (%p440) target = $region64
      $region63: #{fwd.1} parent=11 // pred_region
        _
      $region64: #{fwd.1} parent=11 // pred_fallthru
        _
      // Predicated region
      $region65: #{fwd.1} parent=11 // pred_check
        %p443 = pneg %p342
      $region66: #{fwd.1} parent=11 // pred_check_branch
        %445 = sbr.rel (%p443) target = $region68
      $region67: #{fwd.1} parent=11 // pred_region
        _
      $region68: #{fwd.1} parent=11 // pred_fallthru
        _
      // Predicated region
      $region69: #{fwd.1} parent=11 // pred_check
        %p446 = pneg %p363
      $region70: #{fwd.1} parent=11 // pred_check_branch
        %448 = sbr.rel (%p446) target = $region72
      $region71: #{fwd.1} parent=11 // pred_region
        _
      $region72: #{fwd.1} parent=11 // pred_fallthru
        _
    $region12: #{fwd.1} parent=5 // pred_fallthru
      _
    %p449 = scmp.lt.s32.totalorder %s22, 2
    // Predicated region
    $region73: #{fwd.1} parent=5 // pred_check
      %p450 = pneg %p449
    $region74: #{fwd.1} parent=5 // pred_check_branch
      %452 = sbr.rel (%p450) target = $region76
    $region75: #{fwd.1} parent=5 // pred_region
      // Predicated region
      $region77: #{fwd.1} parent=75 // pred_check
        %p453 = pneg %p42
      $region78: #{fwd.1} parent=75 // pred_check_branch
        %455 = sbr.rel (%p453) target = $region80
      $region79: #{fwd.1} parent=75 // pred_region
        %p456 = scmp.lt.s32.totalorder %s22, 1
        %s457 = scalar_select %p456, %s22, 1
        %s458 = smul.addr %s457, 8
        %s459 = smul.addr %s458, 8
        %s460 = scalar_lea.vmem %s0, %s459
      $region80: #{fwd.1} parent=75 // pred_fallthru
        _
    $region76: #{fwd.1} parent=5 // pred_fallthru
      _
    %p461 = scmp.le.s32.totalorder 1, %s22
    %p462 = scmp.lt.s32.totalorder %s22, 3
    %p463 = pnand %p461, %p462
    %p464 = pneg %p463
    // Predicated region
    $region81: #{fwd.1} parent=5 // pred_check
      _
    $region82: #{fwd.1} parent=5 // pred_check_branch
      %466 = sbr.rel (%p463) target = $region84
    $region83: #{fwd.1} parent=5 // pred_region
      %s467 = ssub.s32 %s22, 1
      %p468 = scmp.lt.s32.totalorder %s27, 1
      %s469 = scalar_select %p468, %s27, 1
      %s470 = smul.addr %s469, 8
      %s471 = smul.addr %s470, 8
      %s472 = scalar_lea.vmem %s0, %s471
      %p473 = pneg %p48
      %p474 = pneg %p45
      %p475 = pneg %p69
      %p476 = pneg %p66
      %p477 = pneg %p90
      %p478 = pneg %p87
      %p479 = pneg %p111
      %p480 = pneg %p108
      %p481 = pneg %p132
      %p482 = pneg %p129
      %p483 = pneg %p153
      %p484 = pneg %p150
      %p485 = pneg %p174
      %p486 = pneg %p171
      %p487 = pneg %p195
      %p488 = pneg %p192
      %p489 = pneg %p216
      %p490 = pneg %p213
      %p491 = pneg %p237
      %p492 = pneg %p234
      %p493 = pneg %p258
      %p494 = pneg %p255
      %p495 = pneg %p279
      %p496 = pneg %p276
      %p497 = pneg %p300
      %p498 = pneg %p297
      %p499 = pneg %p321
      %p500 = pneg %p318
      %p501 = pneg %p342
      %p502 = pneg %p339
      %p503 = pneg %p363
      %p504 = pneg %p360
      %p505 = pneg %p389
      %p506 = pneg %p386
      %p507 = scmp.lt.s32.totalorder %s27, 1
      %s508 = scalar_select %p507, %s27, 1
      %s509 = smul.addr %s508, 4
      %s510 = scalar_lea.vmem %s16, %s509
      %p511 = scmp.lt.s32.totalorder %s27, 1
      %s512 = scalar_select %p511, %s27, 1
      %s513 = smul.addr %s512, 8
      %s514 = smul.addr %s513, 8
      %s515 = scalar_lea.vmem %s0, %s514
      %p516 = scmp.lt.s32.totalorder %s27, 1
      %s517 = scalar_select %p516, %s27, 1
      %s518 = smul.addr %s517, 4
      %s519 = scalar_lea.vmem %s16, %s518
      %v520 = vld [vmem:[%s515] sm:$0xff]
      %v521 = vld [vmem:[%s515 + $0x8] sm:$0xff]
      %v522 = vld [vmem:[%s515 + $0x10] sm:$0xff]
      %v523 = vld [vmem:[%s515 + $0x18] sm:$0xff]
      %v524 = vld [vmem:[%s515 + $0x20] sm:$0xff]
      %v525 = vld [vmem:[%s515 + $0x28] sm:$0xff]
      %v526 = vld [vmem:[%s515 + $0x30] sm:$0xff]
      %v527 = vld [vmem:[%s515 + $0x38] sm:$0xff]
      %v528 = vld [vmem:[%s2] sm:$0xff]
      %v529 = vld [vmem:[%s2 + $0x8] sm:$0xff]
      %vm530 = vcmask 31744
      %v531 = vsel %vm530, %v520, 0.0
      %532 = vadd.xlane.f32.xlu0 %v531
      %v533 = vpop.xlane.xlu0 %532
      %v534 = vsel %vm530, %v521, 0.0
      %535 = vadd.xlane.f32.xlu0 %v534
      %v536 = vpop.xlane.xlu0 %535
      %v537 = vsel %vm530, %v522, 0.0
      %538 = vadd.xlane.f32.xlu0 %v537
      %v539 = vpop.xlane.xlu0 %538
      %v540 = vsel %vm530, %v523, 0.0
      %541 = vadd.xlane.f32.xlu0 %v540
      %v542 = vpop.xlane.xlu0 %541
      %v543 = vsel %vm530, %v524, 0.0
      %544 = vadd.xlane.f32.xlu0 %v543
      %v545 = vpop.xlane.xlu0 %544
      %v546 = vsel %vm530, %v525, 0.0
      %547 = vadd.xlane.f32.xlu0 %v546
      %v548 = vpop.xlane.xlu0 %547
      %v549 = vsel %vm530, %v526, 0.0
      %550 = vadd.xlane.f32.xlu0 %v549
      %v551 = vpop.xlane.xlu0 %550
      %v552 = vsel %vm530, %v527, 0.0
      %553 = vadd.xlane.f32.xlu0 %v552
      %v554 = vpop.xlane.xlu0 %553
      %v563 = vlaneseq
      %v564 = vand.u32 %v563, 127
      %v565 = vperm.slane %v533, %v564
      %v566 = vadd.s32 %v564, 4294967288
      %v567 = vperm.slane %v536, %v566
      %vm568 = vcmask 130112
      %v569 = vsel %vm568, %v567, %v565
      %v570 = vperm.slane %v539, %v564
      %v571 = vperm.slane %v542, %v566
      %v572 = vsel %vm568, %v571, %v570
      %v573 = vperm.slane %v545, %v564
      %v574 = vperm.slane %v548, %v566
      %v575 = vsel %vm568, %v574, %v573
      %v576 = vperm.slane %v551, %v564
      %v577 = vperm.slane %v554, %v566
      %v578 = vsel %vm568, %v577, %v576
      %vm579 = vcmask 1041409
      %v580 = vsel %vm579, %v572, %v569
      %vm581 = vcmask 1042434
      %v582 = vsel %vm581, %v575, %v580
      %vm583 = vcmask 1043459
      %v584 = vsel %vm583, %v578, %v582
      %vm585 = vcmask 130048
      %v586 = vsel %vm585, %v584, 0
      %588 = vmatpush.msra.mxu0 0.0
      %589 = vmatpush.msra.mxu0 0.0
      %590 = vmatpush.msra.mxu0 0.0
      %591 = vmatpush.msra.mxu0 0.0
      %592 = vmatpush.msra.mxu0 0.0
      %593 = vmatpush.msra.mxu0 0.0
      %594 = vmatpush.msra.mxu0 0.0
      %595 = vmatpush.msra.mxu0 0.0
      %596 = vmatpush.msra.mxu0 0.0
      %597 = vmatpush.msra.mxu0 0.0
      %598 = vmatpush.msra.mxu0 0.0
      %599 = vmatpush.msra.mxu0 0.0
      %600 = vmatpush.msra.mxu0 0.0
      %601 = vmatpush.msra.mxu0 0.0
      %602 = vmatpush.msra.mxu0 %v529
      %603 = vmatpush.msra.mxu0 %v528
      %604 = vmatmul.f32.gmra.mxu0 %v586
      %v605 = vpop.f32.mrf.mxu0
      %v606 = vadd.f32 0.0, %v605
      %607 = vdwg.mxu0
      %v608 = vmul.f32 %v606, 0.0625
      %v610 = vsel %vm530, %v608, 0
      %v613 = vsel %vm530, %v528, 0
      %v616 = vsel %vm530, %v529, 0
      %618 = vmatpush.xpose.msra.mxu0 0.0
      %619 = vmatpush.xpose.msra.mxu0 0.0
      %620 = vmatpush.xpose.msra.mxu0 0.0
      %621 = vmatpush.xpose.msra.mxu0 0.0
      %622 = vmatpush.xpose.msra.mxu0 0.0
      %623 = vmatpush.xpose.msra.mxu0 0.0
      %624 = vmatpush.xpose.msra.mxu0 0.0
      %625 = vmatpush.xpose.msra.mxu0 0.0
      %626 = vmatpush.xpose.msra.mxu0 0.0
      %627 = vmatpush.xpose.msra.mxu0 0.0
      %628 = vmatpush.xpose.msra.mxu0 0.0
      %629 = vmatpush.xpose.msra.mxu0 0.0
      %630 = vmatpush.xpose.msra.mxu0 0.0
      %631 = vmatpush.xpose.msra.mxu0 0.0
      %632 = vmatpush.xpose.msra.mxu0 %v616
      %633 = vmatpush.xpose.msra.mxu0 %v613
      %634 = vmatmul.f32.gmra.mxu0 %v610
      %v635 = vpop.f32.mrf.mxu0
      %v636 = vadd.f32 0.0, %v635
      %637 = vdwg.mxu0
      %v638 = vperm.slane %v636, 0
      %v639 = vlaneseq
      %v640 = vshrl.u32 %v639, 7
      %642 = vset.pattern.permute.xlu0 %v640
      %643 = vperm.xlu0 %642, %v638
      %v644 = vpop.permute.xlu0 %643
      %v645 = vlaneseq
      %v646 = vshrl.u32 %v645, 7
      %v647 = vadd.s32 %v646, 8
      %648 = vset.pattern.permute.xlu0 %v647
      %649 = vperm.xlu0 %648, %v638
      %v650 = vpop.permute.xlu0 %649
      %v651 = vperm.slane %v636, 1
      %v652 = vlaneseq
      %v653 = vshrl.u32 %v652, 7
      %655 = vset.pattern.permute.xlu0 %v653
      %656 = vperm.xlu0 %655, %v651
      %v657 = vpop.permute.xlu0 %656
      %v658 = vlaneseq
      %v659 = vshrl.u32 %v658, 7
      %v660 = vadd.s32 %v659, 8
      %661 = vset.pattern.permute.xlu0 %v660
      %662 = vperm.xlu0 %661, %v651
      %v663 = vpop.permute.xlu0 %662
      %v664 = vperm.slane %v636, 2
      %v665 = vlaneseq
      %v666 = vshrl.u32 %v665, 7
      %668 = vset.pattern.permute.xlu0 %v666
      %669 = vperm.xlu0 %668, %v664
      %v670 = vpop.permute.xlu0 %669
      %v671 = vlaneseq
      %v672 = vshrl.u32 %v671, 7
      %v673 = vadd.s32 %v672, 8
      %674 = vset.pattern.permute.xlu0 %v673
      %675 = vperm.xlu0 %674, %v664
      %v676 = vpop.permute.xlu0 %675
      %v677 = vperm.slane %v636, 3
      %v678 = vlaneseq
      %v679 = vshrl.u32 %v678, 7
      %681 = vset.pattern.permute.xlu0 %v679
      %682 = vperm.xlu0 %681, %v677
      %v683 = vpop.permute.xlu0 %682
      %v684 = vlaneseq
      %v685 = vshrl.u32 %v684, 7
      %v686 = vadd.s32 %v685, 8
      %687 = vset.pattern.permute.xlu0 %v686
      %688 = vperm.xlu0 %687, %v677
      %v689 = vpop.permute.xlu0 %688
      %v690 = vsub.f32 %v520, %v644
      %v691 = vsub.f32 %v521, %v650
      %v692 = vsub.f32 %v522, %v657
      %v693 = vsub.f32 %v523, %v663
      %v694 = vsub.f32 %v524, %v670
      %v695 = vsub.f32 %v525, %v676
      %v696 = vsub.f32 %v526, %v683
      %v697 = vsub.f32 %v527, %v689
      %v698 = vmul.f32 %v690, %v690
      %v699 = vmul.f32 %v691, %v691
      %v700 = vmul.f32 %v692, %v692
      %v701 = vmul.f32 %v693, %v693
      %v702 = vmul.f32 %v694, %v694
      %v703 = vmul.f32 %v695, %v695
      %v704 = vmul.f32 %v696, %v696
      %v705 = vmul.f32 %v697, %v697
      %v706 = vsel %vm530, %v698, 0.0
      %707 = vadd.xlane.f32.xlu0 %v706
      %v708 = vpop.xlane.xlu0 %707
      %v709 = vsel %vm530, %v699, 0.0
      %710 = vadd.xlane.f32.xlu0 %v709
      %v711 = vpop.xlane.xlu0 %710
      %v712 = vsel %vm530, %v700, 0.0
      %713 = vadd.xlane.f32.xlu0 %v712
      %v714 = vpop.xlane.xlu0 %713
      %v715 = vsel %vm530, %v701, 0.0
      %716 = vadd.xlane.f32.xlu0 %v715
      %v717 = vpop.xlane.xlu0 %716
      %v718 = vsel %vm530, %v702, 0.0
      %719 = vadd.xlane.f32.xlu0 %v718
      %v720 = vpop.xlane.xlu0 %719
      %v721 = vsel %vm530, %v703, 0.0
      %722 = vadd.xlane.f32.xlu0 %v721
      %v723 = vpop.xlane.xlu0 %722
      %v724 = vsel %vm530, %v704, 0.0
      %725 = vadd.xlane.f32.xlu0 %v724
      %v726 = vpop.xlane.xlu0 %725
      %v727 = vsel %vm530, %v705, 0.0
      %728 = vadd.xlane.f32.xlu0 %v727
      %v729 = vpop.xlane.xlu0 %728
      %v738 = vperm.slane %v708, %v564
      %v739 = vperm.slane %v711, %v566
      %v740 = vsel %vm568, %v739, %v738
      %v741 = vperm.slane %v714, %v564
      %v742 = vperm.slane %v717, %v566
      %v743 = vsel %vm568, %v742, %v741
      %v744 = vperm.slane %v720, %v564
      %v745 = vperm.slane %v723, %v566
      %v746 = vsel %vm568, %v745, %v744
      %v747 = vperm.slane %v726, %v564
      %v748 = vperm.slane %v729, %v566
      %v749 = vsel %vm568, %v748, %v747
      %v750 = vsel %vm579, %v743, %v740
      %v751 = vsel %vm581, %v746, %v750
      %v752 = vsel %vm583, %v749, %v751
      %v753 = vsel %vm585, %v752, 0
      %755 = vmatpush.msra.mxu0 0.0
      %756 = vmatpush.msra.mxu0 0.0
      %757 = vmatpush.msra.mxu0 0.0
      %758 = vmatpush.msra.mxu0 0.0
      %759 = vmatpush.msra.mxu0 0.0
      %760 = vmatpush.msra.mxu0 0.0
      %761 = vmatpush.msra.mxu0 0.0
      %762 = vmatpush.msra.mxu0 0.0
      %763 = vmatpush.msra.mxu0 0.0
      %764 = vmatpush.msra.mxu0 0.0
      %765 = vmatpush.msra.mxu0 0.0
      %766 = vmatpush.msra.mxu0 0.0
      %767 = vmatpush.msra.mxu0 0.0
      %768 = vmatpush.msra.mxu0 0.0
      %769 = vmatpush.msra.mxu0 %v529
      %770 = vmatpush.msra.mxu0 %v528
      %771 = vmatmul.f32.gmra.mxu0 %v753
      %v772 = vpop.f32.mrf.mxu0
      %v773 = vadd.f32 0.0, %v772
      %774 = vdwg.mxu0
      %v775 = vmul.f32 %v773, 0.0625
      %v776 = vadd.f32 %v775, 1e-05
      %v777 = vrsqrt.pop %v776
      %v778 = vmul.f32 %v777, %v776
      %v779 = vmul.f32 %v778, %v777
      %v780 = vmul.f32 0.5, %v779
      %v781 = vsub.f32 1.5, %v780
      %v782 = vmul.f32 %v777, %v781
      %v783 = vmul.f32 %v776, %v782
      %vm784 = vcmp.eq.f32.partialorder %v776, inf
      %v785 = vsel %vm784, %v776, %v783
      %vm786 = vcmp.eq.f32.partialorder %v776, 0.0
      %v787 = vand.u32 %v776, 2147483648
      %v788 = vsel %vm786, %v787, %v785
      %v790 = vsel %vm530, %v788, 0
      %792 = vmatpush.xpose.msra.mxu0 0.0
      %793 = vmatpush.xpose.msra.mxu0 0.0
      %794 = vmatpush.xpose.msra.mxu0 0.0
      %795 = vmatpush.xpose.msra.mxu0 0.0
      %796 = vmatpush.xpose.msra.mxu0 0.0
      %797 = vmatpush.xpose.msra.mxu0 0.0
      %798 = vmatpush.xpose.msra.mxu0 0.0
      %799 = vmatpush.xpose.msra.mxu0 0.0
      %800 = vmatpush.xpose.msra.mxu0 0.0
      %801 = vmatpush.xpose.msra.mxu0 0.0
      %802 = vmatpush.xpose.msra.mxu0 0.0
      %803 = vmatpush.xpose.msra.mxu0 0.0
      %804 = vmatpush.xpose.msra.mxu0 0.0
      %805 = vmatpush.xpose.msra.mxu0 0.0
      %806 = vmatpush.xpose.msra.mxu0 %v616
      %807 = vmatpush.xpose.msra.mxu0 %v613
      %808 = vmatmul.f32.gmra.mxu0 %v790
      %v809 = vpop.f32.mrf.mxu0
      %v810 = vadd.f32 0.0, %v809
      %811 = vdwg.mxu0
      %v812 = vperm.slane %v810, 0
      %v813 = vlaneseq
      %v814 = vshrl.u32 %v813, 7
      %816 = vset.pattern.permute.xlu0 %v814
      %817 = vperm.xlu0 %816, %v812
      %v818 = vpop.permute.xlu0 %817
      %v819 = vlaneseq
      %v820 = vshrl.u32 %v819, 7
      %v821 = vadd.s32 %v820, 8
      %822 = vset.pattern.permute.xlu0 %v821
      %823 = vperm.xlu0 %822, %v812
      %v824 = vpop.permute.xlu0 %823
      %v825 = vperm.slane %v810, 1
      %v826 = vlaneseq
      %v827 = vshrl.u32 %v826, 7
      %829 = vset.pattern.permute.xlu0 %v827
      %830 = vperm.xlu0 %829, %v825
      %v831 = vpop.permute.xlu0 %830
      %v832 = vlaneseq
      %v833 = vshrl.u32 %v832, 7
      %v834 = vadd.s32 %v833, 8
      %835 = vset.pattern.permute.xlu0 %v834
      %836 = vperm.xlu0 %835, %v825
      %v837 = vpop.permute.xlu0 %836
      %v838 = vperm.slane %v810, 2
      %v839 = vlaneseq
      %v840 = vshrl.u32 %v839, 7
      %842 = vset.pattern.permute.xlu0 %v840
      %843 = vperm.xlu0 %842, %v838
      %v844 = vpop.permute.xlu0 %843
      %v845 = vlaneseq
      %v846 = vshrl.u32 %v845, 7
      %v847 = vadd.s32 %v846, 8
      %848 = vset.pattern.permute.xlu0 %v847
      %849 = vperm.xlu0 %848, %v838
      %v850 = vpop.permute.xlu0 %849
      %v851 = vperm.slane %v810, 3
      %v852 = vlaneseq
      %v853 = vshrl.u32 %v852, 7
      %855 = vset.pattern.permute.xlu0 %v853
      %856 = vperm.xlu0 %855, %v851
      %v857 = vpop.permute.xlu0 %856
      %v858 = vlaneseq
      %v859 = vshrl.u32 %v858, 7
      %v860 = vadd.s32 %v859, 8
      %861 = vset.pattern.permute.xlu0 %v860
      %862 = vperm.xlu0 %861, %v851
      %v863 = vpop.permute.xlu0 %862
      %v864 = vrcp.pop %v818
      %v865 = vmul.f32 %v818, %v864
      %v866 = vsub.f32 1.0, %v865
      %v867 = vmul.f32 %v864, %v866
      %v868 = vadd.f32 %v864, %v867
      %vm869 = vweird.f32 %v818
      %vm870 = vweird.f32 %v864
      %vm871 = vmor %vm869, %vm870
      %v872 = vsel %vm871, %v864, %v868
      %v873 = vand.u32 2147483647, %v818
      %vm874 = vcmp.eq.f32.partialorder %v873, 8.507059e+37
      %v875 = vand.u32 %v818, 2147483648
      %v876 = vor.u32 1.1754944e-38, %v875
      %v877 = vsel %vm874, %v876, %v872
      %v878 = vmul.f32 %v690, %v877
      %v879 = vrcp.pop %v824
      %v880 = vmul.f32 %v824, %v879
      %v881 = vsub.f32 1.0, %v880
      %v882 = vmul.f32 %v879, %v881
      %v883 = vadd.f32 %v879, %v882
      %vm884 = vweird.f32 %v824
      %vm885 = vweird.f32 %v879
      %vm886 = vmor %vm884, %vm885
      %v887 = vsel %vm886, %v879, %v883
      %v888 = vand.u32 2147483647, %v824
      %vm889 = vcmp.eq.f32.partialorder %v888, 8.507059e+37
      %v890 = vand.u32 %v824, 2147483648
      %v891 = vor.u32 1.1754944e-38, %v890
      %v892 = vsel %vm889, %v891, %v887
      %v893 = vmul.f32 %v691, %v892
      %v894 = vrcp.pop %v831
      %v895 = vmul.f32 %v831, %v894
      %v896 = vsub.f32 1.0, %v895
      %v897 = vmul.f32 %v894, %v896
      %v898 = vadd.f32 %v894, %v897
      %vm899 = vweird.f32 %v831
      %vm900 = vweird.f32 %v894
      %vm901 = vmor %vm899, %vm900
      %v902 = vsel %vm901, %v894, %v898
      %v903 = vand.u32 2147483647, %v831
      %vm904 = vcmp.eq.f32.partialorder %v903, 8.507059e+37
      %v905 = vand.u32 %v831, 2147483648
      %v906 = vor.u32 1.1754944e-38, %v905
      %v907 = vsel %vm904, %v906, %v902
      %v908 = vmul.f32 %v692, %v907
      %v909 = vrcp.pop %v837
      %v910 = vmul.f32 %v837, %v909
      %v911 = vsub.f32 1.0, %v910
      %v912 = vmul.f32 %v909, %v911
      %v913 = vadd.f32 %v909, %v912
      %vm914 = vweird.f32 %v837
      %vm915 = vweird.f32 %v909
      %vm916 = vmor %vm914, %vm915
      %v917 = vsel %vm916, %v909, %v913
      %v918 = vand.u32 2147483647, %v837
      %vm919 = vcmp.eq.f32.partialorder %v918, 8.507059e+37
      %v920 = vand.u32 %v837, 2147483648
      %v921 = vor.u32 1.1754944e-38, %v920
      %v922 = vsel %vm919, %v921, %v917
      %v923 = vmul.f32 %v693, %v922
      %v924 = vrcp.pop %v844
      %v925 = vmul.f32 %v844, %v924
      %v926 = vsub.f32 1.0, %v925
      %v927 = vmul.f32 %v924, %v926
      %v928 = vadd.f32 %v924, %v927
      %vm929 = vweird.f32 %v844
      %vm930 = vweird.f32 %v924
      %vm931 = vmor %vm929, %vm930
      %v932 = vsel %vm931, %v924, %v928
      %v933 = vand.u32 2147483647, %v844
      %vm934 = vcmp.eq.f32.partialorder %v933, 8.507059e+37
      %v935 = vand.u32 %v844, 2147483648
      %v936 = vor.u32 1.1754944e-38, %v935
      %v937 = vsel %vm934, %v936, %v932
      %v938 = vmul.f32 %v694, %v937
      %v939 = vrcp.pop %v850
      %v940 = vmul.f32 %v850, %v939
      %v941 = vsub.f32 1.0, %v940
      %v942 = vmul.f32 %v939, %v941
      %v943 = vadd.f32 %v939, %v942
      %vm944 = vweird.f32 %v850
      %vm945 = vweird.f32 %v939
      %vm946 = vmor %vm944, %vm945
      %v947 = vsel %vm946, %v939, %v943
      %v948 = vand.u32 2147483647, %v850
      %vm949 = vcmp.eq.f32.partialorder %v948, 8.507059e+37
      %v950 = vand.u32 %v850, 2147483648
      %v951 = vor.u32 1.1754944e-38, %v950
      %v952 = vsel %vm949, %v951, %v947
      %v953 = vmul.f32 %v695, %v952
      %v954 = vrcp.pop %v857
      %v955 = vmul.f32 %v857, %v954
      %v956 = vsub.f32 1.0, %v955
      %v957 = vmul.f32 %v954, %v956
      %v958 = vadd.f32 %v954, %v957
      %vm959 = vweird.f32 %v857
      %vm960 = vweird.f32 %v954
      %vm961 = vmor %vm959, %vm960
      %v962 = vsel %vm961, %v954, %v958
      %v963 = vand.u32 2147483647, %v857
      %vm964 = vcmp.eq.f32.partialorder %v963, 8.507059e+37
      %v965 = vand.u32 %v857, 2147483648
      %v966 = vor.u32 1.1754944e-38, %v965
      %v967 = vsel %vm964, %v966, %v962
      %v968 = vmul.f32 %v696, %v967
      %v969 = vrcp.pop %v863
      %v970 = vmul.f32 %v863, %v969
      %v971 = vsub.f32 1.0, %v970
      %v972 = vmul.f32 %v969, %v971
      %v973 = vadd.f32 %v969, %v972
      %vm974 = vweird.f32 %v863
      %vm975 = vweird.f32 %v969
      %vm976 = vmor %vm974, %vm975
      %v977 = vsel %vm976, %v969, %v973
      %v978 = vand.u32 2147483647, %v863
      %vm979 = vcmp.eq.f32.partialorder %v978, 8.507059e+37
      %v980 = vand.u32 %v863, 2147483648
      %v981 = vor.u32 1.1754944e-38, %v980
      %v982 = vsel %vm979, %v981, %v977
      %v983 = vmul.f32 %v697, %v982
      %v984 = vld [vmem:[%s4] sm:$0xf]
      %v986 = vsel %vm530, %v878, 0
      %v989 = vsel %vm530, %v893, 0
      %v992 = vsel %vm530, %v908, 0
      %v995 = vsel %vm530, %v923, 0
      %v998 = vsel %vm530, %v938, 0
      %v1001 = vsel %vm530, %v953, 0
      %v1004 = vsel %vm530, %v968, 0
      %v1007 = vsel %vm530, %v983, 0
      %vm1009 = vcmask 1043456
      %v1011 = vsel %vm1009, %v984, 0
      %1013 = vmatpush.msra.mxu0 0.0
      %1014 = vmatpush.msra.mxu0 0.0
      %1015 = vmatpush.msra.mxu0 0.0
      %1016 = vmatpush.msra.mxu0 0.0
      %1017 = vmatpush.msra.mxu0 0.0
      %1018 = vmatpush.msra.mxu0 0.0
      %1019 = vmatpush.msra.mxu0 0.0
      %1020 = vmatpush.msra.mxu0 0.0
      %1021 = vmatpush.msra.mxu0 0.0
      %1022 = vmatpush.msra.mxu0 0.0
      %1023 = vmatpush.msra.mxu0 0.0
      %1024 = vmatpush.msra.mxu0 0.0
      %1025 = vmatpush.msra.mxu0 0.0
      %1026 = vmatpush.msra.mxu0 0.0
      %1027 = vmatpush.msra.mxu0 0.0
      %1028 = vmatpush.msra.mxu0 %v1011
      %1029 = vmatmul.f32.gmra.mxu0 %v986
      %v1030 = vpop.f32.mrf.mxu0
      %v1031 = vadd.f32 0.0, %v1030
      %1032 = vmatmul.f32.gmra.mxu0 %v989
      %v1033 = vpop.f32.mrf.mxu0
      %v1034 = vadd.f32 0.0, %v1033
      %1035 = vmatmul.f32.gmra.mxu0 %v992
      %v1036 = vpop.f32.mrf.mxu0
      %v1037 = vadd.f32 0.0, %v1036
      %1038 = vmatmul.f32.gmra.mxu0 %v995
      %v1039 = vpop.f32.mrf.mxu0
      %v1040 = vadd.f32 0.0, %v1039
      %1041 = vmatmul.f32.gmra.mxu0 %v998
      %v1042 = vpop.f32.mrf.mxu0
      %v1043 = vadd.f32 0.0, %v1042
      %1044 = vmatmul.f32.gmra.mxu0 %v1001
      %v1045 = vpop.f32.mrf.mxu0
      %v1046 = vadd.f32 0.0, %v1045
      %1047 = vmatmul.f32.gmra.mxu0 %v1004
      %v1048 = vpop.f32.mrf.mxu0
      %v1049 = vadd.f32 0.0, %v1048
      %1050 = vmatmul.f32.gmra.mxu0 %v1007
      %v1051 = vpop.f32.mrf.mxu0
      %v1052 = vadd.f32 0.0, %v1051
      %1053 = vdwg.mxu0
      %v1054 = vld [vmem:[%s1] sm:$0xff]
      %v1055 = vld [vmem:[%s1 + $0x8] sm:$0xff]
      %v1056 = vld [vmem:[%s13] sm:$0xf]
      %v1057 = vld [vmem:[%s5] sm:$0xff]
      %v1058 = vld [vmem:[%s5 + $0x8] sm:$0xff]
      %v1059 = vld [vmem:[%s5 + $0x10] sm:$0xff]
      %v1060 = vld [vmem:[%s5 + $0x18] sm:$0xff]
      %v1061 = vld [vmem:[%s6] sm:$0x1]
      %v1063 = vperm.slane %v1061, 0
      %vm1065 = vcmask 261120
      %v1067 = vsel %vm1065, %v1031, 0
      %v1070 = vsel %vm1065, %v1034, 0
      %v1073 = vsel %vm1065, %v1037, 0
      %v1076 = vsel %vm1065, %v1040, 0
      %v1079 = vsel %vm1065, %v1043, 0
      %v1082 = vsel %vm1065, %v1046, 0
      %v1085 = vsel %vm1065, %v1049, 0
      %v1088 = vsel %vm1065, %v1052, 0
      %1090 = vmatpush.msra.mxu0 0.0
      %1091 = vmatpush.msra.mxu0 0.0
      %1092 = vmatpush.msra.mxu0 0.0
      %1093 = vmatpush.msra.mxu0 0.0
      %1094 = vmatpush.msra.mxu0 0.0
      %1095 = vmatpush.msra.mxu0 0.0
      %1096 = vmatpush.msra.mxu0 0.0
      %1097 = vmatpush.msra.mxu0 0.0
      %1098 = vmatpush.msra.mxu0 0.0
      %1099 = vmatpush.msra.mxu0 0.0
      %1100 = vmatpush.msra.mxu0 0.0
      %1101 = vmatpush.msra.mxu0 0.0
      %1102 = vmatpush.msra.mxu0 %v1060
      %1103 = vmatpush.msra.mxu0 %v1059
      %1104 = vmatpush.msra.mxu0 %v1058
      %1105 = vmatpush.msra.mxu0 %v1057
      %1106 = vmatmul.f32.gmra.mxu0 %v1067
      %v1107 = vpop.f32.mrf.mxu0
      %v1108 = vadd.f32 %v1063, %v1107
      %1109 = vmatmul.f32.gmra.mxu0 %v1070
      %v1110 = vpop.f32.mrf.mxu0
      %v1111 = vadd.f32 %v1063, %v1110
      %1112 = vmatmul.f32.gmra.mxu0 %v1073
      %v1113 = vpop.f32.mrf.mxu0
      %v1114 = vadd.f32 %v1063, %v1113
      %1115 = vmatmul.f32.gmra.mxu0 %v1076
      %v1116 = vpop.f32.mrf.mxu0
      %v1117 = vadd.f32 %v1063, %v1116
      %1118 = vmatmul.f32.gmra.mxu0 %v1079
      %v1119 = vpop.f32.mrf.mxu0
      %v1120 = vadd.f32 %v1063, %v1119
      %1121 = vmatmul.f32.gmra.mxu0 %v1082
      %v1122 = vpop.f32.mrf.mxu0
      %v1123 = vadd.f32 %v1063, %v1122
      %1124 = vmatmul.f32.gmra.mxu0 %v1085
      %v1125 = vpop.f32.mrf.mxu0
      %v1126 = vadd.f32 %v1063, %v1125
      %1127 = vmatmul.f32.gmra.mxu0 %v1088
      %v1128 = vpop.f32.mrf.mxu0
      %v1129 = vadd.f32 %v1063, %v1128
      %1130 = vdwg.mxu0
      %1133 = vrot.lane.b32.xlu0 %v1108, 96
      %v1134 = vpop.permute.xlu0 %1133
      %1135 = vrot.lane.b32.xlu0 %v1111, 96
      %v1136 = vpop.permute.xlu0 %1135
      %vm1137 = vcmask 64512
      %v1138 = vsel %vm1137, %v1108, 0
      %v1140 = vsel %vm1137, %v1111, 0
      %v1142 = vsel %vm1137, %v1134, 0
      %v1144 = vsel %vm1137, %v1136, 0
      %1146 = vmatpush.xpose.msra.mxu0 0.0
      %1147 = vmatpush.xpose.msra.mxu0 0.0
      %1148 = vmatpush.xpose.msra.mxu0 0.0
      %1149 = vmatpush.xpose.msra.mxu0 0.0
      %1150 = vmatpush.xpose.msra.mxu0 0.0
      %1151 = vmatpush.xpose.msra.mxu0 0.0
      %1152 = vmatpush.xpose.msra.mxu0 0.0
      %1153 = vmatpush.xpose.msra.mxu0 0.0
      %1154 = vmatpush.xpose.msra.mxu0 0.0
      %1155 = vmatpush.xpose.msra.mxu0 0.0
      %1156 = vmatpush.xpose.msra.mxu0 0.0
      %1157 = vmatpush.xpose.msra.mxu0 0.0
      %1158 = vmatpush.xpose.msra.mxu0 0.0
      %1159 = vmatpush.xpose.msra.mxu0 0.0
      %1160 = vmatpush.xpose.msra.mxu0 %v1144
      %1161 = vmatpush.xpose.msra.mxu0 %v1142
      %1162 = vmatmul.f32.gmra.mxu0 %v1138
      %v1163 = vpop.f32.mrf.mxu0
      %v1164 = vadd.f32 %v1054, %v1163
      %1165 = vmatmul.f32.gmra.mxu0 %v1140
      %v1166 = vpop.f32.mrf.mxu0
      %v1167 = vadd.f32 %v1055, %v1166
      %1168 = vdwg.mxu0
      %1171 = vrot.lane.b32.xlu0 %v1114, 96
      %v1172 = vpop.permute.xlu0 %1171
      %1173 = vrot.lane.b32.xlu0 %v1117, 96
      %v1174 = vpop.permute.xlu0 %1173
      %v1175 = vsel %vm1137, %v1114, 0
      %v1177 = vsel %vm1137, %v1117, 0
      %v1179 = vsel %vm1137, %v1172, 0
      %v1181 = vsel %vm1137, %v1174, 0
      %1183 = vmatpush.xpose.msra.mxu0 0.0
      %1184 = vmatpush.xpose.msra.mxu0 0.0
      %1185 = vmatpush.xpose.msra.mxu0 0.0
      %1186 = vmatpush.xpose.msra.mxu0 0.0
      %1187 = vmatpush.xpose.msra.mxu0 0.0
      %1188 = vmatpush.xpose.msra.mxu0 0.0
      %1189 = vmatpush.xpose.msra.mxu0 0.0
      %1190 = vmatpush.xpose.msra.mxu0 0.0
      %1191 = vmatpush.xpose.msra.mxu0 0.0
      %1192 = vmatpush.xpose.msra.mxu0 0.0
      %1193 = vmatpush.xpose.msra.mxu0 0.0
      %1194 = vmatpush.xpose.msra.mxu0 0.0
      %1195 = vmatpush.xpose.msra.mxu0 0.0
      %1196 = vmatpush.xpose.msra.mxu0 0.0
      %1197 = vmatpush.xpose.msra.mxu0 %v1181
      %1198 = vmatpush.xpose.msra.mxu0 %v1179
      %1199 = vmatmul.f32.gmra.mxu0 %v1175
      %v1200 = vpop.f32.mrf.mxu0
      %v1201 = vadd.f32 %v1054, %v1200
      %1202 = vmatmul.f32.gmra.mxu0 %v1177
      %v1203 = vpop.f32.mrf.mxu0
      %v1204 = vadd.f32 %v1055, %v1203
      %1205 = vdwg.mxu0
      %1208 = vrot.lane.b32.xlu0 %v1120, 96
      %v1209 = vpop.permute.xlu0 %1208
      %1210 = vrot.lane.b32.xlu0 %v1123, 96
      %v1211 = vpop.permute.xlu0 %1210
      %v1212 = vsel %vm1137, %v1120, 0
      %v1214 = vsel %vm1137, %v1123, 0
      %v1216 = vsel %vm1137, %v1209, 0
      %v1218 = vsel %vm1137, %v1211, 0
      %1220 = vmatpush.xpose.msra.mxu0 0.0
      %1221 = vmatpush.xpose.msra.mxu0 0.0
      %1222 = vmatpush.xpose.msra.mxu0 0.0
      %1223 = vmatpush.xpose.msra.mxu0 0.0
      %1224 = vmatpush.xpose.msra.mxu0 0.0
      %1225 = vmatpush.xpose.msra.mxu0 0.0
      %1226 = vmatpush.xpose.msra.mxu0 0.0
      %1227 = vmatpush.xpose.msra.mxu0 0.0
      %1228 = vmatpush.xpose.msra.mxu0 0.0
      %1229 = vmatpush.xpose.msra.mxu0 0.0
      %1230 = vmatpush.xpose.msra.mxu0 0.0
      %1231 = vmatpush.xpose.msra.mxu0 0.0
      %1232 = vmatpush.xpose.msra.mxu0 0.0
      %1233 = vmatpush.xpose.msra.mxu0 0.0
      %1234 = vmatpush.xpose.msra.mxu0 %v1218
      %1235 = vmatpush.xpose.msra.mxu0 %v1216
      %1236 = vmatmul.f32.gmra.mxu0 %v1212
      %v1237 = vpop.f32.mrf.mxu0
      %v1238 = vadd.f32 %v1054, %v1237
      %1239 = vmatmul.f32.gmra.mxu0 %v1214
      %v1240 = vpop.f32.mrf.mxu0
      %v1241 = vadd.f32 %v1055, %v1240
      %1242 = vdwg.mxu0
      %1245 = vrot.lane.b32.xlu0 %v1126, 96
      %v1246 = vpop.permute.xlu0 %1245
      %1247 = vrot.lane.b32.xlu0 %v1129, 96
      %v1248 = vpop.permute.xlu0 %1247
      %v1249 = vsel %vm1137, %v1126, 0
      %v1251 = vsel %vm1137, %v1129, 0
      %v1253 = vsel %vm1137, %v1246, 0
      %v1255 = vsel %vm1137, %v1248, 0
      %1257 = vmatpush.xpose.msra.mxu0 0.0
      %1258 = vmatpush.xpose.msra.mxu0 0.0
      %1259 = vmatpush.xpose.msra.mxu0 0.0
      %1260 = vmatpush.xpose.msra.mxu0 0.0
      %1261 = vmatpush.xpose.msra.mxu0 0.0
      %1262 = vmatpush.xpose.msra.mxu0 0.0
      %1263 = vmatpush.xpose.msra.mxu0 0.0
      %1264 = vmatpush.xpose.msra.mxu0 0.0
      %1265 = vmatpush.xpose.msra.mxu0 0.0
      %1266 = vmatpush.xpose.msra.mxu0 0.0
      %1267 = vmatpush.xpose.msra.mxu0 0.0
      %1268 = vmatpush.xpose.msra.mxu0 0.0
      %1269 = vmatpush.xpose.msra.mxu0 0.0
      %1270 = vmatpush.xpose.msra.mxu0 0.0
      %1271 = vmatpush.xpose.msra.mxu0 %v1255
      %1272 = vmatpush.xpose.msra.mxu0 %v1253
      %1273 = vmatmul.f32.gmra.mxu0 %v1249
      %v1274 = vpop.f32.mrf.mxu0
      %v1275 = vadd.f32 %v1054, %v1274
      %1276 = vmatmul.f32.gmra.mxu0 %v1251
      %v1277 = vpop.f32.mrf.mxu0
      %v1278 = vadd.f32 %v1055, %v1277
      %1279 = vdwg.mxu0
      %v1280 = vsel %vm585, %v1164, -inf
      %1281 = vmax.xlane.f32.xlu0 %v1280
      %v1282 = vpop.xlane.xlu0 %1281
      %v1283 = vsel %vm585, %v1167, -inf
      %1284 = vmax.xlane.f32.xlu0 %v1283
      %v1285 = vpop.xlane.xlu0 %1284
      %v1286 = vsel %vm585, %v1201, -inf
      %1287 = vmax.xlane.f32.xlu0 %v1286
      %v1288 = vpop.xlane.xlu0 %1287
      %v1289 = vsel %vm585, %v1204, -inf
      %1290 = vmax.xlane.f32.xlu0 %v1289
      %v1291 = vpop.xlane.xlu0 %1290
      %v1292 = vsel %vm585, %v1238, -inf
      %1293 = vmax.xlane.f32.xlu0 %v1292
      %v1294 = vpop.xlane.xlu0 %1293
      %v1295 = vsel %vm585, %v1241, -inf
      %1296 = vmax.xlane.f32.xlu0 %v1295
      %v1297 = vpop.xlane.xlu0 %1296
      %v1298 = vsel %vm585, %v1275, -inf
      %1299 = vmax.xlane.f32.xlu0 %v1298
      %v1300 = vpop.xlane.xlu0 %1299
      %v1301 = vsel %vm585, %v1278, -inf
      %1302 = vmax.xlane.f32.xlu0 %v1301
      %v1303 = vpop.xlane.xlu0 %1302
      %v1304 = vsub.f32 %v1164, %v1282
      %v1305 = vsub.f32 %v1167, %v1285
      %v1306 = vsub.f32 %v1201, %v1288
      %v1307 = vsub.f32 %v1204, %v1291
      %v1308 = vsub.f32 %v1238, %v1294
      %v1309 = vsub.f32 %v1241, %v1297
      %v1310 = vsub.f32 %v1275, %v1300
      %v1311 = vsub.f32 %v1278, %v1303
      %v1312 = vmul.f32 %v1304, 1.442695
      %v1313 = vpow.pop %v1312
      %v1314 = vmul.f32 %v1305, 1.442695
      %v1315 = vpow.pop %v1314
      %v1316 = vmul.f32 %v1306, 1.442695
      %v1317 = vpow.pop %v1316
      %v1318 = vmul.f32 %v1307, 1.442695
      %v1319 = vpow.pop %v1318
      %v1320 = vmul.f32 %v1308, 1.442695
      %v1321 = vpow.pop %v1320
      %v1322 = vmul.f32 %v1309, 1.442695
      %v1323 = vpow.pop %v1322
      %v1324 = vmul.f32 %v1310, 1.442695
      %v1325 = vpow.pop %v1324
      %v1326 = vmul.f32 %v1311, 1.442695
      %v1327 = vpow.pop %v1326
      %v1328 = vsel %vm585, %v1313, 0.0
      %1329 = vadd.xlane.f32.xlu0 %v1328
      %v1330 = vpop.xlane.xlu0 %1329
      %v1331 = vsel %vm585, %v1315, 0.0
      %1332 = vadd.xlane.f32.xlu0 %v1331
      %v1333 = vpop.xlane.xlu0 %1332
      %v1334 = vsel %vm585, %v1317, 0.0
      %1335 = vadd.xlane.f32.xlu0 %v1334
      %v1336 = vpop.xlane.xlu0 %1335
      %v1337 = vsel %vm585, %v1319, 0.0
      %1338 = vadd.xlane.f32.xlu0 %v1337
      %v1339 = vpop.xlane.xlu0 %1338
      %v1340 = vsel %vm585, %v1321, 0.0
      %1341 = vadd.xlane.f32.xlu0 %v1340
      %v1342 = vpop.xlane.xlu0 %1341
      %v1343 = vsel %vm585, %v1323, 0.0
      %1344 = vadd.xlane.f32.xlu0 %v1343
      %v1345 = vpop.xlane.xlu0 %1344
      %v1346 = vsel %vm585, %v1325, 0.0
      %1347 = vadd.xlane.f32.xlu0 %v1346
      %v1348 = vpop.xlane.xlu0 %1347
      %v1349 = vsel %vm585, %v1327, 0.0
      %1350 = vadd.xlane.f32.xlu0 %v1349
      %v1351 = vpop.xlane.xlu0 %1350
      %v1352 = vrcp.pop %v1330
      %v1353 = vrcp.pop %v1333
      %v1354 = vrcp.pop %v1336
      %v1355 = vrcp.pop %v1339
      %v1356 = vrcp.pop %v1342
      %v1357 = vrcp.pop %v1345
      %v1358 = vrcp.pop %v1348
      %v1359 = vrcp.pop %v1351
      %v1360 = vmul.f32 %v1313, %v1352
      %v1361 = vmul.f32 %v1315, %v1353
      %v1362 = vmul.f32 %v1317, %v1354
      %v1363 = vmul.f32 %v1319, %v1355
      %v1364 = vmul.f32 %v1321, %v1356
      %v1365 = vmul.f32 %v1323, %v1357
      %v1366 = vmul.f32 %v1325, %v1358
      %v1367 = vmul.f32 %v1327, %v1359
      %1368 = vrot.lane.b32.xlu0 %v1108, 64
      %v1369 = vpop.permute.xlu0 %1368
      %1370 = vrot.lane.b32.xlu0 %v1111, 64
      %v1371 = vpop.permute.xlu0 %1370
      %v1375 = vsel %vm585, %v1360, 0
      %v1378 = vsel %vm585, %v1361, 0
      %1380 = vmatpush.msra.mxu0 0.0
      %1381 = vmatpush.msra.mxu0 0.0
      %1382 = vmatpush.msra.mxu0 0.0
      %1383 = vmatpush.msra.mxu0 0.0
      %1384 = vmatpush.msra.mxu0 0.0
      %1385 = vmatpush.msra.mxu0 0.0
      %1386 = vmatpush.msra.mxu0 0.0
      %1387 = vmatpush.msra.mxu0 0.0
      %1388 = vmatpush.msra.mxu0 0.0
      %1389 = vmatpush.msra.mxu0 0.0
      %1390 = vmatpush.msra.mxu0 0.0
      %1391 = vmatpush.msra.mxu0 0.0
      %1392 = vmatpush.msra.mxu0 0.0
      %1393 = vmatpush.msra.mxu0 0.0
      %1394 = vmatpush.msra.mxu0 %v1371
      %1395 = vmatpush.msra.mxu0 %v1369
      %1396 = vmatmul.f32.gmra.mxu0 %v1375
      %v1397 = vpop.f32.mrf.mxu0
      %v1398 = vadd.f32 0.0, %v1397
      %1399 = vmatmul.f32.gmra.mxu0 %v1378
      %v1400 = vpop.f32.mrf.mxu0
      %v1401 = vadd.f32 0.0, %v1400
      %1402 = vdwg.mxu0
      %1403 = vrot.lane.b32.xlu0 %v1114, 64
      %v1404 = vpop.permute.xlu0 %1403
      %1405 = vrot.lane.b32.xlu0 %v1117, 64
      %v1406 = vpop.permute.xlu0 %1405
      %v1410 = vsel %vm585, %v1362, 0
      %v1413 = vsel %vm585, %v1363, 0
      %1415 = vmatpush.msra.mxu0 0.0
      %1416 = vmatpush.msra.mxu0 0.0
      %1417 = vmatpush.msra.mxu0 0.0
      %1418 = vmatpush.msra.mxu0 0.0
      %1419 = vmatpush.msra.mxu0 0.0
      %1420 = vmatpush.msra.mxu0 0.0
      %1421 = vmatpush.msra.mxu0 0.0
      %1422 = vmatpush.msra.mxu0 0.0
      %1423 = vmatpush.msra.mxu0 0.0
      %1424 = vmatpush.msra.mxu0 0.0
      %1425 = vmatpush.msra.mxu0 0.0
      %1426 = vmatpush.msra.mxu0 0.0
      %1427 = vmatpush.msra.mxu0 0.0
      %1428 = vmatpush.msra.mxu0 0.0
      %1429 = vmatpush.msra.mxu0 %v1406
      %1430 = vmatpush.msra.mxu0 %v1404
      %1431 = vmatmul.f32.gmra.mxu0 %v1410
      %v1432 = vpop.f32.mrf.mxu0
      %v1433 = vadd.f32 0.0, %v1432
      %1434 = vmatmul.f32.gmra.mxu0 %v1413
      %v1435 = vpop.f32.mrf.mxu0
      %v1436 = vadd.f32 0.0, %v1435
      %1437 = vdwg.mxu0
      %1438 = vrot.lane.b32.xlu0 %v1120, 64
      %v1439 = vpop.permute.xlu0 %1438
      %1440 = vrot.lane.b32.xlu0 %v1123, 64
      %v1441 = vpop.permute.xlu0 %1440
      %v1445 = vsel %vm585, %v1364, 0
      %v1448 = vsel %vm585, %v1365, 0
      %1450 = vmatpush.msra.mxu0 0.0
      %1451 = vmatpush.msra.mxu0 0.0
      %1452 = vmatpush.msra.mxu0 0.0
      %1453 = vmatpush.msra.mxu0 0.0
      %1454 = vmatpush.msra.mxu0 0.0
      %1455 = vmatpush.msra.mxu0 0.0
      %1456 = vmatpush.msra.mxu0 0.0
      %1457 = vmatpush.msra.mxu0 0.0
      %1458 = vmatpush.msra.mxu0 0.0
      %1459 = vmatpush.msra.mxu0 0.0
      %1460 = vmatpush.msra.mxu0 0.0
      %1461 = vmatpush.msra.mxu0 0.0
      %1462 = vmatpush.msra.mxu0 0.0
      %1463 = vmatpush.msra.mxu0 0.0
      %1464 = vmatpush.msra.mxu0 %v1441
      %1465 = vmatpush.msra.mxu0 %v1439
      %1466 = vmatmul.f32.gmra.mxu0 %v1445
      %v1467 = vpop.f32.mrf.mxu0
      %v1468 = vadd.f32 0.0, %v1467
      %1469 = vmatmul.f32.gmra.mxu0 %v1448
      %v1470 = vpop.f32.mrf.mxu0
      %v1471 = vadd.f32 0.0, %v1470
      %1472 = vdwg.mxu0
      %1473 = vrot.lane.b32.xlu0 %v1126, 64
      %v1474 = vpop.permute.xlu0 %1473
      %1475 = vrot.lane.b32.xlu0 %v1129, 64
      %v1476 = vpop.permute.xlu0 %1475
      %v1480 = vsel %vm585, %v1366, 0
      %v1483 = vsel %vm585, %v1367, 0
      %1485 = vmatpush.msra.mxu0 0.0
      %1486 = vmatpush.msra.mxu0 0.0
      %1487 = vmatpush.msra.mxu0 0.0
      %1488 = vmatpush.msra.mxu0 0.0
      %1489 = vmatpush.msra.mxu0 0.0
      %1490 = vmatpush.msra.mxu0 0.0
      %1491 = vmatpush.msra.mxu0 0.0
      %1492 = vmatpush.msra.mxu0 0.0
      %1493 = vmatpush.msra.mxu0 0.0
      %1494 = vmatpush.msra.mxu0 0.0
      %1495 = vmatpush.msra.mxu0 0.0
      %1496 = vmatpush.msra.mxu0 0.0
      %1497 = vmatpush.msra.mxu0 0.0
      %1498 = vmatpush.msra.mxu0 0.0
      %1499 = vmatpush.msra.mxu0 %v1476
      %1500 = vmatpush.msra.mxu0 %v1474
      %1501 = vmatmul.f32.gmra.mxu0 %v1480
      %v1502 = vpop.f32.mrf.mxu0
      %v1503 = vadd.f32 0.0, %v1502
      %1504 = vmatmul.f32.gmra.mxu0 %v1483
      %v1505 = vpop.f32.mrf.mxu0
      %v1506 = vadd.f32 0.0, %v1505
      %1507 = vdwg.mxu0
      %1508 = vrot.lane.b32.xlu0 %v1108, 120
      %v1509 = vpop.permute.xlu0 %1508
      %1510 = vrot.lane.b32.xlu0 %v1111, 120
      %v1511 = vpop.permute.xlu0 %1510
      %1512 = vrot.lane.b32.xlu0 %v1108, 88
      %v1513 = vpop.permute.xlu0 %1512
      %1514 = vrot.lane.b32.xlu0 %v1111, 88
      %v1515 = vpop.permute.xlu0 %1514
      %v1516 = vsel %vm1137, %v1509, 0
      %v1518 = vsel %vm1137, %v1511, 0
      %v1520 = vsel %vm1137, %v1513, 0
      %v1522 = vsel %vm1137, %v1515, 0
      %1524 = vmatpush.xpose.msra.mxu0 0.0
      %1525 = vmatpush.xpose.msra.mxu0 0.0
      %1526 = vmatpush.xpose.msra.mxu0 0.0
      %1527 = vmatpush.xpose.msra.mxu0 0.0
      %1528 = vmatpush.xpose.msra.mxu0 0.0
      %1529 = vmatpush.xpose.msra.mxu0 0.0
      %1530 = vmatpush.xpose.msra.mxu0 0.0
      %1531 = vmatpush.xpose.msra.mxu0 0.0
      %1532 = vmatpush.xpose.msra.mxu0 0.0
      %1533 = vmatpush.xpose.msra.mxu0 0.0
      %1534 = vmatpush.xpose.msra.mxu0 0.0
      %1535 = vmatpush.xpose.msra.mxu0 0.0
      %1536 = vmatpush.xpose.msra.mxu0 0.0
      %1537 = vmatpush.xpose.msra.mxu0 0.0
      %1538 = vmatpush.xpose.msra.mxu0 %v1522
      %1539 = vmatpush.xpose.msra.mxu0 %v1520
      %1540 = vmatmul.f32.gmra.mxu0 %v1516
      %v1541 = vpop.f32.mrf.mxu0
      %v1542 = vadd.f32 %v1054, %v1541
      %1543 = vmatmul.f32.gmra.mxu0 %v1518
      %v1544 = vpop.f32.mrf.mxu0
      %v1545 = vadd.f32 %v1055, %v1544
      %1546 = vdwg.mxu0
      %1547 = vrot.lane.b32.xlu0 %v1114, 120
      %v1548 = vpop.permute.xlu0 %1547
      %1549 = vrot.lane.b32.xlu0 %v1117, 120
      %v1550 = vpop.permute.xlu0 %1549
      %1551 = vrot.lane.b32.xlu0 %v1114, 88
      %v1552 = vpop.permute.xlu0 %1551
      %1553 = vrot.lane.b32.xlu0 %v1117, 88
      %v1554 = vpop.permute.xlu0 %1553
      %v1555 = vsel %vm1137, %v1548, 0
      %v1557 = vsel %vm1137, %v1550, 0
      %v1559 = vsel %vm1137, %v1552, 0
      %v1561 = vsel %vm1137, %v1554, 0
      %1563 = vmatpush.xpose.msra.mxu0 0.0
      %1564 = vmatpush.xpose.msra.mxu0 0.0
      %1565 = vmatpush.xpose.msra.mxu0 0.0
      %1566 = vmatpush.xpose.msra.mxu0 0.0
      %1567 = vmatpush.xpose.msra.mxu0 0.0
      %1568 = vmatpush.xpose.msra.mxu0 0.0
      %1569 = vmatpush.xpose.msra.mxu0 0.0
      %1570 = vmatpush.xpose.msra.mxu0 0.0
      %1571 = vmatpush.xpose.msra.mxu0 0.0
      %1572 = vmatpush.xpose.msra.mxu0 0.0
      %1573 = vmatpush.xpose.msra.mxu0 0.0
      %1574 = vmatpush.xpose.msra.mxu0 0.0
      %1575 = vmatpush.xpose.msra.mxu0 0.0
      %1576 = vmatpush.xpose.msra.mxu0 0.0
      %1577 = vmatpush.xpose.msra.mxu0 %v1561
      %1578 = vmatpush.xpose.msra.mxu0 %v1559
      %1579 = vmatmul.f32.gmra.mxu0 %v1555
      %v1580 = vpop.f32.mrf.mxu0
      %v1581 = vadd.f32 %v1054, %v1580
      %1582 = vmatmul.f32.gmra.mxu0 %v1557
      %v1583 = vpop.f32.mrf.mxu0
      %v1584 = vadd.f32 %v1055, %v1583
      %1585 = vdwg.mxu0
      %1586 = vrot.lane.b32.xlu0 %v1120, 120
      %v1587 = vpop.permute.xlu0 %1586
      %1588 = vrot.lane.b32.xlu0 %v1123, 120
      %v1589 = vpop.permute.xlu0 %1588
      %1590 = vrot.lane.b32.xlu0 %v1120, 88
      %v1591 = vpop.permute.xlu0 %1590
      %1592 = vrot.lane.b32.xlu0 %v1123, 88
      %v1593 = vpop.permute.xlu0 %1592
      %v1594 = vsel %vm1137, %v1587, 0
      %v1596 = vsel %vm1137, %v1589, 0
      %v1598 = vsel %vm1137, %v1591, 0
      %v1600 = vsel %vm1137, %v1593, 0
      %1602 = vmatpush.xpose.msra.mxu0 0.0
      %1603 = vmatpush.xpose.msra.mxu0 0.0
      %1604 = vmatpush.xpose.msra.mxu0 0.0
      %1605 = vmatpush.xpose.msra.mxu0 0.0
      %1606 = vmatpush.xpose.msra.mxu0 0.0
      %1607 = vmatpush.xpose.msra.mxu0 0.0
      %1608 = vmatpush.xpose.msra.mxu0 0.0
      %1609 = vmatpush.xpose.msra.mxu0 0.0
      %1610 = vmatpush.xpose.msra.mxu0 0.0
      %1611 = vmatpush.xpose.msra.mxu0 0.0
      %1612 = vmatpush.xpose.msra.mxu0 0.0
      %1613 = vmatpush.xpose.msra.mxu0 0.0
      %1614 = vmatpush.xpose.msra.mxu0 0.0
      %1615 = vmatpush.xpose.msra.mxu0 0.0
      %1616 = vmatpush.xpose.msra.mxu0 %v1600
      %1617 = vmatpush.xpose.msra.mxu0 %v1598
      %1618 = vmatmul.f32.gmra.mxu0 %v1594
      %v1619 = vpop.f32.mrf.mxu0
      %v1620 = vadd.f32 %v1054, %v1619
      %1621 = vmatmul.f32.gmra.mxu0 %v1596
      %v1622 = vpop.f32.mrf.mxu0
      %v1623 = vadd.f32 %v1055, %v1622
      %1624 = vdwg.mxu0
      %1625 = vrot.lane.b32.xlu0 %v1126, 120
      %v1626 = vpop.permute.xlu0 %1625
      %1627 = vrot.lane.b32.xlu0 %v1129, 120
      %v1628 = vpop.permute.xlu0 %1627
      %1629 = vrot.lane.b32.xlu0 %v1126, 88
      %v1630 = vpop.permute.xlu0 %1629
      %1631 = vrot.lane.b32.xlu0 %v1129, 88
      %v1632 = vpop.permute.xlu0 %1631
      %v1633 = vsel %vm1137, %v1626, 0
      %v1635 = vsel %vm1137, %v1628, 0
      %v1637 = vsel %vm1137, %v1630, 0
      %v1639 = vsel %vm1137, %v1632, 0
      %1641 = vmatpush.xpose.msra.mxu0 0.0
      %1642 = vmatpush.xpose.msra.mxu0 0.0
      %1643 = vmatpush.xpose.msra.mxu0 0.0
      %1644 = vmatpush.xpose.msra.mxu0 0.0
      %1645 = vmatpush.xpose.msra.mxu0 0.0
      %1646 = vmatpush.xpose.msra.mxu0 0.0
      %1647 = vmatpush.xpose.msra.mxu0 0.0
      %1648 = vmatpush.xpose.msra.mxu0 0.0
      %1649 = vmatpush.xpose.msra.mxu0 0.0
      %1650 = vmatpush.xpose.msra.mxu0 0.0
      %1651 = vmatpush.xpose.msra.mxu0 0.0
      %1652 = vmatpush.xpose.msra.mxu0 0.0
      %1653 = vmatpush.xpose.msra.mxu0 0.0
      %1654 = vmatpush.xpose.msra.mxu0 0.0
      %1655 = vmatpush.xpose.msra.mxu0 %v1639
      %1656 = vmatpush.xpose.msra.mxu0 %v1637
      %1657 = vmatmul.f32.gmra.mxu0 %v1633
      %v1658 = vpop.f32.mrf.mxu0
      %v1659 = vadd.f32 %v1054, %v1658
      %1660 = vmatmul.f32.gmra.mxu0 %v1635
      %v1661 = vpop.f32.mrf.mxu0
      %v1662 = vadd.f32 %v1055, %v1661
      %1663 = vdwg.mxu0
      %v1664 = vsel %vm585, %v1542, -inf
      %1665 = vmax.xlane.f32.xlu0 %v1664
      %v1666 = vpop.xlane.xlu0 %1665
      %v1667 = vsel %vm585, %v1545, -inf
      %1668 = vmax.xlane.f32.xlu0 %v1667
      %v1669 = vpop.xlane.xlu0 %1668
      %v1670 = vsel %vm585, %v1581, -inf
      %1671 = vmax.xlane.f32.xlu0 %v1670
      %v1672 = vpop.xlane.xlu0 %1671
      %v1673 = vsel %vm585, %v1584, -inf
      %1674 = vmax.xlane.f32.xlu0 %v1673
      %v1675 = vpop.xlane.xlu0 %1674
      %v1676 = vsel %vm585, %v1620, -inf
      %1677 = vmax.xlane.f32.xlu0 %v1676
      %v1678 = vpop.xlane.xlu0 %1677
      %v1679 = vsel %vm585, %v1623, -inf
      %1680 = vmax.xlane.f32.xlu0 %v1679
      %v1681 = vpop.xlane.xlu0 %1680
      %v1682 = vsel %vm585, %v1659, -inf
      %1683 = vmax.xlane.f32.xlu0 %v1682
      %v1684 = vpop.xlane.xlu0 %1683
      %v1685 = vsel %vm585, %v1662, -inf
      %1686 = vmax.xlane.f32.xlu0 %v1685
      %v1687 = vpop.xlane.xlu0 %1686
      %v1688 = vsub.f32 %v1542, %v1666
      %v1689 = vsub.f32 %v1545, %v1669
      %v1690 = vsub.f32 %v1581, %v1672
      %v1691 = vsub.f32 %v1584, %v1675
      %v1692 = vsub.f32 %v1620, %v1678
      %v1693 = vsub.f32 %v1623, %v1681
      %v1694 = vsub.f32 %v1659, %v1684
      %v1695 = vsub.f32 %v1662, %v1687
      %v1696 = vmul.f32 %v1688, 1.442695
      %v1697 = vpow.pop %v1696
      %v1698 = vmul.f32 %v1689, 1.442695
      %v1699 = vpow.pop %v1698
      %v1700 = vmul.f32 %v1690, 1.442695
      %v1701 = vpow.pop %v1700
      %v1702 = vmul.f32 %v1691, 1.442695
      %v1703 = vpow.pop %v1702
      %v1704 = vmul.f32 %v1692, 1.442695
      %v1705 = vpow.pop %v1704
      %v1706 = vmul.f32 %v1693, 1.442695
      %v1707 = vpow.pop %v1706
      %v1708 = vmul.f32 %v1694, 1.442695
      %v1709 = vpow.pop %v1708
      %v1710 = vmul.f32 %v1695, 1.442695
      %v1711 = vpow.pop %v1710
      %v1712 = vsel %vm585, %v1697, 0.0
      %1713 = vadd.xlane.f32.xlu0 %v1712
      %v1714 = vpop.xlane.xlu0 %1713
      %v1715 = vsel %vm585, %v1699, 0.0
      %1716 = vadd.xlane.f32.xlu0 %v1715
      %v1717 = vpop.xlane.xlu0 %1716
      %v1718 = vsel %vm585, %v1701, 0.0
      %1719 = vadd.xlane.f32.xlu0 %v1718
      %v1720 = vpop.xlane.xlu0 %1719
      %v1721 = vsel %vm585, %v1703, 0.0
      %1722 = vadd.xlane.f32.xlu0 %v1721
      %v1723 = vpop.xlane.xlu0 %1722
      %v1724 = vsel %vm585, %v1705, 0.0
      %1725 = vadd.xlane.f32.xlu0 %v1724
      %v1726 = vpop.xlane.xlu0 %1725
      %v1727 = vsel %vm585, %v1707, 0.0
      %1728 = vadd.xlane.f32.xlu0 %v1727
      %v1729 = vpop.xlane.xlu0 %1728
      %v1730 = vsel %vm585, %v1709, 0.0
      %1731 = vadd.xlane.f32.xlu0 %v1730
      %v1732 = vpop.xlane.xlu0 %1731
      %v1733 = vsel %vm585, %v1711, 0.0
      %1734 = vadd.xlane.f32.xlu0 %v1733
      %v1735 = vpop.xlane.xlu0 %1734
      %v1736 = vrcp.pop %v1714
      %v1737 = vrcp.pop %v1717
      %v1738 = vrcp.pop %v1720
      %v1739 = vrcp.pop %v1723
      %v1740 = vrcp.pop %v1726
      %v1741 = vrcp.pop %v1729
      %v1742 = vrcp.pop %v1732
      %v1743 = vrcp.pop %v1735
      %v1744 = vmul.f32 %v1697, %v1736
      %v1745 = vmul.f32 %v1699, %v1737
      %v1746 = vmul.f32 %v1701, %v1738
      %v1747 = vmul.f32 %v1703, %v1739
      %v1748 = vmul.f32 %v1705, %v1740
      %v1749 = vmul.f32 %v1707, %v1741
      %v1750 = vmul.f32 %v1709, %v1742
      %v1751 = vmul.f32 %v1711, %v1743
      %1752 = vrot.lane.b32.xlu0 %v1108, 56
      %v1753 = vpop.permute.xlu0 %1752
      %1754 = vrot.lane.b32.xlu0 %v1111, 56
      %v1755 = vpop.permute.xlu0 %1754
      %v1759 = vsel %vm585, %v1744, 0
      %v1762 = vsel %vm585, %v1745, 0
      %1764 = vmatpush.msra.mxu0 0.0
      %1765 = vmatpush.msra.mxu0 0.0
      %1766 = vmatpush.msra.mxu0 0.0
      %1767 = vmatpush.msra.mxu0 0.0
      %1768 = vmatpush.msra.mxu0 0.0
      %1769 = vmatpush.msra.mxu0 0.0
      %1770 = vmatpush.msra.mxu0 0.0
      %1771 = vmatpush.msra.mxu0 0.0
      %1772 = vmatpush.msra.mxu0 0.0
      %1773 = vmatpush.msra.mxu0 0.0
      %1774 = vmatpush.msra.mxu0 0.0
      %1775 = vmatpush.msra.mxu0 0.0
      %1776 = vmatpush.msra.mxu0 0.0
      %1777 = vmatpush.msra.mxu0 0.0
      %1778 = vmatpush.msra.mxu0 %v1755
      %1779 = vmatpush.msra.mxu0 %v1753
      %1780 = vmatmul.f32.gmra.mxu0 %v1759
      %v1781 = vpop.f32.mrf.mxu0
      %v1782 = vadd.f32 0.0, %v1781
      %1783 = vmatmul.f32.gmra.mxu0 %v1762
      %v1784 = vpop.f32.mrf.mxu0
      %v1785 = vadd.f32 0.0, %v1784
      %1786 = vdwg.mxu0
      %1787 = vrot.lane.b32.xlu0 %v1114, 56
      %v1788 = vpop.permute.xlu0 %1787
      %1789 = vrot.lane.b32.xlu0 %v1117, 56
      %v1790 = vpop.permute.xlu0 %1789
      %v1794 = vsel %vm585, %v1746, 0
      %v1797 = vsel %vm585, %v1747, 0
      %1799 = vmatpush.msra.mxu0 0.0
      %1800 = vmatpush.msra.mxu0 0.0
      %1801 = vmatpush.msra.mxu0 0.0
      %1802 = vmatpush.msra.mxu0 0.0
      %1803 = vmatpush.msra.mxu0 0.0
      %1804 = vmatpush.msra.mxu0 0.0
      %1805 = vmatpush.msra.mxu0 0.0
      %1806 = vmatpush.msra.mxu0 0.0
      %1807 = vmatpush.msra.mxu0 0.0
      %1808 = vmatpush.msra.mxu0 0.0
      %1809 = vmatpush.msra.mxu0 0.0
      %1810 = vmatpush.msra.mxu0 0.0
      %1811 = vmatpush.msra.mxu0 0.0
      %1812 = vmatpush.msra.mxu0 0.0
      %1813 = vmatpush.msra.mxu0 %v1790
      %1814 = vmatpush.msra.mxu0 %v1788
      %1815 = vmatmul.f32.gmra.mxu0 %v1794
      %v1816 = vpop.f32.mrf.mxu0
      %v1817 = vadd.f32 0.0, %v1816
      %1818 = vmatmul.f32.gmra.mxu0 %v1797
      %v1819 = vpop.f32.mrf.mxu0
      %v1820 = vadd.f32 0.0, %v1819
      %1821 = vdwg.mxu0
      %1822 = vrot.lane.b32.xlu0 %v1120, 56
      %v1823 = vpop.permute.xlu0 %1822
      %1824 = vrot.lane.b32.xlu0 %v1123, 56
      %v1825 = vpop.permute.xlu0 %1824
      %v1829 = vsel %vm585, %v1748, 0
      %v1832 = vsel %vm585, %v1749, 0
      %1834 = vmatpush.msra.mxu0 0.0
      %1835 = vmatpush.msra.mxu0 0.0
      %1836 = vmatpush.msra.mxu0 0.0
      %1837 = vmatpush.msra.mxu0 0.0
      %1838 = vmatpush.msra.mxu0 0.0
      %1839 = vmatpush.msra.mxu0 0.0
      %1840 = vmatpush.msra.mxu0 0.0
      %1841 = vmatpush.msra.mxu0 0.0
      %1842 = vmatpush.msra.mxu0 0.0
      %1843 = vmatpush.msra.mxu0 0.0
      %1844 = vmatpush.msra.mxu0 0.0
      %1845 = vmatpush.msra.mxu0 0.0
      %1846 = vmatpush.msra.mxu0 0.0
      %1847 = vmatpush.msra.mxu0 0.0
      %1848 = vmatpush.msra.mxu0 %v1825
      %1849 = vmatpush.msra.mxu0 %v1823
      %1850 = vmatmul.f32.gmra.mxu0 %v1829
      %v1851 = vpop.f32.mrf.mxu0
      %v1852 = vadd.f32 0.0, %v1851
      %1853 = vmatmul.f32.gmra.mxu0 %v1832
      %v1854 = vpop.f32.mrf.mxu0
      %v1855 = vadd.f32 0.0, %v1854
      %1856 = vdwg.mxu0
      %1857 = vrot.lane.b32.xlu0 %v1126, 56
      %v1858 = vpop.permute.xlu0 %1857
      %1859 = vrot.lane.b32.xlu0 %v1129, 56
      %v1860 = vpop.permute.xlu0 %1859
      %v1864 = vsel %vm585, %v1750, 0
      %v1867 = vsel %vm585, %v1751, 0
      %1869 = vmatpush.msra.mxu0 0.0
      %1870 = vmatpush.msra.mxu0 0.0
      %1871 = vmatpush.msra.mxu0 0.0
      %1872 = vmatpush.msra.mxu0 0.0
      %1873 = vmatpush.msra.mxu0 0.0
      %1874 = vmatpush.msra.mxu0 0.0
      %1875 = vmatpush.msra.mxu0 0.0
      %1876 = vmatpush.msra.mxu0 0.0
      %1877 = vmatpush.msra.mxu0 0.0
      %1878 = vmatpush.msra.mxu0 0.0
      %1879 = vmatpush.msra.mxu0 0.0
      %1880 = vmatpush.msra.mxu0 0.0
      %1881 = vmatpush.msra.mxu0 0.0
      %1882 = vmatpush.msra.mxu0 0.0
      %1883 = vmatpush.msra.mxu0 %v1860
      %1884 = vmatpush.msra.mxu0 %v1858
      %1885 = vmatmul.f32.gmra.mxu0 %v1864
      %v1886 = vpop.f32.mrf.mxu0
      %v1887 = vadd.f32 0.0, %v1886
      %1888 = vmatmul.f32.gmra.mxu0 %v1867
      %v1889 = vpop.f32.mrf.mxu0
      %v1890 = vadd.f32 0.0, %v1889
      %1891 = vdwg.mxu0
      %1892 = vrot.lane.b32.xlu0 %v1108, 112
      %v1893 = vpop.permute.xlu0 %1892
      %1894 = vrot.lane.b32.xlu0 %v1111, 112
      %v1895 = vpop.permute.xlu0 %1894
      %1896 = vrot.lane.b32.xlu0 %v1108, 80
      %v1897 = vpop.permute.xlu0 %1896
      %1898 = vrot.lane.b32.xlu0 %v1111, 80
      %v1899 = vpop.permute.xlu0 %1898
      %v1900 = vsel %vm1137, %v1893, 0
      %v1902 = vsel %vm1137, %v1895, 0
      %v1904 = vsel %vm1137, %v1897, 0
      %v1906 = vsel %vm1137, %v1899, 0
      %1908 = vmatpush.xpose.msra.mxu0 0.0
      %1909 = vmatpush.xpose.msra.mxu0 0.0
      %1910 = vmatpush.xpose.msra.mxu0 0.0
      %1911 = vmatpush.xpose.msra.mxu0 0.0
      %1912 = vmatpush.xpose.msra.mxu0 0.0
      %1913 = vmatpush.xpose.msra.mxu0 0.0
      %1914 = vmatpush.xpose.msra.mxu0 0.0
      %1915 = vmatpush.xpose.msra.mxu0 0.0
      %1916 = vmatpush.xpose.msra.mxu0 0.0
      %1917 = vmatpush.xpose.msra.mxu0 0.0
      %1918 = vmatpush.xpose.msra.mxu0 0.0
      %1919 = vmatpush.xpose.msra.mxu0 0.0
      %1920 = vmatpush.xpose.msra.mxu0 0.0
      %1921 = vmatpush.xpose.msra.mxu0 0.0
      %1922 = vmatpush.xpose.msra.mxu0 %v1906
      %1923 = vmatpush.xpose.msra.mxu0 %v1904
      %1924 = vmatmul.f32.gmra.mxu0 %v1900
      %v1925 = vpop.f32.mrf.mxu0
      %v1926 = vadd.f32 %v1054, %v1925
      %1927 = vmatmul.f32.gmra.mxu0 %v1902
      %v1928 = vpop.f32.mrf.mxu0
      %v1929 = vadd.f32 %v1055, %v1928
      %1930 = vdwg.mxu0
      %1931 = vrot.lane.b32.xlu0 %v1114, 112
      %v1932 = vpop.permute.xlu0 %1931
      %1933 = vrot.lane.b32.xlu0 %v1117, 112
      %v1934 = vpop.permute.xlu0 %1933
      %1935 = vrot.lane.b32.xlu0 %v1114, 80
      %v1936 = vpop.permute.xlu0 %1935
      %1937 = vrot.lane.b32.xlu0 %v1117, 80
      %v1938 = vpop.permute.xlu0 %1937
      %v1939 = vsel %vm1137, %v1932, 0
      %v1941 = vsel %vm1137, %v1934, 0
      %v1943 = vsel %vm1137, %v1936, 0
      %v1945 = vsel %vm1137, %v1938, 0
      %1947 = vmatpush.xpose.msra.mxu0 0.0
      %1948 = vmatpush.xpose.msra.mxu0 0.0
      %1949 = vmatpush.xpose.msra.mxu0 0.0
      %1950 = vmatpush.xpose.msra.mxu0 0.0
      %1951 = vmatpush.xpose.msra.mxu0 0.0
      %1952 = vmatpush.xpose.msra.mxu0 0.0
      %1953 = vmatpush.xpose.msra.mxu0 0.0
      %1954 = vmatpush.xpose.msra.mxu0 0.0
      %1955 = vmatpush.xpose.msra.mxu0 0.0
      %1956 = vmatpush.xpose.msra.mxu0 0.0
      %1957 = vmatpush.xpose.msra.mxu0 0.0
      %1958 = vmatpush.xpose.msra.mxu0 0.0
      %1959 = vmatpush.xpose.msra.mxu0 0.0
      %1960 = vmatpush.xpose.msra.mxu0 0.0
      %1961 = vmatpush.xpose.msra.mxu0 %v1945
      %1962 = vmatpush.xpose.msra.mxu0 %v1943
      %1963 = vmatmul.f32.gmra.mxu0 %v1939
      %v1964 = vpop.f32.mrf.mxu0
      %v1965 = vadd.f32 %v1054, %v1964
      %1966 = vmatmul.f32.gmra.mxu0 %v1941
      %v1967 = vpop.f32.mrf.mxu0
      %v1968 = vadd.f32 %v1055, %v1967
      %1969 = vdwg.mxu0
      %1970 = vrot.lane.b32.xlu0 %v1120, 112
      %v1971 = vpop.permute.xlu0 %1970
      %1972 = vrot.lane.b32.xlu0 %v1123, 112
      %v1973 = vpop.permute.xlu0 %1972
      %1974 = vrot.lane.b32.xlu0 %v1120, 80
      %v1975 = vpop.permute.xlu0 %1974
      %1976 = vrot.lane.b32.xlu0 %v1123, 80
      %v1977 = vpop.permute.xlu0 %1976
      %v1978 = vsel %vm1137, %v1971, 0
      %v1980 = vsel %vm1137, %v1973, 0
      %v1982 = vsel %vm1137, %v1975, 0
      %v1984 = vsel %vm1137, %v1977, 0
      %1986 = vmatpush.xpose.msra.mxu0 0.0
      %1987 = vmatpush.xpose.msra.mxu0 0.0
      %1988 = vmatpush.xpose.msra.mxu0 0.0
      %1989 = vmatpush.xpose.msra.mxu0 0.0
      %1990 = vmatpush.xpose.msra.mxu0 0.0
      %1991 = vmatpush.xpose.msra.mxu0 0.0
      %1992 = vmatpush.xpose.msra.mxu0 0.0
      %1993 = vmatpush.xpose.msra.mxu0 0.0
      %1994 = vmatpush.xpose.msra.mxu0 0.0
      %1995 = vmatpush.xpose.msra.mxu0 0.0
      %1996 = vmatpush.xpose.msra.mxu0 0.0
      %1997 = vmatpush.xpose.msra.mxu0 0.0
      %1998 = vmatpush.xpose.msra.mxu0 0.0
      %1999 = vmatpush.xpose.msra.mxu0 0.0
      %2000 = vmatpush.xpose.msra.mxu0 %v1984
      %2001 = vmatpush.xpose.msra.mxu0 %v1982
      %2002 = vmatmul.f32.gmra.mxu0 %v1978
      %v2003 = vpop.f32.mrf.mxu0
      %v2004 = vadd.f32 %v1054, %v2003
      %2005 = vmatmul.f32.gmra.mxu0 %v1980
      %v2006 = vpop.f32.mrf.mxu0
      %v2007 = vadd.f32 %v1055, %v2006
      %2008 = vdwg.mxu0
      %2009 = vrot.lane.b32.xlu0 %v1126, 112
      %v2010 = vpop.permute.xlu0 %2009
      %2011 = vrot.lane.b32.xlu0 %v1129, 112
      %v2012 = vpop.permute.xlu0 %2011
      %2013 = vrot.lane.b32.xlu0 %v1126, 80
      %v2014 = vpop.permute.xlu0 %2013
      %2015 = vrot.lane.b32.xlu0 %v1129, 80
      %v2016 = vpop.permute.xlu0 %2015
      %v2017 = vsel %vm1137, %v2010, 0
      %v2019 = vsel %vm1137, %v2012, 0
      %v2021 = vsel %vm1137, %v2014, 0
      %v2023 = vsel %vm1137, %v2016, 0
      %2025 = vmatpush.xpose.msra.mxu0 0.0
      %2026 = vmatpush.xpose.msra.mxu0 0.0
      %2027 = vmatpush.xpose.msra.mxu0 0.0
      %2028 = vmatpush.xpose.msra.mxu0 0.0
      %2029 = vmatpush.xpose.msra.mxu0 0.0
      %2030 = vmatpush.xpose.msra.mxu0 0.0
      %2031 = vmatpush.xpose.msra.mxu0 0.0
      %2032 = vmatpush.xpose.msra.mxu0 0.0
      %2033 = vmatpush.xpose.msra.mxu0 0.0
      %2034 = vmatpush.xpose.msra.mxu0 0.0
      %2035 = vmatpush.xpose.msra.mxu0 0.0
      %2036 = vmatpush.xpose.msra.mxu0 0.0
      %2037 = vmatpush.xpose.msra.mxu0 0.0
      %2038 = vmatpush.xpose.msra.mxu0 0.0
      %2039 = vmatpush.xpose.msra.mxu0 %v2023
      %2040 = vmatpush.xpose.msra.mxu0 %v2021
      %2041 = vmatmul.f32.gmra.mxu0 %v2017
      %v2042 = vpop.f32.mrf.mxu0
      %v2043 = vadd.f32 %v1054, %v2042
      %2044 = vmatmul.f32.gmra.mxu0 %v2019
      %v2045 = vpop.f32.mrf.mxu0
      %v2046 = vadd.f32 %v1055, %v2045
      %2047 = vdwg.mxu0
      %v2048 = vsel %vm585, %v1926, -inf
      %2049 = vmax.xlane.f32.xlu0 %v2048
      %v2050 = vpop.xlane.xlu0 %2049
      %v2051 = vsel %vm585, %v1929, -inf
      %2052 = vmax.xlane.f32.xlu0 %v2051
      %v2053 = vpop.xlane.xlu0 %2052
      %v2054 = vsel %vm585, %v1965, -inf
      %2055 = vmax.xlane.f32.xlu0 %v2054
      %v2056 = vpop.xlane.xlu0 %2055
      %v2057 = vsel %vm585, %v1968, -inf
      %2058 = vmax.xlane.f32.xlu0 %v2057
      %v2059 = vpop.xlane.xlu0 %2058
      %v2060 = vsel %vm585, %v2004, -inf
      %2061 = vmax.xlane.f32.xlu0 %v2060
      %v2062 = vpop.xlane.xlu0 %2061
      %v2063 = vsel %vm585, %v2007, -inf
      %2064 = vmax.xlane.f32.xlu0 %v2063
      %v2065 = vpop.xlane.xlu0 %2064
      %v2066 = vsel %vm585, %v2043, -inf
      %2067 = vmax.xlane.f32.xlu0 %v2066
      %v2068 = vpop.xlane.xlu0 %2067
      %v2069 = vsel %vm585, %v2046, -inf
      %2070 = vmax.xlane.f32.xlu0 %v2069
      %v2071 = vpop.xlane.xlu0 %2070
      %v2072 = vsub.f32 %v1926, %v2050
      %v2073 = vsub.f32 %v1929, %v2053
      %v2074 = vsub.f32 %v1965, %v2056
      %v2075 = vsub.f32 %v1968, %v2059
      %v2076 = vsub.f32 %v2004, %v2062
      %v2077 = vsub.f32 %v2007, %v2065
      %v2078 = vsub.f32 %v2043, %v2068
      %v2079 = vsub.f32 %v2046, %v2071
      %v2080 = vmul.f32 %v2072, 1.442695
      %v2081 = vpow.pop %v2080
      %v2082 = vmul.f32 %v2073, 1.442695
      %v2083 = vpow.pop %v2082
      %v2084 = vmul.f32 %v2074, 1.442695
      %v2085 = vpow.pop %v2084
      %v2086 = vmul.f32 %v2075, 1.442695
      %v2087 = vpow.pop %v2086
      %v2088 = vmul.f32 %v2076, 1.442695
      %v2089 = vpow.pop %v2088
      %v2090 = vmul.f32 %v2077, 1.442695
      %v2091 = vpow.pop %v2090
      %v2092 = vmul.f32 %v2078, 1.442695
      %v2093 = vpow.pop %v2092
      %v2094 = vmul.f32 %v2079, 1.442695
      %v2095 = vpow.pop %v2094
      %v2096 = vsel %vm585, %v2081, 0.0
      %2097 = vadd.xlane.f32.xlu0 %v2096
      %v2098 = vpop.xlane.xlu0 %2097
      %v2099 = vsel %vm585, %v2083, 0.0
      %2100 = vadd.xlane.f32.xlu0 %v2099
      %v2101 = vpop.xlane.xlu0 %2100
      %v2102 = vsel %vm585, %v2085, 0.0
      %2103 = vadd.xlane.f32.xlu0 %v2102
      %v2104 = vpop.xlane.xlu0 %2103
      %v2105 = vsel %vm585, %v2087, 0.0
      %2106 = vadd.xlane.f32.xlu0 %v2105
      %v2107 = vpop.xlane.xlu0 %2106
      %v2108 = vsel %vm585, %v2089, 0.0
      %2109 = vadd.xlane.f32.xlu0 %v2108
      %v2110 = vpop.xlane.xlu0 %2109
      %v2111 = vsel %vm585, %v2091, 0.0
      %2112 = vadd.xlane.f32.xlu0 %v2111
      %v2113 = vpop.xlane.xlu0 %2112
      %v2114 = vsel %vm585, %v2093, 0.0
      %2115 = vadd.xlane.f32.xlu0 %v2114
      %v2116 = vpop.xlane.xlu0 %2115
      %v2117 = vsel %vm585, %v2095, 0.0
      %2118 = vadd.xlane.f32.xlu0 %v2117
      %v2119 = vpop.xlane.xlu0 %2118
      %v2120 = vrcp.pop %v2098
      %v2121 = vrcp.pop %v2101
      %v2122 = vrcp.pop %v2104
      %v2123 = vrcp.pop %v2107
      %v2124 = vrcp.pop %v2110
      %v2125 = vrcp.pop %v2113
      %v2126 = vrcp.pop %v2116
      %v2127 = vrcp.pop %v2119
      %v2128 = vmul.f32 %v2081, %v2120
      %v2129 = vmul.f32 %v2083, %v2121
      %v2130 = vmul.f32 %v2085, %v2122
      %v2131 = vmul.f32 %v2087, %v2123
      %v2132 = vmul.f32 %v2089, %v2124
      %v2133 = vmul.f32 %v2091, %v2125
      %v2134 = vmul.f32 %v2093, %v2126
      %v2135 = vmul.f32 %v2095, %v2127
      %2136 = vrot.lane.b32.xlu0 %v1108, 48
      %v2137 = vpop.permute.xlu0 %2136
      %2138 = vrot.lane.b32.xlu0 %v1111, 48
      %v2139 = vpop.permute.xlu0 %2138
      %v2143 = vsel %vm585, %v2128, 0
      %v2146 = vsel %vm585, %v2129, 0
      %2148 = vmatpush.msra.mxu0 0.0
      %2149 = vmatpush.msra.mxu0 0.0
      %2150 = vmatpush.msra.mxu0 0.0
      %2151 = vmatpush.msra.mxu0 0.0
      %2152 = vmatpush.msra.mxu0 0.0
      %2153 = vmatpush.msra.mxu0 0.0
      %2154 = vmatpush.msra.mxu0 0.0
      %2155 = vmatpush.msra.mxu0 0.0
      %2156 = vmatpush.msra.mxu0 0.0
      %2157 = vmatpush.msra.mxu0 0.0
      %2158 = vmatpush.msra.mxu0 0.0
      %2159 = vmatpush.msra.mxu0 0.0
      %2160 = vmatpush.msra.mxu0 0.0
      %2161 = vmatpush.msra.mxu0 0.0
      %2162 = vmatpush.msra.mxu0 %v2139
      %2163 = vmatpush.msra.mxu0 %v2137
      %2164 = vmatmul.f32.gmra.mxu0 %v2143
      %v2165 = vpop.f32.mrf.mxu0
      %v2166 = vadd.f32 0.0, %v2165
      %2167 = vmatmul.f32.gmra.mxu0 %v2146
      %v2168 = vpop.f32.mrf.mxu0
      %v2169 = vadd.f32 0.0, %v2168
      %2170 = vdwg.mxu0
      %2171 = vrot.lane.b32.xlu0 %v1114, 48
      %v2172 = vpop.permute.xlu0 %2171
      %2173 = vrot.lane.b32.xlu0 %v1117, 48
      %v2174 = vpop.permute.xlu0 %2173
      %v2178 = vsel %vm585, %v2130, 0
      %v2181 = vsel %vm585, %v2131, 0
      %2183 = vmatpush.msra.mxu0 0.0
      %2184 = vmatpush.msra.mxu0 0.0
      %2185 = vmatpush.msra.mxu0 0.0
      %2186 = vmatpush.msra.mxu0 0.0
      %2187 = vmatpush.msra.mxu0 0.0
      %2188 = vmatpush.msra.mxu0 0.0
      %2189 = vmatpush.msra.mxu0 0.0
      %2190 = vmatpush.msra.mxu0 0.0
      %2191 = vmatpush.msra.mxu0 0.0
      %2192 = vmatpush.msra.mxu0 0.0
      %2193 = vmatpush.msra.mxu0 0.0
      %2194 = vmatpush.msra.mxu0 0.0
      %2195 = vmatpush.msra.mxu0 0.0
      %2196 = vmatpush.msra.mxu0 0.0
      %2197 = vmatpush.msra.mxu0 %v2174
      %2198 = vmatpush.msra.mxu0 %v2172
      %2199 = vmatmul.f32.gmra.mxu0 %v2178
      %v2200 = vpop.f32.mrf.mxu0
      %v2201 = vadd.f32 0.0, %v2200
      %2202 = vmatmul.f32.gmra.mxu0 %v2181
      %v2203 = vpop.f32.mrf.mxu0
      %v2204 = vadd.f32 0.0, %v2203
      %2205 = vdwg.mxu0
      %2206 = vrot.lane.b32.xlu0 %v1120, 48
      %v2207 = vpop.permute.xlu0 %2206
      %2208 = vrot.lane.b32.xlu0 %v1123, 48
      %v2209 = vpop.permute.xlu0 %2208
      %v2213 = vsel %vm585, %v2132, 0
      %v2216 = vsel %vm585, %v2133, 0
      %2218 = vmatpush.msra.mxu0 0.0
      %2219 = vmatpush.msra.mxu0 0.0
      %2220 = vmatpush.msra.mxu0 0.0
      %2221 = vmatpush.msra.mxu0 0.0
      %2222 = vmatpush.msra.mxu0 0.0
      %2223 = vmatpush.msra.mxu0 0.0
      %2224 = vmatpush.msra.mxu0 0.0
      %2225 = vmatpush.msra.mxu0 0.0
      %2226 = vmatpush.msra.mxu0 0.0
      %2227 = vmatpush.msra.mxu0 0.0
      %2228 = vmatpush.msra.mxu0 0.0
      %2229 = vmatpush.msra.mxu0 0.0
      %2230 = vmatpush.msra.mxu0 0.0
      %2231 = vmatpush.msra.mxu0 0.0
      %2232 = vmatpush.msra.mxu0 %v2209
      %2233 = vmatpush.msra.mxu0 %v2207
      %2234 = vmatmul.f32.gmra.mxu0 %v2213
      %v2235 = vpop.f32.mrf.mxu0
      %v2236 = vadd.f32 0.0, %v2235
      %2237 = vmatmul.f32.gmra.mxu0 %v2216
      %v2238 = vpop.f32.mrf.mxu0
      %v2239 = vadd.f32 0.0, %v2238
      %2240 = vdwg.mxu0
      %2241 = vrot.lane.b32.xlu0 %v1126, 48
      %v2242 = vpop.permute.xlu0 %2241
      %2243 = vrot.lane.b32.xlu0 %v1129, 48
      %v2244 = vpop.permute.xlu0 %2243
      %v2248 = vsel %vm585, %v2134, 0
      %v2251 = vsel %vm585, %v2135, 0
      %2253 = vmatpush.msra.mxu0 0.0
      %2254 = vmatpush.msra.mxu0 0.0
      %2255 = vmatpush.msra.mxu0 0.0
      %2256 = vmatpush.msra.mxu0 0.0
      %2257 = vmatpush.msra.mxu0 0.0
      %2258 = vmatpush.msra.mxu0 0.0
      %2259 = vmatpush.msra.mxu0 0.0
      %2260 = vmatpush.msra.mxu0 0.0
      %2261 = vmatpush.msra.mxu0 0.0
      %2262 = vmatpush.msra.mxu0 0.0
      %2263 = vmatpush.msra.mxu0 0.0
      %2264 = vmatpush.msra.mxu0 0.0
      %2265 = vmatpush.msra.mxu0 0.0
      %2266 = vmatpush.msra.mxu0 0.0
      %2267 = vmatpush.msra.mxu0 %v2244
      %2268 = vmatpush.msra.mxu0 %v2242
      %2269 = vmatmul.f32.gmra.mxu0 %v2248
      %v2270 = vpop.f32.mrf.mxu0
      %v2271 = vadd.f32 0.0, %v2270
      %2272 = vmatmul.f32.gmra.mxu0 %v2251
      %v2273 = vpop.f32.mrf.mxu0
      %v2274 = vadd.f32 0.0, %v2273
      %2275 = vdwg.mxu0
      %2276 = vrot.lane.b32.xlu0 %v1108, 104
      %v2277 = vpop.permute.xlu0 %2276
      %2278 = vrot.lane.b32.xlu0 %v1111, 104
      %v2279 = vpop.permute.xlu0 %2278
      %2280 = vrot.lane.b32.xlu0 %v1108, 72
      %v2281 = vpop.permute.xlu0 %2280
      %2282 = vrot.lane.b32.xlu0 %v1111, 72
      %v2283 = vpop.permute.xlu0 %2282
      %v2284 = vsel %vm1137, %v2277, 0
      %v2286 = vsel %vm1137, %v2279, 0
      %v2288 = vsel %vm1137, %v2281, 0
      %v2290 = vsel %vm1137, %v2283, 0
      %2292 = vmatpush.xpose.msra.mxu0 0.0
      %2293 = vmatpush.xpose.msra.mxu0 0.0
      %2294 = vmatpush.xpose.msra.mxu0 0.0
      %2295 = vmatpush.xpose.msra.mxu0 0.0
      %2296 = vmatpush.xpose.msra.mxu0 0.0
      %2297 = vmatpush.xpose.msra.mxu0 0.0
      %2298 = vmatpush.xpose.msra.mxu0 0.0
      %2299 = vmatpush.xpose.msra.mxu0 0.0
      %2300 = vmatpush.xpose.msra.mxu0 0.0
      %2301 = vmatpush.xpose.msra.mxu0 0.0
      %2302 = vmatpush.xpose.msra.mxu0 0.0
      %2303 = vmatpush.xpose.msra.mxu0 0.0
      %2304 = vmatpush.xpose.msra.mxu0 0.0
      %2305 = vmatpush.xpose.msra.mxu0 0.0
      %2306 = vmatpush.xpose.msra.mxu0 %v2290
      %2307 = vmatpush.xpose.msra.mxu0 %v2288
      %2308 = vmatmul.f32.gmra.mxu0 %v2284
      %v2309 = vpop.f32.mrf.mxu0
      %v2310 = vadd.f32 %v1054, %v2309
      %2311 = vmatmul.f32.gmra.mxu0 %v2286
      %v2312 = vpop.f32.mrf.mxu0
      %v2313 = vadd.f32 %v1055, %v2312
      %2314 = vdwg.mxu0
      %2315 = vrot.lane.b32.xlu0 %v1114, 104
      %v2316 = vpop.permute.xlu0 %2315
      %2317 = vrot.lane.b32.xlu0 %v1117, 104
      %v2318 = vpop.permute.xlu0 %2317
      %2319 = vrot.lane.b32.xlu0 %v1114, 72
      %v2320 = vpop.permute.xlu0 %2319
      %2321 = vrot.lane.b32.xlu0 %v1117, 72
      %v2322 = vpop.permute.xlu0 %2321
      %v2323 = vsel %vm1137, %v2316, 0
      %v2325 = vsel %vm1137, %v2318, 0
      %v2327 = vsel %vm1137, %v2320, 0
      %v2329 = vsel %vm1137, %v2322, 0
      %2331 = vmatpush.xpose.msra.mxu0 0.0
      %2332 = vmatpush.xpose.msra.mxu0 0.0
      %2333 = vmatpush.xpose.msra.mxu0 0.0
      %2334 = vmatpush.xpose.msra.mxu0 0.0
      %2335 = vmatpush.xpose.msra.mxu0 0.0
      %2336 = vmatpush.xpose.msra.mxu0 0.0
      %2337 = vmatpush.xpose.msra.mxu0 0.0
      %2338 = vmatpush.xpose.msra.mxu0 0.0
      %2339 = vmatpush.xpose.msra.mxu0 0.0
      %2340 = vmatpush.xpose.msra.mxu0 0.0
      %2341 = vmatpush.xpose.msra.mxu0 0.0
      %2342 = vmatpush.xpose.msra.mxu0 0.0
      %2343 = vmatpush.xpose.msra.mxu0 0.0
      %2344 = vmatpush.xpose.msra.mxu0 0.0
      %2345 = vmatpush.xpose.msra.mxu0 %v2329
      %2346 = vmatpush.xpose.msra.mxu0 %v2327
      %2347 = vmatmul.f32.gmra.mxu0 %v2323
      %v2348 = vpop.f32.mrf.mxu0
      %v2349 = vadd.f32 %v1054, %v2348
      %2350 = vmatmul.f32.gmra.mxu0 %v2325
      %v2351 = vpop.f32.mrf.mxu0
      %v2352 = vadd.f32 %v1055, %v2351
      %2353 = vdwg.mxu0
      %2354 = vrot.lane.b32.xlu0 %v1120, 104
      %v2355 = vpop.permute.xlu0 %2354
      %2356 = vrot.lane.b32.xlu0 %v1123, 104
      %v2357 = vpop.permute.xlu0 %2356
      %2358 = vrot.lane.b32.xlu0 %v1120, 72
      %v2359 = vpop.permute.xlu0 %2358
      %2360 = vrot.lane.b32.xlu0 %v1123, 72
      %v2361 = vpop.permute.xlu0 %2360
      %v2362 = vsel %vm1137, %v2355, 0
      %v2364 = vsel %vm1137, %v2357, 0
      %v2366 = vsel %vm1137, %v2359, 0
      %v2368 = vsel %vm1137, %v2361, 0
      %2370 = vmatpush.xpose.msra.mxu0 0.0
      %2371 = vmatpush.xpose.msra.mxu0 0.0
      %2372 = vmatpush.xpose.msra.mxu0 0.0
      %2373 = vmatpush.xpose.msra.mxu0 0.0
      %2374 = vmatpush.xpose.msra.mxu0 0.0
      %2375 = vmatpush.xpose.msra.mxu0 0.0
      %2376 = vmatpush.xpose.msra.mxu0 0.0
      %2377 = vmatpush.xpose.msra.mxu0 0.0
      %2378 = vmatpush.xpose.msra.mxu0 0.0
      %2379 = vmatpush.xpose.msra.mxu0 0.0
      %2380 = vmatpush.xpose.msra.mxu0 0.0
      %2381 = vmatpush.xpose.msra.mxu0 0.0
      %2382 = vmatpush.xpose.msra.mxu0 0.0
      %2383 = vmatpush.xpose.msra.mxu0 0.0
      %2384 = vmatpush.xpose.msra.mxu0 %v2368
      %2385 = vmatpush.xpose.msra.mxu0 %v2366
      %2386 = vmatmul.f32.gmra.mxu0 %v2362
      %v2387 = vpop.f32.mrf.mxu0
      %v2388 = vadd.f32 %v1054, %v2387
      %2389 = vmatmul.f32.gmra.mxu0 %v2364
      %v2390 = vpop.f32.mrf.mxu0
      %v2391 = vadd.f32 %v1055, %v2390
      %2392 = vdwg.mxu0
      %2393 = vrot.lane.b32.xlu0 %v1126, 104
      %v2394 = vpop.permute.xlu0 %2393
      %2395 = vrot.lane.b32.xlu0 %v1129, 104
      %v2396 = vpop.permute.xlu0 %2395
      %2397 = vrot.lane.b32.xlu0 %v1126, 72
      %v2398 = vpop.permute.xlu0 %2397
      %2399 = vrot.lane.b32.xlu0 %v1129, 72
      %v2400 = vpop.permute.xlu0 %2399
      %v2401 = vsel %vm1137, %v2394, 0
      %v2403 = vsel %vm1137, %v2396, 0
      %v2405 = vsel %vm1137, %v2398, 0
      %v2407 = vsel %vm1137, %v2400, 0
      %2409 = vmatpush.xpose.msra.mxu0 0.0
      %2410 = vmatpush.xpose.msra.mxu0 0.0
      %2411 = vmatpush.xpose.msra.mxu0 0.0
      %2412 = vmatpush.xpose.msra.mxu0 0.0
      %2413 = vmatpush.xpose.msra.mxu0 0.0
      %2414 = vmatpush.xpose.msra.mxu0 0.0
      %2415 = vmatpush.xpose.msra.mxu0 0.0
      %2416 = vmatpush.xpose.msra.mxu0 0.0
      %2417 = vmatpush.xpose.msra.mxu0 0.0
      %2418 = vmatpush.xpose.msra.mxu0 0.0
      %2419 = vmatpush.xpose.msra.mxu0 0.0
      %2420 = vmatpush.xpose.msra.mxu0 0.0
      %2421 = vmatpush.xpose.msra.mxu0 0.0
      %2422 = vmatpush.xpose.msra.mxu0 0.0
      %2423 = vmatpush.xpose.msra.mxu0 %v2407
      %2424 = vmatpush.xpose.msra.mxu0 %v2405
      %2425 = vmatmul.f32.gmra.mxu0 %v2401
      %v2426 = vpop.f32.mrf.mxu0
      %v2427 = vadd.f32 %v1054, %v2426
      %2428 = vmatmul.f32.gmra.mxu0 %v2403
      %v2429 = vpop.f32.mrf.mxu0
      %v2430 = vadd.f32 %v1055, %v2429
      %2431 = vdwg.mxu0
      %v2432 = vsel %vm585, %v2310, -inf
      %2433 = vmax.xlane.f32.xlu0 %v2432
      %v2434 = vpop.xlane.xlu0 %2433
      %v2435 = vsel %vm585, %v2313, -inf
      %2436 = vmax.xlane.f32.xlu0 %v2435
      %v2437 = vpop.xlane.xlu0 %2436
      %v2438 = vsel %vm585, %v2349, -inf
      %2439 = vmax.xlane.f32.xlu0 %v2438
      %v2440 = vpop.xlane.xlu0 %2439
      %v2441 = vsel %vm585, %v2352, -inf
      %2442 = vmax.xlane.f32.xlu0 %v2441
      %v2443 = vpop.xlane.xlu0 %2442
      %v2444 = vsel %vm585, %v2388, -inf
      %2445 = vmax.xlane.f32.xlu0 %v2444
      %v2446 = vpop.xlane.xlu0 %2445
      %v2447 = vsel %vm585, %v2391, -inf
      %2448 = vmax.xlane.f32.xlu0 %v2447
      %v2449 = vpop.xlane.xlu0 %2448
      %v2450 = vsel %vm585, %v2427, -inf
      %2451 = vmax.xlane.f32.xlu0 %v2450
      %v2452 = vpop.xlane.xlu0 %2451
      %v2453 = vsel %vm585, %v2430, -inf
      %2454 = vmax.xlane.f32.xlu0 %v2453
      %v2455 = vpop.xlane.xlu0 %2454
      %v2456 = vsub.f32 %v2310, %v2434
      %v2457 = vsub.f32 %v2313, %v2437
      %v2458 = vsub.f32 %v2349, %v2440
      %v2459 = vsub.f32 %v2352, %v2443
      %v2460 = vsub.f32 %v2388, %v2446
      %v2461 = vsub.f32 %v2391, %v2449
      %v2462 = vsub.f32 %v2427, %v2452
      %v2463 = vsub.f32 %v2430, %v2455
      %v2464 = vmul.f32 %v2456, 1.442695
      %v2465 = vpow.pop %v2464
      %v2466 = vmul.f32 %v2457, 1.442695
      %v2467 = vpow.pop %v2466
      %v2468 = vmul.f32 %v2458, 1.442695
      %v2469 = vpow.pop %v2468
      %v2470 = vmul.f32 %v2459, 1.442695
      %v2471 = vpow.pop %v2470
      %v2472 = vmul.f32 %v2460, 1.442695
      %v2473 = vpow.pop %v2472
      %v2474 = vmul.f32 %v2461, 1.442695
      %v2475 = vpow.pop %v2474
      %v2476 = vmul.f32 %v2462, 1.442695
      %v2477 = vpow.pop %v2476
      %v2478 = vmul.f32 %v2463, 1.442695
      %v2479 = vpow.pop %v2478
      %v2480 = vsel %vm585, %v2465, 0.0
      %2481 = vadd.xlane.f32.xlu0 %v2480
      %v2482 = vpop.xlane.xlu0 %2481
      %v2483 = vsel %vm585, %v2467, 0.0
      %2484 = vadd.xlane.f32.xlu0 %v2483
      %v2485 = vpop.xlane.xlu0 %2484
      %v2486 = vsel %vm585, %v2469, 0.0
      %2487 = vadd.xlane.f32.xlu0 %v2486
      %v2488 = vpop.xlane.xlu0 %2487
      %v2489 = vsel %vm585, %v2471, 0.0
      %2490 = vadd.xlane.f32.xlu0 %v2489
      %v2491 = vpop.xlane.xlu0 %2490
      %v2492 = vsel %vm585, %v2473, 0.0
      %2493 = vadd.xlane.f32.xlu0 %v2492
      %v2494 = vpop.xlane.xlu0 %2493
      %v2495 = vsel %vm585, %v2475, 0.0
      %2496 = vadd.xlane.f32.xlu0 %v2495
      %v2497 = vpop.xlane.xlu0 %2496
      %v2498 = vsel %vm585, %v2477, 0.0
      %2499 = vadd.xlane.f32.xlu0 %v2498
      %v2500 = vpop.xlane.xlu0 %2499
      %v2501 = vsel %vm585, %v2479, 0.0
      %2502 = vadd.xlane.f32.xlu0 %v2501
      %v2503 = vpop.xlane.xlu0 %2502
      %v2504 = vrcp.pop %v2482
      %v2505 = vrcp.pop %v2485
      %v2506 = vrcp.pop %v2488
      %v2507 = vrcp.pop %v2491
      %v2508 = vrcp.pop %v2494
      %v2509 = vrcp.pop %v2497
      %v2510 = vrcp.pop %v2500
      %v2511 = vrcp.pop %v2503
      %v2512 = vmul.f32 %v2465, %v2504
      %v2513 = vmul.f32 %v2467, %v2505
      %v2514 = vmul.f32 %v2469, %v2506
      %v2515 = vmul.f32 %v2471, %v2507
      %v2516 = vmul.f32 %v2473, %v2508
      %v2517 = vmul.f32 %v2475, %v2509
      %v2518 = vmul.f32 %v2477, %v2510
      %v2519 = vmul.f32 %v2479, %v2511
      %2520 = vrot.lane.b32.xlu0 %v1108, 40
      %v2521 = vpop.permute.xlu0 %2520
      %2522 = vrot.lane.b32.xlu0 %v1111, 40
      %v2523 = vpop.permute.xlu0 %2522
      %v2527 = vsel %vm585, %v2512, 0
      %v2530 = vsel %vm585, %v2513, 0
      %2532 = vmatpush.msra.mxu0 0.0
      %2533 = vmatpush.msra.mxu0 0.0
      %2534 = vmatpush.msra.mxu0 0.0
      %2535 = vmatpush.msra.mxu0 0.0
      %2536 = vmatpush.msra.mxu0 0.0
      %2537 = vmatpush.msra.mxu0 0.0
      %2538 = vmatpush.msra.mxu0 0.0
      %2539 = vmatpush.msra.mxu0 0.0
      %2540 = vmatpush.msra.mxu0 0.0
      %2541 = vmatpush.msra.mxu0 0.0
      %2542 = vmatpush.msra.mxu0 0.0
      %2543 = vmatpush.msra.mxu0 0.0
      %2544 = vmatpush.msra.mxu0 0.0
      %2545 = vmatpush.msra.mxu0 0.0
      %2546 = vmatpush.msra.mxu0 %v2523
      %2547 = vmatpush.msra.mxu0 %v2521
      %2548 = vmatmul.f32.gmra.mxu0 %v2527
      %v2549 = vpop.f32.mrf.mxu0
      %v2550 = vadd.f32 0.0, %v2549
      %2551 = vmatmul.f32.gmra.mxu0 %v2530
      %v2552 = vpop.f32.mrf.mxu0
      %v2553 = vadd.f32 0.0, %v2552
      %2554 = vdwg.mxu0
      %2555 = vrot.lane.b32.xlu0 %v1114, 40
      %v2556 = vpop.permute.xlu0 %2555
      %2557 = vrot.lane.b32.xlu0 %v1117, 40
      %v2558 = vpop.permute.xlu0 %2557
      %v2562 = vsel %vm585, %v2514, 0
      %v2565 = vsel %vm585, %v2515, 0
      %2567 = vmatpush.msra.mxu0 0.0
      %2568 = vmatpush.msra.mxu0 0.0
      %2569 = vmatpush.msra.mxu0 0.0
      %2570 = vmatpush.msra.mxu0 0.0
      %2571 = vmatpush.msra.mxu0 0.0
      %2572 = vmatpush.msra.mxu0 0.0
      %2573 = vmatpush.msra.mxu0 0.0
      %2574 = vmatpush.msra.mxu0 0.0
      %2575 = vmatpush.msra.mxu0 0.0
      %2576 = vmatpush.msra.mxu0 0.0
      %2577 = vmatpush.msra.mxu0 0.0
      %2578 = vmatpush.msra.mxu0 0.0
      %2579 = vmatpush.msra.mxu0 0.0
      %2580 = vmatpush.msra.mxu0 0.0
      %2581 = vmatpush.msra.mxu0 %v2558
      %2582 = vmatpush.msra.mxu0 %v2556
      %2583 = vmatmul.f32.gmra.mxu0 %v2562
      %v2584 = vpop.f32.mrf.mxu0
      %v2585 = vadd.f32 0.0, %v2584
      %2586 = vmatmul.f32.gmra.mxu0 %v2565
      %v2587 = vpop.f32.mrf.mxu0
      %v2588 = vadd.f32 0.0, %v2587
      %2589 = vdwg.mxu0
      %2590 = vrot.lane.b32.xlu0 %v1120, 40
      %v2591 = vpop.permute.xlu0 %2590
      %2592 = vrot.lane.b32.xlu0 %v1123, 40
      %v2593 = vpop.permute.xlu0 %2592
      %v2597 = vsel %vm585, %v2516, 0
      %v2600 = vsel %vm585, %v2517, 0
      %2602 = vmatpush.msra.mxu0 0.0
      %2603 = vmatpush.msra.mxu0 0.0
      %2604 = vmatpush.msra.mxu0 0.0
      %2605 = vmatpush.msra.mxu0 0.0
      %2606 = vmatpush.msra.mxu0 0.0
      %2607 = vmatpush.msra.mxu0 0.0
      %2608 = vmatpush.msra.mxu0 0.0
      %2609 = vmatpush.msra.mxu0 0.0
      %2610 = vmatpush.msra.mxu0 0.0
      %2611 = vmatpush.msra.mxu0 0.0
      %2612 = vmatpush.msra.mxu0 0.0
      %2613 = vmatpush.msra.mxu0 0.0
      %2614 = vmatpush.msra.mxu0 0.0
      %2615 = vmatpush.msra.mxu0 0.0
      %2616 = vmatpush.msra.mxu0 %v2593
      %2617 = vmatpush.msra.mxu0 %v2591
      %2618 = vmatmul.f32.gmra.mxu0 %v2597
      %v2619 = vpop.f32.mrf.mxu0
      %v2620 = vadd.f32 0.0, %v2619
      %2621 = vmatmul.f32.gmra.mxu0 %v2600
      %v2622 = vpop.f32.mrf.mxu0
      %v2623 = vadd.f32 0.0, %v2622
      %2624 = vdwg.mxu0
      %2625 = vrot.lane.b32.xlu0 %v1126, 40
      %v2626 = vpop.permute.xlu0 %2625
      %2627 = vrot.lane.b32.xlu0 %v1129, 40
      %v2628 = vpop.permute.xlu0 %2627
      %v2632 = vsel %vm585, %v2518, 0
      %v2635 = vsel %vm585, %v2519, 0
      %2637 = vmatpush.msra.mxu0 0.0
      %2638 = vmatpush.msra.mxu0 0.0
      %2639 = vmatpush.msra.mxu0 0.0
      %2640 = vmatpush.msra.mxu0 0.0
      %2641 = vmatpush.msra.mxu0 0.0
      %2642 = vmatpush.msra.mxu0 0.0
      %2643 = vmatpush.msra.mxu0 0.0
      %2644 = vmatpush.msra.mxu0 0.0
      %2645 = vmatpush.msra.mxu0 0.0
      %2646 = vmatpush.msra.mxu0 0.0
      %2647 = vmatpush.msra.mxu0 0.0
      %2648 = vmatpush.msra.mxu0 0.0
      %2649 = vmatpush.msra.mxu0 0.0
      %2650 = vmatpush.msra.mxu0 0.0
      %2651 = vmatpush.msra.mxu0 %v2628
      %2652 = vmatpush.msra.mxu0 %v2626
      %2653 = vmatmul.f32.gmra.mxu0 %v2632
      %v2654 = vpop.f32.mrf.mxu0
      %v2655 = vadd.f32 0.0, %v2654
      %2656 = vmatmul.f32.gmra.mxu0 %v2635
      %v2657 = vpop.f32.mrf.mxu0
      %v2658 = vadd.f32 0.0, %v2657
      %2659 = vdwg.mxu0
      %2668 = vrot.lane.b32.xlu0 %v1782, 8
      %v2669 = vpop.permute.xlu0 %2668
      %2670 = vrot.lane.b32.xlu0 %v1785, 8
      %v2671 = vpop.permute.xlu0 %2670
      %2672 = vrot.lane.b32.xlu0 %v1817, 8
      %v2673 = vpop.permute.xlu0 %2672
      %2674 = vrot.lane.b32.xlu0 %v1820, 8
      %v2675 = vpop.permute.xlu0 %2674
      %2676 = vrot.lane.b32.xlu0 %v1852, 8
      %v2677 = vpop.permute.xlu0 %2676
      %2678 = vrot.lane.b32.xlu0 %v1855, 8
      %v2679 = vpop.permute.xlu0 %2678
      %2680 = vrot.lane.b32.xlu0 %v1887, 8
      %v2681 = vpop.permute.xlu0 %2680
      %2682 = vrot.lane.b32.xlu0 %v1890, 8
      %v2683 = vpop.permute.xlu0 %2682
      %2700 = vrot.lane.b32.xlu0 %v2166, 16
      %v2701 = vpop.permute.xlu0 %2700
      %2702 = vrot.lane.b32.xlu0 %v2169, 16
      %v2703 = vpop.permute.xlu0 %2702
      %2704 = vrot.lane.b32.xlu0 %v2201, 16
      %v2705 = vpop.permute.xlu0 %2704
      %2706 = vrot.lane.b32.xlu0 %v2204, 16
      %v2707 = vpop.permute.xlu0 %2706
      %2708 = vrot.lane.b32.xlu0 %v2236, 16
      %v2709 = vpop.permute.xlu0 %2708
      %2710 = vrot.lane.b32.xlu0 %v2239, 16
      %v2711 = vpop.permute.xlu0 %2710
      %2712 = vrot.lane.b32.xlu0 %v2271, 16
      %v2713 = vpop.permute.xlu0 %2712
      %2714 = vrot.lane.b32.xlu0 %v2274, 16
      %v2715 = vpop.permute.xlu0 %2714
      %2732 = vrot.lane.b32.xlu0 %v2550, 24
      %v2733 = vpop.permute.xlu0 %2732
      %2734 = vrot.lane.b32.xlu0 %v2553, 24
      %v2735 = vpop.permute.xlu0 %2734
      %2736 = vrot.lane.b32.xlu0 %v2585, 24
      %v2737 = vpop.permute.xlu0 %2736
      %2738 = vrot.lane.b32.xlu0 %v2588, 24
      %v2739 = vpop.permute.xlu0 %2738
      %2740 = vrot.lane.b32.xlu0 %v2620, 24
      %v2741 = vpop.permute.xlu0 %2740
      %2742 = vrot.lane.b32.xlu0 %v2623, 24
      %v2743 = vpop.permute.xlu0 %2742
      %2744 = vrot.lane.b32.xlu0 %v2655, 24
      %v2745 = vpop.permute.xlu0 %2744
      %2746 = vrot.lane.b32.xlu0 %v2658, 24
      %v2747 = vpop.permute.xlu0 %2746
      %v2756 = vsel %vm1137, %v1398, %v2669
      %v2757 = vsel %vm1137, %v1401, %v2671
      %v2758 = vsel %vm1137, %v1433, %v2673
      %v2759 = vsel %vm1137, %v1436, %v2675
      %v2760 = vsel %vm1137, %v1468, %v2677
      %v2761 = vsel %vm1137, %v1471, %v2679
      %v2762 = vsel %vm1137, %v1503, %v2681
      %v2763 = vsel %vm1137, %v1506, %v2683
      %v2764 = vsel %vm585, %v2756, %v2701
      %v2765 = vsel %vm585, %v2757, %v2703
      %v2766 = vsel %vm585, %v2758, %v2705
      %v2767 = vsel %vm585, %v2759, %v2707
      %v2768 = vsel %vm585, %v2760, %v2709
      %v2769 = vsel %vm585, %v2761, %v2711
      %v2770 = vsel %vm585, %v2762, %v2713
      %v2771 = vsel %vm585, %v2763, %v2715
      %vm2772 = vcmask 195584
      %v2773 = vsel %vm2772, %v2764, %v2733
      %v2774 = vsel %vm2772, %v2765, %v2735
      %v2775 = vsel %vm2772, %v2766, %v2737
      %v2776 = vsel %vm2772, %v2767, %v2739
      %v2777 = vsel %vm2772, %v2768, %v2741
      %v2778 = vsel %vm2772, %v2769, %v2743
      %v2779 = vsel %vm2772, %v2770, %v2745
      %v2780 = vsel %vm2772, %v2771, %v2747
      %v2781 = vld [vmem:[%s7] sm:$0xff]
      %v2782 = vld [vmem:[%s7 + $0x8] sm:$0xff]
      %v2783 = vld [vmem:[%s7 + $0x10] sm:$0xff]
      %v2784 = vld [vmem:[%s7 + $0x18] sm:$0xff]
      %v2785 = vld [vmem:[%s8] sm:$0x1]
      %v2787 = vperm.slane %v2785, 0
      %v2790 = vsel %vm1065, %v2773, 0
      %v2793 = vsel %vm1065, %v2774, 0
      %v2796 = vsel %vm1065, %v2775, 0
      %v2799 = vsel %vm1065, %v2776, 0
      %v2802 = vsel %vm1065, %v2777, 0
      %v2805 = vsel %vm1065, %v2778, 0
      %v2808 = vsel %vm1065, %v2779, 0
      %v2811 = vsel %vm1065, %v2780, 0
      %2813 = vmatpush.msra.mxu0 0.0
      %2814 = vmatpush.msra.mxu0 0.0
      %2815 = vmatpush.msra.mxu0 0.0
      %2816 = vmatpush.msra.mxu0 0.0
      %2817 = vmatpush.msra.mxu0 0.0
      %2818 = vmatpush.msra.mxu0 0.0
      %2819 = vmatpush.msra.mxu0 0.0
      %2820 = vmatpush.msra.mxu0 0.0
      %2821 = vmatpush.msra.mxu0 0.0
      %2822 = vmatpush.msra.mxu0 0.0
      %2823 = vmatpush.msra.mxu0 0.0
      %2824 = vmatpush.msra.mxu0 0.0
      %2825 = vmatpush.msra.mxu0 %v2784
      %2826 = vmatpush.msra.mxu0 %v2783
      %2827 = vmatpush.msra.mxu0 %v2782
      %2828 = vmatpush.msra.mxu0 %v2781
      %2829 = vmatmul.f32.gmra.mxu0 %v2790
      %v2830 = vpop.f32.mrf.mxu0
      %v2831 = vadd.f32 %v2787, %v2830
      %2832 = vmatmul.f32.gmra.mxu0 %v2793
      %v2833 = vpop.f32.mrf.mxu0
      %v2834 = vadd.f32 %v2787, %v2833
      %2835 = vmatmul.f32.gmra.mxu0 %v2796
      %v2836 = vpop.f32.mrf.mxu0
      %v2837 = vadd.f32 %v2787, %v2836
      %2838 = vmatmul.f32.gmra.mxu0 %v2799
      %v2839 = vpop.f32.mrf.mxu0
      %v2840 = vadd.f32 %v2787, %v2839
      %2841 = vmatmul.f32.gmra.mxu0 %v2802
      %v2842 = vpop.f32.mrf.mxu0
      %v2843 = vadd.f32 %v2787, %v2842
      %2844 = vmatmul.f32.gmra.mxu0 %v2805
      %v2845 = vpop.f32.mrf.mxu0
      %v2846 = vadd.f32 %v2787, %v2845
      %2847 = vmatmul.f32.gmra.mxu0 %v2808
      %v2848 = vpop.f32.mrf.mxu0
      %v2849 = vadd.f32 %v2787, %v2848
      %2850 = vmatmul.f32.gmra.mxu0 %v2811
      %v2851 = vpop.f32.mrf.mxu0
      %v2852 = vadd.f32 %v2787, %v2851
      %2853 = vdwg.mxu0
      %v2854 = vadd.f32 %v1031, %v2831
      %v2855 = vadd.f32 %v1034, %v2834
      %v2856 = vadd.f32 %v1037, %v2837
      %v2857 = vadd.f32 %v1040, %v2840
      %v2858 = vadd.f32 %v1043, %v2843
      %v2859 = vadd.f32 %v1046, %v2846
      %v2860 = vadd.f32 %v1049, %v2849
      %v2861 = vadd.f32 %v1052, %v2852
      %v2862 = vsel %vm1065, %v2854, 0.0
      %2863 = vadd.xlane.f32.xlu0 %v2862
      %v2864 = vpop.xlane.xlu0 %2863
      %v2865 = vsel %vm1065, %v2855, 0.0
      %2866 = vadd.xlane.f32.xlu0 %v2865
      %v2867 = vpop.xlane.xlu0 %2866
      %v2868 = vsel %vm1065, %v2856, 0.0
      %2869 = vadd.xlane.f32.xlu0 %v2868
      %v2870 = vpop.xlane.xlu0 %2869
      %v2871 = vsel %vm1065, %v2857, 0.0
      %2872 = vadd.xlane.f32.xlu0 %v2871
      %v2873 = vpop.xlane.xlu0 %2872
      %v2874 = vsel %vm1065, %v2858, 0.0
      %2875 = vadd.xlane.f32.xlu0 %v2874
      %v2876 = vpop.xlane.xlu0 %2875
      %v2877 = vsel %vm1065, %v2859, 0.0
      %2878 = vadd.xlane.f32.xlu0 %v2877
      %v2879 = vpop.xlane.xlu0 %2878
      %v2880 = vsel %vm1065, %v2860, 0.0
      %2881 = vadd.xlane.f32.xlu0 %v2880
      %v2882 = vpop.xlane.xlu0 %2881
      %v2883 = vsel %vm1065, %v2861, 0.0
      %2884 = vadd.xlane.f32.xlu0 %v2883
      %v2885 = vpop.xlane.xlu0 %2884
      %v2886 = vrcp.pop 32.0
      %v2887 = vmul.f32 32.0, %v2886
      %v2888 = vsub.f32 1.0, %v2887
      %v2889 = vmul.f32 %v2886, %v2888
      %v2890 = vadd.f32 %v2886, %v2889
      %vm2891 = vweird.f32 %v2886
      %v2892 = vsel %vm2891, %v2886, %v2890
      %v2893 = vmul.f32 %v2864, %v2892
      %v2894 = vmul.f32 %v2867, %v2892
      %v2895 = vmul.f32 %v2870, %v2892
      %v2896 = vmul.f32 %v2873, %v2892
      %v2897 = vmul.f32 %v2876, %v2892
      %v2898 = vmul.f32 %v2879, %v2892
      %v2899 = vmul.f32 %v2882, %v2892
      %v2900 = vmul.f32 %v2885, %v2892
      %v2901 = vsub.f32 %v2854, %v2893
      %v2902 = vsub.f32 %v2855, %v2894
      %v2903 = vsub.f32 %v2856, %v2895
      %v2904 = vsub.f32 %v2857, %v2896
      %v2905 = vsub.f32 %v2858, %v2897
      %v2906 = vsub.f32 %v2859, %v2898
      %v2907 = vsub.f32 %v2860, %v2899
      %v2908 = vsub.f32 %v2861, %v2900
      %v2909 = vmul.f32 %v2901, %v2901
      %v2910 = vmul.f32 %v2902, %v2902
      %v2911 = vmul.f32 %v2903, %v2903
      %v2912 = vmul.f32 %v2904, %v2904
      %v2913 = vmul.f32 %v2905, %v2905
      %v2914 = vmul.f32 %v2906, %v2906
      %v2915 = vmul.f32 %v2907, %v2907
      %v2916 = vmul.f32 %v2908, %v2908
      %v2917 = vsel %vm1065, %v2909, 0.0
      %2918 = vadd.xlane.f32.xlu0 %v2917
      %v2919 = vpop.xlane.xlu0 %2918
      %v2920 = vsel %vm1065, %v2910, 0.0
      %2921 = vadd.xlane.f32.xlu0 %v2920
      %v2922 = vpop.xlane.xlu0 %2921
      %v2923 = vsel %vm1065, %v2911, 0.0
      %2924 = vadd.xlane.f32.xlu0 %v2923
      %v2925 = vpop.xlane.xlu0 %2924
      %v2926 = vsel %vm1065, %v2912, 0.0
      %2927 = vadd.xlane.f32.xlu0 %v2926
      %v2928 = vpop.xlane.xlu0 %2927
      %v2929 = vsel %vm1065, %v2913, 0.0
      %2930 = vadd.xlane.f32.xlu0 %v2929
      %v2931 = vpop.xlane.xlu0 %2930
      %v2932 = vsel %vm1065, %v2914, 0.0
      %2933 = vadd.xlane.f32.xlu0 %v2932
      %v2934 = vpop.xlane.xlu0 %2933
      %v2935 = vsel %vm1065, %v2915, 0.0
      %2936 = vadd.xlane.f32.xlu0 %v2935
      %v2937 = vpop.xlane.xlu0 %2936
      %v2938 = vsel %vm1065, %v2916, 0.0
      %2939 = vadd.xlane.f32.xlu0 %v2938
      %v2940 = vpop.xlane.xlu0 %2939
      %v2941 = vmul.f32 %v2919, %v2892
      %v2942 = vmul.f32 %v2922, %v2892
      %v2943 = vmul.f32 %v2925, %v2892
      %v2944 = vmul.f32 %v2928, %v2892
      %v2945 = vmul.f32 %v2931, %v2892
      %v2946 = vmul.f32 %v2934, %v2892
      %v2947 = vmul.f32 %v2937, %v2892
      %v2948 = vmul.f32 %v2940, %v2892
      %v2949 = vadd.f32 %v2941, 1e-05
      %v2950 = vadd.f32 %v2942, 1e-05
      %v2951 = vadd.f32 %v2943, 1e-05
      %v2952 = vadd.f32 %v2944, 1e-05
      %v2953 = vadd.f32 %v2945, 1e-05
      %v2954 = vadd.f32 %v2946, 1e-05
      %v2955 = vadd.f32 %v2947, 1e-05
      %v2956 = vadd.f32 %v2948, 1e-05
      %v2957 = vrsqrt.pop %v2949
      %v2958 = vmul.f32 %v2957, %v2949
      %v2959 = vmul.f32 %v2958, %v2957
      %v2960 = vmul.f32 0.5, %v2959
      %v2961 = vsub.f32 1.5, %v2960
      %v2962 = vmul.f32 %v2957, %v2961
      %vm2963 = vweird.f32 %v2949
      %vm2964 = vweird.f32 %v2957
      %vm2965 = vmor %vm2963, %vm2964
      %v2966 = vsel %vm2965, %v2957, %v2962
      %v2967 = vrsqrt.pop %v2950
      %v2968 = vmul.f32 %v2967, %v2950
      %v2969 = vmul.f32 %v2968, %v2967
      %v2970 = vmul.f32 0.5, %v2969
      %v2971 = vsub.f32 1.5, %v2970
      %v2972 = vmul.f32 %v2967, %v2971
      %vm2973 = vweird.f32 %v2950
      %vm2974 = vweird.f32 %v2967
      %vm2975 = vmor %vm2973, %vm2974
      %v2976 = vsel %vm2975, %v2967, %v2972
      %v2977 = vrsqrt.pop %v2951
      %v2978 = vmul.f32 %v2977, %v2951
      %v2979 = vmul.f32 %v2978, %v2977
      %v2980 = vmul.f32 0.5, %v2979
      %v2981 = vsub.f32 1.5, %v2980
      %v2982 = vmul.f32 %v2977, %v2981
      %vm2983 = vweird.f32 %v2951
      %vm2984 = vweird.f32 %v2977
      %vm2985 = vmor %vm2983, %vm2984
      %v2986 = vsel %vm2985, %v2977, %v2982
      %v2987 = vrsqrt.pop %v2952
      %v2988 = vmul.f32 %v2987, %v2952
      %v2989 = vmul.f32 %v2988, %v2987
      %v2990 = vmul.f32 0.5, %v2989
      %v2991 = vsub.f32 1.5, %v2990
      %v2992 = vmul.f32 %v2987, %v2991
      %vm2993 = vweird.f32 %v2952
      %vm2994 = vweird.f32 %v2987
      %vm2995 = vmor %vm2993, %vm2994
      %v2996 = vsel %vm2995, %v2987, %v2992
      %v2997 = vrsqrt.pop %v2953
      %v2998 = vmul.f32 %v2997, %v2953
      %v2999 = vmul.f32 %v2998, %v2997
      %v3000 = vmul.f32 0.5, %v2999
      %v3001 = vsub.f32 1.5, %v3000
      %v3002 = vmul.f32 %v2997, %v3001
      %vm3003 = vweird.f32 %v2953
      %vm3004 = vweird.f32 %v2997
      %vm3005 = vmor %vm3003, %vm3004
      %v3006 = vsel %vm3005, %v2997, %v3002
      %v3007 = vrsqrt.pop %v2954
      %v3008 = vmul.f32 %v3007, %v2954
      %v3009 = vmul.f32 %v3008, %v3007
      %v3010 = vmul.f32 0.5, %v3009
      %v3011 = vsub.f32 1.5, %v3010
      %v3012 = vmul.f32 %v3007, %v3011
      %vm3013 = vweird.f32 %v2954
      %vm3014 = vweird.f32 %v3007
      %vm3015 = vmor %vm3013, %vm3014
      %v3016 = vsel %vm3015, %v3007, %v3012
      %v3017 = vrsqrt.pop %v2955
      %v3018 = vmul.f32 %v3017, %v2955
      %v3019 = vmul.f32 %v3018, %v3017
      %v3020 = vmul.f32 0.5, %v3019
      %v3021 = vsub.f32 1.5, %v3020
      %v3022 = vmul.f32 %v3017, %v3021
      %vm3023 = vweird.f32 %v2955
      %vm3024 = vweird.f32 %v3017
      %vm3025 = vmor %vm3023, %vm3024
      %v3026 = vsel %vm3025, %v3017, %v3022
      %v3027 = vrsqrt.pop %v2956
      %v3028 = vmul.f32 %v3027, %v2956
      %v3029 = vmul.f32 %v3028, %v3027
      %v3030 = vmul.f32 0.5, %v3029
      %v3031 = vsub.f32 1.5, %v3030
      %v3032 = vmul.f32 %v3027, %v3031
      %vm3033 = vweird.f32 %v2956
      %vm3034 = vweird.f32 %v3027
      %vm3035 = vmor %vm3033, %vm3034
      %v3036 = vsel %vm3035, %v3027, %v3032
      %v3037 = vmul.f32 %v2901, %v2966
      %v3038 = vmul.f32 %v2902, %v2976
      %v3039 = vmul.f32 %v2903, %v2986
      %v3040 = vmul.f32 %v2904, %v2996
      %v3041 = vmul.f32 %v2905, %v3006
      %v3042 = vmul.f32 %v2906, %v3016
      %v3043 = vmul.f32 %v2907, %v3026
      %v3044 = vmul.f32 %v2908, %v3036
      %v3045 = vperm.slane %v1056, 0
      %v3046 = vmul.f32 %v3037, %v3045
      %v3047 = vmul.f32 %v3038, %v3045
      %v3048 = vmul.f32 %v3039, %v3045
      %v3049 = vmul.f32 %v3040, %v3045
      %v3050 = vmul.f32 %v3041, %v3045
      %v3051 = vmul.f32 %v3042, %v3045
      %v3052 = vmul.f32 %v3043, %v3045
      %v3053 = vmul.f32 %v3044, %v3045
      %v3054 = vperm.slane %v1056, 1
      %v3055 = vadd.f32 %v3046, %v3054
      %v3056 = vadd.f32 %v3047, %v3054
      %v3057 = vadd.f32 %v3048, %v3054
      %v3058 = vadd.f32 %v3049, %v3054
      %v3059 = vadd.f32 %v3050, %v3054
      %v3060 = vadd.f32 %v3051, %v3054
      %v3061 = vadd.f32 %v3052, %v3054
      %v3062 = vadd.f32 %v3053, %v3054
      %v3063 = vld [vmem:[%s9] sm:$0xff]
      %v3064 = vld [vmem:[%s9 + $0x8] sm:$0xff]
      %v3065 = vld [vmem:[%s9 + $0x10] sm:$0xff]
      %v3066 = vld [vmem:[%s9 + $0x18] sm:$0xff]
      %v3067 = vld [vmem:[%s10] sm:$0x1]
      %v3069 = vperm.slane %v3067, 0
      %v3072 = vsel %vm1065, %v3055, 0
      %v3075 = vsel %vm1065, %v3056, 0
      %v3078 = vsel %vm1065, %v3057, 0
      %v3081 = vsel %vm1065, %v3058, 0
      %v3084 = vsel %vm1065, %v3059, 0
      %v3087 = vsel %vm1065, %v3060, 0
      %v3090 = vsel %vm1065, %v3061, 0
      %v3093 = vsel %vm1065, %v3062, 0
      %3095 = vmatpush.msra.mxu0 0.0
      %3096 = vmatpush.msra.mxu0 0.0
      %3097 = vmatpush.msra.mxu0 0.0
      %3098 = vmatpush.msra.mxu0 0.0
      %3099 = vmatpush.msra.mxu0 0.0
      %3100 = vmatpush.msra.mxu0 0.0
      %3101 = vmatpush.msra.mxu0 0.0
      %3102 = vmatpush.msra.mxu0 0.0
      %3103 = vmatpush.msra.mxu0 0.0
      %3104 = vmatpush.msra.mxu0 0.0
      %3105 = vmatpush.msra.mxu0 0.0
      %3106 = vmatpush.msra.mxu0 0.0
      %3107 = vmatpush.msra.mxu0 %v3066
      %3108 = vmatpush.msra.mxu0 %v3065
      %3109 = vmatpush.msra.mxu0 %v3064
      %3110 = vmatpush.msra.mxu0 %v3063
      %3111 = vmatmul.f32.gmra.mxu0 %v3072
      %v3112 = vpop.f32.mrf.mxu0
      %v3113 = vadd.f32 %v3069, %v3112
      %3114 = vmatmul.f32.gmra.mxu0 %v3075
      %v3115 = vpop.f32.mrf.mxu0
      %v3116 = vadd.f32 %v3069, %v3115
      %3117 = vmatmul.f32.gmra.mxu0 %v3078
      %v3118 = vpop.f32.mrf.mxu0
      %v3119 = vadd.f32 %v3069, %v3118
      %3120 = vmatmul.f32.gmra.mxu0 %v3081
      %v3121 = vpop.f32.mrf.mxu0
      %v3122 = vadd.f32 %v3069, %v3121
      %3123 = vmatmul.f32.gmra.mxu0 %v3084
      %v3124 = vpop.f32.mrf.mxu0
      %v3125 = vadd.f32 %v3069, %v3124
      %3126 = vmatmul.f32.gmra.mxu0 %v3087
      %v3127 = vpop.f32.mrf.mxu0
      %v3128 = vadd.f32 %v3069, %v3127
      %3129 = vmatmul.f32.gmra.mxu0 %v3090
      %v3130 = vpop.f32.mrf.mxu0
      %v3131 = vadd.f32 %v3069, %v3130
      %3132 = vmatmul.f32.gmra.mxu0 %v3093
      %v3133 = vpop.f32.mrf.mxu0
      %v3134 = vadd.f32 %v3069, %v3133
      %3135 = vdwg.mxu0
      %v3136 = vmax.f32 %v3113, 0.0
      %v3137 = vmax.f32 %v3116, 0.0
      %v3138 = vmax.f32 %v3119, 0.0
      %v3139 = vmax.f32 %v3122, 0.0
      %v3140 = vmax.f32 %v3125, 0.0
      %v3141 = vmax.f32 %v3128, 0.0
      %v3142 = vmax.f32 %v3131, 0.0
      %v3143 = vmax.f32 %v3134, 0.0
      %v3144 = vld [vmem:[%s11] sm:$0xff]
      %v3145 = vld [vmem:[%s11 + $0x8] sm:$0xff]
      %v3146 = vld [vmem:[%s11 + $0x10] sm:$0xff]
      %v3147 = vld [vmem:[%s11 + $0x18] sm:$0xff]
      %v3148 = vld [vmem:[%s11 + $0x20] sm:$0xff]
      %v3149 = vld [vmem:[%s11 + $0x28] sm:$0xff]
      %v3150 = vld [vmem:[%s11 + $0x30] sm:$0xff]
      %v3151 = vld [vmem:[%s11 + $0x38] sm:$0xff]
      %v3152 = vld [vmem:[%s12] sm:$0x1]
      %v3154 = vperm.slane %v3152, 0
      %vm3156 = vcmask 523264
      %v3158 = vsel %vm3156, %v3136, 0
      %v3161 = vsel %vm3156, %v3137, 0
      %v3164 = vsel %vm3156, %v3138, 0
      %v3167 = vsel %vm3156, %v3139, 0
      %v3170 = vsel %vm3156, %v3140, 0
      %v3173 = vsel %vm3156, %v3141, 0
      %v3176 = vsel %vm3156, %v3142, 0
      %v3179 = vsel %vm3156, %v3143, 0
      %3181 = vmatpush.msra.mxu0 0.0
      %3182 = vmatpush.msra.mxu0 0.0
      %3183 = vmatpush.msra.mxu0 0.0
      %3184 = vmatpush.msra.mxu0 0.0
      %3185 = vmatpush.msra.mxu0 0.0
      %3186 = vmatpush.msra.mxu0 0.0
      %3187 = vmatpush.msra.mxu0 0.0
      %3188 = vmatpush.msra.mxu0 0.0
      %3189 = vmatpush.msra.mxu0 %v3151
      %3190 = vmatpush.msra.mxu0 %v3150
      %3191 = vmatpush.msra.mxu0 %v3149
      %3192 = vmatpush.msra.mxu0 %v3148
      %3193 = vmatpush.msra.mxu0 %v3147
      %3194 = vmatpush.msra.mxu0 %v3146
      %3195 = vmatpush.msra.mxu0 %v3145
      %3196 = vmatpush.msra.mxu0 %v3144
      %3197 = vmatmul.f32.gmra.mxu0 %v3158
      %v3198 = vpop.f32.mrf.mxu0
      %v3199 = vadd.f32 %v3154, %v3198
      %3200 = vmatmul.f32.gmra.mxu0 %v3161
      %v3201 = vpop.f32.mrf.mxu0
      %v3202 = vadd.f32 %v3154, %v3201
      %3203 = vmatmul.f32.gmra.mxu0 %v3164
      %v3204 = vpop.f32.mrf.mxu0
      %v3205 = vadd.f32 %v3154, %v3204
      %3206 = vmatmul.f32.gmra.mxu0 %v3167
      %v3207 = vpop.f32.mrf.mxu0
      %v3208 = vadd.f32 %v3154, %v3207
      %3209 = vmatmul.f32.gmra.mxu0 %v3170
      %v3210 = vpop.f32.mrf.mxu0
      %v3211 = vadd.f32 %v3154, %v3210
      %3212 = vmatmul.f32.gmra.mxu0 %v3173
      %v3213 = vpop.f32.mrf.mxu0
      %v3214 = vadd.f32 %v3154, %v3213
      %3215 = vmatmul.f32.gmra.mxu0 %v3176
      %v3216 = vpop.f32.mrf.mxu0
      %v3217 = vadd.f32 %v3154, %v3216
      %3218 = vmatmul.f32.gmra.mxu0 %v3179
      %v3219 = vpop.f32.mrf.mxu0
      %v3220 = vadd.f32 %v3154, %v3219
      %3221 = vdwg.mxu0
      %v3222 = vadd.f32 %v3055, %v3199
      %v3223 = vadd.f32 %v3056, %v3202
      %v3224 = vadd.f32 %v3057, %v3205
      %v3225 = vadd.f32 %v3058, %v3208
      %v3226 = vadd.f32 %v3059, %v3211
      %v3227 = vadd.f32 %v3060, %v3214
      %v3228 = vadd.f32 %v3061, %v3217
      %v3229 = vadd.f32 %v3062, %v3220
      %v3230 = vsel %vm1065, %v3222, 0.0
      %3231 = vadd.xlane.f32.xlu0 %v3230
      %v3232 = vpop.xlane.xlu0 %3231
      %v3233 = vsel %vm1065, %v3223, 0.0
      %3234 = vadd.xlane.f32.xlu0 %v3233
      %v3235 = vpop.xlane.xlu0 %3234
      %v3236 = vsel %vm1065, %v3224, 0.0
      %3237 = vadd.xlane.f32.xlu0 %v3236
      %v3238 = vpop.xlane.xlu0 %3237
      %v3239 = vsel %vm1065, %v3225, 0.0
      %3240 = vadd.xlane.f32.xlu0 %v3239
      %v3241 = vpop.xlane.xlu0 %3240
      %v3242 = vsel %vm1065, %v3226, 0.0
      %3243 = vadd.xlane.f32.xlu0 %v3242
      %v3244 = vpop.xlane.xlu0 %3243
      %v3245 = vsel %vm1065, %v3227, 0.0
      %3246 = vadd.xlane.f32.xlu0 %v3245
      %v3247 = vpop.xlane.xlu0 %3246
      %v3248 = vsel %vm1065, %v3228, 0.0
      %3249 = vadd.xlane.f32.xlu0 %v3248
      %v3250 = vpop.xlane.xlu0 %3249
      %v3251 = vsel %vm1065, %v3229, 0.0
      %3252 = vadd.xlane.f32.xlu0 %v3251
      %v3253 = vpop.xlane.xlu0 %3252
      %v3254 = vmul.f32 %v3232, %v2892
      %v3255 = vmul.f32 %v3235, %v2892
      %v3256 = vmul.f32 %v3238, %v2892
      %v3257 = vmul.f32 %v3241, %v2892
      %v3258 = vmul.f32 %v3244, %v2892
      %v3259 = vmul.f32 %v3247, %v2892
      %v3260 = vmul.f32 %v3250, %v2892
      %v3261 = vmul.f32 %v3253, %v2892
      %v3262 = vsub.f32 %v3222, %v3254
      %v3263 = vsub.f32 %v3223, %v3255
      %v3264 = vsub.f32 %v3224, %v3256
      %v3265 = vsub.f32 %v3225, %v3257
      %v3266 = vsub.f32 %v3226, %v3258
      %v3267 = vsub.f32 %v3227, %v3259
      %v3268 = vsub.f32 %v3228, %v3260
      %v3269 = vsub.f32 %v3229, %v3261
      %v3270 = vmul.f32 %v3262, %v3262
      %v3271 = vmul.f32 %v3263, %v3263
      %v3272 = vmul.f32 %v3264, %v3264
      %v3273 = vmul.f32 %v3265, %v3265
      %v3274 = vmul.f32 %v3266, %v3266
      %v3275 = vmul.f32 %v3267, %v3267
      %v3276 = vmul.f32 %v3268, %v3268
      %v3277 = vmul.f32 %v3269, %v3269
      %v3278 = vsel %vm1065, %v3270, 0.0
      %3279 = vadd.xlane.f32.xlu0 %v3278
      %v3280 = vpop.xlane.xlu0 %3279
      %v3281 = vsel %vm1065, %v3271, 0.0
      %3282 = vadd.xlane.f32.xlu0 %v3281
      %v3283 = vpop.xlane.xlu0 %3282
      %v3284 = vsel %vm1065, %v3272, 0.0
      %3285 = vadd.xlane.f32.xlu0 %v3284
      %v3286 = vpop.xlane.xlu0 %3285
      %v3287 = vsel %vm1065, %v3273, 0.0
      %3288 = vadd.xlane.f32.xlu0 %v3287
      %v3289 = vpop.xlane.xlu0 %3288
      %v3290 = vsel %vm1065, %v3274, 0.0
      %3291 = vadd.xlane.f32.xlu0 %v3290
      %v3292 = vpop.xlane.xlu0 %3291
      %v3293 = vsel %vm1065, %v3275, 0.0
      %3294 = vadd.xlane.f32.xlu0 %v3293
      %v3295 = vpop.xlane.xlu0 %3294
      %v3296 = vsel %vm1065, %v3276, 0.0
      %3297 = vadd.xlane.f32.xlu0 %v3296
      %v3298 = vpop.xlane.xlu0 %3297
      %v3299 = vsel %vm1065, %v3277, 0.0
      %3300 = vadd.xlane.f32.xlu0 %v3299
      %v3301 = vpop.xlane.xlu0 %3300
      %v3302 = vmul.f32 %v3280, %v2892
      %v3303 = vmul.f32 %v3283, %v2892
      %v3304 = vmul.f32 %v3286, %v2892
      %v3305 = vmul.f32 %v3289, %v2892
      %v3306 = vmul.f32 %v3292, %v2892
      %v3307 = vmul.f32 %v3295, %v2892
      %v3308 = vmul.f32 %v3298, %v2892
      %v3309 = vmul.f32 %v3301, %v2892
      %v3310 = vadd.f32 %v3302, 1e-05
      %v3311 = vadd.f32 %v3303, 1e-05
      %v3312 = vadd.f32 %v3304, 1e-05
      %v3313 = vadd.f32 %v3305, 1e-05
      %v3314 = vadd.f32 %v3306, 1e-05
      %v3315 = vadd.f32 %v3307, 1e-05
      %v3316 = vadd.f32 %v3308, 1e-05
      %v3317 = vadd.f32 %v3309, 1e-05
      %v3318 = vrsqrt.pop %v3310
      %v3319 = vmul.f32 %v3318, %v3310
      %v3320 = vmul.f32 %v3319, %v3318
      %v3321 = vmul.f32 0.5, %v3320
      %v3322 = vsub.f32 1.5, %v3321
      %v3323 = vmul.f32 %v3318, %v3322
      %vm3324 = vweird.f32 %v3310
      %vm3325 = vweird.f32 %v3318
      %vm3326 = vmor %vm3324, %vm3325
      %v3327 = vsel %vm3326, %v3318, %v3323
      %v3328 = vrsqrt.pop %v3311
      %v3329 = vmul.f32 %v3328, %v3311
      %v3330 = vmul.f32 %v3329, %v3328
      %v3331 = vmul.f32 0.5, %v3330
      %v3332 = vsub.f32 1.5, %v3331
      %v3333 = vmul.f32 %v3328, %v3332
      %vm3334 = vweird.f32 %v3311
      %vm3335 = vweird.f32 %v3328
      %vm3336 = vmor %vm3334, %vm3335
      %v3337 = vsel %vm3336, %v3328, %v3333
      %v3338 = vrsqrt.pop %v3312
      %v3339 = vmul.f32 %v3338, %v3312
      %v3340 = vmul.f32 %v3339, %v3338
      %v3341 = vmul.f32 0.5, %v3340
      %v3342 = vsub.f32 1.5, %v3341
      %v3343 = vmul.f32 %v3338, %v3342
      %vm3344 = vweird.f32 %v3312
      %vm3345 = vweird.f32 %v3338
      %vm3346 = vmor %vm3344, %vm3345
      %v3347 = vsel %vm3346, %v3338, %v3343
      %v3348 = vrsqrt.pop %v3313
      %v3349 = vmul.f32 %v3348, %v3313
      %v3350 = vmul.f32 %v3349, %v3348
      %v3351 = vmul.f32 0.5, %v3350
      %v3352 = vsub.f32 1.5, %v3351
      %v3353 = vmul.f32 %v3348, %v3352
      %vm3354 = vweird.f32 %v3313
      %vm3355 = vweird.f32 %v3348
      %vm3356 = vmor %vm3354, %vm3355
      %v3357 = vsel %vm3356, %v3348, %v3353
      %v3358 = vrsqrt.pop %v3314
      %v3359 = vmul.f32 %v3358, %v3314
      %v3360 = vmul.f32 %v3359, %v3358
      %v3361 = vmul.f32 0.5, %v3360
      %v3362 = vsub.f32 1.5, %v3361
      %v3363 = vmul.f32 %v3358, %v3362
      %vm3364 = vweird.f32 %v3314
      %vm3365 = vweird.f32 %v3358
      %vm3366 = vmor %vm3364, %vm3365
      %v3367 = vsel %vm3366, %v3358, %v3363
      %v3368 = vrsqrt.pop %v3315
      %v3369 = vmul.f32 %v3368, %v3315
      %v3370 = vmul.f32 %v3369, %v3368
      %v3371 = vmul.f32 0.5, %v3370
      %v3372 = vsub.f32 1.5, %v3371
      %v3373 = vmul.f32 %v3368, %v3372
      %vm3374 = vweird.f32 %v3315
      %vm3375 = vweird.f32 %v3368
      %vm3376 = vmor %vm3374, %vm3375
      %v3377 = vsel %vm3376, %v3368, %v3373
      %v3378 = vrsqrt.pop %v3316
      %v3379 = vmul.f32 %v3378, %v3316
      %v3380 = vmul.f32 %v3379, %v3378
      %v3381 = vmul.f32 0.5, %v3380
      %v3382 = vsub.f32 1.5, %v3381
      %v3383 = vmul.f32 %v3378, %v3382
      %vm3384 = vweird.f32 %v3316
      %vm3385 = vweird.f32 %v3378
      %vm3386 = vmor %vm3384, %vm3385
      %v3387 = vsel %vm3386, %v3378, %v3383
      %v3388 = vrsqrt.pop %v3317
      %v3389 = vmul.f32 %v3388, %v3317
      %v3390 = vmul.f32 %v3389, %v3388
      %v3391 = vmul.f32 0.5, %v3390
      %v3392 = vsub.f32 1.5, %v3391
      %v3393 = vmul.f32 %v3388, %v3392
      %vm3394 = vweird.f32 %v3317
      %vm3395 = vweird.f32 %v3388
      %vm3396 = vmor %vm3394, %vm3395
      %v3397 = vsel %vm3396, %v3388, %v3393
      %v3398 = vmul.f32 %v3262, %v3327
      %v3399 = vmul.f32 %v3263, %v3337
      %v3400 = vmul.f32 %v3264, %v3347
      %v3401 = vmul.f32 %v3265, %v3357
      %v3402 = vmul.f32 %v3266, %v3367
      %v3403 = vmul.f32 %v3267, %v3377
      %v3404 = vmul.f32 %v3268, %v3387
      %v3405 = vmul.f32 %v3269, %v3397
      %v3406 = vperm.slane %v1056, 2
      %v3407 = vmul.f32 %v3398, %v3406
      %v3408 = vmul.f32 %v3399, %v3406
      %v3409 = vmul.f32 %v3400, %v3406
      %v3410 = vmul.f32 %v3401, %v3406
      %v3411 = vmul.f32 %v3402, %v3406
      %v3412 = vmul.f32 %v3403, %v3406
      %v3413 = vmul.f32 %v3404, %v3406
      %v3414 = vmul.f32 %v3405, %v3406
      %v3415 = vperm.slane %v1056, 3
      %v3416 = vadd.f32 %v3407, %v3415
      %v3417 = vadd.f32 %v3408, %v3415
      %v3418 = vadd.f32 %v3409, %v3415
      %v3419 = vadd.f32 %v3410, %v3415
      %v3420 = vadd.f32 %v3411, %v3415
      %v3421 = vadd.f32 %v3412, %v3415
      %v3422 = vadd.f32 %v3413, %v3415
      %v3423 = vadd.f32 %v3414, %v3415
      %s3424 = scalar_lea.vmem %s13, 4
      %v3425 = vld [vmem:[%s3424] sm:$0xf]
      %s3426 = scalar_lea.vmem %s5, 32
      %v3427 = vld [vmem:[%s3426] sm:$0xff]
      %v3428 = vld [vmem:[%s3426 + $0x8] sm:$0xff]
      %v3429 = vld [vmem:[%s3426 + $0x10] sm:$0xff]
      %v3430 = vld [vmem:[%s3426 + $0x18] sm:$0xff]
      %s3431 = scalar_lea.vmem %s6, 1
      %v3432 = vld [vmem:[%s3431] sm:$0x1]
      %v3434 = vperm.slane %v3432, 0
      %v3437 = vsel %vm1065, %v3416, 0
      %v3440 = vsel %vm1065, %v3417, 0
      %v3443 = vsel %vm1065, %v3418, 0
      %v3446 = vsel %vm1065, %v3419, 0
      %v3449 = vsel %vm1065, %v3420, 0
      %v3452 = vsel %vm1065, %v3421, 0
      %v3455 = vsel %vm1065, %v3422, 0
      %v3458 = vsel %vm1065, %v3423, 0
      %3460 = vmatpush.msra.mxu0 0.0
      %3461 = vmatpush.msra.mxu0 0.0
      %3462 = vmatpush.msra.mxu0 0.0
      %3463 = vmatpush.msra.mxu0 0.0
      %3464 = vmatpush.msra.mxu0 0.0
      %3465 = vmatpush.msra.mxu0 0.0
      %3466 = vmatpush.msra.mxu0 0.0
      %3467 = vmatpush.msra.mxu0 0.0
      %3468 = vmatpush.msra.mxu0 0.0
      %3469 = vmatpush.msra.mxu0 0.0
      %3470 = vmatpush.msra.mxu0 0.0
      %3471 = vmatpush.msra.mxu0 0.0
      %3472 = vmatpush.msra.mxu0 %v3430
      %3473 = vmatpush.msra.mxu0 %v3429
      %3474 = vmatpush.msra.mxu0 %v3428
      %3475 = vmatpush.msra.mxu0 %v3427
      %3476 = vmatmul.f32.gmra.mxu0 %v3437
      %v3477 = vpop.f32.mrf.mxu0
      %v3478 = vadd.f32 %v3434, %v3477
      %3479 = vmatmul.f32.gmra.mxu0 %v3440
      %v3480 = vpop.f32.mrf.mxu0
      %v3481 = vadd.f32 %v3434, %v3480
      %3482 = vmatmul.f32.gmra.mxu0 %v3443
      %v3483 = vpop.f32.mrf.mxu0
      %v3484 = vadd.f32 %v3434, %v3483
      %3485 = vmatmul.f32.gmra.mxu0 %v3446
      %v3486 = vpop.f32.mrf.mxu0
      %v3487 = vadd.f32 %v3434, %v3486
      %3488 = vmatmul.f32.gmra.mxu0 %v3449
      %v3489 = vpop.f32.mrf.mxu0
      %v3490 = vadd.f32 %v3434, %v3489
      %3491 = vmatmul.f32.gmra.mxu0 %v3452
      %v3492 = vpop.f32.mrf.mxu0
      %v3493 = vadd.f32 %v3434, %v3492
      %3494 = vmatmul.f32.gmra.mxu0 %v3455
      %v3495 = vpop.f32.mrf.mxu0
      %v3496 = vadd.f32 %v3434, %v3495
      %3497 = vmatmul.f32.gmra.mxu0 %v3458
      %v3498 = vpop.f32.mrf.mxu0
      %v3499 = vadd.f32 %v3434, %v3498
      %3500 = vdwg.mxu0
      %3503 = vrot.lane.b32.xlu0 %v3478, 96
      %v3504 = vpop.permute.xlu0 %3503
      %3505 = vrot.lane.b32.xlu0 %v3481, 96
      %v3506 = vpop.permute.xlu0 %3505
      %v3507 = vsel %vm1137, %v3478, 0
      %v3509 = vsel %vm1137, %v3481, 0
      %v3511 = vsel %vm1137, %v3504, 0
      %v3513 = vsel %vm1137, %v3506, 0
      %3515 = vmatpush.xpose.msra.mxu0 0.0
      %3516 = vmatpush.xpose.msra.mxu0 0.0
      %3517 = vmatpush.xpose.msra.mxu0 0.0
      %3518 = vmatpush.xpose.msra.mxu0 0.0
      %3519 = vmatpush.xpose.msra.mxu0 0.0
      %3520 = vmatpush.xpose.msra.mxu0 0.0
      %3521 = vmatpush.xpose.msra.mxu0 0.0
      %3522 = vmatpush.xpose.msra.mxu0 0.0
      %3523 = vmatpush.xpose.msra.mxu0 0.0
      %3524 = vmatpush.xpose.msra.mxu0 0.0
      %3525 = vmatpush.xpose.msra.mxu0 0.0
      %3526 = vmatpush.xpose.msra.mxu0 0.0
      %3527 = vmatpush.xpose.msra.mxu0 0.0
      %3528 = vmatpush.xpose.msra.mxu0 0.0
      %3529 = vmatpush.xpose.msra.mxu0 %v3513
      %3530 = vmatpush.xpose.msra.mxu0 %v3511
      %3531 = vmatmul.f32.gmra.mxu0 %v3507
      %v3532 = vpop.f32.mrf.mxu0
      %v3533 = vadd.f32 %v1054, %v3532
      %3534 = vmatmul.f32.gmra.mxu0 %v3509
      %v3535 = vpop.f32.mrf.mxu0
      %v3536 = vadd.f32 %v1055, %v3535
      %3537 = vdwg.mxu0
      %3540 = vrot.lane.b32.xlu0 %v3484, 96
      %v3541 = vpop.permute.xlu0 %3540
      %3542 = vrot.lane.b32.xlu0 %v3487, 96
      %v3543 = vpop.permute.xlu0 %3542
      %v3544 = vsel %vm1137, %v3484, 0
      %v3546 = vsel %vm1137, %v3487, 0
      %v3548 = vsel %vm1137, %v3541, 0
      %v3550 = vsel %vm1137, %v3543, 0
      %3552 = vmatpush.xpose.msra.mxu0 0.0
      %3553 = vmatpush.xpose.msra.mxu0 0.0
      %3554 = vmatpush.xpose.msra.mxu0 0.0
      %3555 = vmatpush.xpose.msra.mxu0 0.0
      %3556 = vmatpush.xpose.msra.mxu0 0.0
      %3557 = vmatpush.xpose.msra.mxu0 0.0
      %3558 = vmatpush.xpose.msra.mxu0 0.0
      %3559 = vmatpush.xpose.msra.mxu0 0.0
      %3560 = vmatpush.xpose.msra.mxu0 0.0
      %3561 = vmatpush.xpose.msra.mxu0 0.0
      %3562 = vmatpush.xpose.msra.mxu0 0.0
      %3563 = vmatpush.xpose.msra.mxu0 0.0
      %3564 = vmatpush.xpose.msra.mxu0 0.0
      %3565 = vmatpush.xpose.msra.mxu0 0.0
      %3566 = vmatpush.xpose.msra.mxu0 %v3550
      %3567 = vmatpush.xpose.msra.mxu0 %v3548
      %3568 = vmatmul.f32.gmra.mxu0 %v3544
      %v3569 = vpop.f32.mrf.mxu0
      %v3570 = vadd.f32 %v1054, %v3569
      %3571 = vmatmul.f32.gmra.mxu0 %v3546
      %v3572 = vpop.f32.mrf.mxu0
      %v3573 = vadd.f32 %v1055, %v3572
      %3574 = vdwg.mxu0
      %3577 = vrot.lane.b32.xlu0 %v3490, 96
      %v3578 = vpop.permute.xlu0 %3577
      %3579 = vrot.lane.b32.xlu0 %v3493, 96
      %v3580 = vpop.permute.xlu0 %3579
      %v3581 = vsel %vm1137, %v3490, 0
      %v3583 = vsel %vm1137, %v3493, 0
      %v3585 = vsel %vm1137, %v3578, 0
      %v3587 = vsel %vm1137, %v3580, 0
      %3589 = vmatpush.xpose.msra.mxu0 0.0
      %3590 = vmatpush.xpose.msra.mxu0 0.0
      %3591 = vmatpush.xpose.msra.mxu0 0.0
      %3592 = vmatpush.xpose.msra.mxu0 0.0
      %3593 = vmatpush.xpose.msra.mxu0 0.0
      %3594 = vmatpush.xpose.msra.mxu0 0.0
      %3595 = vmatpush.xpose.msra.mxu0 0.0
      %3596 = vmatpush.xpose.msra.mxu0 0.0
      %3597 = vmatpush.xpose.msra.mxu0 0.0
      %3598 = vmatpush.xpose.msra.mxu0 0.0
      %3599 = vmatpush.xpose.msra.mxu0 0.0
      %3600 = vmatpush.xpose.msra.mxu0 0.0
      %3601 = vmatpush.xpose.msra.mxu0 0.0
      %3602 = vmatpush.xpose.msra.mxu0 0.0
      %3603 = vmatpush.xpose.msra.mxu0 %v3587
      %3604 = vmatpush.xpose.msra.mxu0 %v3585
      %3605 = vmatmul.f32.gmra.mxu0 %v3581
      %v3606 = vpop.f32.mrf.mxu0
      %v3607 = vadd.f32 %v1054, %v3606
      %3608 = vmatmul.f32.gmra.mxu0 %v3583
      %v3609 = vpop.f32.mrf.mxu0
      %v3610 = vadd.f32 %v1055, %v3609
      %3611 = vdwg.mxu0
      %3614 = vrot.lane.b32.xlu0 %v3496, 96
      %v3615 = vpop.permute.xlu0 %3614
      %3616 = vrot.lane.b32.xlu0 %v3499, 96
      %v3617 = vpop.permute.xlu0 %3616
      %v3618 = vsel %vm1137, %v3496, 0
      %v3620 = vsel %vm1137, %v3499, 0
      %v3622 = vsel %vm1137, %v3615, 0
      %v3624 = vsel %vm1137, %v3617, 0
      %3626 = vmatpush.xpose.msra.mxu0 0.0
      %3627 = vmatpush.xpose.msra.mxu0 0.0
      %3628 = vmatpush.xpose.msra.mxu0 0.0
      %3629 = vmatpush.xpose.msra.mxu0 0.0
      %3630 = vmatpush.xpose.msra.mxu0 0.0
      %3631 = vmatpush.xpose.msra.mxu0 0.0
      %3632 = vmatpush.xpose.msra.mxu0 0.0
      %3633 = vmatpush.xpose.msra.mxu0 0.0
      %3634 = vmatpush.xpose.msra.mxu0 0.0
      %3635 = vmatpush.xpose.msra.mxu0 0.0
      %3636 = vmatpush.xpose.msra.mxu0 0.0
      %3637 = vmatpush.xpose.msra.mxu0 0.0
      %3638 = vmatpush.xpose.msra.mxu0 0.0
      %3639 = vmatpush.xpose.msra.mxu0 0.0
      %3640 = vmatpush.xpose.msra.mxu0 %v3624
      %3641 = vmatpush.xpose.msra.mxu0 %v3622
      %3642 = vmatmul.f32.gmra.mxu0 %v3618
      %v3643 = vpop.f32.mrf.mxu0
      %v3644 = vadd.f32 %v1054, %v3643
      %3645 = vmatmul.f32.gmra.mxu0 %v3620
      %v3646 = vpop.f32.mrf.mxu0
      %v3647 = vadd.f32 %v1055, %v3646
      %3648 = vdwg.mxu0
      %v3649 = vsel %vm585, %v3533, -inf
      %3650 = vmax.xlane.f32.xlu0 %v3649
      %v3651 = vpop.xlane.xlu0 %3650
      %v3652 = vsel %vm585, %v3536, -inf
      %3653 = vmax.xlane.f32.xlu0 %v3652
      %v3654 = vpop.xlane.xlu0 %3653
      %v3655 = vsel %vm585, %v3570, -inf
      %3656 = vmax.xlane.f32.xlu0 %v3655
      %v3657 = vpop.xlane.xlu0 %3656
      %v3658 = vsel %vm585, %v3573, -inf
      %3659 = vmax.xlane.f32.xlu0 %v3658
      %v3660 = vpop.xlane.xlu0 %3659
      %v3661 = vsel %vm585, %v3607, -inf
      %3662 = vmax.xlane.f32.xlu0 %v3661
      %v3663 = vpop.xlane.xlu0 %3662
      %v3664 = vsel %vm585, %v3610, -inf
      %3665 = vmax.xlane.f32.xlu0 %v3664
      %v3666 = vpop.xlane.xlu0 %3665
      %v3667 = vsel %vm585, %v3644, -inf
      %3668 = vmax.xlane.f32.xlu0 %v3667
      %v3669 = vpop.xlane.xlu0 %3668
      %v3670 = vsel %vm585, %v3647, -inf
      %3671 = vmax.xlane.f32.xlu0 %v3670
      %v3672 = vpop.xlane.xlu0 %3671
      %v3673 = vsub.f32 %v3533, %v3651
      %v3674 = vsub.f32 %v3536, %v3654
      %v3675 = vsub.f32 %v3570, %v3657
      %v3676 = vsub.f32 %v3573, %v3660
      %v3677 = vsub.f32 %v3607, %v3663
      %v3678 = vsub.f32 %v3610, %v3666
      %v3679 = vsub.f32 %v3644, %v3669
      %v3680 = vsub.f32 %v3647, %v3672
      %v3681 = vmul.f32 %v3673, 1.442695
      %v3682 = vpow.pop %v3681
      %v3683 = vmul.f32 %v3674, 1.442695
      %v3684 = vpow.pop %v3683
      %v3685 = vmul.f32 %v3675, 1.442695
      %v3686 = vpow.pop %v3685
      %v3687 = vmul.f32 %v3676, 1.442695
      %v3688 = vpow.pop %v3687
      %v3689 = vmul.f32 %v3677, 1.442695
      %v3690 = vpow.pop %v3689
      %v3691 = vmul.f32 %v3678, 1.442695
      %v3692 = vpow.pop %v3691
      %v3693 = vmul.f32 %v3679, 1.442695
      %v3694 = vpow.pop %v3693
      %v3695 = vmul.f32 %v3680, 1.442695
      %v3696 = vpow.pop %v3695
      %v3697 = vsel %vm585, %v3682, 0.0
      %3698 = vadd.xlane.f32.xlu0 %v3697
      %v3699 = vpop.xlane.xlu0 %3698
      %v3700 = vsel %vm585, %v3684, 0.0
      %3701 = vadd.xlane.f32.xlu0 %v3700
      %v3702 = vpop.xlane.xlu0 %3701
      %v3703 = vsel %vm585, %v3686, 0.0
      %3704 = vadd.xlane.f32.xlu0 %v3703
      %v3705 = vpop.xlane.xlu0 %3704
      %v3706 = vsel %vm585, %v3688, 0.0
      %3707 = vadd.xlane.f32.xlu0 %v3706
      %v3708 = vpop.xlane.xlu0 %3707
      %v3709 = vsel %vm585, %v3690, 0.0
      %3710 = vadd.xlane.f32.xlu0 %v3709
      %v3711 = vpop.xlane.xlu0 %3710
      %v3712 = vsel %vm585, %v3692, 0.0
      %3713 = vadd.xlane.f32.xlu0 %v3712
      %v3714 = vpop.xlane.xlu0 %3713
      %v3715 = vsel %vm585, %v3694, 0.0
      %3716 = vadd.xlane.f32.xlu0 %v3715
      %v3717 = vpop.xlane.xlu0 %3716
      %v3718 = vsel %vm585, %v3696, 0.0
      %3719 = vadd.xlane.f32.xlu0 %v3718
      %v3720 = vpop.xlane.xlu0 %3719
      %v3721 = vrcp.pop %v3699
      %v3722 = vrcp.pop %v3702
      %v3723 = vrcp.pop %v3705
      %v3724 = vrcp.pop %v3708
      %v3725 = vrcp.pop %v3711
      %v3726 = vrcp.pop %v3714
      %v3727 = vrcp.pop %v3717
      %v3728 = vrcp.pop %v3720
      %v3729 = vmul.f32 %v3682, %v3721
      %v3730 = vmul.f32 %v3684, %v3722
      %v3731 = vmul.f32 %v3686, %v3723
      %v3732 = vmul.f32 %v3688, %v3724
      %v3733 = vmul.f32 %v3690, %v3725
      %v3734 = vmul.f32 %v3692, %v3726
      %v3735 = vmul.f32 %v3694, %v3727
      %v3736 = vmul.f32 %v3696, %v3728
      %3737 = vrot.lane.b32.xlu0 %v3478, 64
      %v3738 = vpop.permute.xlu0 %3737
      %3739 = vrot.lane.b32.xlu0 %v3481, 64
      %v3740 = vpop.permute.xlu0 %3739
      %v3744 = vsel %vm585, %v3729, 0
      %v3747 = vsel %vm585, %v3730, 0
      %3749 = vmatpush.msra.mxu0 0.0
      %3750 = vmatpush.msra.mxu0 0.0
      %3751 = vmatpush.msra.mxu0 0.0
      %3752 = vmatpush.msra.mxu0 0.0
      %3753 = vmatpush.msra.mxu0 0.0
      %3754 = vmatpush.msra.mxu0 0.0
      %3755 = vmatpush.msra.mxu0 0.0
      %3756 = vmatpush.msra.mxu0 0.0
      %3757 = vmatpush.msra.mxu0 0.0
      %3758 = vmatpush.msra.mxu0 0.0
      %3759 = vmatpush.msra.mxu0 0.0
      %3760 = vmatpush.msra.mxu0 0.0
      %3761 = vmatpush.msra.mxu0 0.0
      %3762 = vmatpush.msra.mxu0 0.0
      %3763 = vmatpush.msra.mxu0 %v3740
      %3764 = vmatpush.msra.mxu0 %v3738
      %3765 = vmatmul.f32.gmra.mxu0 %v3744
      %v3766 = vpop.f32.mrf.mxu0
      %v3767 = vadd.f32 0.0, %v3766
      %3768 = vmatmul.f32.gmra.mxu0 %v3747
      %v3769 = vpop.f32.mrf.mxu0
      %v3770 = vadd.f32 0.0, %v3769
      %3771 = vdwg.mxu0
      %3772 = vrot.lane.b32.xlu0 %v3484, 64
      %v3773 = vpop.permute.xlu0 %3772
      %3774 = vrot.lane.b32.xlu0 %v3487, 64
      %v3775 = vpop.permute.xlu0 %3774
      %v3779 = vsel %vm585, %v3731, 0
      %v3782 = vsel %vm585, %v3732, 0
      %3784 = vmatpush.msra.mxu0 0.0
      %3785 = vmatpush.msra.mxu0 0.0
      %3786 = vmatpush.msra.mxu0 0.0
      %3787 = vmatpush.msra.mxu0 0.0
      %3788 = vmatpush.msra.mxu0 0.0
      %3789 = vmatpush.msra.mxu0 0.0
      %3790 = vmatpush.msra.mxu0 0.0
      %3791 = vmatpush.msra.mxu0 0.0
      %3792 = vmatpush.msra.mxu0 0.0
      %3793 = vmatpush.msra.mxu0 0.0
      %3794 = vmatpush.msra.mxu0 0.0
      %3795 = vmatpush.msra.mxu0 0.0
      %3796 = vmatpush.msra.mxu0 0.0
      %3797 = vmatpush.msra.mxu0 0.0
      %3798 = vmatpush.msra.mxu0 %v3775
      %3799 = vmatpush.msra.mxu0 %v3773
      %3800 = vmatmul.f32.gmra.mxu0 %v3779
      %v3801 = vpop.f32.mrf.mxu0
      %v3802 = vadd.f32 0.0, %v3801
      %3803 = vmatmul.f32.gmra.mxu0 %v3782
      %v3804 = vpop.f32.mrf.mxu0
      %v3805 = vadd.f32 0.0, %v3804
      %3806 = vdwg.mxu0
      %3807 = vrot.lane.b32.xlu0 %v3490, 64
      %v3808 = vpop.permute.xlu0 %3807
      %3809 = vrot.lane.b32.xlu0 %v3493, 64
      %v3810 = vpop.permute.xlu0 %3809
      %v3814 = vsel %vm585, %v3733, 0
      %v3817 = vsel %vm585, %v3734, 0
      %3819 = vmatpush.msra.mxu0 0.0
      %3820 = vmatpush.msra.mxu0 0.0
      %3821 = vmatpush.msra.mxu0 0.0
      %3822 = vmatpush.msra.mxu0 0.0
      %3823 = vmatpush.msra.mxu0 0.0
      %3824 = vmatpush.msra.mxu0 0.0
      %3825 = vmatpush.msra.mxu0 0.0
      %3826 = vmatpush.msra.mxu0 0.0
      %3827 = vmatpush.msra.mxu0 0.0
      %3828 = vmatpush.msra.mxu0 0.0
      %3829 = vmatpush.msra.mxu0 0.0
      %3830 = vmatpush.msra.mxu0 0.0
      %3831 = vmatpush.msra.mxu0 0.0
      %3832 = vmatpush.msra.mxu0 0.0
      %3833 = vmatpush.msra.mxu0 %v3810
      %3834 = vmatpush.msra.mxu0 %v3808
      %3835 = vmatmul.f32.gmra.mxu0 %v3814
      %v3836 = vpop.f32.mrf.mxu0
      %v3837 = vadd.f32 0.0, %v3836
      %3838 = vmatmul.f32.gmra.mxu0 %v3817
      %v3839 = vpop.f32.mrf.mxu0
      %v3840 = vadd.f32 0.0, %v3839
      %3841 = vdwg.mxu0
      %3842 = vrot.lane.b32.xlu0 %v3496, 64
      %v3843 = vpop.permute.xlu0 %3842
      %3844 = vrot.lane.b32.xlu0 %v3499, 64
      %v3845 = vpop.permute.xlu0 %3844
      %v3849 = vsel %vm585, %v3735, 0
      %v3852 = vsel %vm585, %v3736, 0
      %3854 = vmatpush.msra.mxu0 0.0
      %3855 = vmatpush.msra.mxu0 0.0
      %3856 = vmatpush.msra.mxu0 0.0
      %3857 = vmatpush.msra.mxu0 0.0
      %3858 = vmatpush.msra.mxu0 0.0
      %3859 = vmatpush.msra.mxu0 0.0
      %3860 = vmatpush.msra.mxu0 0.0
      %3861 = vmatpush.msra.mxu0 0.0
      %3862 = vmatpush.msra.mxu0 0.0
      %3863 = vmatpush.msra.mxu0 0.0
      %3864 = vmatpush.msra.mxu0 0.0
      %3865 = vmatpush.msra.mxu0 0.0
      %3866 = vmatpush.msra.mxu0 0.0
      %3867 = vmatpush.msra.mxu0 0.0
      %3868 = vmatpush.msra.mxu0 %v3845
      %3869 = vmatpush.msra.mxu0 %v3843
      %3870 = vmatmul.f32.gmra.mxu0 %v3849
      %v3871 = vpop.f32.mrf.mxu0
      %v3872 = vadd.f32 0.0, %v3871
      %3873 = vmatmul.f32.gmra.mxu0 %v3852
      %v3874 = vpop.f32.mrf.mxu0
      %v3875 = vadd.f32 0.0, %v3874
      %3876 = vdwg.mxu0
      %3877 = vrot.lane.b32.xlu0 %v3478, 120
      %v3878 = vpop.permute.xlu0 %3877
      %3879 = vrot.lane.b32.xlu0 %v3481, 120
      %v3880 = vpop.permute.xlu0 %3879
      %3881 = vrot.lane.b32.xlu0 %v3478, 88
      %v3882 = vpop.permute.xlu0 %3881
      %3883 = vrot.lane.b32.xlu0 %v3481, 88
      %v3884 = vpop.permute.xlu0 %3883
      %v3885 = vsel %vm1137, %v3878, 0
      %v3887 = vsel %vm1137, %v3880, 0
      %v3889 = vsel %vm1137, %v3882, 0
      %v3891 = vsel %vm1137, %v3884, 0
      %3893 = vmatpush.xpose.msra.mxu0 0.0
      %3894 = vmatpush.xpose.msra.mxu0 0.0
      %3895 = vmatpush.xpose.msra.mxu0 0.0
      %3896 = vmatpush.xpose.msra.mxu0 0.0
      %3897 = vmatpush.xpose.msra.mxu0 0.0
      %3898 = vmatpush.xpose.msra.mxu0 0.0
      %3899 = vmatpush.xpose.msra.mxu0 0.0
      %3900 = vmatpush.xpose.msra.mxu0 0.0
      %3901 = vmatpush.xpose.msra.mxu0 0.0
      %3902 = vmatpush.xpose.msra.mxu0 0.0
      %3903 = vmatpush.xpose.msra.mxu0 0.0
      %3904 = vmatpush.xpose.msra.mxu0 0.0
      %3905 = vmatpush.xpose.msra.mxu0 0.0
      %3906 = vmatpush.xpose.msra.mxu0 0.0
      %3907 = vmatpush.xpose.msra.mxu0 %v3891
      %3908 = vmatpush.xpose.msra.mxu0 %v3889
      %3909 = vmatmul.f32.gmra.mxu0 %v3885
      %v3910 = vpop.f32.mrf.mxu0
      %v3911 = vadd.f32 %v1054, %v3910
      %3912 = vmatmul.f32.gmra.mxu0 %v3887
      %v3913 = vpop.f32.mrf.mxu0
      %v3914 = vadd.f32 %v1055, %v3913
      %3915 = vdwg.mxu0
      %3916 = vrot.lane.b32.xlu0 %v3484, 120
      %v3917 = vpop.permute.xlu0 %3916
      %3918 = vrot.lane.b32.xlu0 %v3487, 120
      %v3919 = vpop.permute.xlu0 %3918
      %3920 = vrot.lane.b32.xlu0 %v3484, 88
      %v3921 = vpop.permute.xlu0 %3920
      %3922 = vrot.lane.b32.xlu0 %v3487, 88
      %v3923 = vpop.permute.xlu0 %3922
      %v3924 = vsel %vm1137, %v3917, 0
      %v3926 = vsel %vm1137, %v3919, 0
      %v3928 = vsel %vm1137, %v3921, 0
      %v3930 = vsel %vm1137, %v3923, 0
      %3932 = vmatpush.xpose.msra.mxu0 0.0
      %3933 = vmatpush.xpose.msra.mxu0 0.0
      %3934 = vmatpush.xpose.msra.mxu0 0.0
      %3935 = vmatpush.xpose.msra.mxu0 0.0
      %3936 = vmatpush.xpose.msra.mxu0 0.0
      %3937 = vmatpush.xpose.msra.mxu0 0.0
      %3938 = vmatpush.xpose.msra.mxu0 0.0
      %3939 = vmatpush.xpose.msra.mxu0 0.0
      %3940 = vmatpush.xpose.msra.mxu0 0.0
      %3941 = vmatpush.xpose.msra.mxu0 0.0
      %3942 = vmatpush.xpose.msra.mxu0 0.0
      %3943 = vmatpush.xpose.msra.mxu0 0.0
      %3944 = vmatpush.xpose.msra.mxu0 0.0
      %3945 = vmatpush.xpose.msra.mxu0 0.0
      %3946 = vmatpush.xpose.msra.mxu0 %v3930
      %3947 = vmatpush.xpose.msra.mxu0 %v3928
      %3948 = vmatmul.f32.gmra.mxu0 %v3924
      %v3949 = vpop.f32.mrf.mxu0
      %v3950 = vadd.f32 %v1054, %v3949
      %3951 = vmatmul.f32.gmra.mxu0 %v3926
      %v3952 = vpop.f32.mrf.mxu0
      %v3953 = vadd.f32 %v1055, %v3952
      %3954 = vdwg.mxu0
      %3955 = vrot.lane.b32.xlu0 %v3490, 120
      %v3956 = vpop.permute.xlu0 %3955
      %3957 = vrot.lane.b32.xlu0 %v3493, 120
      %v3958 = vpop.permute.xlu0 %3957
      %3959 = vrot.lane.b32.xlu0 %v3490, 88
      %v3960 = vpop.permute.xlu0 %3959
      %3961 = vrot.lane.b32.xlu0 %v3493, 88
      %v3962 = vpop.permute.xlu0 %3961
      %v3963 = vsel %vm1137, %v3956, 0
      %v3965 = vsel %vm1137, %v3958, 0
      %v3967 = vsel %vm1137, %v3960, 0
      %v3969 = vsel %vm1137, %v3962, 0
      %3971 = vmatpush.xpose.msra.mxu0 0.0
      %3972 = vmatpush.xpose.msra.mxu0 0.0
      %3973 = vmatpush.xpose.msra.mxu0 0.0
      %3974 = vmatpush.xpose.msra.mxu0 0.0
      %3975 = vmatpush.xpose.msra.mxu0 0.0
      %3976 = vmatpush.xpose.msra.mxu0 0.0
      %3977 = vmatpush.xpose.msra.mxu0 0.0
      %3978 = vmatpush.xpose.msra.mxu0 0.0
      %3979 = vmatpush.xpose.msra.mxu0 0.0
      %3980 = vmatpush.xpose.msra.mxu0 0.0
      %3981 = vmatpush.xpose.msra.mxu0 0.0
      %3982 = vmatpush.xpose.msra.mxu0 0.0
      %3983 = vmatpush.xpose.msra.mxu0 0.0
      %3984 = vmatpush.xpose.msra.mxu0 0.0
      %3985 = vmatpush.xpose.msra.mxu0 %v3969
      %3986 = vmatpush.xpose.msra.mxu0 %v3967
      %3987 = vmatmul.f32.gmra.mxu0 %v3963
      %v3988 = vpop.f32.mrf.mxu0
      %v3989 = vadd.f32 %v1054, %v3988
      %3990 = vmatmul.f32.gmra.mxu0 %v3965
      %v3991 = vpop.f32.mrf.mxu0
      %v3992 = vadd.f32 %v1055, %v3991
      %3993 = vdwg.mxu0
      %3994 = vrot.lane.b32.xlu0 %v3496, 120
      %v3995 = vpop.permute.xlu0 %3994
      %3996 = vrot.lane.b32.xlu0 %v3499, 120
      %v3997 = vpop.permute.xlu0 %3996
      %3998 = vrot.lane.b32.xlu0 %v3496, 88
      %v3999 = vpop.permute.xlu0 %3998
      %4000 = vrot.lane.b32.xlu0 %v3499, 88
      %v4001 = vpop.permute.xlu0 %4000
      %v4002 = vsel %vm1137, %v3995, 0
      %v4004 = vsel %vm1137, %v3997, 0
      %v4006 = vsel %vm1137, %v3999, 0
      %v4008 = vsel %vm1137, %v4001, 0
      %4010 = vmatpush.xpose.msra.mxu0 0.0
      %4011 = vmatpush.xpose.msra.mxu0 0.0
      %4012 = vmatpush.xpose.msra.mxu0 0.0
      %4013 = vmatpush.xpose.msra.mxu0 0.0
      %4014 = vmatpush.xpose.msra.mxu0 0.0
      %4015 = vmatpush.xpose.msra.mxu0 0.0
      %4016 = vmatpush.xpose.msra.mxu0 0.0
      %4017 = vmatpush.xpose.msra.mxu0 0.0
      %4018 = vmatpush.xpose.msra.mxu0 0.0
      %4019 = vmatpush.xpose.msra.mxu0 0.0
      %4020 = vmatpush.xpose.msra.mxu0 0.0
      %4021 = vmatpush.xpose.msra.mxu0 0.0
      %4022 = vmatpush.xpose.msra.mxu0 0.0
      %4023 = vmatpush.xpose.msra.mxu0 0.0
      %4024 = vmatpush.xpose.msra.mxu0 %v4008
      %4025 = vmatpush.xpose.msra.mxu0 %v4006
      %4026 = vmatmul.f32.gmra.mxu0 %v4002
      %v4027 = vpop.f32.mrf.mxu0
      %v4028 = vadd.f32 %v1054, %v4027
      %4029 = vmatmul.f32.gmra.mxu0 %v4004
      %v4030 = vpop.f32.mrf.mxu0
      %v4031 = vadd.f32 %v1055, %v4030
      %4032 = vdwg.mxu0
      %v4033 = vsel %vm585, %v3911, -inf
      %4034 = vmax.xlane.f32.xlu0 %v4033
      %v4035 = vpop.xlane.xlu0 %4034
      %v4036 = vsel %vm585, %v3914, -inf
      %4037 = vmax.xlane.f32.xlu0 %v4036
      %v4038 = vpop.xlane.xlu0 %4037
      %v4039 = vsel %vm585, %v3950, -inf
      %4040 = vmax.xlane.f32.xlu0 %v4039
      %v4041 = vpop.xlane.xlu0 %4040
      %v4042 = vsel %vm585, %v3953, -inf
      %4043 = vmax.xlane.f32.xlu0 %v4042
      %v4044 = vpop.xlane.xlu0 %4043
      %v4045 = vsel %vm585, %v3989, -inf
      %4046 = vmax.xlane.f32.xlu0 %v4045
      %v4047 = vpop.xlane.xlu0 %4046
      %v4048 = vsel %vm585, %v3992, -inf
      %4049 = vmax.xlane.f32.xlu0 %v4048
      %v4050 = vpop.xlane.xlu0 %4049
      %v4051 = vsel %vm585, %v4028, -inf
      %4052 = vmax.xlane.f32.xlu0 %v4051
      %v4053 = vpop.xlane.xlu0 %4052
      %v4054 = vsel %vm585, %v4031, -inf
      %4055 = vmax.xlane.f32.xlu0 %v4054
      %v4056 = vpop.xlane.xlu0 %4055
      %v4057 = vsub.f32 %v3911, %v4035
      %v4058 = vsub.f32 %v3914, %v4038
      %v4059 = vsub.f32 %v3950, %v4041
      %v4060 = vsub.f32 %v3953, %v4044
      %v4061 = vsub.f32 %v3989, %v4047
      %v4062 = vsub.f32 %v3992, %v4050
      %v4063 = vsub.f32 %v4028, %v4053
      %v4064 = vsub.f32 %v4031, %v4056
      %v4065 = vmul.f32 %v4057, 1.442695
      %v4066 = vpow.pop %v4065
      %v4067 = vmul.f32 %v4058, 1.442695
      %v4068 = vpow.pop %v4067
      %v4069 = vmul.f32 %v4059, 1.442695
      %v4070 = vpow.pop %v4069
      %v4071 = vmul.f32 %v4060, 1.442695
      %v4072 = vpow.pop %v4071
      %v4073 = vmul.f32 %v4061, 1.442695
      %v4074 = vpow.pop %v4073
      %v4075 = vmul.f32 %v4062, 1.442695
      %v4076 = vpow.pop %v4075
      %v4077 = vmul.f32 %v4063, 1.442695
      %v4078 = vpow.pop %v4077
      %v4079 = vmul.f32 %v4064, 1.442695
      %v4080 = vpow.pop %v4079
      %v4081 = vsel %vm585, %v4066, 0.0
      %4082 = vadd.xlane.f32.xlu0 %v4081
      %v4083 = vpop.xlane.xlu0 %4082
      %v4084 = vsel %vm585, %v4068, 0.0
      %4085 = vadd.xlane.f32.xlu0 %v4084
      %v4086 = vpop.xlane.xlu0 %4085
      %v4087 = vsel %vm585, %v4070, 0.0
      %4088 = vadd.xlane.f32.xlu0 %v4087
      %v4089 = vpop.xlane.xlu0 %4088
      %v4090 = vsel %vm585, %v4072, 0.0
      %4091 = vadd.xlane.f32.xlu0 %v4090
      %v4092 = vpop.xlane.xlu0 %4091
      %v4093 = vsel %vm585, %v4074, 0.0
      %4094 = vadd.xlane.f32.xlu0 %v4093
      %v4095 = vpop.xlane.xlu0 %4094
      %v4096 = vsel %vm585, %v4076, 0.0
      %4097 = vadd.xlane.f32.xlu0 %v4096
      %v4098 = vpop.xlane.xlu0 %4097
      %v4099 = vsel %vm585, %v4078, 0.0
      %4100 = vadd.xlane.f32.xlu0 %v4099
      %v4101 = vpop.xlane.xlu0 %4100
      %v4102 = vsel %vm585, %v4080, 0.0
      %4103 = vadd.xlane.f32.xlu0 %v4102
      %v4104 = vpop.xlane.xlu0 %4103
      %v4105 = vrcp.pop %v4083
      %v4106 = vrcp.pop %v4086
      %v4107 = vrcp.pop %v4089
      %v4108 = vrcp.pop %v4092
      %v4109 = vrcp.pop %v4095
      %v4110 = vrcp.pop %v4098
      %v4111 = vrcp.pop %v4101
      %v4112 = vrcp.pop %v4104
      %v4113 = vmul.f32 %v4066, %v4105
      %v4114 = vmul.f32 %v4068, %v4106
      %v4115 = vmul.f32 %v4070, %v4107
      %v4116 = vmul.f32 %v4072, %v4108
      %v4117 = vmul.f32 %v4074, %v4109
      %v4118 = vmul.f32 %v4076, %v4110
      %v4119 = vmul.f32 %v4078, %v4111
      %v4120 = vmul.f32 %v4080, %v4112
      %4121 = vrot.lane.b32.xlu0 %v3478, 56
      %v4122 = vpop.permute.xlu0 %4121
      %4123 = vrot.lane.b32.xlu0 %v3481, 56
      %v4124 = vpop.permute.xlu0 %4123
      %v4128 = vsel %vm585, %v4113, 0
      %v4131 = vsel %vm585, %v4114, 0
      %4133 = vmatpush.msra.mxu0 0.0
      %4134 = vmatpush.msra.mxu0 0.0
      %4135 = vmatpush.msra.mxu0 0.0
      %4136 = vmatpush.msra.mxu0 0.0
      %4137 = vmatpush.msra.mxu0 0.0
      %4138 = vmatpush.msra.mxu0 0.0
      %4139 = vmatpush.msra.mxu0 0.0
      %4140 = vmatpush.msra.mxu0 0.0
      %4141 = vmatpush.msra.mxu0 0.0
      %4142 = vmatpush.msra.mxu0 0.0
      %4143 = vmatpush.msra.mxu0 0.0
      %4144 = vmatpush.msra.mxu0 0.0
      %4145 = vmatpush.msra.mxu0 0.0
      %4146 = vmatpush.msra.mxu0 0.0
      %4147 = vmatpush.msra.mxu0 %v4124
      %4148 = vmatpush.msra.mxu0 %v4122
      %4149 = vmatmul.f32.gmra.mxu0 %v4128
      %v4150 = vpop.f32.mrf.mxu0
      %v4151 = vadd.f32 0.0, %v4150
      %4152 = vmatmul.f32.gmra.mxu0 %v4131
      %v4153 = vpop.f32.mrf.mxu0
      %v4154 = vadd.f32 0.0, %v4153
      %4155 = vdwg.mxu0
      %4156 = vrot.lane.b32.xlu0 %v3484, 56
      %v4157 = vpop.permute.xlu0 %4156
      %4158 = vrot.lane.b32.xlu0 %v3487, 56
      %v4159 = vpop.permute.xlu0 %4158
      %v4163 = vsel %vm585, %v4115, 0
      %v4166 = vsel %vm585, %v4116, 0
      %4168 = vmatpush.msra.mxu0 0.0
      %4169 = vmatpush.msra.mxu0 0.0
      %4170 = vmatpush.msra.mxu0 0.0
      %4171 = vmatpush.msra.mxu0 0.0
      %4172 = vmatpush.msra.mxu0 0.0
      %4173 = vmatpush.msra.mxu0 0.0
      %4174 = vmatpush.msra.mxu0 0.0
      %4175 = vmatpush.msra.mxu0 0.0
      %4176 = vmatpush.msra.mxu0 0.0
      %4177 = vmatpush.msra.mxu0 0.0
      %4178 = vmatpush.msra.mxu0 0.0
      %4179 = vmatpush.msra.mxu0 0.0
      %4180 = vmatpush.msra.mxu0 0.0
      %4181 = vmatpush.msra.mxu0 0.0
      %4182 = vmatpush.msra.mxu0 %v4159
      %4183 = vmatpush.msra.mxu0 %v4157
      %4184 = vmatmul.f32.gmra.mxu0 %v4163
      %v4185 = vpop.f32.mrf.mxu0
      %v4186 = vadd.f32 0.0, %v4185
      %4187 = vmatmul.f32.gmra.mxu0 %v4166
      %v4188 = vpop.f32.mrf.mxu0
      %v4189 = vadd.f32 0.0, %v4188
      %4190 = vdwg.mxu0
      %4191 = vrot.lane.b32.xlu0 %v3490, 56
      %v4192 = vpop.permute.xlu0 %4191
      %4193 = vrot.lane.b32.xlu0 %v3493, 56
      %v4194 = vpop.permute.xlu0 %4193
      %v4198 = vsel %vm585, %v4117, 0
      %v4201 = vsel %vm585, %v4118, 0
      %4203 = vmatpush.msra.mxu0 0.0
      %4204 = vmatpush.msra.mxu0 0.0
      %4205 = vmatpush.msra.mxu0 0.0
      %4206 = vmatpush.msra.mxu0 0.0
      %4207 = vmatpush.msra.mxu0 0.0
      %4208 = vmatpush.msra.mxu0 0.0
      %4209 = vmatpush.msra.mxu0 0.0
      %4210 = vmatpush.msra.mxu0 0.0
      %4211 = vmatpush.msra.mxu0 0.0
      %4212 = vmatpush.msra.mxu0 0.0
      %4213 = vmatpush.msra.mxu0 0.0
      %4214 = vmatpush.msra.mxu0 0.0
      %4215 = vmatpush.msra.mxu0 0.0
      %4216 = vmatpush.msra.mxu0 0.0
      %4217 = vmatpush.msra.mxu0 %v4194
      %4218 = vmatpush.msra.mxu0 %v4192
      %4219 = vmatmul.f32.gmra.mxu0 %v4198
      %v4220 = vpop.f32.mrf.mxu0
      %v4221 = vadd.f32 0.0, %v4220
      %4222 = vmatmul.f32.gmra.mxu0 %v4201
      %v4223 = vpop.f32.mrf.mxu0
      %v4224 = vadd.f32 0.0, %v4223
      %4225 = vdwg.mxu0
      %4226 = vrot.lane.b32.xlu0 %v3496, 56
      %v4227 = vpop.permute.xlu0 %4226
      %4228 = vrot.lane.b32.xlu0 %v3499, 56
      %v4229 = vpop.permute.xlu0 %4228
      %v4233 = vsel %vm585, %v4119, 0
      %v4236 = vsel %vm585, %v4120, 0
      %4238 = vmatpush.msra.mxu0 0.0
      %4239 = vmatpush.msra.mxu0 0.0
      %4240 = vmatpush.msra.mxu0 0.0
      %4241 = vmatpush.msra.mxu0 0.0
      %4242 = vmatpush.msra.mxu0 0.0
      %4243 = vmatpush.msra.mxu0 0.0
      %4244 = vmatpush.msra.mxu0 0.0
      %4245 = vmatpush.msra.mxu0 0.0
      %4246 = vmatpush.msra.mxu0 0.0
      %4247 = vmatpush.msra.mxu0 0.0
      %4248 = vmatpush.msra.mxu0 0.0
      %4249 = vmatpush.msra.mxu0 0.0
      %4250 = vmatpush.msra.mxu0 0.0
      %4251 = vmatpush.msra.mxu0 0.0
      %4252 = vmatpush.msra.mxu0 %v4229
      %4253 = vmatpush.msra.mxu0 %v4227
      %4254 = vmatmul.f32.gmra.mxu0 %v4233
      %v4255 = vpop.f32.mrf.mxu0
      %v4256 = vadd.f32 0.0, %v4255
      %4257 = vmatmul.f32.gmra.mxu0 %v4236
      %v4258 = vpop.f32.mrf.mxu0
      %v4259 = vadd.f32 0.0, %v4258
      %4260 = vdwg.mxu0
      %4261 = vrot.lane.b32.xlu0 %v3478, 112
      %v4262 = vpop.permute.xlu0 %4261
      %4263 = vrot.lane.b32.xlu0 %v3481, 112
      %v4264 = vpop.permute.xlu0 %4263
      %4265 = vrot.lane.b32.xlu0 %v3478, 80
      %v4266 = vpop.permute.xlu0 %4265
      %4267 = vrot.lane.b32.xlu0 %v3481, 80
      %v4268 = vpop.permute.xlu0 %4267
      %v4269 = vsel %vm1137, %v4262, 0
      %v4271 = vsel %vm1137, %v4264, 0
      %v4273 = vsel %vm1137, %v4266, 0
      %v4275 = vsel %vm1137, %v4268, 0
      %4277 = vmatpush.xpose.msra.mxu0 0.0
      %4278 = vmatpush.xpose.msra.mxu0 0.0
      %4279 = vmatpush.xpose.msra.mxu0 0.0
      %4280 = vmatpush.xpose.msra.mxu0 0.0
      %4281 = vmatpush.xpose.msra.mxu0 0.0
      %4282 = vmatpush.xpose.msra.mxu0 0.0
      %4283 = vmatpush.xpose.msra.mxu0 0.0
      %4284 = vmatpush.xpose.msra.mxu0 0.0
      %4285 = vmatpush.xpose.msra.mxu0 0.0
      %4286 = vmatpush.xpose.msra.mxu0 0.0
      %4287 = vmatpush.xpose.msra.mxu0 0.0
      %4288 = vmatpush.xpose.msra.mxu0 0.0
      %4289 = vmatpush.xpose.msra.mxu0 0.0
      %4290 = vmatpush.xpose.msra.mxu0 0.0
      %4291 = vmatpush.xpose.msra.mxu0 %v4275
      %4292 = vmatpush.xpose.msra.mxu0 %v4273
      %4293 = vmatmul.f32.gmra.mxu0 %v4269
      %v4294 = vpop.f32.mrf.mxu0
      %v4295 = vadd.f32 %v1054, %v4294
      %4296 = vmatmul.f32.gmra.mxu0 %v4271
      %v4297 = vpop.f32.mrf.mxu0
      %v4298 = vadd.f32 %v1055, %v4297
      %4299 = vdwg.mxu0
      %4300 = vrot.lane.b32.xlu0 %v3484, 112
      %v4301 = vpop.permute.xlu0 %4300
      %4302 = vrot.lane.b32.xlu0 %v3487, 112
      %v4303 = vpop.permute.xlu0 %4302
      %4304 = vrot.lane.b32.xlu0 %v3484, 80
      %v4305 = vpop.permute.xlu0 %4304
      %4306 = vrot.lane.b32.xlu0 %v3487, 80
      %v4307 = vpop.permute.xlu0 %4306
      %v4308 = vsel %vm1137, %v4301, 0
      %v4310 = vsel %vm1137, %v4303, 0
      %v4312 = vsel %vm1137, %v4305, 0
      %v4314 = vsel %vm1137, %v4307, 0
      %4316 = vmatpush.xpose.msra.mxu0 0.0
      %4317 = vmatpush.xpose.msra.mxu0 0.0
      %4318 = vmatpush.xpose.msra.mxu0 0.0
      %4319 = vmatpush.xpose.msra.mxu0 0.0
      %4320 = vmatpush.xpose.msra.mxu0 0.0
      %4321 = vmatpush.xpose.msra.mxu0 0.0
      %4322 = vmatpush.xpose.msra.mxu0 0.0
      %4323 = vmatpush.xpose.msra.mxu0 0.0
      %4324 = vmatpush.xpose.msra.mxu0 0.0
      %4325 = vmatpush.xpose.msra.mxu0 0.0
      %4326 = vmatpush.xpose.msra.mxu0 0.0
      %4327 = vmatpush.xpose.msra.mxu0 0.0
      %4328 = vmatpush.xpose.msra.mxu0 0.0
      %4329 = vmatpush.xpose.msra.mxu0 0.0
      %4330 = vmatpush.xpose.msra.mxu0 %v4314
      %4331 = vmatpush.xpose.msra.mxu0 %v4312
      %4332 = vmatmul.f32.gmra.mxu0 %v4308
      %v4333 = vpop.f32.mrf.mxu0
      %v4334 = vadd.f32 %v1054, %v4333
      %4335 = vmatmul.f32.gmra.mxu0 %v4310
      %v4336 = vpop.f32.mrf.mxu0
      %v4337 = vadd.f32 %v1055, %v4336
      %4338 = vdwg.mxu0
      %4339 = vrot.lane.b32.xlu0 %v3490, 112
      %v4340 = vpop.permute.xlu0 %4339
      %4341 = vrot.lane.b32.xlu0 %v3493, 112
      %v4342 = vpop.permute.xlu0 %4341
      %4343 = vrot.lane.b32.xlu0 %v3490, 80
      %v4344 = vpop.permute.xlu0 %4343
      %4345 = vrot.lane.b32.xlu0 %v3493, 80
      %v4346 = vpop.permute.xlu0 %4345
      %v4347 = vsel %vm1137, %v4340, 0
      %v4349 = vsel %vm1137, %v4342, 0
      %v4351 = vsel %vm1137, %v4344, 0
      %v4353 = vsel %vm1137, %v4346, 0
      %4355 = vmatpush.xpose.msra.mxu0 0.0
      %4356 = vmatpush.xpose.msra.mxu0 0.0
      %4357 = vmatpush.xpose.msra.mxu0 0.0
      %4358 = vmatpush.xpose.msra.mxu0 0.0
      %4359 = vmatpush.xpose.msra.mxu0 0.0
      %4360 = vmatpush.xpose.msra.mxu0 0.0
      %4361 = vmatpush.xpose.msra.mxu0 0.0
      %4362 = vmatpush.xpose.msra.mxu0 0.0
      %4363 = vmatpush.xpose.msra.mxu0 0.0
      %4364 = vmatpush.xpose.msra.mxu0 0.0
      %4365 = vmatpush.xpose.msra.mxu0 0.0
      %4366 = vmatpush.xpose.msra.mxu0 0.0
      %4367 = vmatpush.xpose.msra.mxu0 0.0
      %4368 = vmatpush.xpose.msra.mxu0 0.0
      %4369 = vmatpush.xpose.msra.mxu0 %v4353
      %4370 = vmatpush.xpose.msra.mxu0 %v4351
      %4371 = vmatmul.f32.gmra.mxu0 %v4347
      %v4372 = vpop.f32.mrf.mxu0
      %v4373 = vadd.f32 %v1054, %v4372
      %4374 = vmatmul.f32.gmra.mxu0 %v4349
      %v4375 = vpop.f32.mrf.mxu0
      %v4376 = vadd.f32 %v1055, %v4375
      %4377 = vdwg.mxu0
      %4378 = vrot.lane.b32.xlu0 %v3496, 112
      %v4379 = vpop.permute.xlu0 %4378
      %4380 = vrot.lane.b32.xlu0 %v3499, 112
      %v4381 = vpop.permute.xlu0 %4380
      %4382 = vrot.lane.b32.xlu0 %v3496, 80
      %v4383 = vpop.permute.xlu0 %4382
      %4384 = vrot.lane.b32.xlu0 %v3499, 80
      %v4385 = vpop.permute.xlu0 %4384
      %v4386 = vsel %vm1137, %v4379, 0
      %v4388 = vsel %vm1137, %v4381, 0
      %v4390 = vsel %vm1137, %v4383, 0
      %v4392 = vsel %vm1137, %v4385, 0
      %4394 = vmatpush.xpose.msra.mxu0 0.0
      %4395 = vmatpush.xpose.msra.mxu0 0.0
      %4396 = vmatpush.xpose.msra.mxu0 0.0
      %4397 = vmatpush.xpose.msra.mxu0 0.0
      %4398 = vmatpush.xpose.msra.mxu0 0.0
      %4399 = vmatpush.xpose.msra.mxu0 0.0
      %4400 = vmatpush.xpose.msra.mxu0 0.0
      %4401 = vmatpush.xpose.msra.mxu0 0.0
      %4402 = vmatpush.xpose.msra.mxu0 0.0
      %4403 = vmatpush.xpose.msra.mxu0 0.0
      %4404 = vmatpush.xpose.msra.mxu0 0.0
      %4405 = vmatpush.xpose.msra.mxu0 0.0
      %4406 = vmatpush.xpose.msra.mxu0 0.0
      %4407 = vmatpush.xpose.msra.mxu0 0.0
      %4408 = vmatpush.xpose.msra.mxu0 %v4392
      %4409 = vmatpush.xpose.msra.mxu0 %v4390
      %4410 = vmatmul.f32.gmra.mxu0 %v4386
      %v4411 = vpop.f32.mrf.mxu0
      %v4412 = vadd.f32 %v1054, %v4411
      %4413 = vmatmul.f32.gmra.mxu0 %v4388
      %v4414 = vpop.f32.mrf.mxu0
      %v4415 = vadd.f32 %v1055, %v4414
      %4416 = vdwg.mxu0
      %v4417 = vsel %vm585, %v4295, -inf
      %4418 = vmax.xlane.f32.xlu0 %v4417
      %v4419 = vpop.xlane.xlu0 %4418
      %v4420 = vsel %vm585, %v4298, -inf
      %4421 = vmax.xlane.f32.xlu0 %v4420
      %v4422 = vpop.xlane.xlu0 %4421
      %v4423 = vsel %vm585, %v4334, -inf
      %4424 = vmax.xlane.f32.xlu0 %v4423
      %v4425 = vpop.xlane.xlu0 %4424
      %v4426 = vsel %vm585, %v4337, -inf
      %4427 = vmax.xlane.f32.xlu0 %v4426
      %v4428 = vpop.xlane.xlu0 %4427
      %v4429 = vsel %vm585, %v4373, -inf
      %4430 = vmax.xlane.f32.xlu0 %v4429
      %v4431 = vpop.xlane.xlu0 %4430
      %v4432 = vsel %vm585, %v4376, -inf
      %4433 = vmax.xlane.f32.xlu0 %v4432
      %v4434 = vpop.xlane.xlu0 %4433
      %v4435 = vsel %vm585, %v4412, -inf
      %4436 = vmax.xlane.f32.xlu0 %v4435
      %v4437 = vpop.xlane.xlu0 %4436
      %v4438 = vsel %vm585, %v4415, -inf
      %4439 = vmax.xlane.f32.xlu0 %v4438
      %v4440 = vpop.xlane.xlu0 %4439
      %v4441 = vsub.f32 %v4295, %v4419
      %v4442 = vsub.f32 %v4298, %v4422
      %v4443 = vsub.f32 %v4334, %v4425
      %v4444 = vsub.f32 %v4337, %v4428
      %v4445 = vsub.f32 %v4373, %v4431
      %v4446 = vsub.f32 %v4376, %v4434
      %v4447 = vsub.f32 %v4412, %v4437
      %v4448 = vsub.f32 %v4415, %v4440
      %v4449 = vmul.f32 %v4441, 1.442695
      %v4450 = vpow.pop %v4449
      %v4451 = vmul.f32 %v4442, 1.442695
      %v4452 = vpow.pop %v4451
      %v4453 = vmul.f32 %v4443, 1.442695
      %v4454 = vpow.pop %v4453
      %v4455 = vmul.f32 %v4444, 1.442695
      %v4456 = vpow.pop %v4455
      %v4457 = vmul.f32 %v4445, 1.442695
      %v4458 = vpow.pop %v4457
      %v4459 = vmul.f32 %v4446, 1.442695
      %v4460 = vpow.pop %v4459
      %v4461 = vmul.f32 %v4447, 1.442695
      %v4462 = vpow.pop %v4461
      %v4463 = vmul.f32 %v4448, 1.442695
      %v4464 = vpow.pop %v4463
      %v4465 = vsel %vm585, %v4450, 0.0
      %4466 = vadd.xlane.f32.xlu0 %v4465
      %v4467 = vpop.xlane.xlu0 %4466
      %v4468 = vsel %vm585, %v4452, 0.0
      %4469 = vadd.xlane.f32.xlu0 %v4468
      %v4470 = vpop.xlane.xlu0 %4469
      %v4471 = vsel %vm585, %v4454, 0.0
      %4472 = vadd.xlane.f32.xlu0 %v4471
      %v4473 = vpop.xlane.xlu0 %4472
      %v4474 = vsel %vm585, %v4456, 0.0
      %4475 = vadd.xlane.f32.xlu0 %v4474
      %v4476 = vpop.xlane.xlu0 %4475
      %v4477 = vsel %vm585, %v4458, 0.0
      %4478 = vadd.xlane.f32.xlu0 %v4477
      %v4479 = vpop.xlane.xlu0 %4478
      %v4480 = vsel %vm585, %v4460, 0.0
      %4481 = vadd.xlane.f32.xlu0 %v4480
      %v4482 = vpop.xlane.xlu0 %4481
      %v4483 = vsel %vm585, %v4462, 0.0
      %4484 = vadd.xlane.f32.xlu0 %v4483
      %v4485 = vpop.xlane.xlu0 %4484
      %v4486 = vsel %vm585, %v4464, 0.0
      %4487 = vadd.xlane.f32.xlu0 %v4486
      %v4488 = vpop.xlane.xlu0 %4487
      %v4489 = vrcp.pop %v4467
      %v4490 = vrcp.pop %v4470
      %v4491 = vrcp.pop %v4473
      %v4492 = vrcp.pop %v4476
      %v4493 = vrcp.pop %v4479
      %v4494 = vrcp.pop %v4482
      %v4495 = vrcp.pop %v4485
      %v4496 = vrcp.pop %v4488
      %v4497 = vmul.f32 %v4450, %v4489
      %v4498 = vmul.f32 %v4452, %v4490
      %v4499 = vmul.f32 %v4454, %v4491
      %v4500 = vmul.f32 %v4456, %v4492
      %v4501 = vmul.f32 %v4458, %v4493
      %v4502 = vmul.f32 %v4460, %v4494
      %v4503 = vmul.f32 %v4462, %v4495
      %v4504 = vmul.f32 %v4464, %v4496
      %4505 = vrot.lane.b32.xlu0 %v3478, 48
      %v4506 = vpop.permute.xlu0 %4505
      %4507 = vrot.lane.b32.xlu0 %v3481, 48
      %v4508 = vpop.permute.xlu0 %4507
      %v4512 = vsel %vm585, %v4497, 0
      %v4515 = vsel %vm585, %v4498, 0
      %4517 = vmatpush.msra.mxu0 0.0
      %4518 = vmatpush.msra.mxu0 0.0
      %4519 = vmatpush.msra.mxu0 0.0
      %4520 = vmatpush.msra.mxu0 0.0
      %4521 = vmatpush.msra.mxu0 0.0
      %4522 = vmatpush.msra.mxu0 0.0
      %4523 = vmatpush.msra.mxu0 0.0
      %4524 = vmatpush.msra.mxu0 0.0
      %4525 = vmatpush.msra.mxu0 0.0
      %4526 = vmatpush.msra.mxu0 0.0
      %4527 = vmatpush.msra.mxu0 0.0
      %4528 = vmatpush.msra.mxu0 0.0
      %4529 = vmatpush.msra.mxu0 0.0
      %4530 = vmatpush.msra.mxu0 0.0
      %4531 = vmatpush.msra.mxu0 %v4508
      %4532 = vmatpush.msra.mxu0 %v4506
      %4533 = vmatmul.f32.gmra.mxu0 %v4512
      %v4534 = vpop.f32.mrf.mxu0
      %v4535 = vadd.f32 0.0, %v4534
      %4536 = vmatmul.f32.gmra.mxu0 %v4515
      %v4537 = vpop.f32.mrf.mxu0
      %v4538 = vadd.f32 0.0, %v4537
      %4539 = vdwg.mxu0
      %4540 = vrot.lane.b32.xlu0 %v3484, 48
      %v4541 = vpop.permute.xlu0 %4540
      %4542 = vrot.lane.b32.xlu0 %v3487, 48
      %v4543 = vpop.permute.xlu0 %4542
      %v4547 = vsel %vm585, %v4499, 0
      %v4550 = vsel %vm585, %v4500, 0
      %4552 = vmatpush.msra.mxu0 0.0
      %4553 = vmatpush.msra.mxu0 0.0
      %4554 = vmatpush.msra.mxu0 0.0
      %4555 = vmatpush.msra.mxu0 0.0
      %4556 = vmatpush.msra.mxu0 0.0
      %4557 = vmatpush.msra.mxu0 0.0
      %4558 = vmatpush.msra.mxu0 0.0
      %4559 = vmatpush.msra.mxu0 0.0
      %4560 = vmatpush.msra.mxu0 0.0
      %4561 = vmatpush.msra.mxu0 0.0
      %4562 = vmatpush.msra.mxu0 0.0
      %4563 = vmatpush.msra.mxu0 0.0
      %4564 = vmatpush.msra.mxu0 0.0
      %4565 = vmatpush.msra.mxu0 0.0
      %4566 = vmatpush.msra.mxu0 %v4543
      %4567 = vmatpush.msra.mxu0 %v4541
      %4568 = vmatmul.f32.gmra.mxu0 %v4547
      %v4569 = vpop.f32.mrf.mxu0
      %v4570 = vadd.f32 0.0, %v4569
      %4571 = vmatmul.f32.gmra.mxu0 %v4550
      %v4572 = vpop.f32.mrf.mxu0
      %v4573 = vadd.f32 0.0, %v4572
      %4574 = vdwg.mxu0
      %4575 = vrot.lane.b32.xlu0 %v3490, 48
      %v4576 = vpop.permute.xlu0 %4575
      %4577 = vrot.lane.b32.xlu0 %v3493, 48
      %v4578 = vpop.permute.xlu0 %4577
      %v4582 = vsel %vm585, %v4501, 0
      %v4585 = vsel %vm585, %v4502, 0
      %4587 = vmatpush.msra.mxu0 0.0
      %4588 = vmatpush.msra.mxu0 0.0
      %4589 = vmatpush.msra.mxu0 0.0
      %4590 = vmatpush.msra.mxu0 0.0
      %4591 = vmatpush.msra.mxu0 0.0
      %4592 = vmatpush.msra.mxu0 0.0
      %4593 = vmatpush.msra.mxu0 0.0
      %4594 = vmatpush.msra.mxu0 0.0
      %4595 = vmatpush.msra.mxu0 0.0
      %4596 = vmatpush.msra.mxu0 0.0
      %4597 = vmatpush.msra.mxu0 0.0
      %4598 = vmatpush.msra.mxu0 0.0
      %4599 = vmatpush.msra.mxu0 0.0
      %4600 = vmatpush.msra.mxu0 0.0
      %4601 = vmatpush.msra.mxu0 %v4578
      %4602 = vmatpush.msra.mxu0 %v4576
      %4603 = vmatmul.f32.gmra.mxu0 %v4582
      %v4604 = vpop.f32.mrf.mxu0
      %v4605 = vadd.f32 0.0, %v4604
      %4606 = vmatmul.f32.gmra.mxu0 %v4585
      %v4607 = vpop.f32.mrf.mxu0
      %v4608 = vadd.f32 0.0, %v4607
      %4609 = vdwg.mxu0
      %4610 = vrot.lane.b32.xlu0 %v3496, 48
      %v4611 = vpop.permute.xlu0 %4610
      %4612 = vrot.lane.b32.xlu0 %v3499, 48
      %v4613 = vpop.permute.xlu0 %4612
      %v4617 = vsel %vm585, %v4503, 0
      %v4620 = vsel %vm585, %v4504, 0
      %4622 = vmatpush.msra.mxu0 0.0
      %4623 = vmatpush.msra.mxu0 0.0
      %4624 = vmatpush.msra.mxu0 0.0
      %4625 = vmatpush.msra.mxu0 0.0
      %4626 = vmatpush.msra.mxu0 0.0
      %4627 = vmatpush.msra.mxu0 0.0
      %4628 = vmatpush.msra.mxu0 0.0
      %4629 = vmatpush.msra.mxu0 0.0
      %4630 = vmatpush.msra.mxu0 0.0
      %4631 = vmatpush.msra.mxu0 0.0
      %4632 = vmatpush.msra.mxu0 0.0
      %4633 = vmatpush.msra.mxu0 0.0
      %4634 = vmatpush.msra.mxu0 0.0
      %4635 = vmatpush.msra.mxu0 0.0
      %4636 = vmatpush.msra.mxu0 %v4613
      %4637 = vmatpush.msra.mxu0 %v4611
      %4638 = vmatmul.f32.gmra.mxu0 %v4617
      %v4639 = vpop.f32.mrf.mxu0
      %v4640 = vadd.f32 0.0, %v4639
      %4641 = vmatmul.f32.gmra.mxu0 %v4620
      %v4642 = vpop.f32.mrf.mxu0
      %v4643 = vadd.f32 0.0, %v4642
      %4644 = vdwg.mxu0
      %4645 = vrot.lane.b32.xlu0 %v3478, 104
      %v4646 = vpop.permute.xlu0 %4645
      %4647 = vrot.lane.b32.xlu0 %v3481, 104
      %v4648 = vpop.permute.xlu0 %4647
      %4649 = vrot.lane.b32.xlu0 %v3478, 72
      %v4650 = vpop.permute.xlu0 %4649
      %4651 = vrot.lane.b32.xlu0 %v3481, 72
      %v4652 = vpop.permute.xlu0 %4651
      %v4653 = vsel %vm1137, %v4646, 0
      %v4655 = vsel %vm1137, %v4648, 0
      %v4657 = vsel %vm1137, %v4650, 0
      %v4659 = vsel %vm1137, %v4652, 0
      %4661 = vmatpush.xpose.msra.mxu0 0.0
      %4662 = vmatpush.xpose.msra.mxu0 0.0
      %4663 = vmatpush.xpose.msra.mxu0 0.0
      %4664 = vmatpush.xpose.msra.mxu0 0.0
      %4665 = vmatpush.xpose.msra.mxu0 0.0
      %4666 = vmatpush.xpose.msra.mxu0 0.0
      %4667 = vmatpush.xpose.msra.mxu0 0.0
      %4668 = vmatpush.xpose.msra.mxu0 0.0
      %4669 = vmatpush.xpose.msra.mxu0 0.0
      %4670 = vmatpush.xpose.msra.mxu0 0.0
      %4671 = vmatpush.xpose.msra.mxu0 0.0
      %4672 = vmatpush.xpose.msra.mxu0 0.0
      %4673 = vmatpush.xpose.msra.mxu0 0.0
      %4674 = vmatpush.xpose.msra.mxu0 0.0
      %4675 = vmatpush.xpose.msra.mxu0 %v4659
      %4676 = vmatpush.xpose.msra.mxu0 %v4657
      %4677 = vmatmul.f32.gmra.mxu0 %v4653
      %v4678 = vpop.f32.mrf.mxu0
      %v4679 = vadd.f32 %v1054, %v4678
      %4680 = vmatmul.f32.gmra.mxu0 %v4655
      %v4681 = vpop.f32.mrf.mxu0
      %v4682 = vadd.f32 %v1055, %v4681
      %4683 = vdwg.mxu0
      %4684 = vrot.lane.b32.xlu0 %v3484, 104
      %v4685 = vpop.permute.xlu0 %4684
      %4686 = vrot.lane.b32.xlu0 %v3487, 104
      %v4687 = vpop.permute.xlu0 %4686
      %4688 = vrot.lane.b32.xlu0 %v3484, 72
      %v4689 = vpop.permute.xlu0 %4688
      %4690 = vrot.lane.b32.xlu0 %v3487, 72
      %v4691 = vpop.permute.xlu0 %4690
      %v4692 = vsel %vm1137, %v4685, 0
      %v4694 = vsel %vm1137, %v4687, 0
      %v4696 = vsel %vm1137, %v4689, 0
      %v4698 = vsel %vm1137, %v4691, 0
      %4700 = vmatpush.xpose.msra.mxu0 0.0
      %4701 = vmatpush.xpose.msra.mxu0 0.0
      %4702 = vmatpush.xpose.msra.mxu0 0.0
      %4703 = vmatpush.xpose.msra.mxu0 0.0
      %4704 = vmatpush.xpose.msra.mxu0 0.0
      %4705 = vmatpush.xpose.msra.mxu0 0.0
      %4706 = vmatpush.xpose.msra.mxu0 0.0
      %4707 = vmatpush.xpose.msra.mxu0 0.0
      %4708 = vmatpush.xpose.msra.mxu0 0.0
      %4709 = vmatpush.xpose.msra.mxu0 0.0
      %4710 = vmatpush.xpose.msra.mxu0 0.0
      %4711 = vmatpush.xpose.msra.mxu0 0.0
      %4712 = vmatpush.xpose.msra.mxu0 0.0
      %4713 = vmatpush.xpose.msra.mxu0 0.0
      %4714 = vmatpush.xpose.msra.mxu0 %v4698
      %4715 = vmatpush.xpose.msra.mxu0 %v4696
      %4716 = vmatmul.f32.gmra.mxu0 %v4692
      %v4717 = vpop.f32.mrf.mxu0
      %v4718 = vadd.f32 %v1054, %v4717
      %4719 = vmatmul.f32.gmra.mxu0 %v4694
      %v4720 = vpop.f32.mrf.mxu0
      %v4721 = vadd.f32 %v1055, %v4720
      %4722 = vdwg.mxu0
      %4723 = vrot.lane.b32.xlu0 %v3490, 104
      %v4724 = vpop.permute.xlu0 %4723
      %4725 = vrot.lane.b32.xlu0 %v3493, 104
      %v4726 = vpop.permute.xlu0 %4725
      %4727 = vrot.lane.b32.xlu0 %v3490, 72
      %v4728 = vpop.permute.xlu0 %4727
      %4729 = vrot.lane.b32.xlu0 %v3493, 72
      %v4730 = vpop.permute.xlu0 %4729
      %v4731 = vsel %vm1137, %v4724, 0
      %v4733 = vsel %vm1137, %v4726, 0
      %v4735 = vsel %vm1137, %v4728, 0
      %v4737 = vsel %vm1137, %v4730, 0
      %4739 = vmatpush.xpose.msra.mxu0 0.0
      %4740 = vmatpush.xpose.msra.mxu0 0.0
      %4741 = vmatpush.xpose.msra.mxu0 0.0
      %4742 = vmatpush.xpose.msra.mxu0 0.0
      %4743 = vmatpush.xpose.msra.mxu0 0.0
      %4744 = vmatpush.xpose.msra.mxu0 0.0
      %4745 = vmatpush.xpose.msra.mxu0 0.0
      %4746 = vmatpush.xpose.msra.mxu0 0.0
      %4747 = vmatpush.xpose.msra.mxu0 0.0
      %4748 = vmatpush.xpose.msra.mxu0 0.0
      %4749 = vmatpush.xpose.msra.mxu0 0.0
      %4750 = vmatpush.xpose.msra.mxu0 0.0
      %4751 = vmatpush.xpose.msra.mxu0 0.0
      %4752 = vmatpush.xpose.msra.mxu0 0.0
      %4753 = vmatpush.xpose.msra.mxu0 %v4737
      %4754 = vmatpush.xpose.msra.mxu0 %v4735
      %4755 = vmatmul.f32.gmra.mxu0 %v4731
      %v4756 = vpop.f32.mrf.mxu0
      %v4757 = vadd.f32 %v1054, %v4756
      %4758 = vmatmul.f32.gmra.mxu0 %v4733
      %v4759 = vpop.f32.mrf.mxu0
      %v4760 = vadd.f32 %v1055, %v4759
      %4761 = vdwg.mxu0
      %4762 = vrot.lane.b32.xlu0 %v3496, 104
      %v4763 = vpop.permute.xlu0 %4762
      %4764 = vrot.lane.b32.xlu0 %v3499, 104
      %v4765 = vpop.permute.xlu0 %4764
      %4766 = vrot.lane.b32.xlu0 %v3496, 72
      %v4767 = vpop.permute.xlu0 %4766
      %4768 = vrot.lane.b32.xlu0 %v3499, 72
      %v4769 = vpop.permute.xlu0 %4768
      %v4770 = vsel %vm1137, %v4763, 0
      %v4772 = vsel %vm1137, %v4765, 0
      %v4774 = vsel %vm1137, %v4767, 0
      %v4776 = vsel %vm1137, %v4769, 0
      %4778 = vmatpush.xpose.msra.mxu0 0.0
      %4779 = vmatpush.xpose.msra.mxu0 0.0
      %4780 = vmatpush.xpose.msra.mxu0 0.0
      %4781 = vmatpush.xpose.msra.mxu0 0.0
      %4782 = vmatpush.xpose.msra.mxu0 0.0
      %4783 = vmatpush.xpose.msra.mxu0 0.0
      %4784 = vmatpush.xpose.msra.mxu0 0.0
      %4785 = vmatpush.xpose.msra.mxu0 0.0
      %4786 = vmatpush.xpose.msra.mxu0 0.0
      %4787 = vmatpush.xpose.msra.mxu0 0.0
      %4788 = vmatpush.xpose.msra.mxu0 0.0
      %4789 = vmatpush.xpose.msra.mxu0 0.0
      %4790 = vmatpush.xpose.msra.mxu0 0.0
      %4791 = vmatpush.xpose.msra.mxu0 0.0
      %4792 = vmatpush.xpose.msra.mxu0 %v4776
      %4793 = vmatpush.xpose.msra.mxu0 %v4774
      %4794 = vmatmul.f32.gmra.mxu0 %v4770
      %v4795 = vpop.f32.mrf.mxu0
      %v4796 = vadd.f32 %v1054, %v4795
      %4797 = vmatmul.f32.gmra.mxu0 %v4772
      %v4798 = vpop.f32.mrf.mxu0
      %v4799 = vadd.f32 %v1055, %v4798
      %4800 = vdwg.mxu0
      %v4801 = vsel %vm585, %v4679, -inf
      %4802 = vmax.xlane.f32.xlu0 %v4801
      %v4803 = vpop.xlane.xlu0 %4802
      %v4804 = vsel %vm585, %v4682, -inf
      %4805 = vmax.xlane.f32.xlu0 %v4804
      %v4806 = vpop.xlane.xlu0 %4805
      %v4807 = vsel %vm585, %v4718, -inf
      %4808 = vmax.xlane.f32.xlu0 %v4807
      %v4809 = vpop.xlane.xlu0 %4808
      %v4810 = vsel %vm585, %v4721, -inf
      %4811 = vmax.xlane.f32.xlu0 %v4810
      %v4812 = vpop.xlane.xlu0 %4811
      %v4813 = vsel %vm585, %v4757, -inf
      %4814 = vmax.xlane.f32.xlu0 %v4813
      %v4815 = vpop.xlane.xlu0 %4814
      %v4816 = vsel %vm585, %v4760, -inf
      %4817 = vmax.xlane.f32.xlu0 %v4816
      %v4818 = vpop.xlane.xlu0 %4817
      %v4819 = vsel %vm585, %v4796, -inf
      %4820 = vmax.xlane.f32.xlu0 %v4819
      %v4821 = vpop.xlane.xlu0 %4820
      %v4822 = vsel %vm585, %v4799, -inf
      %4823 = vmax.xlane.f32.xlu0 %v4822
      %v4824 = vpop.xlane.xlu0 %4823
      %v4825 = vsub.f32 %v4679, %v4803
      %v4826 = vsub.f32 %v4682, %v4806
      %v4827 = vsub.f32 %v4718, %v4809
      %v4828 = vsub.f32 %v4721, %v4812
      %v4829 = vsub.f32 %v4757, %v4815
      %v4830 = vsub.f32 %v4760, %v4818
      %v4831 = vsub.f32 %v4796, %v4821
      %v4832 = vsub.f32 %v4799, %v4824
      %v4833 = vmul.f32 %v4825, 1.442695
      %v4834 = vpow.pop %v4833
      %v4835 = vmul.f32 %v4826, 1.442695
      %v4836 = vpow.pop %v4835
      %v4837 = vmul.f32 %v4827, 1.442695
      %v4838 = vpow.pop %v4837
      %v4839 = vmul.f32 %v4828, 1.442695
      %v4840 = vpow.pop %v4839
      %v4841 = vmul.f32 %v4829, 1.442695
      %v4842 = vpow.pop %v4841
      %v4843 = vmul.f32 %v4830, 1.442695
      %v4844 = vpow.pop %v4843
      %v4845 = vmul.f32 %v4831, 1.442695
      %v4846 = vpow.pop %v4845
      %v4847 = vmul.f32 %v4832, 1.442695
      %v4848 = vpow.pop %v4847
      %v4849 = vsel %vm585, %v4834, 0.0
      %4850 = vadd.xlane.f32.xlu0 %v4849
      %v4851 = vpop.xlane.xlu0 %4850
      %v4852 = vsel %vm585, %v4836, 0.0
      %4853 = vadd.xlane.f32.xlu0 %v4852
      %v4854 = vpop.xlane.xlu0 %4853
      %v4855 = vsel %vm585, %v4838, 0.0
      %4856 = vadd.xlane.f32.xlu0 %v4855
      %v4857 = vpop.xlane.xlu0 %4856
      %v4858 = vsel %vm585, %v4840, 0.0
      %4859 = vadd.xlane.f32.xlu0 %v4858
      %v4860 = vpop.xlane.xlu0 %4859
      %v4861 = vsel %vm585, %v4842, 0.0
      %4862 = vadd.xlane.f32.xlu0 %v4861
      %v4863 = vpop.xlane.xlu0 %4862
      %v4864 = vsel %vm585, %v4844, 0.0
      %4865 = vadd.xlane.f32.xlu0 %v4864
      %v4866 = vpop.xlane.xlu0 %4865
      %v4867 = vsel %vm585, %v4846, 0.0
      %4868 = vadd.xlane.f32.xlu0 %v4867
      %v4869 = vpop.xlane.xlu0 %4868
      %v4870 = vsel %vm585, %v4848, 0.0
      %4871 = vadd.xlane.f32.xlu0 %v4870
      %v4872 = vpop.xlane.xlu0 %4871
      %v4873 = vrcp.pop %v4851
      %v4874 = vrcp.pop %v4854
      %v4875 = vrcp.pop %v4857
      %v4876 = vrcp.pop %v4860
      %v4877 = vrcp.pop %v4863
      %v4878 = vrcp.pop %v4866
      %v4879 = vrcp.pop %v4869
      %v4880 = vrcp.pop %v4872
      %v4881 = vmul.f32 %v4834, %v4873
      %v4882 = vmul.f32 %v4836, %v4874
      %v4883 = vmul.f32 %v4838, %v4875
      %v4884 = vmul.f32 %v4840, %v4876
      %v4885 = vmul.f32 %v4842, %v4877
      %v4886 = vmul.f32 %v4844, %v4878
      %v4887 = vmul.f32 %v4846, %v4879
      %v4888 = vmul.f32 %v4848, %v4880
      %4889 = vrot.lane.b32.xlu0 %v3478, 40
      %v4890 = vpop.permute.xlu0 %4889
      %4891 = vrot.lane.b32.xlu0 %v3481, 40
      %v4892 = vpop.permute.xlu0 %4891
      %v4896 = vsel %vm585, %v4881, 0
      %v4899 = vsel %vm585, %v4882, 0
      %4901 = vmatpush.msra.mxu0 0.0
      %4902 = vmatpush.msra.mxu0 0.0
      %4903 = vmatpush.msra.mxu0 0.0
      %4904 = vmatpush.msra.mxu0 0.0
      %4905 = vmatpush.msra.mxu0 0.0
      %4906 = vmatpush.msra.mxu0 0.0
      %4907 = vmatpush.msra.mxu0 0.0
      %4908 = vmatpush.msra.mxu0 0.0
      %4909 = vmatpush.msra.mxu0 0.0
      %4910 = vmatpush.msra.mxu0 0.0
      %4911 = vmatpush.msra.mxu0 0.0
      %4912 = vmatpush.msra.mxu0 0.0
      %4913 = vmatpush.msra.mxu0 0.0
      %4914 = vmatpush.msra.mxu0 0.0
      %4915 = vmatpush.msra.mxu0 %v4892
      %4916 = vmatpush.msra.mxu0 %v4890
      %4917 = vmatmul.f32.gmra.mxu0 %v4896
      %v4918 = vpop.f32.mrf.mxu0
      %v4919 = vadd.f32 0.0, %v4918
      %4920 = vmatmul.f32.gmra.mxu0 %v4899
      %v4921 = vpop.f32.mrf.mxu0
      %v4922 = vadd.f32 0.0, %v4921
      %4923 = vdwg.mxu0
      %4924 = vrot.lane.b32.xlu0 %v3484, 40
      %v4925 = vpop.permute.xlu0 %4924
      %4926 = vrot.lane.b32.xlu0 %v3487, 40
      %v4927 = vpop.permute.xlu0 %4926
      %v4931 = vsel %vm585, %v4883, 0
      %v4934 = vsel %vm585, %v4884, 0
      %4936 = vmatpush.msra.mxu0 0.0
      %4937 = vmatpush.msra.mxu0 0.0
      %4938 = vmatpush.msra.mxu0 0.0
      %4939 = vmatpush.msra.mxu0 0.0
      %4940 = vmatpush.msra.mxu0 0.0
      %4941 = vmatpush.msra.mxu0 0.0
      %4942 = vmatpush.msra.mxu0 0.0
      %4943 = vmatpush.msra.mxu0 0.0
      %4944 = vmatpush.msra.mxu0 0.0
      %4945 = vmatpush.msra.mxu0 0.0
      %4946 = vmatpush.msra.mxu0 0.0
      %4947 = vmatpush.msra.mxu0 0.0
      %4948 = vmatpush.msra.mxu0 0.0
      %4949 = vmatpush.msra.mxu0 0.0
      %4950 = vmatpush.msra.mxu0 %v4927
      %4951 = vmatpush.msra.mxu0 %v4925
      %4952 = vmatmul.f32.gmra.mxu0 %v4931
      %v4953 = vpop.f32.mrf.mxu0
      %v4954 = vadd.f32 0.0, %v4953
      %4955 = vmatmul.f32.gmra.mxu0 %v4934
      %v4956 = vpop.f32.mrf.mxu0
      %v4957 = vadd.f32 0.0, %v4956
      %4958 = vdwg.mxu0
      %4959 = vrot.lane.b32.xlu0 %v3490, 40
      %v4960 = vpop.permute.xlu0 %4959
      %4961 = vrot.lane.b32.xlu0 %v3493, 40
      %v4962 = vpop.permute.xlu0 %4961
      %v4966 = vsel %vm585, %v4885, 0
      %v4969 = vsel %vm585, %v4886, 0
      %4971 = vmatpush.msra.mxu0 0.0
      %4972 = vmatpush.msra.mxu0 0.0
      %4973 = vmatpush.msra.mxu0 0.0
      %4974 = vmatpush.msra.mxu0 0.0
      %4975 = vmatpush.msra.mxu0 0.0
      %4976 = vmatpush.msra.mxu0 0.0
      %4977 = vmatpush.msra.mxu0 0.0
      %4978 = vmatpush.msra.mxu0 0.0
      %4979 = vmatpush.msra.mxu0 0.0
      %4980 = vmatpush.msra.mxu0 0.0
      %4981 = vmatpush.msra.mxu0 0.0
      %4982 = vmatpush.msra.mxu0 0.0
      %4983 = vmatpush.msra.mxu0 0.0
      %4984 = vmatpush.msra.mxu0 0.0
      %4985 = vmatpush.msra.mxu0 %v4962
      %4986 = vmatpush.msra.mxu0 %v4960
      %4987 = vmatmul.f32.gmra.mxu0 %v4966
      %v4988 = vpop.f32.mrf.mxu0
      %v4989 = vadd.f32 0.0, %v4988
      %4990 = vmatmul.f32.gmra.mxu0 %v4969
      %v4991 = vpop.f32.mrf.mxu0
      %v4992 = vadd.f32 0.0, %v4991
      %4993 = vdwg.mxu0
      %4994 = vrot.lane.b32.xlu0 %v3496, 40
      %v4995 = vpop.permute.xlu0 %4994
      %4996 = vrot.lane.b32.xlu0 %v3499, 40
      %v4997 = vpop.permute.xlu0 %4996
      %v5001 = vsel %vm585, %v4887, 0
      %v5004 = vsel %vm585, %v4888, 0
      %5006 = vmatpush.msra.mxu0 0.0
      %5007 = vmatpush.msra.mxu0 0.0
      %5008 = vmatpush.msra.mxu0 0.0
      %5009 = vmatpush.msra.mxu0 0.0
      %5010 = vmatpush.msra.mxu0 0.0
      %5011 = vmatpush.msra.mxu0 0.0
      %5012 = vmatpush.msra.mxu0 0.0
      %5013 = vmatpush.msra.mxu0 0.0
      %5014 = vmatpush.msra.mxu0 0.0
      %5015 = vmatpush.msra.mxu0 0.0
      %5016 = vmatpush.msra.mxu0 0.0
      %5017 = vmatpush.msra.mxu0 0.0
      %5018 = vmatpush.msra.mxu0 0.0
      %5019 = vmatpush.msra.mxu0 0.0
      %5020 = vmatpush.msra.mxu0 %v4997
      %5021 = vmatpush.msra.mxu0 %v4995
      %5022 = vmatmul.f32.gmra.mxu0 %v5001
      %v5023 = vpop.f32.mrf.mxu0
      %v5024 = vadd.f32 0.0, %v5023
      %5025 = vmatmul.f32.gmra.mxu0 %v5004
      %v5026 = vpop.f32.mrf.mxu0
      %v5027 = vadd.f32 0.0, %v5026
      %5028 = vdwg.mxu0
      %5037 = vrot.lane.b32.xlu0 %v4151, 8
      %v5038 = vpop.permute.xlu0 %5037
      %5039 = vrot.lane.b32.xlu0 %v4154, 8
      %v5040 = vpop.permute.xlu0 %5039
      %5041 = vrot.lane.b32.xlu0 %v4186, 8
      %v5042 = vpop.permute.xlu0 %5041
      %5043 = vrot.lane.b32.xlu0 %v4189, 8
      %v5044 = vpop.permute.xlu0 %5043
      %5045 = vrot.lane.b32.xlu0 %v4221, 8
      %v5046 = vpop.permute.xlu0 %5045
      %5047 = vrot.lane.b32.xlu0 %v4224, 8
      %v5048 = vpop.permute.xlu0 %5047
      %5049 = vrot.lane.b32.xlu0 %v4256, 8
      %v5050 = vpop.permute.xlu0 %5049
      %5051 = vrot.lane.b32.xlu0 %v4259, 8
      %v5052 = vpop.permute.xlu0 %5051
      %5069 = vrot.lane.b32.xlu0 %v4535, 16
      %v5070 = vpop.permute.xlu0 %5069
      %5071 = vrot.lane.b32.xlu0 %v4538, 16
      %v5072 = vpop.permute.xlu0 %5071
      %5073 = vrot.lane.b32.xlu0 %v4570, 16
      %v5074 = vpop.permute.xlu0 %5073
      %5075 = vrot.lane.b32.xlu0 %v4573, 16
      %v5076 = vpop.permute.xlu0 %5075
      %5077 = vrot.lane.b32.xlu0 %v4605, 16
      %v5078 = vpop.permute.xlu0 %5077
      %5079 = vrot.lane.b32.xlu0 %v4608, 16
      %v5080 = vpop.permute.xlu0 %5079
      %5081 = vrot.lane.b32.xlu0 %v4640, 16
      %v5082 = vpop.permute.xlu0 %5081
      %5083 = vrot.lane.b32.xlu0 %v4643, 16
      %v5084 = vpop.permute.xlu0 %5083
      %5101 = vrot.lane.b32.xlu0 %v4919, 24
      %v5102 = vpop.permute.xlu0 %5101
      %5103 = vrot.lane.b32.xlu0 %v4922, 24
      %v5104 = vpop.permute.xlu0 %5103
      %5105 = vrot.lane.b32.xlu0 %v4954, 24
      %v5106 = vpop.permute.xlu0 %5105
      %5107 = vrot.lane.b32.xlu0 %v4957, 24
      %v5108 = vpop.permute.xlu0 %5107
      %5109 = vrot.lane.b32.xlu0 %v4989, 24
      %v5110 = vpop.permute.xlu0 %5109
      %5111 = vrot.lane.b32.xlu0 %v4992, 24
      %v5112 = vpop.permute.xlu0 %5111
      %5113 = vrot.lane.b32.xlu0 %v5024, 24
      %v5114 = vpop.permute.xlu0 %5113
      %5115 = vrot.lane.b32.xlu0 %v5027, 24
      %v5116 = vpop.permute.xlu0 %5115
      %v5125 = vsel %vm1137, %v3767, %v5038
      %v5126 = vsel %vm1137, %v3770, %v5040
      %v5127 = vsel %vm1137, %v3802, %v5042
      %v5128 = vsel %vm1137, %v3805, %v5044
      %v5129 = vsel %vm1137, %v3837, %v5046
      %v5130 = vsel %vm1137, %v3840, %v5048
      %v5131 = vsel %vm1137, %v3872, %v5050
      %v5132 = vsel %vm1137, %v3875, %v5052
      %v5133 = vsel %vm585, %v5125, %v5070
      %v5134 = vsel %vm585, %v5126, %v5072
      %v5135 = vsel %vm585, %v5127, %v5074
      %v5136 = vsel %vm585, %v5128, %v5076
      %v5137 = vsel %vm585, %v5129, %v5078
      %v5138 = vsel %vm585, %v5130, %v5080
      %v5139 = vsel %vm585, %v5131, %v5082
      %v5140 = vsel %vm585, %v5132, %v5084
      %v5141 = vsel %vm2772, %v5133, %v5102
      %v5142 = vsel %vm2772, %v5134, %v5104
      %v5143 = vsel %vm2772, %v5135, %v5106
      %v5144 = vsel %vm2772, %v5136, %v5108
      %v5145 = vsel %vm2772, %v5137, %v5110
      %v5146 = vsel %vm2772, %v5138, %v5112
      %v5147 = vsel %vm2772, %v5139, %v5114
      %v5148 = vsel %vm2772, %v5140, %v5116
      %s5149 = scalar_lea.vmem %s7, 32
      %v5150 = vld [vmem:[%s5149] sm:$0xff]
      %v5151 = vld [vmem:[%s5149 + $0x8] sm:$0xff]
      %v5152 = vld [vmem:[%s5149 + $0x10] sm:$0xff]
      %v5153 = vld [vmem:[%s5149 + $0x18] sm:$0xff]
      %s5154 = scalar_lea.vmem %s8, 1
      %v5155 = vld [vmem:[%s5154] sm:$0x1]
      %v5157 = vperm.slane %v5155, 0
      %v5160 = vsel %vm1065, %v5141, 0
      %v5163 = vsel %vm1065, %v5142, 0
      %v5166 = vsel %vm1065, %v5143, 0
      %v5169 = vsel %vm1065, %v5144, 0
      %v5172 = vsel %vm1065, %v5145, 0
      %v5175 = vsel %vm1065, %v5146, 0
      %v5178 = vsel %vm1065, %v5147, 0
      %v5181 = vsel %vm1065, %v5148, 0
      %5183 = vmatpush.msra.mxu0 0.0
      %5184 = vmatpush.msra.mxu0 0.0
      %5185 = vmatpush.msra.mxu0 0.0
      %5186 = vmatpush.msra.mxu0 0.0
      %5187 = vmatpush.msra.mxu0 0.0
      %5188 = vmatpush.msra.mxu0 0.0
      %5189 = vmatpush.msra.mxu0 0.0
      %5190 = vmatpush.msra.mxu0 0.0
      %5191 = vmatpush.msra.mxu0 0.0
      %5192 = vmatpush.msra.mxu0 0.0
      %5193 = vmatpush.msra.mxu0 0.0
      %5194 = vmatpush.msra.mxu0 0.0
      %5195 = vmatpush.msra.mxu0 %v5153
      %5196 = vmatpush.msra.mxu0 %v5152
      %5197 = vmatpush.msra.mxu0 %v5151
      %5198 = vmatpush.msra.mxu0 %v5150
      %5199 = vmatmul.f32.gmra.mxu0 %v5160
      %v5200 = vpop.f32.mrf.mxu0
      %v5201 = vadd.f32 %v5157, %v5200
      %5202 = vmatmul.f32.gmra.mxu0 %v5163
      %v5203 = vpop.f32.mrf.mxu0
      %v5204 = vadd.f32 %v5157, %v5203
      %5205 = vmatmul.f32.gmra.mxu0 %v5166
      %v5206 = vpop.f32.mrf.mxu0
      %v5207 = vadd.f32 %v5157, %v5206
      %5208 = vmatmul.f32.gmra.mxu0 %v5169
      %v5209 = vpop.f32.mrf.mxu0
      %v5210 = vadd.f32 %v5157, %v5209
      %5211 = vmatmul.f32.gmra.mxu0 %v5172
      %v5212 = vpop.f32.mrf.mxu0
      %v5213 = vadd.f32 %v5157, %v5212
      %5214 = vmatmul.f32.gmra.mxu0 %v5175
      %v5215 = vpop.f32.mrf.mxu0
      %v5216 = vadd.f32 %v5157, %v5215
      %5217 = vmatmul.f32.gmra.mxu0 %v5178
      %v5218 = vpop.f32.mrf.mxu0
      %v5219 = vadd.f32 %v5157, %v5218
      %5220 = vmatmul.f32.gmra.mxu0 %v5181
      %v5221 = vpop.f32.mrf.mxu0
      %v5222 = vadd.f32 %v5157, %v5221
      %5223 = vdwg.mxu0
      %v5224 = vadd.f32 %v3416, %v5201
      %v5225 = vadd.f32 %v3417, %v5204
      %v5226 = vadd.f32 %v3418, %v5207
      %v5227 = vadd.f32 %v3419, %v5210
      %v5228 = vadd.f32 %v3420, %v5213
      %v5229 = vadd.f32 %v3421, %v5216
      %v5230 = vadd.f32 %v3422, %v5219
      %v5231 = vadd.f32 %v3423, %v5222
      %v5232 = vsel %vm1065, %v5224, 0.0
      %5233 = vadd.xlane.f32.xlu0 %v5232
      %v5234 = vpop.xlane.xlu0 %5233
      %v5235 = vsel %vm1065, %v5225, 0.0
      %5236 = vadd.xlane.f32.xlu0 %v5235
      %v5237 = vpop.xlane.xlu0 %5236
      %v5238 = vsel %vm1065, %v5226, 0.0
      %5239 = vadd.xlane.f32.xlu0 %v5238
      %v5240 = vpop.xlane.xlu0 %5239
      %v5241 = vsel %vm1065, %v5227, 0.0
      %5242 = vadd.xlane.f32.xlu0 %v5241
      %v5243 = vpop.xlane.xlu0 %5242
      %v5244 = vsel %vm1065, %v5228, 0.0
      %5245 = vadd.xlane.f32.xlu0 %v5244
      %v5246 = vpop.xlane.xlu0 %5245
      %v5247 = vsel %vm1065, %v5229, 0.0
      %5248 = vadd.xlane.f32.xlu0 %v5247
      %v5249 = vpop.xlane.xlu0 %5248
      %v5250 = vsel %vm1065, %v5230, 0.0
      %5251 = vadd.xlane.f32.xlu0 %v5250
      %v5252 = vpop.xlane.xlu0 %5251
      %v5253 = vsel %vm1065, %v5231, 0.0
      %5254 = vadd.xlane.f32.xlu0 %v5253
      %v5255 = vpop.xlane.xlu0 %5254
      %v5256 = vmul.f32 %v5234, %v2892
      %v5257 = vmul.f32 %v5237, %v2892
      %v5258 = vmul.f32 %v5240, %v2892
      %v5259 = vmul.f32 %v5243, %v2892
      %v5260 = vmul.f32 %v5246, %v2892
      %v5261 = vmul.f32 %v5249, %v2892
      %v5262 = vmul.f32 %v5252, %v2892
      %v5263 = vmul.f32 %v5255, %v2892
      %v5264 = vsub.f32 %v5224, %v5256
      %v5265 = vsub.f32 %v5225, %v5257
      %v5266 = vsub.f32 %v5226, %v5258
      %v5267 = vsub.f32 %v5227, %v5259
      %v5268 = vsub.f32 %v5228, %v5260
      %v5269 = vsub.f32 %v5229, %v5261
      %v5270 = vsub.f32 %v5230, %v5262
      %v5271 = vsub.f32 %v5231, %v5263
      %v5272 = vmul.f32 %v5264, %v5264
      %v5273 = vmul.f32 %v5265, %v5265
      %v5274 = vmul.f32 %v5266, %v5266
      %v5275 = vmul.f32 %v5267, %v5267
      %v5276 = vmul.f32 %v5268, %v5268
      %v5277 = vmul.f32 %v5269, %v5269
      %v5278 = vmul.f32 %v5270, %v5270
      %v5279 = vmul.f32 %v5271, %v5271
      %v5280 = vsel %vm1065, %v5272, 0.0
      %5281 = vadd.xlane.f32.xlu0 %v5280
      %v5282 = vpop.xlane.xlu0 %5281
      %v5283 = vsel %vm1065, %v5273, 0.0
      %5284 = vadd.xlane.f32.xlu0 %v5283
      %v5285 = vpop.xlane.xlu0 %5284
      %v5286 = vsel %vm1065, %v5274, 0.0
      %5287 = vadd.xlane.f32.xlu0 %v5286
      %v5288 = vpop.xlane.xlu0 %5287
      %v5289 = vsel %vm1065, %v5275, 0.0
      %5290 = vadd.xlane.f32.xlu0 %v5289
      %v5291 = vpop.xlane.xlu0 %5290
      %v5292 = vsel %vm1065, %v5276, 0.0
      %5293 = vadd.xlane.f32.xlu0 %v5292
      %v5294 = vpop.xlane.xlu0 %5293
      %v5295 = vsel %vm1065, %v5277, 0.0
      %5296 = vadd.xlane.f32.xlu0 %v5295
      %v5297 = vpop.xlane.xlu0 %5296
      %v5298 = vsel %vm1065, %v5278, 0.0
      %5299 = vadd.xlane.f32.xlu0 %v5298
      %v5300 = vpop.xlane.xlu0 %5299
      %v5301 = vsel %vm1065, %v5279, 0.0
      %5302 = vadd.xlane.f32.xlu0 %v5301
      %v5303 = vpop.xlane.xlu0 %5302
      %v5304 = vmul.f32 %v5282, %v2892
      %v5305 = vmul.f32 %v5285, %v2892
      %v5306 = vmul.f32 %v5288, %v2892
      %v5307 = vmul.f32 %v5291, %v2892
      %v5308 = vmul.f32 %v5294, %v2892
      %v5309 = vmul.f32 %v5297, %v2892
      %v5310 = vmul.f32 %v5300, %v2892
      %v5311 = vmul.f32 %v5303, %v2892
      %v5312 = vadd.f32 %v5304, 1e-05
      %v5313 = vadd.f32 %v5305, 1e-05
      %v5314 = vadd.f32 %v5306, 1e-05
      %v5315 = vadd.f32 %v5307, 1e-05
      %v5316 = vadd.f32 %v5308, 1e-05
      %v5317 = vadd.f32 %v5309, 1e-05
      %v5318 = vadd.f32 %v5310, 1e-05
      %v5319 = vadd.f32 %v5311, 1e-05
      %v5320 = vrsqrt.pop %v5312
      %v5321 = vmul.f32 %v5320, %v5312
      %v5322 = vmul.f32 %v5321, %v5320
      %v5323 = vmul.f32 0.5, %v5322
      %v5324 = vsub.f32 1.5, %v5323
      %v5325 = vmul.f32 %v5320, %v5324
      %vm5326 = vweird.f32 %v5312
      %vm5327 = vweird.f32 %v5320
      %vm5328 = vmor %vm5326, %vm5327
      %v5329 = vsel %vm5328, %v5320, %v5325
      %v5330 = vrsqrt.pop %v5313
      %v5331 = vmul.f32 %v5330, %v5313
      %v5332 = vmul.f32 %v5331, %v5330
      %v5333 = vmul.f32 0.5, %v5332
      %v5334 = vsub.f32 1.5, %v5333
      %v5335 = vmul.f32 %v5330, %v5334
      %vm5336 = vweird.f32 %v5313
      %vm5337 = vweird.f32 %v5330
      %vm5338 = vmor %vm5336, %vm5337
      %v5339 = vsel %vm5338, %v5330, %v5335
      %v5340 = vrsqrt.pop %v5314
      %v5341 = vmul.f32 %v5340, %v5314
      %v5342 = vmul.f32 %v5341, %v5340
      %v5343 = vmul.f32 0.5, %v5342
      %v5344 = vsub.f32 1.5, %v5343
      %v5345 = vmul.f32 %v5340, %v5344
      %vm5346 = vweird.f32 %v5314
      %vm5347 = vweird.f32 %v5340
      %vm5348 = vmor %vm5346, %vm5347
      %v5349 = vsel %vm5348, %v5340, %v5345
      %v5350 = vrsqrt.pop %v5315
      %v5351 = vmul.f32 %v5350, %v5315
      %v5352 = vmul.f32 %v5351, %v5350
      %v5353 = vmul.f32 0.5, %v5352
      %v5354 = vsub.f32 1.5, %v5353
      %v5355 = vmul.f32 %v5350, %v5354
      %vm5356 = vweird.f32 %v5315
      %vm5357 = vweird.f32 %v5350
      %vm5358 = vmor %vm5356, %vm5357
      %v5359 = vsel %vm5358, %v5350, %v5355
      %v5360 = vrsqrt.pop %v5316
      %v5361 = vmul.f32 %v5360, %v5316
      %v5362 = vmul.f32 %v5361, %v5360
      %v5363 = vmul.f32 0.5, %v5362
      %v5364 = vsub.f32 1.5, %v5363
      %v5365 = vmul.f32 %v5360, %v5364
      %vm5366 = vweird.f32 %v5316
      %vm5367 = vweird.f32 %v5360
      %vm5368 = vmor %vm5366, %vm5367
      %v5369 = vsel %vm5368, %v5360, %v5365
      %v5370 = vrsqrt.pop %v5317
      %v5371 = vmul.f32 %v5370, %v5317
      %v5372 = vmul.f32 %v5371, %v5370
      %v5373 = vmul.f32 0.5, %v5372
      %v5374 = vsub.f32 1.5, %v5373
      %v5375 = vmul.f32 %v5370, %v5374
      %vm5376 = vweird.f32 %v5317
      %vm5377 = vweird.f32 %v5370
      %vm5378 = vmor %vm5376, %vm5377
      %v5379 = vsel %vm5378, %v5370, %v5375
      %v5380 = vrsqrt.pop %v5318
      %v5381 = vmul.f32 %v5380, %v5318
      %v5382 = vmul.f32 %v5381, %v5380
      %v5383 = vmul.f32 0.5, %v5382
      %v5384 = vsub.f32 1.5, %v5383
      %v5385 = vmul.f32 %v5380, %v5384
      %vm5386 = vweird.f32 %v5318
      %vm5387 = vweird.f32 %v5380
      %vm5388 = vmor %vm5386, %vm5387
      %v5389 = vsel %vm5388, %v5380, %v5385
      %v5390 = vrsqrt.pop %v5319
      %v5391 = vmul.f32 %v5390, %v5319
      %v5392 = vmul.f32 %v5391, %v5390
      %v5393 = vmul.f32 0.5, %v5392
      %v5394 = vsub.f32 1.5, %v5393
      %v5395 = vmul.f32 %v5390, %v5394
      %vm5396 = vweird.f32 %v5319
      %vm5397 = vweird.f32 %v5390
      %vm5398 = vmor %vm5396, %vm5397
      %v5399 = vsel %vm5398, %v5390, %v5395
      %v5400 = vmul.f32 %v5264, %v5329
      %v5401 = vmul.f32 %v5265, %v5339
      %v5402 = vmul.f32 %v5266, %v5349
      %v5403 = vmul.f32 %v5267, %v5359
      %v5404 = vmul.f32 %v5268, %v5369
      %v5405 = vmul.f32 %v5269, %v5379
      %v5406 = vmul.f32 %v5270, %v5389
      %v5407 = vmul.f32 %v5271, %v5399
      %v5408 = vperm.slane %v3425, 0
      %v5409 = vmul.f32 %v5400, %v5408
      %v5410 = vmul.f32 %v5401, %v5408
      %v5411 = vmul.f32 %v5402, %v5408
      %v5412 = vmul.f32 %v5403, %v5408
      %v5413 = vmul.f32 %v5404, %v5408
      %v5414 = vmul.f32 %v5405, %v5408
      %v5415 = vmul.f32 %v5406, %v5408
      %v5416 = vmul.f32 %v5407, %v5408
      %v5417 = vperm.slane %v3425, 1
      %v5418 = vadd.f32 %v5409, %v5417
      %v5419 = vadd.f32 %v5410, %v5417
      %v5420 = vadd.f32 %v5411, %v5417
      %v5421 = vadd.f32 %v5412, %v5417
      %v5422 = vadd.f32 %v5413, %v5417
      %v5423 = vadd.f32 %v5414, %v5417
      %v5424 = vadd.f32 %v5415, %v5417
      %v5425 = vadd.f32 %v5416, %v5417
      %s5426 = scalar_lea.vmem %s9, 32
      %v5427 = vld [vmem:[%s5426] sm:$0xff]
      %v5428 = vld [vmem:[%s5426 + $0x8] sm:$0xff]
      %v5429 = vld [vmem:[%s5426 + $0x10] sm:$0xff]
      %v5430 = vld [vmem:[%s5426 + $0x18] sm:$0xff]
      %s5431 = scalar_lea.vmem %s10, 1
      %v5432 = vld [vmem:[%s5431] sm:$0x1]
      %v5434 = vperm.slane %v5432, 0
      %v5437 = vsel %vm1065, %v5418, 0
      %v5440 = vsel %vm1065, %v5419, 0
      %v5443 = vsel %vm1065, %v5420, 0
      %v5446 = vsel %vm1065, %v5421, 0
      %v5449 = vsel %vm1065, %v5422, 0
      %v5452 = vsel %vm1065, %v5423, 0
      %v5455 = vsel %vm1065, %v5424, 0
      %v5458 = vsel %vm1065, %v5425, 0
      %5460 = vmatpush.msra.mxu0 0.0
      %5461 = vmatpush.msra.mxu0 0.0
      %5462 = vmatpush.msra.mxu0 0.0
      %5463 = vmatpush.msra.mxu0 0.0
      %5464 = vmatpush.msra.mxu0 0.0
      %5465 = vmatpush.msra.mxu0 0.0
      %5466 = vmatpush.msra.mxu0 0.0
      %5467 = vmatpush.msra.mxu0 0.0
      %5468 = vmatpush.msra.mxu0 0.0
      %5469 = vmatpush.msra.mxu0 0.0
      %5470 = vmatpush.msra.mxu0 0.0
      %5471 = vmatpush.msra.mxu0 0.0
      %5472 = vmatpush.msra.mxu0 %v5430
      %5473 = vmatpush.msra.mxu0 %v5429
      %5474 = vmatpush.msra.mxu0 %v5428
      %5475 = vmatpush.msra.mxu0 %v5427
      %5476 = vmatmul.f32.gmra.mxu0 %v5437
      %v5477 = vpop.f32.mrf.mxu0
      %v5478 = vadd.f32 %v5434, %v5477
      %5479 = vmatmul.f32.gmra.mxu0 %v5440
      %v5480 = vpop.f32.mrf.mxu0
      %v5481 = vadd.f32 %v5434, %v5480
      %5482 = vmatmul.f32.gmra.mxu0 %v5443
      %v5483 = vpop.f32.mrf.mxu0
      %v5484 = vadd.f32 %v5434, %v5483
      %5485 = vmatmul.f32.gmra.mxu0 %v5446
      %v5486 = vpop.f32.mrf.mxu0
      %v5487 = vadd.f32 %v5434, %v5486
      %5488 = vmatmul.f32.gmra.mxu0 %v5449
      %v5489 = vpop.f32.mrf.mxu0
      %v5490 = vadd.f32 %v5434, %v5489
      %5491 = vmatmul.f32.gmra.mxu0 %v5452
      %v5492 = vpop.f32.mrf.mxu0
      %v5493 = vadd.f32 %v5434, %v5492
      %5494 = vmatmul.f32.gmra.mxu0 %v5455
      %v5495 = vpop.f32.mrf.mxu0
      %v5496 = vadd.f32 %v5434, %v5495
      %5497 = vmatmul.f32.gmra.mxu0 %v5458
      %v5498 = vpop.f32.mrf.mxu0
      %v5499 = vadd.f32 %v5434, %v5498
      %5500 = vdwg.mxu0
      %v5501 = vmax.f32 %v5478, 0.0
      %v5502 = vmax.f32 %v5481, 0.0
      %v5503 = vmax.f32 %v5484, 0.0
      %v5504 = vmax.f32 %v5487, 0.0
      %v5505 = vmax.f32 %v5490, 0.0
      %v5506 = vmax.f32 %v5493, 0.0
      %v5507 = vmax.f32 %v5496, 0.0
      %v5508 = vmax.f32 %v5499, 0.0
      %s5509 = scalar_lea.vmem %s11, 64
      %v5510 = vld [vmem:[%s5509] sm:$0xff]
      %v5511 = vld [vmem:[%s5509 + $0x8] sm:$0xff]
      %v5512 = vld [vmem:[%s5509 + $0x10] sm:$0xff]
      %v5513 = vld [vmem:[%s5509 + $0x18] sm:$0xff]
      %v5514 = vld [vmem:[%s5509 + $0x20] sm:$0xff]
      %v5515 = vld [vmem:[%s5509 + $0x28] sm:$0xff]
      %v5516 = vld [vmem:[%s5509 + $0x30] sm:$0xff]
      %v5517 = vld [vmem:[%s5509 + $0x38] sm:$0xff]
      %s5518 = scalar_lea.vmem %s12, 1
      %v5519 = vld [vmem:[%s5518] sm:$0x1]
      %v5521 = vperm.slane %v5519, 0
      %v5524 = vsel %vm3156, %v5501, 0
      %v5527 = vsel %vm3156, %v5502, 0
      %v5530 = vsel %vm3156, %v5503, 0
      %v5533 = vsel %vm3156, %v5504, 0
      %v5536 = vsel %vm3156, %v5505, 0
      %v5539 = vsel %vm3156, %v5506, 0
      %v5542 = vsel %vm3156, %v5507, 0
      %v5545 = vsel %vm3156, %v5508, 0
      %5547 = vmatpush.msra.mxu0 0.0
      %5548 = vmatpush.msra.mxu0 0.0
      %5549 = vmatpush.msra.mxu0 0.0
      %5550 = vmatpush.msra.mxu0 0.0
      %5551 = vmatpush.msra.mxu0 0.0
      %5552 = vmatpush.msra.mxu0 0.0
      %5553 = vmatpush.msra.mxu0 0.0
      %5554 = vmatpush.msra.mxu0 0.0
      %5555 = vmatpush.msra.mxu0 %v5517
      %5556 = vmatpush.msra.mxu0 %v5516
      %5557 = vmatpush.msra.mxu0 %v5515
      %5558 = vmatpush.msra.mxu0 %v5514
      %5559 = vmatpush.msra.mxu0 %v5513
      %5560 = vmatpush.msra.mxu0 %v5512
      %5561 = vmatpush.msra.mxu0 %v5511
      %5562 = vmatpush.msra.mxu0 %v5510
      %5563 = vmatmul.f32.gmra.mxu0 %v5524
      %v5564 = vpop.f32.mrf.mxu0
      %v5565 = vadd.f32 %v5521, %v5564
      %5566 = vmatmul.f32.gmra.mxu0 %v5527
      %v5567 = vpop.f32.mrf.mxu0
      %v5568 = vadd.f32 %v5521, %v5567
      %5569 = vmatmul.f32.gmra.mxu0 %v5530
      %v5570 = vpop.f32.mrf.mxu0
      %v5571 = vadd.f32 %v5521, %v5570
      %5572 = vmatmul.f32.gmra.mxu0 %v5533
      %v5573 = vpop.f32.mrf.mxu0
      %v5574 = vadd.f32 %v5521, %v5573
      %5575 = vmatmul.f32.gmra.mxu0 %v5536
      %v5576 = vpop.f32.mrf.mxu0
      %v5577 = vadd.f32 %v5521, %v5576
      %5578 = vmatmul.f32.gmra.mxu0 %v5539
      %v5579 = vpop.f32.mrf.mxu0
      %v5580 = vadd.f32 %v5521, %v5579
      %5581 = vmatmul.f32.gmra.mxu0 %v5542
      %v5582 = vpop.f32.mrf.mxu0
      %v5583 = vadd.f32 %v5521, %v5582
      %5584 = vmatmul.f32.gmra.mxu0 %v5545
      %v5585 = vpop.f32.mrf.mxu0
      %v5586 = vadd.f32 %v5521, %v5585
      %5587 = vdwg.mxu0
      %v5588 = vadd.f32 %v5418, %v5565
      %v5589 = vadd.f32 %v5419, %v5568
      %v5590 = vadd.f32 %v5420, %v5571
      %v5591 = vadd.f32 %v5421, %v5574
      %v5592 = vadd.f32 %v5422, %v5577
      %v5593 = vadd.f32 %v5423, %v5580
      %v5594 = vadd.f32 %v5424, %v5583
      %v5595 = vadd.f32 %v5425, %v5586
      %v5596 = vsel %vm1065, %v5588, 0.0
      %5597 = vadd.xlane.f32.xlu0 %v5596
      %v5598 = vpop.xlane.xlu0 %5597
      %v5599 = vsel %vm1065, %v5589, 0.0
      %5600 = vadd.xlane.f32.xlu0 %v5599
      %v5601 = vpop.xlane.xlu0 %5600
      %v5602 = vsel %vm1065, %v5590, 0.0
      %5603 = vadd.xlane.f32.xlu0 %v5602
      %v5604 = vpop.xlane.xlu0 %5603
      %v5605 = vsel %vm1065, %v5591, 0.0
      %5606 = vadd.xlane.f32.xlu0 %v5605
      %v5607 = vpop.xlane.xlu0 %5606
      %v5608 = vsel %vm1065, %v5592, 0.0
      %5609 = vadd.xlane.f32.xlu0 %v5608
      %v5610 = vpop.xlane.xlu0 %5609
      %v5611 = vsel %vm1065, %v5593, 0.0
      %5612 = vadd.xlane.f32.xlu0 %v5611
      %v5613 = vpop.xlane.xlu0 %5612
      %v5614 = vsel %vm1065, %v5594, 0.0
      %5615 = vadd.xlane.f32.xlu0 %v5614
      %v5616 = vpop.xlane.xlu0 %5615
      %v5617 = vsel %vm1065, %v5595, 0.0
      %5618 = vadd.xlane.f32.xlu0 %v5617
      %v5619 = vpop.xlane.xlu0 %5618
      %v5620 = vmul.f32 %v5598, %v2892
      %v5621 = vmul.f32 %v5601, %v2892
      %v5622 = vmul.f32 %v5604, %v2892
      %v5623 = vmul.f32 %v5607, %v2892
      %v5624 = vmul.f32 %v5610, %v2892
      %v5625 = vmul.f32 %v5613, %v2892
      %v5626 = vmul.f32 %v5616, %v2892
      %v5627 = vmul.f32 %v5619, %v2892
      %v5628 = vsub.f32 %v5588, %v5620
      %v5629 = vsub.f32 %v5589, %v5621
      %v5630 = vsub.f32 %v5590, %v5622
      %v5631 = vsub.f32 %v5591, %v5623
      %v5632 = vsub.f32 %v5592, %v5624
      %v5633 = vsub.f32 %v5593, %v5625
      %v5634 = vsub.f32 %v5594, %v5626
      %v5635 = vsub.f32 %v5595, %v5627
      %v5636 = vmul.f32 %v5628, %v5628
      %v5637 = vmul.f32 %v5629, %v5629
      %v5638 = vmul.f32 %v5630, %v5630
      %v5639 = vmul.f32 %v5631, %v5631
      %v5640 = vmul.f32 %v5632, %v5632
      %v5641 = vmul.f32 %v5633, %v5633
      %v5642 = vmul.f32 %v5634, %v5634
      %v5643 = vmul.f32 %v5635, %v5635
      %v5644 = vsel %vm1065, %v5636, 0.0
      %5645 = vadd.xlane.f32.xlu0 %v5644
      %v5646 = vpop.xlane.xlu0 %5645
      %v5647 = vsel %vm1065, %v5637, 0.0
      %5648 = vadd.xlane.f32.xlu0 %v5647
      %v5649 = vpop.xlane.xlu0 %5648
      %v5650 = vsel %vm1065, %v5638, 0.0
      %5651 = vadd.xlane.f32.xlu0 %v5650
      %v5652 = vpop.xlane.xlu0 %5651
      %v5653 = vsel %vm1065, %v5639, 0.0
      %5654 = vadd.xlane.f32.xlu0 %v5653
      %v5655 = vpop.xlane.xlu0 %5654
      %v5656 = vsel %vm1065, %v5640, 0.0
      %5657 = vadd.xlane.f32.xlu0 %v5656
      %v5658 = vpop.xlane.xlu0 %5657
      %v5659 = vsel %vm1065, %v5641, 0.0
      %5660 = vadd.xlane.f32.xlu0 %v5659
      %v5661 = vpop.xlane.xlu0 %5660
      %v5662 = vsel %vm1065, %v5642, 0.0
      %5663 = vadd.xlane.f32.xlu0 %v5662
      %v5664 = vpop.xlane.xlu0 %5663
      %v5665 = vsel %vm1065, %v5643, 0.0
      %5666 = vadd.xlane.f32.xlu0 %v5665
      %v5667 = vpop.xlane.xlu0 %5666
      %v5668 = vmul.f32 %v5646, %v2892
      %v5669 = vmul.f32 %v5649, %v2892
      %v5670 = vmul.f32 %v5652, %v2892
      %v5671 = vmul.f32 %v5655, %v2892
      %v5672 = vmul.f32 %v5658, %v2892
      %v5673 = vmul.f32 %v5661, %v2892
      %v5674 = vmul.f32 %v5664, %v2892
      %v5675 = vmul.f32 %v5667, %v2892
      %v5676 = vadd.f32 %v5668, 1e-05
      %v5677 = vadd.f32 %v5669, 1e-05
      %v5678 = vadd.f32 %v5670, 1e-05
      %v5679 = vadd.f32 %v5671, 1e-05
      %v5680 = vadd.f32 %v5672, 1e-05
      %v5681 = vadd.f32 %v5673, 1e-05
      %v5682 = vadd.f32 %v5674, 1e-05
      %v5683 = vadd.f32 %v5675, 1e-05
      %v5684 = vrsqrt.pop %v5676
      %v5685 = vmul.f32 %v5684, %v5676
      %v5686 = vmul.f32 %v5685, %v5684
      %v5687 = vmul.f32 0.5, %v5686
      %v5688 = vsub.f32 1.5, %v5687
      %v5689 = vmul.f32 %v5684, %v5688
      %vm5690 = vweird.f32 %v5676
      %vm5691 = vweird.f32 %v5684
      %vm5692 = vmor %vm5690, %vm5691
      %v5693 = vsel %vm5692, %v5684, %v5689
      %v5694 = vrsqrt.pop %v5677
      %v5695 = vmul.f32 %v5694, %v5677
      %v5696 = vmul.f32 %v5695, %v5694
      %v5697 = vmul.f32 0.5, %v5696
      %v5698 = vsub.f32 1.5, %v5697
      %v5699 = vmul.f32 %v5694, %v5698
      %vm5700 = vweird.f32 %v5677
      %vm5701 = vweird.f32 %v5694
      %vm5702 = vmor %vm5700, %vm5701
      %v5703 = vsel %vm5702, %v5694, %v5699
      %v5704 = vrsqrt.pop %v5678
      %v5705 = vmul.f32 %v5704, %v5678
      %v5706 = vmul.f32 %v5705, %v5704
      %v5707 = vmul.f32 0.5, %v5706
      %v5708 = vsub.f32 1.5, %v5707
      %v5709 = vmul.f32 %v5704, %v5708
      %vm5710 = vweird.f32 %v5678
      %vm5711 = vweird.f32 %v5704
      %vm5712 = vmor %vm5710, %vm5711
      %v5713 = vsel %vm5712, %v5704, %v5709
      %v5714 = vrsqrt.pop %v5679
      %v5715 = vmul.f32 %v5714, %v5679
      %v5716 = vmul.f32 %v5715, %v5714
      %v5717 = vmul.f32 0.5, %v5716
      %v5718 = vsub.f32 1.5, %v5717
      %v5719 = vmul.f32 %v5714, %v5718
      %vm5720 = vweird.f32 %v5679
      %vm5721 = vweird.f32 %v5714
      %vm5722 = vmor %vm5720, %vm5721
      %v5723 = vsel %vm5722, %v5714, %v5719
      %v5724 = vrsqrt.pop %v5680
      %v5725 = vmul.f32 %v5724, %v5680
      %v5726 = vmul.f32 %v5725, %v5724
      %v5727 = vmul.f32 0.5, %v5726
      %v5728 = vsub.f32 1.5, %v5727
      %v5729 = vmul.f32 %v5724, %v5728
      %vm5730 = vweird.f32 %v5680
      %vm5731 = vweird.f32 %v5724
      %vm5732 = vmor %vm5730, %vm5731
      %v5733 = vsel %vm5732, %v5724, %v5729
      %v5734 = vrsqrt.pop %v5681
      %v5735 = vmul.f32 %v5734, %v5681
      %v5736 = vmul.f32 %v5735, %v5734
      %v5737 = vmul.f32 0.5, %v5736
      %v5738 = vsub.f32 1.5, %v5737
      %v5739 = vmul.f32 %v5734, %v5738
      %vm5740 = vweird.f32 %v5681
      %vm5741 = vweird.f32 %v5734
      %vm5742 = vmor %vm5740, %vm5741
      %v5743 = vsel %vm5742, %v5734, %v5739
      %v5744 = vrsqrt.pop %v5682
      %v5745 = vmul.f32 %v5744, %v5682
      %v5746 = vmul.f32 %v5745, %v5744
      %v5747 = vmul.f32 0.5, %v5746
      %v5748 = vsub.f32 1.5, %v5747
      %v5749 = vmul.f32 %v5744, %v5748
      %vm5750 = vweird.f32 %v5682
      %vm5751 = vweird.f32 %v5744
      %vm5752 = vmor %vm5750, %vm5751
      %v5753 = vsel %vm5752, %v5744, %v5749
      %v5754 = vrsqrt.pop %v5683
      %v5755 = vmul.f32 %v5754, %v5683
      %v5756 = vmul.f32 %v5755, %v5754
      %v5757 = vmul.f32 0.5, %v5756
      %v5758 = vsub.f32 1.5, %v5757
      %v5759 = vmul.f32 %v5754, %v5758
      %vm5760 = vweird.f32 %v5683
      %vm5761 = vweird.f32 %v5754
      %vm5762 = vmor %vm5760, %vm5761
      %v5763 = vsel %vm5762, %v5754, %v5759
      %v5764 = vmul.f32 %v5628, %v5693
      %v5765 = vmul.f32 %v5629, %v5703
      %v5766 = vmul.f32 %v5630, %v5713
      %v5767 = vmul.f32 %v5631, %v5723
      %v5768 = vmul.f32 %v5632, %v5733
      %v5769 = vmul.f32 %v5633, %v5743
      %v5770 = vmul.f32 %v5634, %v5753
      %v5771 = vmul.f32 %v5635, %v5763
      %v5772 = vperm.slane %v3425, 2
      %v5773 = vmul.f32 %v5764, %v5772
      %v5774 = vmul.f32 %v5765, %v5772
      %v5775 = vmul.f32 %v5766, %v5772
      %v5776 = vmul.f32 %v5767, %v5772
      %v5777 = vmul.f32 %v5768, %v5772
      %v5778 = vmul.f32 %v5769, %v5772
      %v5779 = vmul.f32 %v5770, %v5772
      %v5780 = vmul.f32 %v5771, %v5772
      %v5781 = vperm.slane %v3425, 3
      %v5782 = vadd.f32 %v5773, %v5781
      %v5783 = vadd.f32 %v5774, %v5781
      %v5784 = vadd.f32 %v5775, %v5781
      %v5785 = vadd.f32 %v5776, %v5781
      %v5786 = vadd.f32 %v5777, %v5781
      %v5787 = vadd.f32 %v5778, %v5781
      %v5788 = vadd.f32 %v5779, %v5781
      %v5789 = vadd.f32 %v5780, %v5781
      %v5790 = vld [vmem:[%s3] sm:$0xff]
      %v5791 = vld [vmem:[%s3 + $0x8] sm:$0xff]
      %v5792 = vld [vmem:[%s14] sm:$0xff]
      %v5793 = vld [vmem:[%s14 + $0x8] sm:$0xff]
      %v5794 = vld [vmem:[%s14 + $0x10] sm:$0xff]
      %v5795 = vld [vmem:[%s14 + $0x18] sm:$0xff]
      %v5797 = vsel %vm1065, %v5782, 0
      %v5800 = vsel %vm1065, %v5783, 0
      %v5803 = vsel %vm1065, %v5784, 0
      %v5806 = vsel %vm1065, %v5785, 0
      %v5809 = vsel %vm1065, %v5786, 0
      %v5812 = vsel %vm1065, %v5787, 0
      %v5815 = vsel %vm1065, %v5788, 0
      %v5818 = vsel %vm1065, %v5789, 0
      %5820 = vmatpush.msra.mxu0 0.0
      %5821 = vmatpush.msra.mxu0 0.0
      %5822 = vmatpush.msra.mxu0 0.0
      %5823 = vmatpush.msra.mxu0 0.0
      %5824 = vmatpush.msra.mxu0 0.0
      %5825 = vmatpush.msra.mxu0 0.0
      %5826 = vmatpush.msra.mxu0 0.0
      %5827 = vmatpush.msra.mxu0 0.0
      %5828 = vmatpush.msra.mxu0 0.0
      %5829 = vmatpush.msra.mxu0 0.0
      %5830 = vmatpush.msra.mxu0 0.0
      %5831 = vmatpush.msra.mxu0 0.0
      %5832 = vmatpush.msra.mxu0 %v5795
      %5833 = vmatpush.msra.mxu0 %v5794
      %5834 = vmatpush.msra.mxu0 %v5793
      %5835 = vmatpush.msra.mxu0 %v5792
      %5836 = vmatmul.f32.gmra.mxu0 %v5797
      %v5837 = vpop.f32.mrf.mxu0
      %v5838 = vadd.f32 0.0, %v5837
      %5839 = vmatmul.f32.gmra.mxu0 %v5800
      %v5840 = vpop.f32.mrf.mxu0
      %v5841 = vadd.f32 0.0, %v5840
      %5842 = vmatmul.f32.gmra.mxu0 %v5803
      %v5843 = vpop.f32.mrf.mxu0
      %v5844 = vadd.f32 0.0, %v5843
      %5845 = vmatmul.f32.gmra.mxu0 %v5806
      %v5846 = vpop.f32.mrf.mxu0
      %v5847 = vadd.f32 0.0, %v5846
      %5848 = vmatmul.f32.gmra.mxu0 %v5809
      %v5849 = vpop.f32.mrf.mxu0
      %v5850 = vadd.f32 0.0, %v5849
      %5851 = vmatmul.f32.gmra.mxu0 %v5812
      %v5852 = vpop.f32.mrf.mxu0
      %v5853 = vadd.f32 0.0, %v5852
      %5854 = vmatmul.f32.gmra.mxu0 %v5815
      %v5855 = vpop.f32.mrf.mxu0
      %v5856 = vadd.f32 0.0, %v5855
      %5857 = vmatmul.f32.gmra.mxu0 %v5818
      %v5858 = vpop.f32.mrf.mxu0
      %v5859 = vadd.f32 0.0, %v5858
      %5860 = vdwg.mxu0
      %5862 = vset.pattern.permute.xlu0 0
      %5863 = vperm.xlu0 %5862, %v5790
      %v5864 = vpop.permute.xlu0 %5863
      %5867 = vset.pattern.permute.xlu0 0
      %5868 = vperm.xlu0 %5867, %v5791
      %v5869 = vpop.permute.xlu0 %5868
      %v5871 = vmul.f32 %v5838, %v5864
      %v5872 = vmul.f32 %v5841, %v5869
      %v5873 = vmul.f32 %v5844, %v5864
      %v5874 = vmul.f32 %v5847, %v5869
      %v5875 = vmul.f32 %v5850, %v5864
      %v5876 = vmul.f32 %v5853, %v5869
      %v5877 = vmul.f32 %v5856, %v5864
      %v5878 = vmul.f32 %v5859, %v5869
      %v5879 = vadd.f32 %v5871, 0.0
      %v5880 = vadd.f32 %v5872, 0.0
      %v5881 = vadd.f32 %v5873, 0.0
      %v5882 = vadd.f32 %v5874, 0.0
      %v5883 = vadd.f32 %v5875, 0.0
      %v5884 = vadd.f32 %v5876, 0.0
      %v5885 = vadd.f32 %v5877, 0.0
      %v5886 = vadd.f32 %v5878, 0.0
      %s5887 = scalar_lea.vmem %s14, 32
      %v5888 = vld [vmem:[%s5887] sm:$0xff]
      %v5889 = vld [vmem:[%s5887 + $0x8] sm:$0xff]
      %v5890 = vld [vmem:[%s5887 + $0x10] sm:$0xff]
      %v5891 = vld [vmem:[%s5887 + $0x18] sm:$0xff]
      %5892 = vmatpush.msra.mxu0 0.0
      %5893 = vmatpush.msra.mxu0 0.0
      %5894 = vmatpush.msra.mxu0 0.0
      %5895 = vmatpush.msra.mxu0 0.0
      %5896 = vmatpush.msra.mxu0 0.0
      %5897 = vmatpush.msra.mxu0 0.0
      %5898 = vmatpush.msra.mxu0 0.0
      %5899 = vmatpush.msra.mxu0 0.0
      %5900 = vmatpush.msra.mxu0 0.0
      %5901 = vmatpush.msra.mxu0 0.0
      %5902 = vmatpush.msra.mxu0 0.0
      %5903 = vmatpush.msra.mxu0 0.0
      %5904 = vmatpush.msra.mxu0 %v5891
      %5905 = vmatpush.msra.mxu0 %v5890
      %5906 = vmatpush.msra.mxu0 %v5889
      %5907 = vmatpush.msra.mxu0 %v5888
      %5908 = vmatmul.f32.gmra.mxu0 %v5797
      %v5909 = vpop.f32.mrf.mxu0
      %v5910 = vadd.f32 0.0, %v5909
      %5911 = vmatmul.f32.gmra.mxu0 %v5800
      %v5912 = vpop.f32.mrf.mxu0
      %v5913 = vadd.f32 0.0, %v5912
      %5914 = vmatmul.f32.gmra.mxu0 %v5803
      %v5915 = vpop.f32.mrf.mxu0
      %v5916 = vadd.f32 0.0, %v5915
      %5917 = vmatmul.f32.gmra.mxu0 %v5806
      %v5918 = vpop.f32.mrf.mxu0
      %v5919 = vadd.f32 0.0, %v5918
      %5920 = vmatmul.f32.gmra.mxu0 %v5809
      %v5921 = vpop.f32.mrf.mxu0
      %v5922 = vadd.f32 0.0, %v5921
      %5923 = vmatmul.f32.gmra.mxu0 %v5812
      %v5924 = vpop.f32.mrf.mxu0
      %v5925 = vadd.f32 0.0, %v5924
      %5926 = vmatmul.f32.gmra.mxu0 %v5815
      %v5927 = vpop.f32.mrf.mxu0
      %v5928 = vadd.f32 0.0, %v5927
      %5929 = vmatmul.f32.gmra.mxu0 %v5818
      %v5930 = vpop.f32.mrf.mxu0
      %v5931 = vadd.f32 0.0, %v5930
      %5932 = vdwg.mxu0
      %5933 = vset.pattern.permute.xlu0 1
      %5934 = vperm.xlu0 %5933, %v5790
      %v5935 = vpop.permute.xlu0 %5934
      %5937 = vset.pattern.permute.xlu0 1
      %5938 = vperm.xlu0 %5937, %v5791
      %v5939 = vpop.permute.xlu0 %5938
      %v5941 = vmul.f32 %v5910, %v5935
      %v5942 = vmul.f32 %v5913, %v5939
      %v5943 = vmul.f32 %v5916, %v5935
      %v5944 = vmul.f32 %v5919, %v5939
      %v5945 = vmul.f32 %v5922, %v5935
      %v5946 = vmul.f32 %v5925, %v5939
      %v5947 = vmul.f32 %v5928, %v5935
      %v5948 = vmul.f32 %v5931, %v5939
      %v5949 = vadd.f32 %v5879, %v5941
      %v5950 = vadd.f32 %v5880, %v5942
      %v5951 = vadd.f32 %v5881, %v5943
      %v5952 = vadd.f32 %v5882, %v5944
      %v5953 = vadd.f32 %v5883, %v5945
      %v5954 = vadd.f32 %v5884, %v5946
      %v5955 = vadd.f32 %v5885, %v5947
      %v5956 = vadd.f32 %v5886, %v5948
      %s5957 = scalar_lea.vmem %s14, 64
      %v5958 = vld [vmem:[%s5957] sm:$0xff]
      %v5959 = vld [vmem:[%s5957 + $0x8] sm:$0xff]
      %v5960 = vld [vmem:[%s5957 + $0x10] sm:$0xff]
      %v5961 = vld [vmem:[%s5957 + $0x18] sm:$0xff]
      %5962 = vmatpush.msra.mxu0 0.0
      %5963 = vmatpush.msra.mxu0 0.0
      %5964 = vmatpush.msra.mxu0 0.0
      %5965 = vmatpush.msra.mxu0 0.0
      %5966 = vmatpush.msra.mxu0 0.0
      %5967 = vmatpush.msra.mxu0 0.0
      %5968 = vmatpush.msra.mxu0 0.0
      %5969 = vmatpush.msra.mxu0 0.0
      %5970 = vmatpush.msra.mxu0 0.0
      %5971 = vmatpush.msra.mxu0 0.0
      %5972 = vmatpush.msra.mxu0 0.0
      %5973 = vmatpush.msra.mxu0 0.0
      %5974 = vmatpush.msra.mxu0 %v5961
      %5975 = vmatpush.msra.mxu0 %v5960
      %5976 = vmatpush.msra.mxu0 %v5959
      %5977 = vmatpush.msra.mxu0 %v5958
      %5978 = vmatmul.f32.gmra.mxu0 %v5797
      %v5979 = vpop.f32.mrf.mxu0
      %v5980 = vadd.f32 0.0, %v5979
      %5981 = vmatmul.f32.gmra.mxu0 %v5800
      %v5982 = vpop.f32.mrf.mxu0
      %v5983 = vadd.f32 0.0, %v5982
      %5984 = vmatmul.f32.gmra.mxu0 %v5803
      %v5985 = vpop.f32.mrf.mxu0
      %v5986 = vadd.f32 0.0, %v5985
      %5987 = vmatmul.f32.gmra.mxu0 %v5806
      %v5988 = vpop.f32.mrf.mxu0
      %v5989 = vadd.f32 0.0, %v5988
      %5990 = vmatmul.f32.gmra.mxu0 %v5809
      %v5991 = vpop.f32.mrf.mxu0
      %v5992 = vadd.f32 0.0, %v5991
      %5993 = vmatmul.f32.gmra.mxu0 %v5812
      %v5994 = vpop.f32.mrf.mxu0
      %v5995 = vadd.f32 0.0, %v5994
      %5996 = vmatmul.f32.gmra.mxu0 %v5815
      %v5997 = vpop.f32.mrf.mxu0
      %v5998 = vadd.f32 0.0, %v5997
      %5999 = vmatmul.f32.gmra.mxu0 %v5818
      %v6000 = vpop.f32.mrf.mxu0
      %v6001 = vadd.f32 0.0, %v6000
      %6002 = vdwg.mxu0
      %6003 = vset.pattern.permute.xlu0 2
      %6004 = vperm.xlu0 %6003, %v5790
      %v6005 = vpop.permute.xlu0 %6004
      %6007 = vset.pattern.permute.xlu0 2
      %6008 = vperm.xlu0 %6007, %v5791
      %v6009 = vpop.permute.xlu0 %6008
      %v6011 = vmul.f32 %v5980, %v6005
      %v6012 = vmul.f32 %v5983, %v6009
      %v6013 = vmul.f32 %v5986, %v6005
      %v6014 = vmul.f32 %v5989, %v6009
      %v6015 = vmul.f32 %v5992, %v6005
      %v6016 = vmul.f32 %v5995, %v6009
      %v6017 = vmul.f32 %v5998, %v6005
      %v6018 = vmul.f32 %v6001, %v6009
      %v6019 = vadd.f32 %v5949, %v6011
      %v6020 = vadd.f32 %v5950, %v6012
      %v6021 = vadd.f32 %v5951, %v6013
      %v6022 = vadd.f32 %v5952, %v6014
      %v6023 = vadd.f32 %v5953, %v6015
      %v6024 = vadd.f32 %v5954, %v6016
      %v6025 = vadd.f32 %v5955, %v6017
      %v6026 = vadd.f32 %v5956, %v6018
      %s6027 = scalar_lea.vmem %s14, 96
      %v6028 = vld [vmem:[%s6027] sm:$0xff]
      %v6029 = vld [vmem:[%s6027 + $0x8] sm:$0xff]
      %v6030 = vld [vmem:[%s6027 + $0x10] sm:$0xff]
      %v6031 = vld [vmem:[%s6027 + $0x18] sm:$0xff]
      %6032 = vmatpush.msra.mxu0 0.0
      %6033 = vmatpush.msra.mxu0 0.0
      %6034 = vmatpush.msra.mxu0 0.0
      %6035 = vmatpush.msra.mxu0 0.0
      %6036 = vmatpush.msra.mxu0 0.0
      %6037 = vmatpush.msra.mxu0 0.0
      %6038 = vmatpush.msra.mxu0 0.0
      %6039 = vmatpush.msra.mxu0 0.0
      %6040 = vmatpush.msra.mxu0 0.0
      %6041 = vmatpush.msra.mxu0 0.0
      %6042 = vmatpush.msra.mxu0 0.0
      %6043 = vmatpush.msra.mxu0 0.0
      %6044 = vmatpush.msra.mxu0 %v6031
      %6045 = vmatpush.msra.mxu0 %v6030
      %6046 = vmatpush.msra.mxu0 %v6029
      %6047 = vmatpush.msra.mxu0 %v6028
      %6048 = vmatmul.f32.gmra.mxu0 %v5797
      %v6049 = vpop.f32.mrf.mxu0
      %v6050 = vadd.f32 0.0, %v6049
      %6051 = vmatmul.f32.gmra.mxu0 %v5800
      %v6052 = vpop.f32.mrf.mxu0
      %v6053 = vadd.f32 0.0, %v6052
      %6054 = vmatmul.f32.gmra.mxu0 %v5803
      %v6055 = vpop.f32.mrf.mxu0
      %v6056 = vadd.f32 0.0, %v6055
      %6057 = vmatmul.f32.gmra.mxu0 %v5806
      %v6058 = vpop.f32.mrf.mxu0
      %v6059 = vadd.f32 0.0, %v6058
      %6060 = vmatmul.f32.gmra.mxu0 %v5809
      %v6061 = vpop.f32.mrf.mxu0
      %v6062 = vadd.f32 0.0, %v6061
      %6063 = vmatmul.f32.gmra.mxu0 %v5812
      %v6064 = vpop.f32.mrf.mxu0
      %v6065 = vadd.f32 0.0, %v6064
      %6066 = vmatmul.f32.gmra.mxu0 %v5815
      %v6067 = vpop.f32.mrf.mxu0
      %v6068 = vadd.f32 0.0, %v6067
      %6069 = vmatmul.f32.gmra.mxu0 %v5818
      %v6070 = vpop.f32.mrf.mxu0
      %v6071 = vadd.f32 0.0, %v6070
      %6072 = vdwg.mxu0
      %6073 = vset.pattern.permute.xlu0 3
      %6074 = vperm.xlu0 %6073, %v5790
      %v6075 = vpop.permute.xlu0 %6074
      %6077 = vset.pattern.permute.xlu0 3
      %6078 = vperm.xlu0 %6077, %v5791
      %v6079 = vpop.permute.xlu0 %6078
      %v6081 = vmul.f32 %v6050, %v6075
      %v6082 = vmul.f32 %v6053, %v6079
      %v6083 = vmul.f32 %v6056, %v6075
      %v6084 = vmul.f32 %v6059, %v6079
      %v6085 = vmul.f32 %v6062, %v6075
      %v6086 = vmul.f32 %v6065, %v6079
      %v6087 = vmul.f32 %v6068, %v6075
      %v6088 = vmul.f32 %v6071, %v6079
      %v6089 = vadd.f32 %v6019, %v6081
      %v6090 = vadd.f32 %v6020, %v6082
      %v6091 = vadd.f32 %v6021, %v6083
      %v6092 = vadd.f32 %v6022, %v6084
      %v6093 = vadd.f32 %v6023, %v6085
      %v6094 = vadd.f32 %v6024, %v6086
      %v6095 = vadd.f32 %v6025, %v6087
      %v6096 = vadd.f32 %v6026, %v6088
      %v6097 = vld [vmem:[%s15] sm:$0xff]
      %6099 = vset.pattern.permute.xlu0 0
      %6100 = vperm.xlu0 %6099, %v6097
      %v6101 = vpop.permute.xlu0 %6100
      %6103 = vxpose.xlu0.b32.start [1/16] %v6089, 128
      %6104 = vxpose.xlu0.b32.cont [2/16] %v6090, 128
      %6105 = vxpose.xlu0.b32.cont [3/16] 0.0, 128
      %6106 = vxpose.xlu0.b32.cont [4/16] 0.0, 128
      %6107 = vxpose.xlu0.b32.cont [5/16] 0.0, 128
      %6108 = vxpose.xlu0.b32.cont [6/16] 0.0, 128
      %6109 = vxpose.xlu0.b32.cont [7/16] 0.0, 128
      %6110 = vxpose.xlu0.b32.cont [8/16] 0.0, 128
      %6111 = vxpose.xlu0.b32.cont [9/16] 0.0, 128
      %6112 = vxpose.xlu0.b32.cont [10/16] 0.0, 128
      %6113 = vxpose.xlu0.b32.cont [11/16] 0.0, 128
      %6114 = vxpose.xlu0.b32.cont [12/16] 0.0, 128
      %6115 = vxpose.xlu0.b32.cont [13/16] 0.0, 128
      %6116 = vxpose.xlu0.b32.cont [14/16] 0.0, 128
      %6117 = vxpose.xlu0.b32.cont [15/16] 0.0, 128
      %6118 = vxpose.xlu0.b32.end [16/16] 0.0, 128
      %v6119 = vpop.trf.xlu0
      %v6120 = vpop.trf.xlu0
      %v6121 = vpop.trf.xlu0
      %v6122 = vpop.trf.xlu0
      %v6123 = vpop.trf.xlu0
      %v6124 = vpop.trf.xlu0
      %v6125 = vpop.trf.xlu0
      %v6126 = vpop.trf.xlu0
      %v6127 = vpop.trf.xlu0
      %v6128 = vpop.trf.xlu0
      %v6129 = vpop.trf.xlu0
      %v6130 = vpop.trf.xlu0
      %v6131 = vpop.trf.xlu0
      %v6132 = vpop.trf.xlu0
      %v6133 = vpop.trf.xlu0
      %v6134 = vpop.trf.xlu0
      %6135 = vxpose.xlu0.b32.start [1/16] %v6091, 128
      %6136 = vxpose.xlu0.b32.cont [2/16] %v6092, 128
      %6137 = vxpose.xlu0.b32.cont [3/16] 0.0, 128
      %6138 = vxpose.xlu0.b32.cont [4/16] 0.0, 128
      %6139 = vxpose.xlu0.b32.cont [5/16] 0.0, 128
      %6140 = vxpose.xlu0.b32.cont [6/16] 0.0, 128
      %6141 = vxpose.xlu0.b32.cont [7/16] 0.0, 128
      %6142 = vxpose.xlu0.b32.cont [8/16] 0.0, 128
      %6143 = vxpose.xlu0.b32.cont [9/16] 0.0, 128
      %6144 = vxpose.xlu0.b32.cont [10/16] 0.0, 128
      %6145 = vxpose.xlu0.b32.cont [11/16] 0.0, 128
      %6146 = vxpose.xlu0.b32.cont [12/16] 0.0, 128
      %6147 = vxpose.xlu0.b32.cont [13/16] 0.0, 128
      %6148 = vxpose.xlu0.b32.cont [14/16] 0.0, 128
      %6149 = vxpose.xlu0.b32.cont [15/16] 0.0, 128
      %6150 = vxpose.xlu0.b32.end [16/16] 0.0, 128
      %v6151 = vpop.trf.xlu0
      %v6152 = vpop.trf.xlu0
      %v6153 = vpop.trf.xlu0
      %v6154 = vpop.trf.xlu0
      %v6155 = vpop.trf.xlu0
      %v6156 = vpop.trf.xlu0
      %v6157 = vpop.trf.xlu0
      %v6158 = vpop.trf.xlu0
      %v6159 = vpop.trf.xlu0
      %v6160 = vpop.trf.xlu0
      %v6161 = vpop.trf.xlu0
      %v6162 = vpop.trf.xlu0
      %v6163 = vpop.trf.xlu0
      %v6164 = vpop.trf.xlu0
      %v6165 = vpop.trf.xlu0
      %v6166 = vpop.trf.xlu0
      %6167 = vxpose.xlu0.b32.start [1/16] %v6093, 128
      %6168 = vxpose.xlu0.b32.cont [2/16] %v6094, 128
      %6169 = vxpose.xlu0.b32.cont [3/16] 0.0, 128
      %6170 = vxpose.xlu0.b32.cont [4/16] 0.0, 128
      %6171 = vxpose.xlu0.b32.cont [5/16] 0.0, 128
      %6172 = vxpose.xlu0.b32.cont [6/16] 0.0, 128
      %6173 = vxpose.xlu0.b32.cont [7/16] 0.0, 128
      %6174 = vxpose.xlu0.b32.cont [8/16] 0.0, 128
      %6175 = vxpose.xlu0.b32.cont [9/16] 0.0, 128
      %6176 = vxpose.xlu0.b32.cont [10/16] 0.0, 128
      %6177 = vxpose.xlu0.b32.cont [11/16] 0.0, 128
      %6178 = vxpose.xlu0.b32.cont [12/16] 0.0, 128
      %6179 = vxpose.xlu0.b32.cont [13/16] 0.0, 128
      %6180 = vxpose.xlu0.b32.cont [14/16] 0.0, 128
      %6181 = vxpose.xlu0.b32.cont [15/16] 0.0, 128
      %6182 = vxpose.xlu0.b32.end [16/16] 0.0, 128
      %v6183 = vpop.trf.xlu0
      %v6184 = vpop.trf.xlu0
      %v6185 = vpop.trf.xlu0
      %v6186 = vpop.trf.xlu0
      %v6187 = vpop.trf.xlu0
      %v6188 = vpop.trf.xlu0
      %v6189 = vpop.trf.xlu0
      %v6190 = vpop.trf.xlu0
      %v6191 = vpop.trf.xlu0
      %v6192 = vpop.trf.xlu0
      %v6193 = vpop.trf.xlu0
      %v6194 = vpop.trf.xlu0
      %v6195 = vpop.trf.xlu0
      %v6196 = vpop.trf.xlu0
      %v6197 = vpop.trf.xlu0
      %v6198 = vpop.trf.xlu0
      %6199 = vxpose.xlu0.b32.start [1/16] %v6095, 128
      %6200 = vxpose.xlu0.b32.cont [2/16] %v6096, 128
      %6201 = vxpose.xlu0.b32.cont [3/16] 0.0, 128
      %6202 = vxpose.xlu0.b32.cont [4/16] 0.0, 128
      %6203 = vxpose.xlu0.b32.cont [5/16] 0.0, 128
      %6204 = vxpose.xlu0.b32.cont [6/16] 0.0, 128
      %6205 = vxpose.xlu0.b32.cont [7/16] 0.0, 128
      %6206 = vxpose.xlu0.b32.cont [8/16] 0.0, 128
      %6207 = vxpose.xlu0.b32.cont [9/16] 0.0, 128
      %6208 = vxpose.xlu0.b32.cont [10/16] 0.0, 128
      %6209 = vxpose.xlu0.b32.cont [11/16] 0.0, 128
      %6210 = vxpose.xlu0.b32.cont [12/16] 0.0, 128
      %6211 = vxpose.xlu0.b32.cont [13/16] 0.0, 128
      %6212 = vxpose.xlu0.b32.cont [14/16] 0.0, 128
      %6213 = vxpose.xlu0.b32.cont [15/16] 0.0, 128
      %6214 = vxpose.xlu0.b32.end [16/16] 0.0, 128
      %v6215 = vpop.trf.xlu0
      %v6216 = vpop.trf.xlu0
      %v6217 = vpop.trf.xlu0
      %v6218 = vpop.trf.xlu0
      %v6219 = vpop.trf.xlu0
      %v6220 = vpop.trf.xlu0
      %v6221 = vpop.trf.xlu0
      %v6222 = vpop.trf.xlu0
      %v6223 = vpop.trf.xlu0
      %v6224 = vpop.trf.xlu0
      %v6225 = vpop.trf.xlu0
      %v6226 = vpop.trf.xlu0
      %v6227 = vpop.trf.xlu0
      %v6228 = vpop.trf.xlu0
      %v6229 = vpop.trf.xlu0
      %v6230 = vpop.trf.xlu0
      %v6232 = vsel %vm585, %v6119, 0
      %v6235 = vsel %vm585, %v6151, 0
      %v6238 = vsel %vm585, %v6183, 0
      %v6241 = vsel %vm585, %v6215, 0
      %6243 = vmatpush.msra.mxu0 0.0
      %6244 = vmatpush.msra.mxu0 0.0
      %6245 = vmatpush.msra.mxu0 0.0
      %6246 = vmatpush.msra.mxu0 0.0
      %6247 = vmatpush.msra.mxu0 0.0
      %6248 = vmatpush.msra.mxu0 0.0
      %6249 = vmatpush.msra.mxu0 0.0
      %6250 = vmatpush.msra.mxu0 0.0
      %6251 = vmatpush.msra.mxu0 0.0
      %6252 = vmatpush.msra.mxu0 0.0
      %6253 = vmatpush.msra.mxu0 0.0
      %6254 = vmatpush.msra.mxu0 0.0
      %6255 = vmatpush.msra.mxu0 0.0
      %6256 = vmatpush.msra.mxu0 0.0
      %6257 = vmatpush.msra.mxu0 %v529
      %6258 = vmatpush.msra.mxu0 %v528
      %6259 = vmatmul.f32.gmra.mxu0 %v6232
      %v6260 = vpop.f32.mrf.mxu0
      %v6261 = vadd.f32 %v6101, %v6260
      %6262 = vmatmul.f32.gmra.mxu0 %v6235
      %v6263 = vpop.f32.mrf.mxu0
      %v6264 = vadd.f32 %v6101, %v6263
      %6265 = vmatmul.f32.gmra.mxu0 %v6238
      %v6266 = vpop.f32.mrf.mxu0
      %v6267 = vadd.f32 %v6101, %v6266
      %6268 = vmatmul.f32.gmra.mxu0 %v6241
      %v6269 = vpop.f32.mrf.mxu0
      %v6270 = vadd.f32 %v6101, %v6269
      %6271 = vdwg.mxu0
      %v6272 = vrot.slane %v788, 1
      %v6273 = vrot.slane %v788, 2
      %v6274 = vrot.slane %v788, 3
      %v6275 = vperm.slane %v788, 0
      %v6276 = vperm.slane %v6272, 0
      %v6277 = vperm.slane %v6273, 0
      %v6278 = vperm.slane %v6274, 0
      %v6283 = vmul.f32 %v6261, %v6275
      %v6284 = vmul.f32 %v6264, %v6276
      %v6285 = vmul.f32 %v6267, %v6277
      %v6286 = vmul.f32 %v6270, %v6278
      %v6287 = vrot.slane %v608, 1
      %v6288 = vrot.slane %v608, 2
      %v6289 = vrot.slane %v608, 3
      %v6290 = vperm.slane %v608, 0
      %v6291 = vperm.slane %v6287, 0
      %v6292 = vperm.slane %v6288, 0
      %v6293 = vperm.slane %v6289, 0
      %v6298 = vadd.f32 %v6283, %v6290
      %v6299 = vadd.f32 %v6284, %v6291
      %v6300 = vadd.f32 %v6285, %v6292
      %v6301 = vadd.f32 %v6286, %v6293
      %v6302 = vrot.slane %v6300, 4
      %vm6303 = vcmask 1047556
      %v6304 = vsel %vm6303, %v6302, %v6298
      %v6305 = vrot.slane %v6298, 4
      %v6306 = vsel %vm6303, %v6300, %v6305
      %v6308 = vunpack.c.l.s4 1983009808
      %v6309 = vunpack.c.0.s8 %v6308
      %v6310 = vperm.slane %v6304, %v6309
      %v6312 = vunpack.c.l.s4 1983009808
      %v6313 = vunpack.c.0.s8 %v6312
      %v6314 = vperm.slane %v6306, %v6313
      %v6315 = vrot.slane %v6301, 4
      %v6316 = vsel %vm6303, %v6315, %v6299
      %v6317 = vrot.slane %v6299, 4
      %v6318 = vsel %vm6303, %v6301, %v6317
      %v6320 = vunpack.c.l.s4 1983009808
      %v6321 = vunpack.c.0.s8 %v6320
      %v6322 = vperm.slane %v6316, %v6321
      %v6324 = vunpack.c.l.s4 1983009808
      %v6325 = vunpack.c.0.s8 %v6324
      %v6326 = vperm.slane %v6318, %v6325
      %v6327 = vrot.slane %v6322, 4
      %v6328 = vsel %vm6303, %v6327, %v6310
      %v6329 = vrot.slane %v6310, 4
      %v6330 = vsel %vm6303, %v6322, %v6329
      %v6332 = vunpack.c.l.s4 1934713408
      %v6333 = vunpack.c.0.s8 %v6332
      %v6334 = vperm.slane %v6328, %v6333
      %v6336 = vunpack.c.l.s4 1934713408
      %v6337 = vunpack.c.0.s8 %v6336
      %v6338 = vperm.slane %v6330, %v6337
      %v6339 = vrot.slane %v6326, 4
      %v6340 = vsel %vm6303, %v6339, %v6314
      %v6341 = vrot.slane %v6314, 4
      %v6342 = vsel %vm6303, %v6326, %v6341
      %v6344 = vunpack.c.l.s4 1934713408
      %v6345 = vunpack.c.0.s8 %v6344
      %v6346 = vperm.slane %v6340, %v6345
      %v6348 = vunpack.c.l.s4 1934713408
      %v6349 = vunpack.c.0.s8 %v6348
      %v6350 = vperm.slane %v6342, %v6349
      %v6351 = vrot.slane %v6334, 4
      %v6352 = vsel %vm6303, 0.0, %v6351
      %v6353 = vrot.slane %v6338, 4
      %v6354 = vsel %vm6303, 0.0, %v6353
      %v6355 = vrot.slane %v6346, 4
      %v6356 = vsel %vm6303, 0.0, %v6355
      %v6357 = vrot.slane %v6350, 4
      %v6358 = vsel %vm6303, 0.0, %v6357
      %6360 = vrot.lane.b32.xlu0 %v6352, 4
      %v6361 = vpop.permute.xlu0 %6360
      %6364 = vrot.lane.b32.xlu0 %v6338, 8
      %v6365 = vpop.permute.xlu0 %6364
      %6368 = vrot.lane.b32.xlu0 %v6354, 12
      %v6369 = vpop.permute.xlu0 %6368
      %6372 = vrot.lane.b32.xlu0 %v6346, 16
      %v6373 = vpop.permute.xlu0 %6372
      %6376 = vrot.lane.b32.xlu0 %v6356, 20
      %v6377 = vpop.permute.xlu0 %6376
      %6380 = vrot.lane.b32.xlu0 %v6350, 24
      %v6381 = vpop.permute.xlu0 %6380
      %6384 = vrot.lane.b32.xlu0 %v6358, 28
      %v6385 = vpop.permute.xlu0 %6384
      %v6387 = vsel %vm530, %v6334, %v6361
      %v6388 = vsel %vm1137, %v6387, %v6365
      %vm6389 = vcmask 97280
      %v6390 = vsel %vm6389, %v6388, %v6369
      %v6391 = vsel %vm585, %v6390, %v6373
      %vm6392 = vcmask 162816
      %v6393 = vsel %vm6392, %v6391, %v6377
      %v6394 = vsel %vm2772, %v6393, %v6381
      %vm6395 = vcmask 228352
      %v6396 = vsel %vm6395, %v6394, %v6385
      %vm6397 = vcmask 257024
      %6398 = vst.msk [vmem:[%s519] sm:$0xf] %vm6397, %v6396
      %p6399 = scmp.lt.s32.totalorder %s27, 1
      %s6400 = scalar_select %p6399, %s27, 1
      %s6401 = smul.addr %s6400, 4
      %s6402 = scalar_lea.vmem %s16, %s6401
      // Predicated region
      $region85: #{fwd.1} parent=83 // pred_check
        %p6403 = pneg %p386
      $region86: #{fwd.1} parent=83 // pred_check_branch
        %6405 = sbr.rel (%p6403) target = $region88
      $region87: #{fwd.1} parent=83 // pred_region
        _
      $region88: #{fwd.1} parent=83 // pred_fallthru
        _
    $region84: #{fwd.1} parent=5 // pred_fallthru
      _
    %p6406 = scmp.le.s32.totalorder 2, %s22
    // Predicated region
    $region89: #{fwd.1} parent=5 // pred_check
      %p6407 = pneg %p6406
    $region90: #{fwd.1} parent=5 // pred_check_branch
      %6409 = sbr.rel (%p6407) target = $region92
    $region91: #{fwd.1} parent=5 // pred_region
      %s6410 = ssub.s32 %s22, 2
      // Predicated region
      $region93: #{fwd.1} parent=91 // pred_check
        %p6411 = pneg %p392
      $region94: #{fwd.1} parent=91 // pred_check_branch
        %6413 = sbr.rel (%p6411) target = $region96
      $region95: #{fwd.1} parent=91 // pred_region
        %p6414 = scmp.lt.s32.totalorder %s28, 1
        %s6415 = scalar_select %p6414, %s28, 1
        %s6416 = smul.addr %s6415, 4
        %s6417 = scalar_lea.vmem %s16, %s6416
      $region96: #{fwd.1} parent=91 // pred_fallthru
        _
    $region92: #{fwd.1} parent=5 // pred_fallthru
      _
  $region6: #{fwd.1} parent=0 // loop_footer
    %s26 = sadd.s32 1, %s22
  $region7: #{fwd.1} parent=0 // loop_footer_branch
    %21 = sbr.rel target = $region3
  $region8: #{fwd.1} parent=0 // loop_exit
    _

</llo_original>
